<compile_context>
chip_gen: v7x
topology: tpu7x:2x2x1
jax: 0.10.0
libtpu: 0.0.40
codegen_flags: <defaults>
</compile_context>

<pallas_src>
import math

import jax
import jax.numpy as jnp
from jax.experimental import pallas as pl
from jax.experimental.pallas import tpu as pltpu

# ----------------------------------------------------------------------------
# Model dimensions.
# ----------------------------------------------------------------------------
GLOBAL_DIM = 32
LOCAL_DIM = 16
NUM_HEADS = 8
BATCH = 2
SEQ = 8                      # global / local sequence lengths must match
LN_EPS = 1e-5

G, L, H = GLOBAL_DIM, LOCAL_DIM, NUM_HEADS
B, S = BATCH, SEQ
BS = B * S                   # batch-flattened token count           (16)
D2 = 2 * G                   # self-attention embed dim              (64)
DO = G + L                   # final linear / LayerNorm dim          (48)
DH1 = G // H                 # head dim of the two cross-attentions   (4)
DH3 = D2 // H                # head dim of the self-attention          (8)

# ----------------------------------------------------------------------------
# Parameter-slab layout (two tightly packed 2-D arrays; section starts are
# sublane-aligned where it is free to do so).
#
# slab A : (A_ROWS, 192)  — everything that is naturally 96/192 lanes wide.
# slab B : (B_ROWS, 64)   — everything that is naturally 32/48/64 lanes wide.
# ----------------------------------------------------------------------------
A_COLS = 3 * D2              # 192
A_W3A = 0                    # (G, 192)  self-attn [q3|k3|v3] weight rows hit by a1
A_W3B = A_W3A + G            # (G, 192)  rows hit by a2
A_B3 = A_W3B + G             # (1, 192)  self-attn qkv bias
A_WGL = 72                   # (G, 192)  [ global->[k1|v1|q2] | adj_local->[q1|k2|v2] ]
A_BGL = A_WGL + G            # (1, 192)  the two fused projection biases
A_ROWS = 112                 # 105 used, padded to a multiple of 8

B_COLS = D2                  # 64
B_WO3 = 0                    # (D2, D2)  self-attn out-proj
B_WF = B_WO3 + D2            # (D2, DO)  final_linear (lane-padded to 64)
B_WO12 = B_WF + D2           # (G, 2G)   [Wo1 | Wo2]  cross-attn out-projs
B_WAL = B_WO12 + G           # (L, G)    adjust_local_dim weight
B_BAL = 176                  # (1, G)    adjust_local_dim bias
B_BO12 = 177                 # (1, 2G)   [bo1 | bo2]
B_BO3 = 178                  # (1, D2)
B_BF = 179                   # (1, DO)
B_GAMMA = 180                # (1, DO)
B_BETA = 181                 # (1, DO)
B_ROWS = 184                 # 182 used, padded to a multiple of 8


def _mm(a, b):
    # DEFAULT matmul precision (review item 1): bf16 MXU passes, f32 accumulate.
    return jnp.dot(a, b, preferred_element_type=jnp.float32)


def _mm_nt(a, b):
    # a @ b.T without materializing the transpose.
    return jax.lax.dot_general(a, b, (((1,), (1,)), ((), ())),
                               preferred_element_type=jnp.float32)


# ----------------------------------------------------------------------------
# Kernel (runs once; no grid).
# ----------------------------------------------------------------------------
def fused_kernel(g_ref, l_ref, wa_ref, wb_ref, out_ref):
    g = g_ref[...]               # (BS, G)  batch-flattened global features
    loc = l_ref[...]             # (BS, L)  batch-flattened local features

    # Block-diagonal batch mask: flattened token i may attend to token j only
    # if both belong to the same batch element.  Built from iota + compares
    # (no integer division) and reused by every head of every attention.
    rows = jax.lax.broadcasted_iota(jnp.int32, (BS, BS), 0)
    cols = jax.lax.broadcasted_iota(jnp.int32, (BS, BS), 1)
    rb = jnp.zeros((BS, BS), jnp.int32)
    cb = jnp.zeros((BS, BS), jnp.int32)
    for b in range(1, B):
        rb = rb + jnp.where(rows >= b * S, 1, 0)
        cb = cb + jnp.where(cols >= b * S, 1, 0)
    bmask = jnp.where(rb == cb, 1.0, 0.0)                        # (BS, BS)

    def mha(q, k, v, wo, bo, dh):
        """nn.MultiheadAttention core on batch-flattened (BS, E) q/k/v.

        Heads are contiguous dh-column groups (torch layout).  One score and
        one context matmul per head cover BOTH batch elements (cross-batch
        pairs are zeroed by bmask before normalization); the head merge is a
        lane concat folded through a single (BS,E)@(E,E) out-proj matmul.
        """
        nheads = q.shape[-1] // dh
        scale = 1.0 / math.sqrt(dh)
        ctx = []
        for h in range(nheads):
            sl = slice(h * dh, (h + 1) * dh)
            s = _mm_nt(q[:, sl], k[:, sl]) * scale               # (BS, BS)
            # No max-subtraction (review item 5): scores here are O(1)-bounded
            # and softmax is shift-invariant; exp cannot overflow.
            p = jnp.exp(s) * bmask
            denom = jnp.sum(p, axis=-1, keepdims=True)           # (BS, 1)
            ctx.append(_mm(p, v[:, sl]) / denom)                 # (BS, dh)
        return _mm(jnp.concatenate(ctx, axis=-1), wo) + bo       # (BS, E)

    # ---- adjust_local_dim: Linear(L -> G).  (adjust_global_dim is computed
    #      but never consumed by the PyTorch forward, so it is omitted.)
    adj_l = _mm(loc, wb_ref[B_WAL:B_WAL + L, 0:G]) + \
        wb_ref[B_BAL:B_BAL + 1, 0:G]                             # (BS, G)

    # ---- two fused, full-width projections (one MXU matmul each):
    #      global    -> [k1 | v1 | q2]     adj-local -> [q1 | k2 | v2]
    g_proj = _mm(g, wa_ref[A_WGL:A_WGL + G, 0:3 * G]) + \
        wa_ref[A_BGL:A_BGL + 1, 0:3 * G]                         # (BS, 96)
    l_proj = _mm(adj_l, wa_ref[A_WGL:A_WGL + G, 3 * G:6 * G]) + \
        wa_ref[A_BGL:A_BGL + 1, 3 * G:6 * G]                     # (BS, 96)

    # ---- global_to_local_attention(query=adjusted_local, key=value=global)
    a1 = mha(l_proj[:, 0:G], g_proj[:, 0:G], g_proj[:, G:2 * G],
             wb_ref[B_WO12:B_WO12 + G, 0:G],
             wb_ref[B_BO12:B_BO12 + 1, 0:G], DH1)
    # ---- local_to_global_attention(query=global, key=value=adjusted_local)
    a2 = mha(g_proj[:, 2 * G:3 * G], l_proj[:, G:2 * G], l_proj[:, 2 * G:3 * G],
             wb_ref[B_WO12:B_WO12 + G, G:2 * G],
             wb_ref[B_BO12:B_BO12 + 1, G:2 * G], DH1)

    # ---- self_attention on concat([a1, a2]); the concat never materializes:
    #      the qkv weight is split into its a1 / a2 row blocks.
    qkv3 = (_mm(a1, wa_ref[A_W3A:A_W3A + G, :]) +
            _mm(a2, wa_ref[A_W3B:A_W3B + G, :]) +
            wa_ref[A_B3:A_B3 + 1, :])                            # (BS, 192)
    a3 = mha(qkv3[:, 0:D2], qkv3[:, D2:2 * D2], qkv3[:, 2 * D2:3 * D2],
             wb_ref[B_WO3:B_WO3 + D2, 0:D2],
             wb_ref[B_BO3:B_BO3 + 1, 0:D2], DH3)

    # ---- final_linear (2G -> G+L) + LayerNorm(eps=1e-5, affine)
    y = _mm(a3, wb_ref[B_WF:B_WF + D2, 0:DO]) + wb_ref[B_BF:B_BF + 1, 0:DO]
    mean = jnp.mean(y, axis=-1, keepdims=True)
    var = jnp.mean((y - mean) ** 2, axis=-1, keepdims=True)
    yn = (y - mean) * jax.lax.rsqrt(var + LN_EPS)
    out = yn * wb_ref[B_GAMMA:B_GAMMA + 1, 0:DO] + \
        wb_ref[B_BETA:B_BETA + 1, 0:DO]
    out_ref[...] = out.astype(out_ref.dtype)        # single (BS, DO) store


def esam_forward(global_features, local_features, slab_a, slab_b):
    b, s, gd = global_features.shape
    ld = local_features.shape[-1]
    do = gd + ld
    # Collapse batch wrapper-side (free reshape) -> one gridless kernel call.
    g2d = global_features.reshape(b * s, gd)
    l2d = local_features.reshape(b * s, ld)
    vmem = pl.BlockSpec(memory_space=pltpu.MemorySpace.VMEM)
    out2d = pl.pallas_call(
        fused_kernel,
        out_shape=jax.ShapeDtypeStruct((b * s, do), jnp.float32),
        in_specs=[vmem, vmem, vmem, vmem],
        out_specs=vmem,
    )(g2d, l2d, slab_a, slab_b)
    return out2d.reshape(b, s, do)


# ----------------------------------------------------------------------------
# Synthetic parameters (PyTorch Linear weights stored transposed as (in, out)),
# wrapper-side slab packing, and an independently-structured JAX reference.
# ----------------------------------------------------------------------------
def init_params(key):
    keys = iter(jax.random.split(key, 40))

    def w(shape, scale=0.2):
        return (scale * jax.random.normal(next(keys), shape)).astype(jnp.float32)

    def mha_params(E):
        return dict(wq=w((E, E)), wk=w((E, E)), wv=w((E, E)),
                    bq=w((E,), 0.05), bk=w((E,), 0.05), bv=w((E,), 0.05),
                    wo=w((E, E)), bo=w((E,), 0.05))

    return dict(
        w_al=w((L, G)), b_al=w((G,), 0.05),
        # adjust_global_dim exists in the module but is dead in forward().
        w_ag=w((G, L)), b_ag=w((L,), 0.05),
        attn1=mha_params(G), attn2=mha_params(G), attn3=mha_params(D2),
        wf=w((D2, DO)), bf=w((DO,), 0.05),
        gamma=(1.0 + w((DO,), 0.05)).astype(jnp.float32),
        beta=w((DO,), 0.05),
    )


def pack_params(p):
    """Pack all live parameters into the two kernel slabs."""
    a1, a2, a3 = p['attn1'], p['attn2'], p['attn3']

    wg = jnp.concatenate([a1['wk'], a1['wv'], a2['wq']], axis=1)   # (G, 96)
    bg = jnp.concatenate([a1['bk'], a1['bv'], a2['bq']])           # (96,)
    wl = jnp.concatenate([a1['wq'], a2['wk'], a2['wv']], axis=1)   # (G, 96)
    bl = jnp.concatenate([a1['bq'], a2['bk'], a2['bv']])           # (96,)
    w3 = jnp.concatenate([a3['wq'], a3['wk'], a3['wv']], axis=1)   # (D2, 192)
    b3 = jnp.concatenate([a3['bq'], a3['bk'], a3['bv']])           # (192,)

    slab_a = jnp.zeros((A_ROWS, A_COLS), jnp.float32)
    slab_a = slab_a.at[A_W3A:A_W3A + G, :].set(w3[:G])
    slab_a = slab_a.at[A_W3B:A_W3B + G, :].set(w3[G:])
    slab_a = slab_a.at[A_B3, :].set(b3)
    slab_a = slab_a.at[A_WGL:A_WGL + G, 0:3 * G].set(wg)
    slab_a = slab_a.at[A_WGL:A_WGL + G, 3 * G:6 * G].set(wl)
    slab_a = slab_a.at[A_BGL, 0:3 * G].set(bg)
    slab_a = slab_a.at[A_BGL, 3 * G:6 * G].set(bl)

    slab_b = jnp.zeros((B_ROWS, B_COLS), jnp.float32)
    slab_b = slab_b.at[B_WO3:B_WO3 + D2, :].set(a3['wo'])
    slab_b = slab_b.at[B_WF:B_WF + D2, 0:DO].set(p['wf'])
    slab_b = slab_b.at[B_WO12:B_WO12 + G, 0:G].set(a1['wo'])
    slab_b = slab_b.at[B_WO12:B_WO12 + G, G:2 * G].set(a2['wo'])
    slab_b = slab_b.at[B_WAL:B_WAL + L, 0:G].set(p['w_al'])
    slab_b = slab_b.at[B_BAL, 0:G].set(p['b_al'])
    slab_b = slab_b.at[B_BO12, 0:G].set(a1['bo'])
    slab_b = slab_b.at[B_BO12, G:2 * G].set(a2['bo'])
    slab_b = slab_b.at[B_BO3, 0:D2].set(a3['bo'])
    slab_b = slab_b.at[B_BF, 0:DO].set(p['bf'])
    slab_b = slab_b.at[B_GAMMA, 0:DO].set(p['gamma'])
    slab_b = slab_b.at[B_BETA, 0:DO].set(p['beta'])
    return slab_a, slab_b


def _ref_mha(q_in, k_in, v_in, p, num_heads):
    """Straightforward per-head nn.MultiheadAttention math (dropout=0)."""
    E = p['wq'].shape[1]
    dh = E // num_heads
    q = _mm(q_in, p['wq']) + p['bq']
    k = _mm(k_in, p['wk']) + p['bk']
    v = _mm(v_in, p['wv']) + p['bv']
    outs = []
    for h in range(num_heads):
        sl = slice(h * dh, (h + 1) * dh)
        s = _mm(q[:, sl], k[:, sl].T) / math.sqrt(dh)
        outs.append(_mm(jax.nn.softmax(s, axis=-1), v[:, sl]))
    return _mm(jnp.concatenate(outs, axis=-1), p['wo']) + p['bo']


def reference(global_features, local_features, params):
    """Differently-structured pure-JAX model of the PyTorch forward."""
    def single(g, loc):
        adj_l = _mm(loc, params['w_al']) + params['b_al']
        a1 = _ref_mha(adj_l, g, g, params['attn1'], H)
        a2 = _ref_mha(g, adj_l, adj_l, params['attn2'], H)
        cat = jnp.concatenate([a1, a2], axis=-1)
        a3 = _ref_mha(cat, cat, cat, params['attn3'], H)
        y = _mm(a3, params['wf']) + params['bf']
        mean = jnp.mean(y, axis=-1, keepdims=True)
        var = jnp.mean((y - mean) ** 2, axis=-1, keepdims=True)
        return ((y - mean) * jax.lax.rsqrt(var + LN_EPS)
                * params['gamma'] + params['beta'])
    return jax.vmap(single)(global_features, local_features)


if __name__ == "__main__":
    key = jax.random.PRNGKey(0)
    k_g, k_l, k_p = jax.random.split(key, 3)
    gf = jax.random.normal(k_g, (BATCH, SEQ, GLOBAL_DIM), dtype=jnp.float32)
    lf = jax.random.normal(k_l, (BATCH, SEQ, LOCAL_DIM), dtype=jnp.float32)
    params = init_params(k_p)
    slab_a, slab_b = pack_params(params)

    out = esam_forward(gf, lf, slab_a, slab_b)
    jax.block_until_ready(out)
    assert out.shape == (BATCH, SEQ, GLOBAL_DIM + LOCAL_DIM), out.shape

    ref = reference(gf, lf, params)
    err = float(jnp.max(jnp.abs(out - ref)))
    # Both kernel and reference use DEFAULT matmul precision, so the expected
    # disagreement is ~1e-5 (accumulation-order only).  The bound below also
    # absorbs the case where Mosaic and XLA realize DEFAULT f32 matmuls with
    # different pass counts (bf16 input rounding x LayerNorm gain ~ 1e-2 worst
    # case); packing / fusion bugs would show up as O(0.1-1) errors.
    assert err < 2e-2, f"kernel/reference mismatch: max abs err = {err}"
    print("KERNEL_OK")
</pallas_src>

<mosaic_0001>
module attributes {stable_mosaic.version = 11 : i64} {
  func.func @fused_kernel(%arg0: memref<16x32xf32, #tpu.memory_space<vmem>>, %arg1: memref<16x16xf32, #tpu.memory_space<vmem>>, %arg2: memref<112x192xf32, #tpu.memory_space<vmem>>, %arg3: memref<184x64xf32, #tpu.memory_space<vmem>>, %arg4: memref<16x48xf32, #tpu.memory_space<vmem>>) attributes {dimension_semantics = [], scalar_prefetch = 0 : i64, scratch_operands = 0 : i64, tpu.core_type = #tpu.core_type<tc>} {
    %c0 = arith.constant 0 : index
    %c0_0 = arith.constant 0 : index
    %0 = vector.load %arg0[%c0, %c0_0] : memref<16x32xf32, #tpu.memory_space<vmem>>, vector<16x32xf32>
    %c0_1 = arith.constant 0 : index
    %c0_2 = arith.constant 0 : index
    %1 = vector.load %arg1[%c0_1, %c0_2] : memref<16x16xf32, #tpu.memory_space<vmem>>, vector<16x16xf32>
    %2 = tpu.iota {dimensions = array<i32: 0>} : vector<16x16xi32>
    %3 = tpu.iota {dimensions = array<i32: 1>} : vector<16x16xi32>
    %c0_i32 = arith.constant 0 : i32
    %4 = vector.broadcast %c0_i32 : i32 to vector<16x16xi32>
    %c0_i32_3 = arith.constant 0 : i32
    %5 = vector.broadcast %c0_i32_3 : i32 to vector<16x16xi32>
    %c8_i32 = arith.constant 8 : i32
    %6 = vector.broadcast %c8_i32 : i32 to vector<16x16xi32>
    %7 = arith.cmpi sge, %2, %6 : vector<16x16xi32>
    %c1_i32 = arith.constant 1 : i32
    %c0_i32_4 = arith.constant 0 : i32
    %8 = vector.broadcast %c1_i32 : i32 to vector<16x16xi32>
    %9 = vector.broadcast %c0_i32_4 : i32 to vector<16x16xi32>
    %10 = arith.select %7, %8, %9 : vector<16x16xi1>, vector<16x16xi32>
    %11 = arith.addi %4, %10 : vector<16x16xi32>
    %c8_i32_5 = arith.constant 8 : i32
    %12 = vector.broadcast %c8_i32_5 : i32 to vector<16x16xi32>
    %13 = arith.cmpi sge, %3, %12 : vector<16x16xi32>
    %c1_i32_6 = arith.constant 1 : i32
    %c0_i32_7 = arith.constant 0 : i32
    %14 = vector.broadcast %c1_i32_6 : i32 to vector<16x16xi32>
    %15 = vector.broadcast %c0_i32_7 : i32 to vector<16x16xi32>
    %16 = arith.select %13, %14, %15 : vector<16x16xi1>, vector<16x16xi32>
    %17 = arith.addi %5, %16 : vector<16x16xi32>
    %18 = arith.cmpi eq, %11, %17 : vector<16x16xi32>
    %cst = arith.constant 1.000000e+00 : f32
    %cst_8 = arith.constant 0.000000e+00 : f32
    %19 = vector.broadcast %cst : f32 to vector<16x16xf32>
    %20 = vector.broadcast %cst_8 : f32 to vector<16x16xf32>
    %21 = arith.select %18, %19, %20 : vector<16x16xi1>, vector<16x16xf32>
    %c160 = arith.constant 160 : index
    %c0_9 = arith.constant 0 : index
    %22 = vector.load %arg3[%c160, %c0_9] : memref<184x64xf32, #tpu.memory_space<vmem>>, vector<16x32xf32>
    %cst_10 = arith.constant dense<0.000000e+00> : vector<16x32xf32>
    %23 = tpu.matmul %1, %22, %cst_10 {dimension_numbers = #tpu.dot_dimension_numbers<[1], [0], [0], [1], [0, 0, 1, 1], [], []>} : vector<16x16xf32>, vector<16x32xf32>, vector<16x32xf32> -> vector<16x32xf32>
    %c176 = arith.constant 176 : index
    %c0_11 = arith.constant 0 : index
    %24 = vector.load %arg3[%c176, %c0_11] : memref<184x64xf32, #tpu.memory_space<vmem>>, vector<1x32xf32>
    %25 = vector.broadcast %24 : vector<1x32xf32> to vector<16x32xf32>
    %26 = arith.addf %23, %25 : vector<16x32xf32>
    %c72 = arith.constant 72 : index
    %c0_12 = arith.constant 0 : index
    %27 = vector.load %arg2[%c72, %c0_12] : memref<112x192xf32, #tpu.memory_space<vmem>>, vector<32x96xf32>
    %cst_13 = arith.constant dense<0.000000e+00> : vector<16x96xf32>
    %28 = tpu.matmul %0, %27, %cst_13 {dimension_numbers = #tpu.dot_dimension_numbers<[1], [0], [0], [1], [0, 0, 1, 1], [], []>} : vector<16x32xf32>, vector<32x96xf32>, vector<16x96xf32> -> vector<16x96xf32>
    %c104 = arith.constant 104 : index
    %c0_14 = arith.constant 0 : index
    %29 = vector.load %arg2[%c104, %c0_14] : memref<112x192xf32, #tpu.memory_space<vmem>>, vector<1x96xf32>
    %30 = vector.broadcast %29 : vector<1x96xf32> to vector<16x96xf32>
    %31 = arith.addf %28, %30 : vector<16x96xf32>
    %c72_15 = arith.constant 72 : index
    %c96 = arith.constant 96 : index
    %32 = vector.load %arg2[%c72_15, %c96] : memref<112x192xf32, #tpu.memory_space<vmem>>, vector<32x96xf32>
    %cst_16 = arith.constant dense<0.000000e+00> : vector<16x96xf32>
    %33 = tpu.matmul %26, %32, %cst_16 {dimension_numbers = #tpu.dot_dimension_numbers<[1], [0], [0], [1], [0, 0, 1, 1], [], []>} : vector<16x32xf32>, vector<32x96xf32>, vector<16x96xf32> -> vector<16x96xf32>
    %c104_17 = arith.constant 104 : index
    %c96_18 = arith.constant 96 : index
    %34 = vector.load %arg2[%c104_17, %c96_18] : memref<112x192xf32, #tpu.memory_space<vmem>>, vector<1x96xf32>
    %35 = vector.broadcast %34 : vector<1x96xf32> to vector<16x96xf32>
    %36 = arith.addf %33, %35 : vector<16x96xf32>
    %37 = vector.extract_strided_slice %36 {offsets = [0, 0], sizes = [16, 32], strides = [1, 1]} : vector<16x96xf32> to vector<16x32xf32>
    %38 = vector.extract_strided_slice %31 {offsets = [0, 0], sizes = [16, 32], strides = [1, 1]} : vector<16x96xf32> to vector<16x32xf32>
    %39 = vector.extract_strided_slice %31 {offsets = [0, 32], sizes = [16, 32], strides = [1, 1]} : vector<16x96xf32> to vector<16x32xf32>
    %c128 = arith.constant 128 : index
    %c0_19 = arith.constant 0 : index
    %40 = vector.load %arg3[%c128, %c0_19] : memref<184x64xf32, #tpu.memory_space<vmem>>, vector<32x32xf32>
    %c177 = arith.constant 177 : index
    %c0_20 = arith.constant 0 : index
    %41 = vector.load %arg3[%c177, %c0_20] : memref<184x64xf32, #tpu.memory_space<vmem>>, vector<1x32xf32>
    %42 = vector.extract_strided_slice %37 {offsets = [0, 0], sizes = [16, 4], strides = [1, 1]} : vector<16x32xf32> to vector<16x4xf32>
    %43 = vector.extract_strided_slice %38 {offsets = [0, 0], sizes = [16, 4], strides = [1, 1]} : vector<16x32xf32> to vector<16x4xf32>
    %cst_21 = arith.constant dense<0.000000e+00> : vector<16x16xf32>
    %44 = tpu.matmul %42, %43, %cst_21 {dimension_numbers = #tpu.dot_dimension_numbers<[1], [1], [0], [0], [0, 0, 1, 0], [], []>} : vector<16x4xf32>, vector<16x4xf32>, vector<16x16xf32> -> vector<16x16xf32>
    %cst_22 = arith.constant 5.000000e-01 : f32
    %45 = vector.broadcast %cst_22 : f32 to vector<16x16xf32>
    %46 = arith.mulf %44, %45 : vector<16x16xf32>
    %47 = math.exp %46 : vector<16x16xf32>
    %48 = arith.mulf %47, %21 : vector<16x16xf32>
    %cst_23 = arith.constant dense<0.000000e+00> : vector<16xf32>
    %49 = vector.multi_reduction <add>, %48, %cst_23 [1] : vector<16x16xf32> to vector<16xf32>
    %50 = vector.shape_cast %49 : vector<16xf32> to vector<16x1xf32>
    %51 = vector.extract_strided_slice %39 {offsets = [0, 0], sizes = [16, 4], strides = [1, 1]} : vector<16x32xf32> to vector<16x4xf32>
    %cst_24 = arith.constant dense<0.000000e+00> : vector<16x4xf32>
    %52 = tpu.matmul %48, %51, %cst_24 {dimension_numbers = #tpu.dot_dimension_numbers<[1], [0], [0], [1], [0, 0, 1, 1], [], []>} : vector<16x16xf32>, vector<16x4xf32>, vector<16x4xf32> -> vector<16x4xf32>
    %53 = vector.broadcast %50 : vector<16x1xf32> to vector<16x4xf32>
    %54 = arith.divf %52, %53 : vector<16x4xf32>
    %55 = vector.extract_strided_slice %37 {offsets = [0, 4], sizes = [16, 4], strides = [1, 1]} : vector<16x32xf32> to vector<16x4xf32>
    %56 = vector.extract_strided_slice %38 {offsets = [0, 4], sizes = [16, 4], strides = [1, 1]} : vector<16x32xf32> to vector<16x4xf32>
    %cst_25 = arith.constant dense<0.000000e+00> : vector<16x16xf32>
    %57 = tpu.matmul %55, %56, %cst_25 {dimension_numbers = #tpu.dot_dimension_numbers<[1], [1], [0], [0], [0, 0, 1, 0], [], []>} : vector<16x4xf32>, vector<16x4xf32>, vector<16x16xf32> -> vector<16x16xf32>
    %cst_26 = arith.constant 5.000000e-01 : f32
    %58 = vector.broadcast %cst_26 : f32 to vector<16x16xf32>
    %59 = arith.mulf %57, %58 : vector<16x16xf32>
    %60 = math.exp %59 : vector<16x16xf32>
    %61 = arith.mulf %60, %21 : vector<16x16xf32>
    %cst_27 = arith.constant dense<0.000000e+00> : vector<16xf32>
    %62 = vector.multi_reduction <add>, %61, %cst_27 [1] : vector<16x16xf32> to vector<16xf32>
    %63 = vector.shape_cast %62 : vector<16xf32> to vector<16x1xf32>
    %64 = vector.extract_strided_slice %39 {offsets = [0, 4], sizes = [16, 4], strides = [1, 1]} : vector<16x32xf32> to vector<16x4xf32>
    %cst_28 = arith.constant dense<0.000000e+00> : vector<16x4xf32>
    %65 = tpu.matmul %61, %64, %cst_28 {dimension_numbers = #tpu.dot_dimension_numbers<[1], [0], [0], [1], [0, 0, 1, 1], [], []>} : vector<16x16xf32>, vector<16x4xf32>, vector<16x4xf32> -> vector<16x4xf32>
    %66 = vector.broadcast %63 : vector<16x1xf32> to vector<16x4xf32>
    %67 = arith.divf %65, %66 : vector<16x4xf32>
    %68 = vector.extract_strided_slice %37 {offsets = [0, 8], sizes = [16, 4], strides = [1, 1]} : vector<16x32xf32> to vector<16x4xf32>
    %69 = vector.extract_strided_slice %38 {offsets = [0, 8], sizes = [16, 4], strides = [1, 1]} : vector<16x32xf32> to vector<16x4xf32>
    %cst_29 = arith.constant dense<0.000000e+00> : vector<16x16xf32>
    %70 = tpu.matmul %68, %69, %cst_29 {dimension_numbers = #tpu.dot_dimension_numbers<[1], [1], [0], [0], [0, 0, 1, 0], [], []>} : vector<16x4xf32>, vector<16x4xf32>, vector<16x16xf32> -> vector<16x16xf32>
    %cst_30 = arith.constant 5.000000e-01 : f32
    %71 = vector.broadcast %cst_30 : f32 to vector<16x16xf32>
    %72 = arith.mulf %70, %71 : vector<16x16xf32>
    %73 = math.exp %72 : vector<16x16xf32>
    %74 = arith.mulf %73, %21 : vector<16x16xf32>
    %cst_31 = arith.constant dense<0.000000e+00> : vector<16xf32>
    %75 = vector.multi_reduction <add>, %74, %cst_31 [1] : vector<16x16xf32> to vector<16xf32>
    %76 = vector.shape_cast %75 : vector<16xf32> to vector<16x1xf32>
    %77 = vector.extract_strided_slice %39 {offsets = [0, 8], sizes = [16, 4], strides = [1, 1]} : vector<16x32xf32> to vector<16x4xf32>
    %cst_32 = arith.constant dense<0.000000e+00> : vector<16x4xf32>
    %78 = tpu.matmul %74, %77, %cst_32 {dimension_numbers = #tpu.dot_dimension_numbers<[1], [0], [0], [1], [0, 0, 1, 1], [], []>} : vector<16x16xf32>, vector<16x4xf32>, vector<16x4xf32> -> vector<16x4xf32>
    %79 = vector.broadcast %76 : vector<16x1xf32> to vector<16x4xf32>
    %80 = arith.divf %78, %79 : vector<16x4xf32>
    %81 = vector.extract_strided_slice %37 {offsets = [0, 12], sizes = [16, 4], strides = [1, 1]} : vector<16x32xf32> to vector<16x4xf32>
    %82 = vector.extract_strided_slice %38 {offsets = [0, 12], sizes = [16, 4], strides = [1, 1]} : vector<16x32xf32> to vector<16x4xf32>
    %cst_33 = arith.constant dense<0.000000e+00> : vector<16x16xf32>
    %83 = tpu.matmul %81, %82, %cst_33 {dimension_numbers = #tpu.dot_dimension_numbers<[1], [1], [0], [0], [0, 0, 1, 0], [], []>} : vector<16x4xf32>, vector<16x4xf32>, vector<16x16xf32> -> vector<16x16xf32>
    %cst_34 = arith.constant 5.000000e-01 : f32
    %84 = vector.broadcast %cst_34 : f32 to vector<16x16xf32>
    %85 = arith.mulf %83, %84 : vector<16x16xf32>
    %86 = math.exp %85 : vector<16x16xf32>
    %87 = arith.mulf %86, %21 : vector<16x16xf32>
    %cst_35 = arith.constant dense<0.000000e+00> : vector<16xf32>
    %88 = vector.multi_reduction <add>, %87, %cst_35 [1] : vector<16x16xf32> to vector<16xf32>
    %89 = vector.shape_cast %88 : vector<16xf32> to vector<16x1xf32>
    %90 = vector.extract_strided_slice %39 {offsets = [0, 12], sizes = [16, 4], strides = [1, 1]} : vector<16x32xf32> to vector<16x4xf32>
    %cst_36 = arith.constant dense<0.000000e+00> : vector<16x4xf32>
    %91 = tpu.matmul %87, %90, %cst_36 {dimension_numbers = #tpu.dot_dimension_numbers<[1], [0], [0], [1], [0, 0, 1, 1], [], []>} : vector<16x16xf32>, vector<16x4xf32>, vector<16x4xf32> -> vector<16x4xf32>
    %92 = vector.broadcast %89 : vector<16x1xf32> to vector<16x4xf32>
    %93 = arith.divf %91, %92 : vector<16x4xf32>
    %94 = vector.extract_strided_slice %37 {offsets = [0, 16], sizes = [16, 4], strides = [1, 1]} : vector<16x32xf32> to vector<16x4xf32>
    %95 = vector.extract_strided_slice %38 {offsets = [0, 16], sizes = [16, 4], strides = [1, 1]} : vector<16x32xf32> to vector<16x4xf32>
    %cst_37 = arith.constant dense<0.000000e+00> : vector<16x16xf32>
    %96 = tpu.matmul %94, %95, %cst_37 {dimension_numbers = #tpu.dot_dimension_numbers<[1], [1], [0], [0], [0, 0, 1, 0], [], []>} : vector<16x4xf32>, vector<16x4xf32>, vector<16x16xf32> -> vector<16x16xf32>
    %cst_38 = arith.constant 5.000000e-01 : f32
    %97 = vector.broadcast %cst_38 : f32 to vector<16x16xf32>
    %98 = arith.mulf %96, %97 : vector<16x16xf32>
    %99 = math.exp %98 : vector<16x16xf32>
    %100 = arith.mulf %99, %21 : vector<16x16xf32>
    %cst_39 = arith.constant dense<0.000000e+00> : vector<16xf32>
    %101 = vector.multi_reduction <add>, %100, %cst_39 [1] : vector<16x16xf32> to vector<16xf32>
    %102 = vector.shape_cast %101 : vector<16xf32> to vector<16x1xf32>
    %103 = vector.extract_strided_slice %39 {offsets = [0, 16], sizes = [16, 4], strides = [1, 1]} : vector<16x32xf32> to vector<16x4xf32>
    %cst_40 = arith.constant dense<0.000000e+00> : vector<16x4xf32>
    %104 = tpu.matmul %100, %103, %cst_40 {dimension_numbers = #tpu.dot_dimension_numbers<[1], [0], [0], [1], [0, 0, 1, 1], [], []>} : vector<16x16xf32>, vector<16x4xf32>, vector<16x4xf32> -> vector<16x4xf32>
    %105 = vector.broadcast %102 : vector<16x1xf32> to vector<16x4xf32>
    %106 = arith.divf %104, %105 : vector<16x4xf32>
    %107 = vector.extract_strided_slice %37 {offsets = [0, 20], sizes = [16, 4], strides = [1, 1]} : vector<16x32xf32> to vector<16x4xf32>
    %108 = vector.extract_strided_slice %38 {offsets = [0, 20], sizes = [16, 4], strides = [1, 1]} : vector<16x32xf32> to vector<16x4xf32>
    %cst_41 = arith.constant dense<0.000000e+00> : vector<16x16xf32>
    %109 = tpu.matmul %107, %108, %cst_41 {dimension_numbers = #tpu.dot_dimension_numbers<[1], [1], [0], [0], [0, 0, 1, 0], [], []>} : vector<16x4xf32>, vector<16x4xf32>, vector<16x16xf32> -> vector<16x16xf32>
    %cst_42 = arith.constant 5.000000e-01 : f32
    %110 = vector.broadcast %cst_42 : f32 to vector<16x16xf32>
    %111 = arith.mulf %109, %110 : vector<16x16xf32>
    %112 = math.exp %111 : vector<16x16xf32>
    %113 = arith.mulf %112, %21 : vector<16x16xf32>
    %cst_43 = arith.constant dense<0.000000e+00> : vector<16xf32>
    %114 = vector.multi_reduction <add>, %113, %cst_43 [1] : vector<16x16xf32> to vector<16xf32>
    %115 = vector.shape_cast %114 : vector<16xf32> to vector<16x1xf32>
    %116 = vector.extract_strided_slice %39 {offsets = [0, 20], sizes = [16, 4], strides = [1, 1]} : vector<16x32xf32> to vector<16x4xf32>
    %cst_44 = arith.constant dense<0.000000e+00> : vector<16x4xf32>
    %117 = tpu.matmul %113, %116, %cst_44 {dimension_numbers = #tpu.dot_dimension_numbers<[1], [0], [0], [1], [0, 0, 1, 1], [], []>} : vector<16x16xf32>, vector<16x4xf32>, vector<16x4xf32> -> vector<16x4xf32>
    %118 = vector.broadcast %115 : vector<16x1xf32> to vector<16x4xf32>
    %119 = arith.divf %117, %118 : vector<16x4xf32>
    %120 = vector.extract_strided_slice %37 {offsets = [0, 24], sizes = [16, 4], strides = [1, 1]} : vector<16x32xf32> to vector<16x4xf32>
    %121 = vector.extract_strided_slice %38 {offsets = [0, 24], sizes = [16, 4], strides = [1, 1]} : vector<16x32xf32> to vector<16x4xf32>
    %cst_45 = arith.constant dense<0.000000e+00> : vector<16x16xf32>
    %122 = tpu.matmul %120, %121, %cst_45 {dimension_numbers = #tpu.dot_dimension_numbers<[1], [1], [0], [0], [0, 0, 1, 0], [], []>} : vector<16x4xf32>, vector<16x4xf32>, vector<16x16xf32> -> vector<16x16xf32>
    %cst_46 = arith.constant 5.000000e-01 : f32
    %123 = vector.broadcast %cst_46 : f32 to vector<16x16xf32>
    %124 = arith.mulf %122, %123 : vector<16x16xf32>
    %125 = math.exp %124 : vector<16x16xf32>
    %126 = arith.mulf %125, %21 : vector<16x16xf32>
    %cst_47 = arith.constant dense<0.000000e+00> : vector<16xf32>
    %127 = vector.multi_reduction <add>, %126, %cst_47 [1] : vector<16x16xf32> to vector<16xf32>
    %128 = vector.shape_cast %127 : vector<16xf32> to vector<16x1xf32>
    %129 = vector.extract_strided_slice %39 {offsets = [0, 24], sizes = [16, 4], strides = [1, 1]} : vector<16x32xf32> to vector<16x4xf32>
    %cst_48 = arith.constant dense<0.000000e+00> : vector<16x4xf32>
    %130 = tpu.matmul %126, %129, %cst_48 {dimension_numbers = #tpu.dot_dimension_numbers<[1], [0], [0], [1], [0, 0, 1, 1], [], []>} : vector<16x16xf32>, vector<16x4xf32>, vector<16x4xf32> -> vector<16x4xf32>
    %131 = vector.broadcast %128 : vector<16x1xf32> to vector<16x4xf32>
    %132 = arith.divf %130, %131 : vector<16x4xf32>
    %133 = vector.extract_strided_slice %37 {offsets = [0, 28], sizes = [16, 4], strides = [1, 1]} : vector<16x32xf32> to vector<16x4xf32>
    %134 = vector.extract_strided_slice %38 {offsets = [0, 28], sizes = [16, 4], strides = [1, 1]} : vector<16x32xf32> to vector<16x4xf32>
    %cst_49 = arith.constant dense<0.000000e+00> : vector<16x16xf32>
    %135 = tpu.matmul %133, %134, %cst_49 {dimension_numbers = #tpu.dot_dimension_numbers<[1], [1], [0], [0], [0, 0, 1, 0], [], []>} : vector<16x4xf32>, vector<16x4xf32>, vector<16x16xf32> -> vector<16x16xf32>
    %cst_50 = arith.constant 5.000000e-01 : f32
    %136 = vector.broadcast %cst_50 : f32 to vector<16x16xf32>
    %137 = arith.mulf %135, %136 : vector<16x16xf32>
    %138 = math.exp %137 : vector<16x16xf32>
    %139 = arith.mulf %138, %21 : vector<16x16xf32>
    %cst_51 = arith.constant dense<0.000000e+00> : vector<16xf32>
    %140 = vector.multi_reduction <add>, %139, %cst_51 [1] : vector<16x16xf32> to vector<16xf32>
    %141 = vector.shape_cast %140 : vector<16xf32> to vector<16x1xf32>
    %142 = vector.extract_strided_slice %39 {offsets = [0, 28], sizes = [16, 4], strides = [1, 1]} : vector<16x32xf32> to vector<16x4xf32>
    %cst_52 = arith.constant dense<0.000000e+00> : vector<16x4xf32>
    %143 = tpu.matmul %139, %142, %cst_52 {dimension_numbers = #tpu.dot_dimension_numbers<[1], [0], [0], [1], [0, 0, 1, 1], [], []>} : vector<16x16xf32>, vector<16x4xf32>, vector<16x4xf32> -> vector<16x4xf32>
    %144 = vector.broadcast %141 : vector<16x1xf32> to vector<16x4xf32>
    %145 = arith.divf %143, %144 : vector<16x4xf32>
    %146 = tpu.concatenate %54, %67, %80, %93, %106, %119, %132, %145 in 1 : vector<16x4xf32>, vector<16x4xf32>, vector<16x4xf32>, vector<16x4xf32>, vector<16x4xf32>, vector<16x4xf32>, vector<16x4xf32>, vector<16x4xf32> -> vector<16x32xf32>
    %cst_53 = arith.constant dense<0.000000e+00> : vector<16x32xf32>
    %147 = tpu.matmul %146, %40, %cst_53 {dimension_numbers = #tpu.dot_dimension_numbers<[1], [0], [0], [1], [0, 0, 1, 1], [], []>} : vector<16x32xf32>, vector<32x32xf32>, vector<16x32xf32> -> vector<16x32xf32>
    %148 = vector.broadcast %41 : vector<1x32xf32> to vector<16x32xf32>
    %149 = arith.addf %147, %148 : vector<16x32xf32>
    %150 = vector.extract_strided_slice %31 {offsets = [0, 64], sizes = [16, 32], strides = [1, 1]} : vector<16x96xf32> to vector<16x32xf32>
    %151 = vector.extract_strided_slice %36 {offsets = [0, 32], sizes = [16, 32], strides = [1, 1]} : vector<16x96xf32> to vector<16x32xf32>
    %152 = vector.extract_strided_slice %36 {offsets = [0, 64], sizes = [16, 32], strides = [1, 1]} : vector<16x96xf32> to vector<16x32xf32>
    %c128_54 = arith.constant 128 : index
    %c32 = arith.constant 32 : index
    %153 = vector.load %arg3[%c128_54, %c32] : memref<184x64xf32, #tpu.memory_space<vmem>>, vector<32x32xf32>
    %c177_55 = arith.constant 177 : index
    %c32_56 = arith.constant 32 : index
    %154 = vector.load %arg3[%c177_55, %c32_56] : memref<184x64xf32, #tpu.memory_space<vmem>>, vector<1x32xf32>
    %155 = vector.extract_strided_slice %150 {offsets = [0, 0], sizes = [16, 4], strides = [1, 1]} : vector<16x32xf32> to vector<16x4xf32>
    %156 = vector.extract_strided_slice %151 {offsets = [0, 0], sizes = [16, 4], strides = [1, 1]} : vector<16x32xf32> to vector<16x4xf32>
    %cst_57 = arith.constant dense<0.000000e+00> : vector<16x16xf32>
    %157 = tpu.matmul %155, %156, %cst_57 {dimension_numbers = #tpu.dot_dimension_numbers<[1], [1], [0], [0], [0, 0, 1, 0], [], []>} : vector<16x4xf32>, vector<16x4xf32>, vector<16x16xf32> -> vector<16x16xf32>
    %cst_58 = arith.constant 5.000000e-01 : f32
    %158 = vector.broadcast %cst_58 : f32 to vector<16x16xf32>
    %159 = arith.mulf %157, %158 : vector<16x16xf32>
    %160 = math.exp %159 : vector<16x16xf32>
    %161 = arith.mulf %160, %21 : vector<16x16xf32>
    %cst_59 = arith.constant dense<0.000000e+00> : vector<16xf32>
    %162 = vector.multi_reduction <add>, %161, %cst_59 [1] : vector<16x16xf32> to vector<16xf32>
    %163 = vector.shape_cast %162 : vector<16xf32> to vector<16x1xf32>
    %164 = vector.extract_strided_slice %152 {offsets = [0, 0], sizes = [16, 4], strides = [1, 1]} : vector<16x32xf32> to vector<16x4xf32>
    %cst_60 = arith.constant dense<0.000000e+00> : vector<16x4xf32>
    %165 = tpu.matmul %161, %164, %cst_60 {dimension_numbers = #tpu.dot_dimension_numbers<[1], [0], [0], [1], [0, 0, 1, 1], [], []>} : vector<16x16xf32>, vector<16x4xf32>, vector<16x4xf32> -> vector<16x4xf32>
    %166 = vector.broadcast %163 : vector<16x1xf32> to vector<16x4xf32>
    %167 = arith.divf %165, %166 : vector<16x4xf32>
    %168 = vector.extract_strided_slice %150 {offsets = [0, 4], sizes = [16, 4], strides = [1, 1]} : vector<16x32xf32> to vector<16x4xf32>
    %169 = vector.extract_strided_slice %151 {offsets = [0, 4], sizes = [16, 4], strides = [1, 1]} : vector<16x32xf32> to vector<16x4xf32>
    %cst_61 = arith.constant dense<0.000000e+00> : vector<16x16xf32>
    %170 = tpu.matmul %168, %169, %cst_61 {dimension_numbers = #tpu.dot_dimension_numbers<[1], [1], [0], [0], [0, 0, 1, 0], [], []>} : vector<16x4xf32>, vector<16x4xf32>, vector<16x16xf32> -> vector<16x16xf32>
    %cst_62 = arith.constant 5.000000e-01 : f32
    %171 = vector.broadcast %cst_62 : f32 to vector<16x16xf32>
    %172 = arith.mulf %170, %171 : vector<16x16xf32>
    %173 = math.exp %172 : vector<16x16xf32>
    %174 = arith.mulf %173, %21 : vector<16x16xf32>
    %cst_63 = arith.constant dense<0.000000e+00> : vector<16xf32>
    %175 = vector.multi_reduction <add>, %174, %cst_63 [1] : vector<16x16xf32> to vector<16xf32>
    %176 = vector.shape_cast %175 : vector<16xf32> to vector<16x1xf32>
    %177 = vector.extract_strided_slice %152 {offsets = [0, 4], sizes = [16, 4], strides = [1, 1]} : vector<16x32xf32> to vector<16x4xf32>
    %cst_64 = arith.constant dense<0.000000e+00> : vector<16x4xf32>
    %178 = tpu.matmul %174, %177, %cst_64 {dimension_numbers = #tpu.dot_dimension_numbers<[1], [0], [0], [1], [0, 0, 1, 1], [], []>} : vector<16x16xf32>, vector<16x4xf32>, vector<16x4xf32> -> vector<16x4xf32>
    %179 = vector.broadcast %176 : vector<16x1xf32> to vector<16x4xf32>
    %180 = arith.divf %178, %179 : vector<16x4xf32>
    %181 = vector.extract_strided_slice %150 {offsets = [0, 8], sizes = [16, 4], strides = [1, 1]} : vector<16x32xf32> to vector<16x4xf32>
    %182 = vector.extract_strided_slice %151 {offsets = [0, 8], sizes = [16, 4], strides = [1, 1]} : vector<16x32xf32> to vector<16x4xf32>
    %cst_65 = arith.constant dense<0.000000e+00> : vector<16x16xf32>
    %183 = tpu.matmul %181, %182, %cst_65 {dimension_numbers = #tpu.dot_dimension_numbers<[1], [1], [0], [0], [0, 0, 1, 0], [], []>} : vector<16x4xf32>, vector<16x4xf32>, vector<16x16xf32> -> vector<16x16xf32>
    %cst_66 = arith.constant 5.000000e-01 : f32
    %184 = vector.broadcast %cst_66 : f32 to vector<16x16xf32>
    %185 = arith.mulf %183, %184 : vector<16x16xf32>
    %186 = math.exp %185 : vector<16x16xf32>
    %187 = arith.mulf %186, %21 : vector<16x16xf32>
    %cst_67 = arith.constant dense<0.000000e+00> : vector<16xf32>
    %188 = vector.multi_reduction <add>, %187, %cst_67 [1] : vector<16x16xf32> to vector<16xf32>
    %189 = vector.shape_cast %188 : vector<16xf32> to vector<16x1xf32>
    %190 = vector.extract_strided_slice %152 {offsets = [0, 8], sizes = [16, 4], strides = [1, 1]} : vector<16x32xf32> to vector<16x4xf32>
    %cst_68 = arith.constant dense<0.000000e+00> : vector<16x4xf32>
    %191 = tpu.matmul %187, %190, %cst_68 {dimension_numbers = #tpu.dot_dimension_numbers<[1], [0], [0], [1], [0, 0, 1, 1], [], []>} : vector<16x16xf32>, vector<16x4xf32>, vector<16x4xf32> -> vector<16x4xf32>
    %192 = vector.broadcast %189 : vector<16x1xf32> to vector<16x4xf32>
    %193 = arith.divf %191, %192 : vector<16x4xf32>
    %194 = vector.extract_strided_slice %150 {offsets = [0, 12], sizes = [16, 4], strides = [1, 1]} : vector<16x32xf32> to vector<16x4xf32>
    %195 = vector.extract_strided_slice %151 {offsets = [0, 12], sizes = [16, 4], strides = [1, 1]} : vector<16x32xf32> to vector<16x4xf32>
    %cst_69 = arith.constant dense<0.000000e+00> : vector<16x16xf32>
    %196 = tpu.matmul %194, %195, %cst_69 {dimension_numbers = #tpu.dot_dimension_numbers<[1], [1], [0], [0], [0, 0, 1, 0], [], []>} : vector<16x4xf32>, vector<16x4xf32>, vector<16x16xf32> -> vector<16x16xf32>
    %cst_70 = arith.constant 5.000000e-01 : f32
    %197 = vector.broadcast %cst_70 : f32 to vector<16x16xf32>
    %198 = arith.mulf %196, %197 : vector<16x16xf32>
    %199 = math.exp %198 : vector<16x16xf32>
    %200 = arith.mulf %199, %21 : vector<16x16xf32>
    %cst_71 = arith.constant dense<0.000000e+00> : vector<16xf32>
    %201 = vector.multi_reduction <add>, %200, %cst_71 [1] : vector<16x16xf32> to vector<16xf32>
    %202 = vector.shape_cast %201 : vector<16xf32> to vector<16x1xf32>
    %203 = vector.extract_strided_slice %152 {offsets = [0, 12], sizes = [16, 4], strides = [1, 1]} : vector<16x32xf32> to vector<16x4xf32>
    %cst_72 = arith.constant dense<0.000000e+00> : vector<16x4xf32>
    %204 = tpu.matmul %200, %203, %cst_72 {dimension_numbers = #tpu.dot_dimension_numbers<[1], [0], [0], [1], [0, 0, 1, 1], [], []>} : vector<16x16xf32>, vector<16x4xf32>, vector<16x4xf32> -> vector<16x4xf32>
    %205 = vector.broadcast %202 : vector<16x1xf32> to vector<16x4xf32>
    %206 = arith.divf %204, %205 : vector<16x4xf32>
    %207 = vector.extract_strided_slice %150 {offsets = [0, 16], sizes = [16, 4], strides = [1, 1]} : vector<16x32xf32> to vector<16x4xf32>
    %208 = vector.extract_strided_slice %151 {offsets = [0, 16], sizes = [16, 4], strides = [1, 1]} : vector<16x32xf32> to vector<16x4xf32>
    %cst_73 = arith.constant dense<0.000000e+00> : vector<16x16xf32>
    %209 = tpu.matmul %207, %208, %cst_73 {dimension_numbers = #tpu.dot_dimension_numbers<[1], [1], [0], [0], [0, 0, 1, 0], [], []>} : vector<16x4xf32>, vector<16x4xf32>, vector<16x16xf32> -> vector<16x16xf32>
    %cst_74 = arith.constant 5.000000e-01 : f32
    %210 = vector.broadcast %cst_74 : f32 to vector<16x16xf32>
    %211 = arith.mulf %209, %210 : vector<16x16xf32>
    %212 = math.exp %211 : vector<16x16xf32>
    %213 = arith.mulf %212, %21 : vector<16x16xf32>
    %cst_75 = arith.constant dense<0.000000e+00> : vector<16xf32>
    %214 = vector.multi_reduction <add>, %213, %cst_75 [1] : vector<16x16xf32> to vector<16xf32>
    %215 = vector.shape_cast %214 : vector<16xf32> to vector<16x1xf32>
    %216 = vector.extract_strided_slice %152 {offsets = [0, 16], sizes = [16, 4], strides = [1, 1]} : vector<16x32xf32> to vector<16x4xf32>
    %cst_76 = arith.constant dense<0.000000e+00> : vector<16x4xf32>
    %217 = tpu.matmul %213, %216, %cst_76 {dimension_numbers = #tpu.dot_dimension_numbers<[1], [0], [0], [1], [0, 0, 1, 1], [], []>} : vector<16x16xf32>, vector<16x4xf32>, vector<16x4xf32> -> vector<16x4xf32>
    %218 = vector.broadcast %215 : vector<16x1xf32> to vector<16x4xf32>
    %219 = arith.divf %217, %218 : vector<16x4xf32>
    %220 = vector.extract_strided_slice %150 {offsets = [0, 20], sizes = [16, 4], strides = [1, 1]} : vector<16x32xf32> to vector<16x4xf32>
    %221 = vector.extract_strided_slice %151 {offsets = [0, 20], sizes = [16, 4], strides = [1, 1]} : vector<16x32xf32> to vector<16x4xf32>
    %cst_77 = arith.constant dense<0.000000e+00> : vector<16x16xf32>
    %222 = tpu.matmul %220, %221, %cst_77 {dimension_numbers = #tpu.dot_dimension_numbers<[1], [1], [0], [0], [0, 0, 1, 0], [], []>} : vector<16x4xf32>, vector<16x4xf32>, vector<16x16xf32> -> vector<16x16xf32>
    %cst_78 = arith.constant 5.000000e-01 : f32
    %223 = vector.broadcast %cst_78 : f32 to vector<16x16xf32>
    %224 = arith.mulf %222, %223 : vector<16x16xf32>
    %225 = math.exp %224 : vector<16x16xf32>
    %226 = arith.mulf %225, %21 : vector<16x16xf32>
    %cst_79 = arith.constant dense<0.000000e+00> : vector<16xf32>
    %227 = vector.multi_reduction <add>, %226, %cst_79 [1] : vector<16x16xf32> to vector<16xf32>
    %228 = vector.shape_cast %227 : vector<16xf32> to vector<16x1xf32>
    %229 = vector.extract_strided_slice %152 {offsets = [0, 20], sizes = [16, 4], strides = [1, 1]} : vector<16x32xf32> to vector<16x4xf32>
    %cst_80 = arith.constant dense<0.000000e+00> : vector<16x4xf32>
    %230 = tpu.matmul %226, %229, %cst_80 {dimension_numbers = #tpu.dot_dimension_numbers<[1], [0], [0], [1], [0, 0, 1, 1], [], []>} : vector<16x16xf32>, vector<16x4xf32>, vector<16x4xf32> -> vector<16x4xf32>
    %231 = vector.broadcast %228 : vector<16x1xf32> to vector<16x4xf32>
    %232 = arith.divf %230, %231 : vector<16x4xf32>
    %233 = vector.extract_strided_slice %150 {offsets = [0, 24], sizes = [16, 4], strides = [1, 1]} : vector<16x32xf32> to vector<16x4xf32>
    %234 = vector.extract_strided_slice %151 {offsets = [0, 24], sizes = [16, 4], strides = [1, 1]} : vector<16x32xf32> to vector<16x4xf32>
    %cst_81 = arith.constant dense<0.000000e+00> : vector<16x16xf32>
    %235 = tpu.matmul %233, %234, %cst_81 {dimension_numbers = #tpu.dot_dimension_numbers<[1], [1], [0], [0], [0, 0, 1, 0], [], []>} : vector<16x4xf32>, vector<16x4xf32>, vector<16x16xf32> -> vector<16x16xf32>
    %cst_82 = arith.constant 5.000000e-01 : f32
    %236 = vector.broadcast %cst_82 : f32 to vector<16x16xf32>
    %237 = arith.mulf %235, %236 : vector<16x16xf32>
    %238 = math.exp %237 : vector<16x16xf32>
    %239 = arith.mulf %238, %21 : vector<16x16xf32>
    %cst_83 = arith.constant dense<0.000000e+00> : vector<16xf32>
    %240 = vector.multi_reduction <add>, %239, %cst_83 [1] : vector<16x16xf32> to vector<16xf32>
    %241 = vector.shape_cast %240 : vector<16xf32> to vector<16x1xf32>
    %242 = vector.extract_strided_slice %152 {offsets = [0, 24], sizes = [16, 4], strides = [1, 1]} : vector<16x32xf32> to vector<16x4xf32>
    %cst_84 = arith.constant dense<0.000000e+00> : vector<16x4xf32>
    %243 = tpu.matmul %239, %242, %cst_84 {dimension_numbers = #tpu.dot_dimension_numbers<[1], [0], [0], [1], [0, 0, 1, 1], [], []>} : vector<16x16xf32>, vector<16x4xf32>, vector<16x4xf32> -> vector<16x4xf32>
    %244 = vector.broadcast %241 : vector<16x1xf32> to vector<16x4xf32>
    %245 = arith.divf %243, %244 : vector<16x4xf32>
    %246 = vector.extract_strided_slice %150 {offsets = [0, 28], sizes = [16, 4], strides = [1, 1]} : vector<16x32xf32> to vector<16x4xf32>
    %247 = vector.extract_strided_slice %151 {offsets = [0, 28], sizes = [16, 4], strides = [1, 1]} : vector<16x32xf32> to vector<16x4xf32>
    %cst_85 = arith.constant dense<0.000000e+00> : vector<16x16xf32>
    %248 = tpu.matmul %246, %247, %cst_85 {dimension_numbers = #tpu.dot_dimension_numbers<[1], [1], [0], [0], [0, 0, 1, 0], [], []>} : vector<16x4xf32>, vector<16x4xf32>, vector<16x16xf32> -> vector<16x16xf32>
    %cst_86 = arith.constant 5.000000e-01 : f32
    %249 = vector.broadcast %cst_86 : f32 to vector<16x16xf32>
    %250 = arith.mulf %248, %249 : vector<16x16xf32>
    %251 = math.exp %250 : vector<16x16xf32>
    %252 = arith.mulf %251, %21 : vector<16x16xf32>
    %cst_87 = arith.constant dense<0.000000e+00> : vector<16xf32>
    %253 = vector.multi_reduction <add>, %252, %cst_87 [1] : vector<16x16xf32> to vector<16xf32>
    %254 = vector.shape_cast %253 : vector<16xf32> to vector<16x1xf32>
    %255 = vector.extract_strided_slice %152 {offsets = [0, 28], sizes = [16, 4], strides = [1, 1]} : vector<16x32xf32> to vector<16x4xf32>
    %cst_88 = arith.constant dense<0.000000e+00> : vector<16x4xf32>
    %256 = tpu.matmul %252, %255, %cst_88 {dimension_numbers = #tpu.dot_dimension_numbers<[1], [0], [0], [1], [0, 0, 1, 1], [], []>} : vector<16x16xf32>, vector<16x4xf32>, vector<16x4xf32> -> vector<16x4xf32>
    %257 = vector.broadcast %254 : vector<16x1xf32> to vector<16x4xf32>
    %258 = arith.divf %256, %257 : vector<16x4xf32>
    %259 = tpu.concatenate %167, %180, %193, %206, %219, %232, %245, %258 in 1 : vector<16x4xf32>, vector<16x4xf32>, vector<16x4xf32>, vector<16x4xf32>, vector<16x4xf32>, vector<16x4xf32>, vector<16x4xf32>, vector<16x4xf32> -> vector<16x32xf32>
    %cst_89 = arith.constant dense<0.000000e+00> : vector<16x32xf32>
    %260 = tpu.matmul %259, %153, %cst_89 {dimension_numbers = #tpu.dot_dimension_numbers<[1], [0], [0], [1], [0, 0, 1, 1], [], []>} : vector<16x32xf32>, vector<32x32xf32>, vector<16x32xf32> -> vector<16x32xf32>
    %261 = vector.broadcast %154 : vector<1x32xf32> to vector<16x32xf32>
    %262 = arith.addf %260, %261 : vector<16x32xf32>
    %c0_90 = arith.constant 0 : index
    %c0_91 = arith.constant 0 : index
    %263 = vector.load %arg2[%c0_90, %c0_91] : memref<112x192xf32, #tpu.memory_space<vmem>>, vector<32x192xf32>
    %cst_92 = arith.constant dense<0.000000e+00> : vector<16x192xf32>
    %264 = tpu.matmul %149, %263, %cst_92 {dimension_numbers = #tpu.dot_dimension_numbers<[1], [0], [0], [1], [0, 0, 1, 1], [], []>} : vector<16x32xf32>, vector<32x192xf32>, vector<16x192xf32> -> vector<16x192xf32>
    %c32_93 = arith.constant 32 : index
    %c0_94 = arith.constant 0 : index
    %265 = vector.load %arg2[%c32_93, %c0_94] : memref<112x192xf32, #tpu.memory_space<vmem>>, vector<32x192xf32>
    %cst_95 = arith.constant dense<0.000000e+00> : vector<16x192xf32>
    %266 = tpu.matmul %262, %265, %cst_95 {dimension_numbers = #tpu.dot_dimension_numbers<[1], [0], [0], [1], [0, 0, 1, 1], [], []>} : vector<16x32xf32>, vector<32x192xf32>, vector<16x192xf32> -> vector<16x192xf32>
    %267 = arith.addf %264, %266 : vector<16x192xf32>
    %c64 = arith.constant 64 : index
    %c0_96 = arith.constant 0 : index
    %268 = vector.load %arg2[%c64, %c0_96] : memref<112x192xf32, #tpu.memory_space<vmem>>, vector<1x192xf32>
    %269 = vector.broadcast %268 : vector<1x192xf32> to vector<16x192xf32>
    %270 = arith.addf %267, %269 : vector<16x192xf32>
    %271 = vector.extract_strided_slice %270 {offsets = [0, 0], sizes = [16, 64], strides = [1, 1]} : vector<16x192xf32> to vector<16x64xf32>
    %272 = vector.extract_strided_slice %270 {offsets = [0, 64], sizes = [16, 64], strides = [1, 1]} : vector<16x192xf32> to vector<16x64xf32>
    %273 = vector.extract_strided_slice %270 {offsets = [0, 128], sizes = [16, 64], strides = [1, 1]} : vector<16x192xf32> to vector<16x64xf32>
    %c0_97 = arith.constant 0 : index
    %c0_98 = arith.constant 0 : index
    %274 = vector.load %arg3[%c0_97, %c0_98] : memref<184x64xf32, #tpu.memory_space<vmem>>, vector<64x64xf32>
    %c178 = arith.constant 178 : index
    %c0_99 = arith.constant 0 : index
    %275 = vector.load %arg3[%c178, %c0_99] : memref<184x64xf32, #tpu.memory_space<vmem>>, vector<1x64xf32>
    %276 = vector.extract_strided_slice %271 {offsets = [0, 0], sizes = [16, 8], strides = [1, 1]} : vector<16x64xf32> to vector<16x8xf32>
    %277 = vector.extract_strided_slice %272 {offsets = [0, 0], sizes = [16, 8], strides = [1, 1]} : vector<16x64xf32> to vector<16x8xf32>
    %cst_100 = arith.constant dense<0.000000e+00> : vector<16x16xf32>
    %278 = tpu.matmul %276, %277, %cst_100 {dimension_numbers = #tpu.dot_dimension_numbers<[1], [1], [0], [0], [0, 0, 1, 0], [], []>} : vector<16x8xf32>, vector<16x8xf32>, vector<16x16xf32> -> vector<16x16xf32>
    %cst_101 = arith.constant 0.353553385 : f32
    %279 = vector.broadcast %cst_101 : f32 to vector<16x16xf32>
    %280 = arith.mulf %278, %279 : vector<16x16xf32>
    %281 = math.exp %280 : vector<16x16xf32>
    %282 = arith.mulf %281, %21 : vector<16x16xf32>
    %cst_102 = arith.constant dense<0.000000e+00> : vector<16xf32>
    %283 = vector.multi_reduction <add>, %282, %cst_102 [1] : vector<16x16xf32> to vector<16xf32>
    %284 = vector.shape_cast %283 : vector<16xf32> to vector<16x1xf32>
    %285 = vector.extract_strided_slice %273 {offsets = [0, 0], sizes = [16, 8], strides = [1, 1]} : vector<16x64xf32> to vector<16x8xf32>
    %cst_103 = arith.constant dense<0.000000e+00> : vector<16x8xf32>
    %286 = tpu.matmul %282, %285, %cst_103 {dimension_numbers = #tpu.dot_dimension_numbers<[1], [0], [0], [1], [0, 0, 1, 1], [], []>} : vector<16x16xf32>, vector<16x8xf32>, vector<16x8xf32> -> vector<16x8xf32>
    %287 = vector.broadcast %284 : vector<16x1xf32> to vector<16x8xf32>
    %288 = arith.divf %286, %287 : vector<16x8xf32>
    %289 = vector.extract_strided_slice %271 {offsets = [0, 8], sizes = [16, 8], strides = [1, 1]} : vector<16x64xf32> to vector<16x8xf32>
    %290 = vector.extract_strided_slice %272 {offsets = [0, 8], sizes = [16, 8], strides = [1, 1]} : vector<16x64xf32> to vector<16x8xf32>
    %cst_104 = arith.constant dense<0.000000e+00> : vector<16x16xf32>
    %291 = tpu.matmul %289, %290, %cst_104 {dimension_numbers = #tpu.dot_dimension_numbers<[1], [1], [0], [0], [0, 0, 1, 0], [], []>} : vector<16x8xf32>, vector<16x8xf32>, vector<16x16xf32> -> vector<16x16xf32>
    %cst_105 = arith.constant 0.353553385 : f32
    %292 = vector.broadcast %cst_105 : f32 to vector<16x16xf32>
    %293 = arith.mulf %291, %292 : vector<16x16xf32>
    %294 = math.exp %293 : vector<16x16xf32>
    %295 = arith.mulf %294, %21 : vector<16x16xf32>
    %cst_106 = arith.constant dense<0.000000e+00> : vector<16xf32>
    %296 = vector.multi_reduction <add>, %295, %cst_106 [1] : vector<16x16xf32> to vector<16xf32>
    %297 = vector.shape_cast %296 : vector<16xf32> to vector<16x1xf32>
    %298 = vector.extract_strided_slice %273 {offsets = [0, 8], sizes = [16, 8], strides = [1, 1]} : vector<16x64xf32> to vector<16x8xf32>
    %cst_107 = arith.constant dense<0.000000e+00> : vector<16x8xf32>
    %299 = tpu.matmul %295, %298, %cst_107 {dimension_numbers = #tpu.dot_dimension_numbers<[1], [0], [0], [1], [0, 0, 1, 1], [], []>} : vector<16x16xf32>, vector<16x8xf32>, vector<16x8xf32> -> vector<16x8xf32>
    %300 = vector.broadcast %297 : vector<16x1xf32> to vector<16x8xf32>
    %301 = arith.divf %299, %300 : vector<16x8xf32>
    %302 = vector.extract_strided_slice %271 {offsets = [0, 16], sizes = [16, 8], strides = [1, 1]} : vector<16x64xf32> to vector<16x8xf32>
    %303 = vector.extract_strided_slice %272 {offsets = [0, 16], sizes = [16, 8], strides = [1, 1]} : vector<16x64xf32> to vector<16x8xf32>
    %cst_108 = arith.constant dense<0.000000e+00> : vector<16x16xf32>
    %304 = tpu.matmul %302, %303, %cst_108 {dimension_numbers = #tpu.dot_dimension_numbers<[1], [1], [0], [0], [0, 0, 1, 0], [], []>} : vector<16x8xf32>, vector<16x8xf32>, vector<16x16xf32> -> vector<16x16xf32>
    %cst_109 = arith.constant 0.353553385 : f32
    %305 = vector.broadcast %cst_109 : f32 to vector<16x16xf32>
    %306 = arith.mulf %304, %305 : vector<16x16xf32>
    %307 = math.exp %306 : vector<16x16xf32>
    %308 = arith.mulf %307, %21 : vector<16x16xf32>
    %cst_110 = arith.constant dense<0.000000e+00> : vector<16xf32>
    %309 = vector.multi_reduction <add>, %308, %cst_110 [1] : vector<16x16xf32> to vector<16xf32>
    %310 = vector.shape_cast %309 : vector<16xf32> to vector<16x1xf32>
    %311 = vector.extract_strided_slice %273 {offsets = [0, 16], sizes = [16, 8], strides = [1, 1]} : vector<16x64xf32> to vector<16x8xf32>
    %cst_111 = arith.constant dense<0.000000e+00> : vector<16x8xf32>
    %312 = tpu.matmul %308, %311, %cst_111 {dimension_numbers = #tpu.dot_dimension_numbers<[1], [0], [0], [1], [0, 0, 1, 1], [], []>} : vector<16x16xf32>, vector<16x8xf32>, vector<16x8xf32> -> vector<16x8xf32>
    %313 = vector.broadcast %310 : vector<16x1xf32> to vector<16x8xf32>
    %314 = arith.divf %312, %313 : vector<16x8xf32>
    %315 = vector.extract_strided_slice %271 {offsets = [0, 24], sizes = [16, 8], strides = [1, 1]} : vector<16x64xf32> to vector<16x8xf32>
    %316 = vector.extract_strided_slice %272 {offsets = [0, 24], sizes = [16, 8], strides = [1, 1]} : vector<16x64xf32> to vector<16x8xf32>
    %cst_112 = arith.constant dense<0.000000e+00> : vector<16x16xf32>
    %317 = tpu.matmul %315, %316, %cst_112 {dimension_numbers = #tpu.dot_dimension_numbers<[1], [1], [0], [0], [0, 0, 1, 0], [], []>} : vector<16x8xf32>, vector<16x8xf32>, vector<16x16xf32> -> vector<16x16xf32>
    %cst_113 = arith.constant 0.353553385 : f32
    %318 = vector.broadcast %cst_113 : f32 to vector<16x16xf32>
    %319 = arith.mulf %317, %318 : vector<16x16xf32>
    %320 = math.exp %319 : vector<16x16xf32>
    %321 = arith.mulf %320, %21 : vector<16x16xf32>
    %cst_114 = arith.constant dense<0.000000e+00> : vector<16xf32>
    %322 = vector.multi_reduction <add>, %321, %cst_114 [1] : vector<16x16xf32> to vector<16xf32>
    %323 = vector.shape_cast %322 : vector<16xf32> to vector<16x1xf32>
    %324 = vector.extract_strided_slice %273 {offsets = [0, 24], sizes = [16, 8], strides = [1, 1]} : vector<16x64xf32> to vector<16x8xf32>
    %cst_115 = arith.constant dense<0.000000e+00> : vector<16x8xf32>
    %325 = tpu.matmul %321, %324, %cst_115 {dimension_numbers = #tpu.dot_dimension_numbers<[1], [0], [0], [1], [0, 0, 1, 1], [], []>} : vector<16x16xf32>, vector<16x8xf32>, vector<16x8xf32> -> vector<16x8xf32>
    %326 = vector.broadcast %323 : vector<16x1xf32> to vector<16x8xf32>
    %327 = arith.divf %325, %326 : vector<16x8xf32>
    %328 = vector.extract_strided_slice %271 {offsets = [0, 32], sizes = [16, 8], strides = [1, 1]} : vector<16x64xf32> to vector<16x8xf32>
    %329 = vector.extract_strided_slice %272 {offsets = [0, 32], sizes = [16, 8], strides = [1, 1]} : vector<16x64xf32> to vector<16x8xf32>
    %cst_116 = arith.constant dense<0.000000e+00> : vector<16x16xf32>
    %330 = tpu.matmul %328, %329, %cst_116 {dimension_numbers = #tpu.dot_dimension_numbers<[1], [1], [0], [0], [0, 0, 1, 0], [], []>} : vector<16x8xf32>, vector<16x8xf32>, vector<16x16xf32> -> vector<16x16xf32>
    %cst_117 = arith.constant 0.353553385 : f32
    %331 = vector.broadcast %cst_117 : f32 to vector<16x16xf32>
    %332 = arith.mulf %330, %331 : vector<16x16xf32>
    %333 = math.exp %332 : vector<16x16xf32>
    %334 = arith.mulf %333, %21 : vector<16x16xf32>
    %cst_118 = arith.constant dense<0.000000e+00> : vector<16xf32>
    %335 = vector.multi_reduction <add>, %334, %cst_118 [1] : vector<16x16xf32> to vector<16xf32>
    %336 = vector.shape_cast %335 : vector<16xf32> to vector<16x1xf32>
    %337 = vector.extract_strided_slice %273 {offsets = [0, 32], sizes = [16, 8], strides = [1, 1]} : vector<16x64xf32> to vector<16x8xf32>
    %cst_119 = arith.constant dense<0.000000e+00> : vector<16x8xf32>
    %338 = tpu.matmul %334, %337, %cst_119 {dimension_numbers = #tpu.dot_dimension_numbers<[1], [0], [0], [1], [0, 0, 1, 1], [], []>} : vector<16x16xf32>, vector<16x8xf32>, vector<16x8xf32> -> vector<16x8xf32>
    %339 = vector.broadcast %336 : vector<16x1xf32> to vector<16x8xf32>
    %340 = arith.divf %338, %339 : vector<16x8xf32>
    %341 = vector.extract_strided_slice %271 {offsets = [0, 40], sizes = [16, 8], strides = [1, 1]} : vector<16x64xf32> to vector<16x8xf32>
    %342 = vector.extract_strided_slice %272 {offsets = [0, 40], sizes = [16, 8], strides = [1, 1]} : vector<16x64xf32> to vector<16x8xf32>
    %cst_120 = arith.constant dense<0.000000e+00> : vector<16x16xf32>
    %343 = tpu.matmul %341, %342, %cst_120 {dimension_numbers = #tpu.dot_dimension_numbers<[1], [1], [0], [0], [0, 0, 1, 0], [], []>} : vector<16x8xf32>, vector<16x8xf32>, vector<16x16xf32> -> vector<16x16xf32>
    %cst_121 = arith.constant 0.353553385 : f32
    %344 = vector.broadcast %cst_121 : f32 to vector<16x16xf32>
    %345 = arith.mulf %343, %344 : vector<16x16xf32>
    %346 = math.exp %345 : vector<16x16xf32>
    %347 = arith.mulf %346, %21 : vector<16x16xf32>
    %cst_122 = arith.constant dense<0.000000e+00> : vector<16xf32>
    %348 = vector.multi_reduction <add>, %347, %cst_122 [1] : vector<16x16xf32> to vector<16xf32>
    %349 = vector.shape_cast %348 : vector<16xf32> to vector<16x1xf32>
    %350 = vector.extract_strided_slice %273 {offsets = [0, 40], sizes = [16, 8], strides = [1, 1]} : vector<16x64xf32> to vector<16x8xf32>
    %cst_123 = arith.constant dense<0.000000e+00> : vector<16x8xf32>
    %351 = tpu.matmul %347, %350, %cst_123 {dimension_numbers = #tpu.dot_dimension_numbers<[1], [0], [0], [1], [0, 0, 1, 1], [], []>} : vector<16x16xf32>, vector<16x8xf32>, vector<16x8xf32> -> vector<16x8xf32>
    %352 = vector.broadcast %349 : vector<16x1xf32> to vector<16x8xf32>
    %353 = arith.divf %351, %352 : vector<16x8xf32>
    %354 = vector.extract_strided_slice %271 {offsets = [0, 48], sizes = [16, 8], strides = [1, 1]} : vector<16x64xf32> to vector<16x8xf32>
    %355 = vector.extract_strided_slice %272 {offsets = [0, 48], sizes = [16, 8], strides = [1, 1]} : vector<16x64xf32> to vector<16x8xf32>
    %cst_124 = arith.constant dense<0.000000e+00> : vector<16x16xf32>
    %356 = tpu.matmul %354, %355, %cst_124 {dimension_numbers = #tpu.dot_dimension_numbers<[1], [1], [0], [0], [0, 0, 1, 0], [], []>} : vector<16x8xf32>, vector<16x8xf32>, vector<16x16xf32> -> vector<16x16xf32>
    %cst_125 = arith.constant 0.353553385 : f32
    %357 = vector.broadcast %cst_125 : f32 to vector<16x16xf32>
    %358 = arith.mulf %356, %357 : vector<16x16xf32>
    %359 = math.exp %358 : vector<16x16xf32>
    %360 = arith.mulf %359, %21 : vector<16x16xf32>
    %cst_126 = arith.constant dense<0.000000e+00> : vector<16xf32>
    %361 = vector.multi_reduction <add>, %360, %cst_126 [1] : vector<16x16xf32> to vector<16xf32>
    %362 = vector.shape_cast %361 : vector<16xf32> to vector<16x1xf32>
    %363 = vector.extract_strided_slice %273 {offsets = [0, 48], sizes = [16, 8], strides = [1, 1]} : vector<16x64xf32> to vector<16x8xf32>
    %cst_127 = arith.constant dense<0.000000e+00> : vector<16x8xf32>
    %364 = tpu.matmul %360, %363, %cst_127 {dimension_numbers = #tpu.dot_dimension_numbers<[1], [0], [0], [1], [0, 0, 1, 1], [], []>} : vector<16x16xf32>, vector<16x8xf32>, vector<16x8xf32> -> vector<16x8xf32>
    %365 = vector.broadcast %362 : vector<16x1xf32> to vector<16x8xf32>
    %366 = arith.divf %364, %365 : vector<16x8xf32>
    %367 = vector.extract_strided_slice %271 {offsets = [0, 56], sizes = [16, 8], strides = [1, 1]} : vector<16x64xf32> to vector<16x8xf32>
    %368 = vector.extract_strided_slice %272 {offsets = [0, 56], sizes = [16, 8], strides = [1, 1]} : vector<16x64xf32> to vector<16x8xf32>
    %cst_128 = arith.constant dense<0.000000e+00> : vector<16x16xf32>
    %369 = tpu.matmul %367, %368, %cst_128 {dimension_numbers = #tpu.dot_dimension_numbers<[1], [1], [0], [0], [0, 0, 1, 0], [], []>} : vector<16x8xf32>, vector<16x8xf32>, vector<16x16xf32> -> vector<16x16xf32>
    %cst_129 = arith.constant 0.353553385 : f32
    %370 = vector.broadcast %cst_129 : f32 to vector<16x16xf32>
    %371 = arith.mulf %369, %370 : vector<16x16xf32>
    %372 = math.exp %371 : vector<16x16xf32>
    %373 = arith.mulf %372, %21 : vector<16x16xf32>
    %cst_130 = arith.constant dense<0.000000e+00> : vector<16xf32>
    %374 = vector.multi_reduction <add>, %373, %cst_130 [1] : vector<16x16xf32> to vector<16xf32>
    %375 = vector.shape_cast %374 : vector<16xf32> to vector<16x1xf32>
    %376 = vector.extract_strided_slice %273 {offsets = [0, 56], sizes = [16, 8], strides = [1, 1]} : vector<16x64xf32> to vector<16x8xf32>
    %cst_131 = arith.constant dense<0.000000e+00> : vector<16x8xf32>
    %377 = tpu.matmul %373, %376, %cst_131 {dimension_numbers = #tpu.dot_dimension_numbers<[1], [0], [0], [1], [0, 0, 1, 1], [], []>} : vector<16x16xf32>, vector<16x8xf32>, vector<16x8xf32> -> vector<16x8xf32>
    %378 = vector.broadcast %375 : vector<16x1xf32> to vector<16x8xf32>
    %379 = arith.divf %377, %378 : vector<16x8xf32>
    %380 = tpu.concatenate %288, %301, %314, %327, %340, %353, %366, %379 in 1 : vector<16x8xf32>, vector<16x8xf32>, vector<16x8xf32>, vector<16x8xf32>, vector<16x8xf32>, vector<16x8xf32>, vector<16x8xf32>, vector<16x8xf32> -> vector<16x64xf32>
    %cst_132 = arith.constant dense<0.000000e+00> : vector<16x64xf32>
    %381 = tpu.matmul %380, %274, %cst_132 {dimension_numbers = #tpu.dot_dimension_numbers<[1], [0], [0], [1], [0, 0, 1, 1], [], []>} : vector<16x64xf32>, vector<64x64xf32>, vector<16x64xf32> -> vector<16x64xf32>
    %382 = vector.broadcast %275 : vector<1x64xf32> to vector<16x64xf32>
    %383 = arith.addf %381, %382 : vector<16x64xf32>
    %c64_133 = arith.constant 64 : index
    %c0_134 = arith.constant 0 : index
    %384 = vector.load %arg3[%c64_133, %c0_134] : memref<184x64xf32, #tpu.memory_space<vmem>>, vector<64x48xf32>
    %cst_135 = arith.constant dense<0.000000e+00> : vector<16x48xf32>
    %385 = tpu.matmul %383, %384, %cst_135 {dimension_numbers = #tpu.dot_dimension_numbers<[1], [0], [0], [1], [0, 0, 1, 1], [], []>} : vector<16x64xf32>, vector<64x48xf32>, vector<16x48xf32> -> vector<16x48xf32>
    %c179 = arith.constant 179 : index
    %c0_136 = arith.constant 0 : index
    %386 = vector.load %arg3[%c179, %c0_136] : memref<184x64xf32, #tpu.memory_space<vmem>>, vector<1x48xf32>
    %387 = vector.broadcast %386 : vector<1x48xf32> to vector<16x48xf32>
    %388 = arith.addf %385, %387 : vector<16x48xf32>
    %cst_137 = arith.constant dense<0.000000e+00> : vector<16xf32>
    %389 = vector.multi_reduction <add>, %388, %cst_137 [1] : vector<16x48xf32> to vector<16xf32>
    %390 = vector.shape_cast %389 : vector<16xf32> to vector<16x1xf32>
    %cst_138 = arith.constant 4.800000e+01 : f32
    %391 = vector.broadcast %cst_138 : f32 to vector<16x1xf32>
    %392 = arith.divf %390, %391 : vector<16x1xf32>
    %393 = vector.broadcast %392 : vector<16x1xf32> to vector<16x48xf32>
    %394 = arith.subf %388, %393 : vector<16x48xf32>
    %395 = arith.mulf %394, %394 : vector<16x48xf32>
    %cst_139 = arith.constant dense<0.000000e+00> : vector<16xf32>
    %396 = vector.multi_reduction <add>, %395, %cst_139 [1] : vector<16x48xf32> to vector<16xf32>
    %397 = vector.shape_cast %396 : vector<16xf32> to vector<16x1xf32>
    %cst_140 = arith.constant 4.800000e+01 : f32
    %398 = vector.broadcast %cst_140 : f32 to vector<16x1xf32>
    %399 = arith.divf %397, %398 : vector<16x1xf32>
    %400 = vector.broadcast %392 : vector<16x1xf32> to vector<16x48xf32>
    %401 = arith.subf %388, %400 : vector<16x48xf32>
    %cst_141 = arith.constant 9.99999974E-6 : f32
    %402 = vector.broadcast %cst_141 : f32 to vector<16x1xf32>
    %403 = arith.addf %399, %402 : vector<16x1xf32>
    %404 = math.rsqrt %403 : vector<16x1xf32>
    %405 = vector.broadcast %404 : vector<16x1xf32> to vector<16x48xf32>
    %406 = arith.mulf %401, %405 : vector<16x48xf32>
    %c180 = arith.constant 180 : index
    %c0_142 = arith.constant 0 : index
    %407 = vector.load %arg3[%c180, %c0_142] : memref<184x64xf32, #tpu.memory_space<vmem>>, vector<1x48xf32>
    %408 = vector.broadcast %407 : vector<1x48xf32> to vector<16x48xf32>
    %409 = arith.mulf %406, %408 : vector<16x48xf32>
    %c181 = arith.constant 181 : index
    %c0_143 = arith.constant 0 : index
    %410 = vector.load %arg3[%c181, %c0_143] : memref<184x64xf32, #tpu.memory_space<vmem>>, vector<1x48xf32>
    %411 = vector.broadcast %410 : vector<1x48xf32> to vector<16x48xf32>
    %412 = arith.addf %409, %411 : vector<16x48xf32>
    %c0_144 = arith.constant 0 : index
    %c0_145 = arith.constant 0 : index
    %413 = vector.load %arg4[%c0_144, %c0_145] : memref<16x48xf32, #tpu.memory_space<vmem>>, vector<16x48xf32>
    tpu.vector_store %arg4[%c0_144, %c0_145], %412 {strides = array<i32>} : memref<16x48xf32, #tpu.memory_space<vmem>>, vector<16x48xf32>,
    return
  }
}

</mosaic_0001>

<llo_original>
// kernel: tpu_custom_call.1
$region0: #{tpu_custom_call.1}
  #allocation0 [shape = 'u32[]', space=smem, size = 0x4, offset = 0x4, fixed_abs, tag = 'smem constant byte address 0x4 - core index']
  #allocation1 [shape = 'u32[144,128]{1,0:T(1,128)}', space=vmem, size = 0x12000, scoped, tag = 'internal scratch']
  %s0 = inlined_call_operand.vmem [shape: f32[16,32], index: 0, kind: input, shape index: {}]
  %s1 = inlined_call_operand.vmem [shape: f32[16,16], index: 1, kind: input, shape index: {}]
  %s2 = inlined_call_operand.vmem [shape: f32[112,192], index: 2, kind: input, shape index: {}]
  %s3 = inlined_call_operand.vmem [shape: f32[184,64], index: 3, kind: input, shape index: {}]
  %s4 = inlined_call_operand.hbm [shape: f32[16,48], index: 4, kind: output, shape index: {}]
  %s5 = sld [smem:[#allocation0]]
  $region26: #{tpu_custom_call.1} parent=0
    _
  %s7 = ssub.s32 1, %s5
  %s8 = scalar_select 0, %s7, %s5
  $region1: #{tpu_custom_call.1} parent=0
    #allocation2 [shape = 'u8[8192]{0}', space=vmem, size = 0x2000, scoped, tag = 'output window, operand 0, single buffered']
    #allocation3 [shape = 's32[1]{0}', space=sflag, size = 0x4, scoped, tag = 'scoped memory for tpu_custom_call.1']
    %9 = vsyncpa [#allocation3], 0
    // Predicated region
    $region2: #{tpu_custom_call.1} parent=1 // pred_check
      _
    $region3: #{tpu_custom_call.1} parent=1 // pred_check_branch
      %11 = sbr.rel (0) target = $region5
    $region4: #{tpu_custom_call.1} parent=1 // pred_region
      _
    $region5: #{tpu_custom_call.1} parent=1 // pred_fallthru
      _
    // Predicated region
    $region6: #{tpu_custom_call.1} parent=1 // pred_check
      _
    $region7: #{tpu_custom_call.1} parent=1 // pred_check_branch
      %13 = sbr.rel (0) target = $region9
    $region8: #{tpu_custom_call.1} parent=1 // pred_region
      _
    $region9: #{tpu_custom_call.1} parent=1 // pred_fallthru
      _
    // Predicated region
    $region10: #{tpu_custom_call.1} parent=1 // pred_check
      _
    $region11: #{tpu_custom_call.1} parent=1 // pred_check_branch
      %15 = sbr.rel (0) target = $region13
    $region12: #{tpu_custom_call.1} parent=1 // pred_region
      _
    $region13: #{tpu_custom_call.1} parent=1 // pred_fallthru
      _
    // Predicated region
    $region14: #{tpu_custom_call.1} parent=1 // pred_check
      _
    $region15: #{tpu_custom_call.1} parent=1 // pred_check_branch
      %17 = sbr.rel (0) target = $region17
    $region16: #{tpu_custom_call.1} parent=1 // pred_region
      _
    $region17: #{tpu_custom_call.1} parent=1 // pred_fallthru
      _
    %v18 = vld [vmem:[%s0] sm:$0xff]
    %v19 = vld [vmem:[%s0 + $0x8] sm:$0xff]
    %v20 = vld [vmem:[%s1] sm:$0xff]
    %v21 = vld [vmem:[%s1 + $0x8] sm:$0xff]
    %v22 = vlaneseq
    %v23 = vshrl.u32 %v22, 7
    %v24 = vadd.s32 %v23, 8
    %v25 = vlaneseq
    %v26 = vand.u32 %v25, 127
    %vm27 = vcmp.ge.s32.totalorder %v23, 8
    %vm28 = vcmp.ge.s32.totalorder %v24, 8
    %v29 = vsel %vm27, 1, 0
    %v30 = vsel %vm28, 1, 0
    %vm31 = vcmp.ge.s32.totalorder %v26, 8
    %v32 = vsel %vm31, 1, 0
    %vm33 = vcmp.eq.s32.totalorder %v29, %v32
    %vm34 = vcmp.eq.s32.totalorder %v30, %v32
    %v35 = vsel %vm33, 1.0, 0.0
    %v36 = vsel %vm34, 1.0, 0.0
    %v37 = vld [vmem:[%s3 + $0xa0] sm:$0xff]
    %v38 = vld [vmem:[%s3 + $0xa8] sm:$0xff]
    %v39 = vld [vmem:[%s3 + $0xb0] sm:$0x1]
    %v40 = vlaneseq
    %v41 = vshrl.u32 %v40, 7
    %v42 = vsub.s32 0, %v41
    %v43 = vrot.slane %v39, %v42
    %vm44 = vcmask 130048
    %v46 = vsel %vm44, %v20, 0
    %v49 = vsel %vm44, %v21, 0
    %51 = vmatprep.subr.mxu0 0.0
    %52 = vmatpush1.msra.mxu0 %v37
    %53 = vmatprep.subr.mxu0 0.0
    %54 = vmatpush1.msra.mxu0 %v38
    %55 = vmatprep.subr.mxu0 0.0
    %56 = vmatpush1.msra.mxu0 0.0
    %57 = vmatprep.subr.mxu0 0.0
    %58 = vmatpush1.msra.mxu0 0.0
    %59 = vmatprep.subr.mxu0 0.0
    %60 = vmatpush1.msra.mxu0 0.0
    %61 = vmatprep.subr.mxu0 0.0
    %62 = vmatpush1.msra.mxu0 0.0
    %63 = vmatprep.subr.mxu0 0.0
    %64 = vmatpush1.msra.mxu0 0.0
    %65 = vmatprep.subr.mxu0 0.0
    %66 = vmatpush1.msra.mxu0 0.0
    %67 = vmatprep.subr.mxu0 0.0
    %68 = vmatpush1.msra.mxu0 0.0
    %69 = vmatprep.subr.mxu0 0.0
    %70 = vmatpush1.msra.mxu0 0.0
    %71 = vmatprep.subr.mxu0 0.0
    %72 = vmatpush1.msra.mxu0 0.0
    %73 = vmatprep.subr.mxu0 0.0
    %74 = vmatpush1.msra.mxu0 0.0
    %75 = vmatprep.subr.mxu0 0.0
    %76 = vmatpush1.msra.mxu0 0.0
    %77 = vmatprep.subr.mxu0 0.0
    %78 = vmatpush1.msra.mxu0 0.0
    %79 = vmatprep.subr.mxu0 0.0
    %80 = vmatpush1.msra.mxu0 0.0
    %81 = vmatprep.subr.mxu0 0.0
    %82 = vmatpush1.msra.mxu0 0.0
    %83 = vmatprep.subr.mxu0 0.0
    %84 = vmatpush1.msra.mxu0 0.0
    %85 = vmatprep.subr.mxu0 0.0
    %86 = vmatpush1.msra.mxu0 0.0
    %87 = vmatprep.subr.mxu0 0.0
    %88 = vmatpush1.msra.mxu0 0.0
    %89 = vmatprep.subr.mxu0 0.0
    %90 = vmatpush1.msra.mxu0 0.0
    %91 = vmatprep.subr.mxu0 0.0
    %92 = vmatpush1.msra.mxu0 0.0
    %93 = vmatprep.subr.mxu0 0.0
    %94 = vmatpush1.msra.mxu0 0.0
    %95 = vmatprep.subr.mxu0 0.0
    %96 = vmatpush1.msra.mxu0 0.0
    %97 = vmatprep.subr.mxu0 0.0
    %98 = vmatpush1.msra.mxu0 0.0
    %99 = vmatprep.subr.mxu0 0.0
    %100 = vmatpush1.msra.mxu0 0.0
    %101 = vmatprep.subr.mxu0 0.0
    %102 = vmatpush1.msra.mxu0 0.0
    %103 = vmatprep.subr.mxu0 0.0
    %104 = vmatpush1.msra.mxu0 0.0
    %105 = vmatprep.subr.mxu0 0.0
    %106 = vmatpush1.msra.mxu0 0.0
    %107 = vmatprep.subr.mxu0 0.0
    %108 = vmatpush1.msra.mxu0 0.0
    %109 = vmatprep.subr.mxu0 0.0
    %110 = vmatpush1.msra.mxu0 0.0
    %111 = vmatprep.subr.mxu0 0.0
    %112 = vmatpush1.msra.mxu0 0.0
    %113 = vmatprep.subr.mxu0 0.0
    %114 = vmatpush1.msra.mxu0 0.0
    %115 = vmatprep.mubr.f32.mxu0 0.0
    %116 = vmatmul.mubr.f32.gmra.mrb[0].mxu0 %v46
    %v117 = vpop.f32.mrb[0].mxu0
    %v118 = vadd.f32 %v43, %v117
    %v119 = vpop.f32.mrb[0].mxu0
    %120 = vmatprep.mubr.f32.mxu0 0.0
    %121 = vmatmul.mubr.f32.gmra.mrb[0].mxu0 %v49
    %v122 = vpop.f32.mrb[0].mxu0
    %v123 = vadd.f32 %v43, %v122
    %v124 = vpop.f32.mrb[0].mxu0
    %125 = vdwg.mxu0
    %v126 = vld [vmem:[%s2 + $0x90] sm:$0xff]
    %v127 = vld [vmem:[%s2 + $0xa0] sm:$0xff]
    %v128 = vld [vmem:[%s2 + $0xb0] sm:$0xff]
    %v129 = vld [vmem:[%s2 + $0xc0] sm:$0xff]
    %v130 = vld [vmem:[%s2 + $0xd0] ss:$0 sm:$0xff]
    %vm131 = vcmask 261120
    %v133 = vsel %vm131, %v18, 0
    %v136 = vsel %vm131, %v19, 0
    %138 = vmatprep.subr.mxu0 0.0
    %139 = vmatpush1.msra.mxu0 %v126
    %140 = vmatprep.subr.mxu0 0.0
    %141 = vmatpush1.msra.mxu0 %v127
    %142 = vmatprep.subr.mxu0 0.0
    %143 = vmatpush1.msra.mxu0 %v128
    %144 = vmatprep.subr.mxu0 0.0
    %145 = vmatpush1.msra.mxu0 %v129
    %146 = vmatprep.subr.mxu0 0.0
    %147 = vmatpush1.msra.mxu0 0.0
    %148 = vmatprep.subr.mxu0 0.0
    %149 = vmatpush1.msra.mxu0 0.0
    %150 = vmatprep.subr.mxu0 0.0
    %151 = vmatpush1.msra.mxu0 0.0
    %152 = vmatprep.subr.mxu0 0.0
    %153 = vmatpush1.msra.mxu0 0.0
    %154 = vmatprep.subr.mxu0 0.0
    %155 = vmatpush1.msra.mxu0 0.0
    %156 = vmatprep.subr.mxu0 0.0
    %157 = vmatpush1.msra.mxu0 0.0
    %158 = vmatprep.subr.mxu0 0.0
    %159 = vmatpush1.msra.mxu0 0.0
    %160 = vmatprep.subr.mxu0 0.0
    %161 = vmatpush1.msra.mxu0 0.0
    %162 = vmatprep.subr.mxu0 0.0
    %163 = vmatpush1.msra.mxu0 0.0
    %164 = vmatprep.subr.mxu0 0.0
    %165 = vmatpush1.msra.mxu0 0.0
    %166 = vmatprep.subr.mxu0 0.0
    %167 = vmatpush1.msra.mxu0 0.0
    %168 = vmatprep.subr.mxu0 0.0
    %169 = vmatpush1.msra.mxu0 0.0
    %170 = vmatprep.subr.mxu0 0.0
    %171 = vmatpush1.msra.mxu0 0.0
    %172 = vmatprep.subr.mxu0 0.0
    %173 = vmatpush1.msra.mxu0 0.0
    %174 = vmatprep.subr.mxu0 0.0
    %175 = vmatpush1.msra.mxu0 0.0
    %176 = vmatprep.subr.mxu0 0.0
    %177 = vmatpush1.msra.mxu0 0.0
    %178 = vmatprep.subr.mxu0 0.0
    %179 = vmatpush1.msra.mxu0 0.0
    %180 = vmatprep.subr.mxu0 0.0
    %181 = vmatpush1.msra.mxu0 0.0
    %182 = vmatprep.subr.mxu0 0.0
    %183 = vmatpush1.msra.mxu0 0.0
    %184 = vmatprep.subr.mxu0 0.0
    %185 = vmatpush1.msra.mxu0 0.0
    %186 = vmatprep.subr.mxu0 0.0
    %187 = vmatpush1.msra.mxu0 0.0
    %188 = vmatprep.subr.mxu0 0.0
    %189 = vmatpush1.msra.mxu0 0.0
    %190 = vmatprep.subr.mxu0 0.0
    %191 = vmatpush1.msra.mxu0 0.0
    %192 = vmatprep.subr.mxu0 0.0
    %193 = vmatpush1.msra.mxu0 0.0
    %194 = vmatprep.subr.mxu0 0.0
    %195 = vmatpush1.msra.mxu0 0.0
    %196 = vmatprep.subr.mxu0 0.0
    %197 = vmatpush1.msra.mxu0 0.0
    %198 = vmatprep.subr.mxu0 0.0
    %199 = vmatpush1.msra.mxu0 0.0
    %200 = vmatprep.subr.mxu0 0.0
    %201 = vmatpush1.msra.mxu0 0.0
    %202 = vmatprep.mubr.f32.mxu0 0.0
    %203 = vmatmul.mubr.f32.gmra.mrb[0].mxu0 %v133
    %v204 = vpop.f32.mrb[0].mxu0
    %v205 = vadd.f32 %v130, %v204
    %v206 = vpop.f32.mrb[0].mxu0
    %207 = vmatprep.mubr.f32.mxu0 0.0
    %208 = vmatmul.mubr.f32.gmra.mrb[0].mxu0 %v136
    %v209 = vpop.f32.mrb[0].mxu0
    %v210 = vadd.f32 %v130, %v209
    %v211 = vpop.f32.mrb[0].mxu0
    %212 = vdwg.mxu0
    %v213 = vld [vmem:[%s2 + $0x90] sm:$0xff]
    %v214 = vld [vmem:[%s2 + $0x98] sm:$0xff]
    %v215 = vld [vmem:[%s2 + $0xa0] sm:$0xff]
    %v216 = vld [vmem:[%s2 + $0xa8] sm:$0xff]
    %v217 = vld [vmem:[%s2 + $0xb0] sm:$0xff]
    %v218 = vld [vmem:[%s2 + $0xb8] sm:$0xff]
    %v219 = vld [vmem:[%s2 + $0xc0] sm:$0xff]
    %v220 = vld [vmem:[%s2 + $0xc8] sm:$0xff]
    %v221 = vld [vmem:[%s2 + $0xd0] ss:$0 sm:$0xff]
    %v222 = vld [vmem:[%s2 + $0xd8] ss:$0 sm:$0xff]
    %231 = vrot.lane.b32.xlu0 %v213, 32
    %v232 = vpop.permute.xlu0 %231
    %233 = vrot.lane.b32.xlu0 %v214, 32
    %v234 = vpop.permute.xlu0 %233
    %235 = vrot.lane.b32.xlu0 %v215, 32
    %v236 = vpop.permute.xlu0 %235
    %237 = vrot.lane.b32.xlu0 %v216, 32
    %v238 = vpop.permute.xlu0 %237
    %239 = vrot.lane.b32.xlu0 %v217, 32
    %v240 = vpop.permute.xlu0 %239
    %241 = vrot.lane.b32.xlu0 %v218, 32
    %v242 = vpop.permute.xlu0 %241
    %243 = vrot.lane.b32.xlu0 %v219, 32
    %v244 = vpop.permute.xlu0 %243
    %245 = vrot.lane.b32.xlu0 %v220, 32
    %v246 = vpop.permute.xlu0 %245
    %v247 = vsel %vm131, %v232, %v234
    %v248 = vsel %vm131, %v236, %v238
    %v249 = vsel %vm131, %v240, %v242
    %v250 = vsel %vm131, %v244, %v246
    %257 = vrot.lane.b32.xlu0 %v221, 32
    %v258 = vpop.permute.xlu0 %257
    %259 = vrot.lane.b32.xlu0 %v222, 32
    %v260 = vpop.permute.xlu0 %259
    %v261 = vsel %vm131, %v258, %v260
    %v264 = vsel %vm131, %v118, 0
    %v267 = vsel %vm131, %v123, 0
    %269 = vmatprep.subr.mxu0 0.0
    %270 = vmatpush1.msra.mxu0 %v247
    %271 = vmatprep.subr.mxu0 0.0
    %272 = vmatpush1.msra.mxu0 %v248
    %273 = vmatprep.subr.mxu0 0.0
    %274 = vmatpush1.msra.mxu0 %v249
    %275 = vmatprep.subr.mxu0 0.0
    %276 = vmatpush1.msra.mxu0 %v250
    %277 = vmatprep.subr.mxu0 0.0
    %278 = vmatpush1.msra.mxu0 0.0
    %279 = vmatprep.subr.mxu0 0.0
    %280 = vmatpush1.msra.mxu0 0.0
    %281 = vmatprep.subr.mxu0 0.0
    %282 = vmatpush1.msra.mxu0 0.0
    %283 = vmatprep.subr.mxu0 0.0
    %284 = vmatpush1.msra.mxu0 0.0
    %285 = vmatprep.subr.mxu0 0.0
    %286 = vmatpush1.msra.mxu0 0.0
    %287 = vmatprep.subr.mxu0 0.0
    %288 = vmatpush1.msra.mxu0 0.0
    %289 = vmatprep.subr.mxu0 0.0
    %290 = vmatpush1.msra.mxu0 0.0
    %291 = vmatprep.subr.mxu0 0.0
    %292 = vmatpush1.msra.mxu0 0.0
    %293 = vmatprep.subr.mxu0 0.0
    %294 = vmatpush1.msra.mxu0 0.0
    %295 = vmatprep.subr.mxu0 0.0
    %296 = vmatpush1.msra.mxu0 0.0
    %297 = vmatprep.subr.mxu0 0.0
    %298 = vmatpush1.msra.mxu0 0.0
    %299 = vmatprep.subr.mxu0 0.0
    %300 = vmatpush1.msra.mxu0 0.0
    %301 = vmatprep.subr.mxu0 0.0
    %302 = vmatpush1.msra.mxu0 0.0
    %303 = vmatprep.subr.mxu0 0.0
    %304 = vmatpush1.msra.mxu0 0.0
    %305 = vmatprep.subr.mxu0 0.0
    %306 = vmatpush1.msra.mxu0 0.0
    %307 = vmatprep.subr.mxu0 0.0
    %308 = vmatpush1.msra.mxu0 0.0
    %309 = vmatprep.subr.mxu0 0.0
    %310 = vmatpush1.msra.mxu0 0.0
    %311 = vmatprep.subr.mxu0 0.0
    %312 = vmatpush1.msra.mxu0 0.0
    %313 = vmatprep.subr.mxu0 0.0
    %314 = vmatpush1.msra.mxu0 0.0
    %315 = vmatprep.subr.mxu0 0.0
    %316 = vmatpush1.msra.mxu0 0.0
    %317 = vmatprep.subr.mxu0 0.0
    %318 = vmatpush1.msra.mxu0 0.0
    %319 = vmatprep.subr.mxu0 0.0
    %320 = vmatpush1.msra.mxu0 0.0
    %321 = vmatprep.subr.mxu0 0.0
    %322 = vmatpush1.msra.mxu0 0.0
    %323 = vmatprep.subr.mxu0 0.0
    %324 = vmatpush1.msra.mxu0 0.0
    %325 = vmatprep.subr.mxu0 0.0
    %326 = vmatpush1.msra.mxu0 0.0
    %327 = vmatprep.subr.mxu0 0.0
    %328 = vmatpush1.msra.mxu0 0.0
    %329 = vmatprep.subr.mxu0 0.0
    %330 = vmatpush1.msra.mxu0 0.0
    %331 = vmatprep.subr.mxu0 0.0
    %332 = vmatpush1.msra.mxu0 0.0
    %333 = vmatprep.mubr.f32.mxu0 0.0
    %334 = vmatmul.mubr.f32.gmra.mrb[0].mxu0 %v264
    %v335 = vpop.f32.mrb[0].mxu0
    %v336 = vadd.f32 %v261, %v335
    %v337 = vpop.f32.mrb[0].mxu0
    %338 = vmatprep.mubr.f32.mxu0 0.0
    %339 = vmatmul.mubr.f32.gmra.mrb[0].mxu0 %v267
    %v340 = vpop.f32.mrb[0].mxu0
    %v341 = vadd.f32 %v261, %v340
    %v342 = vpop.f32.mrb[0].mxu0
    %343 = vdwg.mxu0
    %v344 = vld [vmem:[%s3 + $0x80] sm:$0xff]
    %v345 = vld [vmem:[%s3 + $0x88] sm:$0xff]
    %v346 = vld [vmem:[%s3 + $0x90] sm:$0xff]
    %v347 = vld [vmem:[%s3 + $0x98] sm:$0xff]
    %v348 = vld [vmem:[%s3 + $0xb1] sm:$0x1]
    %vm349 = vcmask 31744
    %v351 = vsel %vm349, %v336, 0
    %v354 = vsel %vm349, %v341, 0
    %v357 = vsel %vm349, %v205, 0
    %v360 = vsel %vm349, %v210, 0
    %362 = vmatprep.subr.mxu0 0.0
    %363 = vmatpush1.xpose.msra.mxu0 %v357
    %364 = vmatprep.subr.mxu0 0.0
    %365 = vmatpush1.xpose.msra.mxu0 %v360
    %366 = vmatprep.subr.mxu0 0.0
    %367 = vmatpush1.xpose.msra.mxu0 0.0
    %368 = vmatprep.subr.mxu0 0.0
    %369 = vmatpush1.xpose.msra.mxu0 0.0
    %370 = vmatprep.subr.mxu0 0.0
    %371 = vmatpush1.xpose.msra.mxu0 0.0
    %372 = vmatprep.subr.mxu0 0.0
    %373 = vmatpush1.xpose.msra.mxu0 0.0
    %374 = vmatprep.subr.mxu0 0.0
    %375 = vmatpush1.xpose.msra.mxu0 0.0
    %376 = vmatprep.subr.mxu0 0.0
    %377 = vmatpush1.xpose.msra.mxu0 0.0
    %378 = vmatprep.subr.mxu0 0.0
    %379 = vmatpush1.xpose.msra.mxu0 0.0
    %380 = vmatprep.subr.mxu0 0.0
    %381 = vmatpush1.xpose.msra.mxu0 0.0
    %382 = vmatprep.subr.mxu0 0.0
    %383 = vmatpush1.xpose.msra.mxu0 0.0
    %384 = vmatprep.subr.mxu0 0.0
    %385 = vmatpush1.xpose.msra.mxu0 0.0
    %386 = vmatprep.subr.mxu0 0.0
    %387 = vmatpush1.xpose.msra.mxu0 0.0
    %388 = vmatprep.subr.mxu0 0.0
    %389 = vmatpush1.xpose.msra.mxu0 0.0
    %390 = vmatprep.subr.mxu0 0.0
    %391 = vmatpush1.xpose.msra.mxu0 0.0
    %392 = vmatprep.subr.mxu0 0.0
    %393 = vmatpush1.xpose.msra.mxu0 0.0
    %394 = vmatprep.subr.mxu0 0.0
    %395 = vmatpush1.xpose.msra.mxu0 0.0
    %396 = vmatprep.subr.mxu0 0.0
    %397 = vmatpush1.xpose.msra.mxu0 0.0
    %398 = vmatprep.subr.mxu0 0.0
    %399 = vmatpush1.xpose.msra.mxu0 0.0
    %400 = vmatprep.subr.mxu0 0.0
    %401 = vmatpush1.xpose.msra.mxu0 0.0
    %402 = vmatprep.subr.mxu0 0.0
    %403 = vmatpush1.xpose.msra.mxu0 0.0
    %404 = vmatprep.subr.mxu0 0.0
    %405 = vmatpush1.xpose.msra.mxu0 0.0
    %406 = vmatprep.subr.mxu0 0.0
    %407 = vmatpush1.xpose.msra.mxu0 0.0
    %408 = vmatprep.subr.mxu0 0.0
    %409 = vmatpush1.xpose.msra.mxu0 0.0
    %410 = vmatprep.subr.mxu0 0.0
    %411 = vmatpush1.xpose.msra.mxu0 0.0
    %412 = vmatprep.subr.mxu0 0.0
    %413 = vmatpush1.xpose.msra.mxu0 0.0
    %414 = vmatprep.subr.mxu0 0.0
    %415 = vmatpush1.xpose.msra.mxu0 0.0
    %416 = vmatprep.subr.mxu0 0.0
    %417 = vmatpush1.xpose.msra.mxu0 0.0
    %418 = vmatprep.subr.mxu0 0.0
    %419 = vmatpush1.xpose.msra.mxu0 0.0
    %420 = vmatprep.subr.mxu0 0.0
    %421 = vmatpush1.xpose.msra.mxu0 0.0
    %422 = vmatprep.subr.mxu0 0.0
    %423 = vmatpush1.xpose.msra.mxu0 0.0
    %424 = vmatprep.subr.mxu0 0.0
    %425 = vmatpush1.xpose.msra.mxu0 0.0
    %426 = vmatprep.mubr.f32.mxu0 0.0
    %427 = vmatmul.mubr.f32.gmra.mrb[0].mxu0 %v351
    %v428 = vpop.f32.mrb[0].mxu0
    %v429 = vadd.f32 0.0, %v428
    %v430 = vpop.f32.mrb[0].mxu0
    %431 = vmatprep.mubr.f32.mxu0 0.0
    %432 = vmatmul.mubr.f32.gmra.mrb[0].mxu0 %v354
    %v433 = vpop.f32.mrb[0].mxu0
    %v434 = vadd.f32 0.0, %v433
    %v435 = vpop.f32.mrb[0].mxu0
    %436 = vdwg.mxu0
    %v437 = vmul.f32 %v429, 0.5
    %v438 = vmul.f32 %v434, 0.5
    %v439 = vmul.f32 %v437, 1.442695
    %v440 = vpow.pop %v439
    %v441 = vmul.f32 %v438, 1.442695
    %v442 = vpow.pop %v441
    %v443 = vmul.f32 %v440, %v35
    %v444 = vmul.f32 %v442, %v36
    %v445 = vsel %vm44, %v443, 0.0
    %446 = vadd.xlane.f32.xlu0 %v445
    %v447 = vpop.xlane.xlu0 %446
    %v448 = vsel %vm44, %v444, 0.0
    %449 = vadd.xlane.f32.xlu0 %v448
    %v450 = vpop.xlane.xlu0 %449
    %451 = vrot.lane.b32.xlu0 %v205, 96
    %v452 = vpop.permute.xlu0 %451
    %453 = vrot.lane.b32.xlu0 %v210, 96
    %v454 = vpop.permute.xlu0 %453
    %v458 = vsel %vm44, %v443, 0
    %v461 = vsel %vm44, %v444, 0
    %463 = vmatprep.subr.mxu0 0.0
    %464 = vmatpush1.msra.mxu0 %v452
    %465 = vmatprep.subr.mxu0 0.0
    %466 = vmatpush1.msra.mxu0 %v454
    %467 = vmatprep.subr.mxu0 0.0
    %468 = vmatpush1.msra.mxu0 0.0
    %469 = vmatprep.subr.mxu0 0.0
    %470 = vmatpush1.msra.mxu0 0.0
    %471 = vmatprep.subr.mxu0 0.0
    %472 = vmatpush1.msra.mxu0 0.0
    %473 = vmatprep.subr.mxu0 0.0
    %474 = vmatpush1.msra.mxu0 0.0
    %475 = vmatprep.subr.mxu0 0.0
    %476 = vmatpush1.msra.mxu0 0.0
    %477 = vmatprep.subr.mxu0 0.0
    %478 = vmatpush1.msra.mxu0 0.0
    %479 = vmatprep.subr.mxu0 0.0
    %480 = vmatpush1.msra.mxu0 0.0
    %481 = vmatprep.subr.mxu0 0.0
    %482 = vmatpush1.msra.mxu0 0.0
    %483 = vmatprep.subr.mxu0 0.0
    %484 = vmatpush1.msra.mxu0 0.0
    %485 = vmatprep.subr.mxu0 0.0
    %486 = vmatpush1.msra.mxu0 0.0
    %487 = vmatprep.subr.mxu0 0.0
    %488 = vmatpush1.msra.mxu0 0.0
    %489 = vmatprep.subr.mxu0 0.0
    %490 = vmatpush1.msra.mxu0 0.0
    %491 = vmatprep.subr.mxu0 0.0
    %492 = vmatpush1.msra.mxu0 0.0
    %493 = vmatprep.subr.mxu0 0.0
    %494 = vmatpush1.msra.mxu0 0.0
    %495 = vmatprep.subr.mxu0 0.0
    %496 = vmatpush1.msra.mxu0 0.0
    %497 = vmatprep.subr.mxu0 0.0
    %498 = vmatpush1.msra.mxu0 0.0
    %499 = vmatprep.subr.mxu0 0.0
    %500 = vmatpush1.msra.mxu0 0.0
    %501 = vmatprep.subr.mxu0 0.0
    %502 = vmatpush1.msra.mxu0 0.0
    %503 = vmatprep.subr.mxu0 0.0
    %504 = vmatpush1.msra.mxu0 0.0
    %505 = vmatprep.subr.mxu0 0.0
    %506 = vmatpush1.msra.mxu0 0.0
    %507 = vmatprep.subr.mxu0 0.0
    %508 = vmatpush1.msra.mxu0 0.0
    %509 = vmatprep.subr.mxu0 0.0
    %510 = vmatpush1.msra.mxu0 0.0
    %511 = vmatprep.subr.mxu0 0.0
    %512 = vmatpush1.msra.mxu0 0.0
    %513 = vmatprep.subr.mxu0 0.0
    %514 = vmatpush1.msra.mxu0 0.0
    %515 = vmatprep.subr.mxu0 0.0
    %516 = vmatpush1.msra.mxu0 0.0
    %517 = vmatprep.subr.mxu0 0.0
    %518 = vmatpush1.msra.mxu0 0.0
    %519 = vmatprep.subr.mxu0 0.0
    %520 = vmatpush1.msra.mxu0 0.0
    %521 = vmatprep.subr.mxu0 0.0
    %522 = vmatpush1.msra.mxu0 0.0
    %523 = vmatprep.subr.mxu0 0.0
    %524 = vmatpush1.msra.mxu0 0.0
    %525 = vmatprep.subr.mxu0 0.0
    %526 = vmatpush1.msra.mxu0 0.0
    %527 = vmatprep.mubr.f32.mxu0 0.0
    %528 = vmatmul.mubr.f32.gmra.mrb[0].mxu0 %v458
    %v529 = vpop.f32.mrb[0].mxu0
    %v530 = vadd.f32 0.0, %v529
    %v531 = vpop.f32.mrb[0].mxu0
    %532 = vmatprep.mubr.f32.mxu0 0.0
    %533 = vmatmul.mubr.f32.gmra.mrb[0].mxu0 %v461
    %v534 = vpop.f32.mrb[0].mxu0
    %v535 = vadd.f32 0.0, %v534
    %v536 = vpop.f32.mrb[0].mxu0
    %537 = vdwg.mxu0
    %v538 = vrcp.pop %v447
    %v539 = vmul.f32 %v530, %v538
    %v540 = vrcp.pop %v450
    %v541 = vmul.f32 %v535, %v540
    %542 = vrot.lane.b32.xlu0 %v336, 124
    %v543 = vpop.permute.xlu0 %542
    %544 = vrot.lane.b32.xlu0 %v341, 124
    %v545 = vpop.permute.xlu0 %544
    %546 = vrot.lane.b32.xlu0 %v205, 124
    %v547 = vpop.permute.xlu0 %546
    %548 = vrot.lane.b32.xlu0 %v210, 124
    %v549 = vpop.permute.xlu0 %548
    %v550 = vsel %vm349, %v543, 0
    %v552 = vsel %vm349, %v545, 0
    %v554 = vsel %vm349, %v547, 0
    %v556 = vsel %vm349, %v549, 0
    %558 = vmatprep.subr.mxu0 0.0
    %559 = vmatpush1.xpose.msra.mxu0 %v554
    %560 = vmatprep.subr.mxu0 0.0
    %561 = vmatpush1.xpose.msra.mxu0 %v556
    %562 = vmatprep.subr.mxu0 0.0
    %563 = vmatpush1.xpose.msra.mxu0 0.0
    %564 = vmatprep.subr.mxu0 0.0
    %565 = vmatpush1.xpose.msra.mxu0 0.0
    %566 = vmatprep.subr.mxu0 0.0
    %567 = vmatpush1.xpose.msra.mxu0 0.0
    %568 = vmatprep.subr.mxu0 0.0
    %569 = vmatpush1.xpose.msra.mxu0 0.0
    %570 = vmatprep.subr.mxu0 0.0
    %571 = vmatpush1.xpose.msra.mxu0 0.0
    %572 = vmatprep.subr.mxu0 0.0
    %573 = vmatpush1.xpose.msra.mxu0 0.0
    %574 = vmatprep.subr.mxu0 0.0
    %575 = vmatpush1.xpose.msra.mxu0 0.0
    %576 = vmatprep.subr.mxu0 0.0
    %577 = vmatpush1.xpose.msra.mxu0 0.0
    %578 = vmatprep.subr.mxu0 0.0
    %579 = vmatpush1.xpose.msra.mxu0 0.0
    %580 = vmatprep.subr.mxu0 0.0
    %581 = vmatpush1.xpose.msra.mxu0 0.0
    %582 = vmatprep.subr.mxu0 0.0
    %583 = vmatpush1.xpose.msra.mxu0 0.0
    %584 = vmatprep.subr.mxu0 0.0
    %585 = vmatpush1.xpose.msra.mxu0 0.0
    %586 = vmatprep.subr.mxu0 0.0
    %587 = vmatpush1.xpose.msra.mxu0 0.0
    %588 = vmatprep.subr.mxu0 0.0
    %589 = vmatpush1.xpose.msra.mxu0 0.0
    %590 = vmatprep.subr.mxu0 0.0
    %591 = vmatpush1.xpose.msra.mxu0 0.0
    %592 = vmatprep.subr.mxu0 0.0
    %593 = vmatpush1.xpose.msra.mxu0 0.0
    %594 = vmatprep.subr.mxu0 0.0
    %595 = vmatpush1.xpose.msra.mxu0 0.0
    %596 = vmatprep.subr.mxu0 0.0
    %597 = vmatpush1.xpose.msra.mxu0 0.0
    %598 = vmatprep.subr.mxu0 0.0
    %599 = vmatpush1.xpose.msra.mxu0 0.0
    %600 = vmatprep.subr.mxu0 0.0
    %601 = vmatpush1.xpose.msra.mxu0 0.0
    %602 = vmatprep.subr.mxu0 0.0
    %603 = vmatpush1.xpose.msra.mxu0 0.0
    %604 = vmatprep.subr.mxu0 0.0
    %605 = vmatpush1.xpose.msra.mxu0 0.0
    %606 = vmatprep.subr.mxu0 0.0
    %607 = vmatpush1.xpose.msra.mxu0 0.0
    %608 = vmatprep.subr.mxu0 0.0
    %609 = vmatpush1.xpose.msra.mxu0 0.0
    %610 = vmatprep.subr.mxu0 0.0
    %611 = vmatpush1.xpose.msra.mxu0 0.0
    %612 = vmatprep.subr.mxu0 0.0
    %613 = vmatpush1.xpose.msra.mxu0 0.0
    %614 = vmatprep.subr.mxu0 0.0
    %615 = vmatpush1.xpose.msra.mxu0 0.0
    %616 = vmatprep.subr.mxu0 0.0
    %617 = vmatpush1.xpose.msra.mxu0 0.0
    %618 = vmatprep.subr.mxu0 0.0
    %619 = vmatpush1.xpose.msra.mxu0 0.0
    %620 = vmatprep.subr.mxu0 0.0
    %621 = vmatpush1.xpose.msra.mxu0 0.0
    %622 = vmatprep.mubr.f32.mxu0 0.0
    %623 = vmatmul.mubr.f32.gmra.mrb[0].mxu0 %v550
    %v624 = vpop.f32.mrb[0].mxu0
    %v625 = vadd.f32 0.0, %v624
    %v626 = vpop.f32.mrb[0].mxu0
    %627 = vmatprep.mubr.f32.mxu0 0.0
    %628 = vmatmul.mubr.f32.gmra.mrb[0].mxu0 %v552
    %v629 = vpop.f32.mrb[0].mxu0
    %v630 = vadd.f32 0.0, %v629
    %v631 = vpop.f32.mrb[0].mxu0
    %632 = vdwg.mxu0
    %v633 = vmul.f32 %v625, 0.5
    %v634 = vmul.f32 %v630, 0.5
    %v635 = vmul.f32 %v633, 1.442695
    %v636 = vpow.pop %v635
    %v637 = vmul.f32 %v634, 1.442695
    %v638 = vpow.pop %v637
    %v639 = vmul.f32 %v636, %v35
    %v640 = vmul.f32 %v638, %v36
    %v641 = vsel %vm44, %v639, 0.0
    %642 = vadd.xlane.f32.xlu0 %v641
    %v643 = vpop.xlane.xlu0 %642
    %v644 = vsel %vm44, %v640, 0.0
    %645 = vadd.xlane.f32.xlu0 %v644
    %v646 = vpop.xlane.xlu0 %645
    %647 = vrot.lane.b32.xlu0 %v205, 92
    %v648 = vpop.permute.xlu0 %647
    %649 = vrot.lane.b32.xlu0 %v210, 92
    %v650 = vpop.permute.xlu0 %649
    %v654 = vsel %vm44, %v639, 0
    %v657 = vsel %vm44, %v640, 0
    %659 = vmatprep.subr.mxu0 0.0
    %660 = vmatpush1.msra.mxu0 %v648
    %661 = vmatprep.subr.mxu0 0.0
    %662 = vmatpush1.msra.mxu0 %v650
    %663 = vmatprep.subr.mxu0 0.0
    %664 = vmatpush1.msra.mxu0 0.0
    %665 = vmatprep.subr.mxu0 0.0
    %666 = vmatpush1.msra.mxu0 0.0
    %667 = vmatprep.subr.mxu0 0.0
    %668 = vmatpush1.msra.mxu0 0.0
    %669 = vmatprep.subr.mxu0 0.0
    %670 = vmatpush1.msra.mxu0 0.0
    %671 = vmatprep.subr.mxu0 0.0
    %672 = vmatpush1.msra.mxu0 0.0
    %673 = vmatprep.subr.mxu0 0.0
    %674 = vmatpush1.msra.mxu0 0.0
    %675 = vmatprep.subr.mxu0 0.0
    %676 = vmatpush1.msra.mxu0 0.0
    %677 = vmatprep.subr.mxu0 0.0
    %678 = vmatpush1.msra.mxu0 0.0
    %679 = vmatprep.subr.mxu0 0.0
    %680 = vmatpush1.msra.mxu0 0.0
    %681 = vmatprep.subr.mxu0 0.0
    %682 = vmatpush1.msra.mxu0 0.0
    %683 = vmatprep.subr.mxu0 0.0
    %684 = vmatpush1.msra.mxu0 0.0
    %685 = vmatprep.subr.mxu0 0.0
    %686 = vmatpush1.msra.mxu0 0.0
    %687 = vmatprep.subr.mxu0 0.0
    %688 = vmatpush1.msra.mxu0 0.0
    %689 = vmatprep.subr.mxu0 0.0
    %690 = vmatpush1.msra.mxu0 0.0
    %691 = vmatprep.subr.mxu0 0.0
    %692 = vmatpush1.msra.mxu0 0.0
    %693 = vmatprep.subr.mxu0 0.0
    %694 = vmatpush1.msra.mxu0 0.0
    %695 = vmatprep.subr.mxu0 0.0
    %696 = vmatpush1.msra.mxu0 0.0
    %697 = vmatprep.subr.mxu0 0.0
    %698 = vmatpush1.msra.mxu0 0.0
    %699 = vmatprep.subr.mxu0 0.0
    %700 = vmatpush1.msra.mxu0 0.0
    %701 = vmatprep.subr.mxu0 0.0
    %702 = vmatpush1.msra.mxu0 0.0
    %703 = vmatprep.subr.mxu0 0.0
    %704 = vmatpush1.msra.mxu0 0.0
    %705 = vmatprep.subr.mxu0 0.0
    %706 = vmatpush1.msra.mxu0 0.0
    %707 = vmatprep.subr.mxu0 0.0
    %708 = vmatpush1.msra.mxu0 0.0
    %709 = vmatprep.subr.mxu0 0.0
    %710 = vmatpush1.msra.mxu0 0.0
    %711 = vmatprep.subr.mxu0 0.0
    %712 = vmatpush1.msra.mxu0 0.0
    %713 = vmatprep.subr.mxu0 0.0
    %714 = vmatpush1.msra.mxu0 0.0
    %715 = vmatprep.subr.mxu0 0.0
    %716 = vmatpush1.msra.mxu0 0.0
    %717 = vmatprep.subr.mxu0 0.0
    %718 = vmatpush1.msra.mxu0 0.0
    %719 = vmatprep.subr.mxu0 0.0
    %720 = vmatpush1.msra.mxu0 0.0
    %721 = vmatprep.subr.mxu0 0.0
    %722 = vmatpush1.msra.mxu0 0.0
    %723 = vmatprep.mubr.f32.mxu0 0.0
    %724 = vmatmul.mubr.f32.gmra.mrb[0].mxu0 %v654
    %v725 = vpop.f32.mrb[0].mxu0
    %v726 = vadd.f32 0.0, %v725
    %v727 = vpop.f32.mrb[0].mxu0
    %728 = vmatprep.mubr.f32.mxu0 0.0
    %729 = vmatmul.mubr.f32.gmra.mrb[0].mxu0 %v657
    %v730 = vpop.f32.mrb[0].mxu0
    %v731 = vadd.f32 0.0, %v730
    %v732 = vpop.f32.mrb[0].mxu0
    %733 = vdwg.mxu0
    %v734 = vrcp.pop %v643
    %v735 = vmul.f32 %v726, %v734
    %v736 = vrcp.pop %v646
    %v737 = vmul.f32 %v731, %v736
    %738 = vrot.lane.b32.xlu0 %v336, 120
    %v739 = vpop.permute.xlu0 %738
    %740 = vrot.lane.b32.xlu0 %v341, 120
    %v741 = vpop.permute.xlu0 %740
    %742 = vrot.lane.b32.xlu0 %v205, 120
    %v743 = vpop.permute.xlu0 %742
    %744 = vrot.lane.b32.xlu0 %v210, 120
    %v745 = vpop.permute.xlu0 %744
    %v746 = vsel %vm349, %v739, 0
    %v748 = vsel %vm349, %v741, 0
    %v750 = vsel %vm349, %v743, 0
    %v752 = vsel %vm349, %v745, 0
    %754 = vmatprep.subr.mxu0 0.0
    %755 = vmatpush1.xpose.msra.mxu0 %v750
    %756 = vmatprep.subr.mxu0 0.0
    %757 = vmatpush1.xpose.msra.mxu0 %v752
    %758 = vmatprep.subr.mxu0 0.0
    %759 = vmatpush1.xpose.msra.mxu0 0.0
    %760 = vmatprep.subr.mxu0 0.0
    %761 = vmatpush1.xpose.msra.mxu0 0.0
    %762 = vmatprep.subr.mxu0 0.0
    %763 = vmatpush1.xpose.msra.mxu0 0.0
    %764 = vmatprep.subr.mxu0 0.0
    %765 = vmatpush1.xpose.msra.mxu0 0.0
    %766 = vmatprep.subr.mxu0 0.0
    %767 = vmatpush1.xpose.msra.mxu0 0.0
    %768 = vmatprep.subr.mxu0 0.0
    %769 = vmatpush1.xpose.msra.mxu0 0.0
    %770 = vmatprep.subr.mxu0 0.0
    %771 = vmatpush1.xpose.msra.mxu0 0.0
    %772 = vmatprep.subr.mxu0 0.0
    %773 = vmatpush1.xpose.msra.mxu0 0.0
    %774 = vmatprep.subr.mxu0 0.0
    %775 = vmatpush1.xpose.msra.mxu0 0.0
    %776 = vmatprep.subr.mxu0 0.0
    %777 = vmatpush1.xpose.msra.mxu0 0.0
    %778 = vmatprep.subr.mxu0 0.0
    %779 = vmatpush1.xpose.msra.mxu0 0.0
    %780 = vmatprep.subr.mxu0 0.0
    %781 = vmatpush1.xpose.msra.mxu0 0.0
    %782 = vmatprep.subr.mxu0 0.0
    %783 = vmatpush1.xpose.msra.mxu0 0.0
    %784 = vmatprep.subr.mxu0 0.0
    %785 = vmatpush1.xpose.msra.mxu0 0.0
    %786 = vmatprep.subr.mxu0 0.0
    %787 = vmatpush1.xpose.msra.mxu0 0.0
    %788 = vmatprep.subr.mxu0 0.0
    %789 = vmatpush1.xpose.msra.mxu0 0.0
    %790 = vmatprep.subr.mxu0 0.0
    %791 = vmatpush1.xpose.msra.mxu0 0.0
    %792 = vmatprep.subr.mxu0 0.0
    %793 = vmatpush1.xpose.msra.mxu0 0.0
    %794 = vmatprep.subr.mxu0 0.0
    %795 = vmatpush1.xpose.msra.mxu0 0.0
    %796 = vmatprep.subr.mxu0 0.0
    %797 = vmatpush1.xpose.msra.mxu0 0.0
    %798 = vmatprep.subr.mxu0 0.0
    %799 = vmatpush1.xpose.msra.mxu0 0.0
    %800 = vmatprep.subr.mxu0 0.0
    %801 = vmatpush1.xpose.msra.mxu0 0.0
    %802 = vmatprep.subr.mxu0 0.0
    %803 = vmatpush1.xpose.msra.mxu0 0.0
    %804 = vmatprep.subr.mxu0 0.0
    %805 = vmatpush1.xpose.msra.mxu0 0.0
    %806 = vmatprep.subr.mxu0 0.0
    %807 = vmatpush1.xpose.msra.mxu0 0.0
    %808 = vmatprep.subr.mxu0 0.0
    %809 = vmatpush1.xpose.msra.mxu0 0.0
    %810 = vmatprep.subr.mxu0 0.0
    %811 = vmatpush1.xpose.msra.mxu0 0.0
    %812 = vmatprep.subr.mxu0 0.0
    %813 = vmatpush1.xpose.msra.mxu0 0.0
    %814 = vmatprep.subr.mxu0 0.0
    %815 = vmatpush1.xpose.msra.mxu0 0.0
    %816 = vmatprep.subr.mxu0 0.0
    %817 = vmatpush1.xpose.msra.mxu0 0.0
    %818 = vmatprep.mubr.f32.mxu0 0.0
    %819 = vmatmul.mubr.f32.gmra.mrb[0].mxu0 %v746
    %v820 = vpop.f32.mrb[0].mxu0
    %v821 = vadd.f32 0.0, %v820
    %v822 = vpop.f32.mrb[0].mxu0
    %823 = vmatprep.mubr.f32.mxu0 0.0
    %824 = vmatmul.mubr.f32.gmra.mrb[0].mxu0 %v748
    %v825 = vpop.f32.mrb[0].mxu0
    %v826 = vadd.f32 0.0, %v825
    %v827 = vpop.f32.mrb[0].mxu0
    %828 = vdwg.mxu0
    %v829 = vmul.f32 %v821, 0.5
    %v830 = vmul.f32 %v826, 0.5
    %v831 = vmul.f32 %v829, 1.442695
    %v832 = vpow.pop %v831
    %v833 = vmul.f32 %v830, 1.442695
    %v834 = vpow.pop %v833
    %v835 = vmul.f32 %v832, %v35
    %v836 = vmul.f32 %v834, %v36
    %v837 = vsel %vm44, %v835, 0.0
    %838 = vadd.xlane.f32.xlu0 %v837
    %v839 = vpop.xlane.xlu0 %838
    %v840 = vsel %vm44, %v836, 0.0
    %841 = vadd.xlane.f32.xlu0 %v840
    %v842 = vpop.xlane.xlu0 %841
    %843 = vrot.lane.b32.xlu0 %v205, 88
    %v844 = vpop.permute.xlu0 %843
    %845 = vrot.lane.b32.xlu0 %v210, 88
    %v846 = vpop.permute.xlu0 %845
    %v850 = vsel %vm44, %v835, 0
    %v853 = vsel %vm44, %v836, 0
    %855 = vmatprep.subr.mxu0 0.0
    %856 = vmatpush1.msra.mxu0 %v844
    %857 = vmatprep.subr.mxu0 0.0
    %858 = vmatpush1.msra.mxu0 %v846
    %859 = vmatprep.subr.mxu0 0.0
    %860 = vmatpush1.msra.mxu0 0.0
    %861 = vmatprep.subr.mxu0 0.0
    %862 = vmatpush1.msra.mxu0 0.0
    %863 = vmatprep.subr.mxu0 0.0
    %864 = vmatpush1.msra.mxu0 0.0
    %865 = vmatprep.subr.mxu0 0.0
    %866 = vmatpush1.msra.mxu0 0.0
    %867 = vmatprep.subr.mxu0 0.0
    %868 = vmatpush1.msra.mxu0 0.0
    %869 = vmatprep.subr.mxu0 0.0
    %870 = vmatpush1.msra.mxu0 0.0
    %871 = vmatprep.subr.mxu0 0.0
    %872 = vmatpush1.msra.mxu0 0.0
    %873 = vmatprep.subr.mxu0 0.0
    %874 = vmatpush1.msra.mxu0 0.0
    %875 = vmatprep.subr.mxu0 0.0
    %876 = vmatpush1.msra.mxu0 0.0
    %877 = vmatprep.subr.mxu0 0.0
    %878 = vmatpush1.msra.mxu0 0.0
    %879 = vmatprep.subr.mxu0 0.0
    %880 = vmatpush1.msra.mxu0 0.0
    %881 = vmatprep.subr.mxu0 0.0
    %882 = vmatpush1.msra.mxu0 0.0
    %883 = vmatprep.subr.mxu0 0.0
    %884 = vmatpush1.msra.mxu0 0.0
    %885 = vmatprep.subr.mxu0 0.0
    %886 = vmatpush1.msra.mxu0 0.0
    %887 = vmatprep.subr.mxu0 0.0
    %888 = vmatpush1.msra.mxu0 0.0
    %889 = vmatprep.subr.mxu0 0.0
    %890 = vmatpush1.msra.mxu0 0.0
    %891 = vmatprep.subr.mxu0 0.0
    %892 = vmatpush1.msra.mxu0 0.0
    %893 = vmatprep.subr.mxu0 0.0
    %894 = vmatpush1.msra.mxu0 0.0
    %895 = vmatprep.subr.mxu0 0.0
    %896 = vmatpush1.msra.mxu0 0.0
    %897 = vmatprep.subr.mxu0 0.0
    %898 = vmatpush1.msra.mxu0 0.0
    %899 = vmatprep.subr.mxu0 0.0
    %900 = vmatpush1.msra.mxu0 0.0
    %901 = vmatprep.subr.mxu0 0.0
    %902 = vmatpush1.msra.mxu0 0.0
    %903 = vmatprep.subr.mxu0 0.0
    %904 = vmatpush1.msra.mxu0 0.0
    %905 = vmatprep.subr.mxu0 0.0
    %906 = vmatpush1.msra.mxu0 0.0
    %907 = vmatprep.subr.mxu0 0.0
    %908 = vmatpush1.msra.mxu0 0.0
    %909 = vmatprep.subr.mxu0 0.0
    %910 = vmatpush1.msra.mxu0 0.0
    %911 = vmatprep.subr.mxu0 0.0
    %912 = vmatpush1.msra.mxu0 0.0
    %913 = vmatprep.subr.mxu0 0.0
    %914 = vmatpush1.msra.mxu0 0.0
    %915 = vmatprep.subr.mxu0 0.0
    %916 = vmatpush1.msra.mxu0 0.0
    %917 = vmatprep.subr.mxu0 0.0
    %918 = vmatpush1.msra.mxu0 0.0
    %919 = vmatprep.mubr.f32.mxu0 0.0
    %920 = vmatmul.mubr.f32.gmra.mrb[0].mxu0 %v850
    %v921 = vpop.f32.mrb[0].mxu0
    %v922 = vadd.f32 0.0, %v921
    %v923 = vpop.f32.mrb[0].mxu0
    %924 = vmatprep.mubr.f32.mxu0 0.0
    %925 = vmatmul.mubr.f32.gmra.mrb[0].mxu0 %v853
    %v926 = vpop.f32.mrb[0].mxu0
    %v927 = vadd.f32 0.0, %v926
    %v928 = vpop.f32.mrb[0].mxu0
    %929 = vdwg.mxu0
    %v930 = vrcp.pop %v839
    %v931 = vmul.f32 %v922, %v930
    %v932 = vrcp.pop %v842
    %v933 = vmul.f32 %v927, %v932
    %934 = vrot.lane.b32.xlu0 %v336, 116
    %v935 = vpop.permute.xlu0 %934
    %936 = vrot.lane.b32.xlu0 %v341, 116
    %v937 = vpop.permute.xlu0 %936
    %938 = vrot.lane.b32.xlu0 %v205, 116
    %v939 = vpop.permute.xlu0 %938
    %940 = vrot.lane.b32.xlu0 %v210, 116
    %v941 = vpop.permute.xlu0 %940
    %v942 = vsel %vm349, %v935, 0
    %v944 = vsel %vm349, %v937, 0
    %v946 = vsel %vm349, %v939, 0
    %v948 = vsel %vm349, %v941, 0
    %950 = vmatprep.subr.mxu0 0.0
    %951 = vmatpush1.xpose.msra.mxu0 %v946
    %952 = vmatprep.subr.mxu0 0.0
    %953 = vmatpush1.xpose.msra.mxu0 %v948
    %954 = vmatprep.subr.mxu0 0.0
    %955 = vmatpush1.xpose.msra.mxu0 0.0
    %956 = vmatprep.subr.mxu0 0.0
    %957 = vmatpush1.xpose.msra.mxu0 0.0
    %958 = vmatprep.subr.mxu0 0.0
    %959 = vmatpush1.xpose.msra.mxu0 0.0
    %960 = vmatprep.subr.mxu0 0.0
    %961 = vmatpush1.xpose.msra.mxu0 0.0
    %962 = vmatprep.subr.mxu0 0.0
    %963 = vmatpush1.xpose.msra.mxu0 0.0
    %964 = vmatprep.subr.mxu0 0.0
    %965 = vmatpush1.xpose.msra.mxu0 0.0
    %966 = vmatprep.subr.mxu0 0.0
    %967 = vmatpush1.xpose.msra.mxu0 0.0
    %968 = vmatprep.subr.mxu0 0.0
    %969 = vmatpush1.xpose.msra.mxu0 0.0
    %970 = vmatprep.subr.mxu0 0.0
    %971 = vmatpush1.xpose.msra.mxu0 0.0
    %972 = vmatprep.subr.mxu0 0.0
    %973 = vmatpush1.xpose.msra.mxu0 0.0
    %974 = vmatprep.subr.mxu0 0.0
    %975 = vmatpush1.xpose.msra.mxu0 0.0
    %976 = vmatprep.subr.mxu0 0.0
    %977 = vmatpush1.xpose.msra.mxu0 0.0
    %978 = vmatprep.subr.mxu0 0.0
    %979 = vmatpush1.xpose.msra.mxu0 0.0
    %980 = vmatprep.subr.mxu0 0.0
    %981 = vmatpush1.xpose.msra.mxu0 0.0
    %982 = vmatprep.subr.mxu0 0.0
    %983 = vmatpush1.xpose.msra.mxu0 0.0
    %984 = vmatprep.subr.mxu0 0.0
    %985 = vmatpush1.xpose.msra.mxu0 0.0
    %986 = vmatprep.subr.mxu0 0.0
    %987 = vmatpush1.xpose.msra.mxu0 0.0
    %988 = vmatprep.subr.mxu0 0.0
    %989 = vmatpush1.xpose.msra.mxu0 0.0
    %990 = vmatprep.subr.mxu0 0.0
    %991 = vmatpush1.xpose.msra.mxu0 0.0
    %992 = vmatprep.subr.mxu0 0.0
    %993 = vmatpush1.xpose.msra.mxu0 0.0
    %994 = vmatprep.subr.mxu0 0.0
    %995 = vmatpush1.xpose.msra.mxu0 0.0
    %996 = vmatprep.subr.mxu0 0.0
    %997 = vmatpush1.xpose.msra.mxu0 0.0
    %998 = vmatprep.subr.mxu0 0.0
    %999 = vmatpush1.xpose.msra.mxu0 0.0
    %1000 = vmatprep.subr.mxu0 0.0
    %1001 = vmatpush1.xpose.msra.mxu0 0.0
    %1002 = vmatprep.subr.mxu0 0.0
    %1003 = vmatpush1.xpose.msra.mxu0 0.0
    %1004 = vmatprep.subr.mxu0 0.0
    %1005 = vmatpush1.xpose.msra.mxu0 0.0
    %1006 = vmatprep.subr.mxu0 0.0
    %1007 = vmatpush1.xpose.msra.mxu0 0.0
    %1008 = vmatprep.subr.mxu0 0.0
    %1009 = vmatpush1.xpose.msra.mxu0 0.0
    %1010 = vmatprep.subr.mxu0 0.0
    %1011 = vmatpush1.xpose.msra.mxu0 0.0
    %1012 = vmatprep.subr.mxu0 0.0
    %1013 = vmatpush1.xpose.msra.mxu0 0.0
    %1014 = vmatprep.mubr.f32.mxu0 0.0
    %1015 = vmatmul.mubr.f32.gmra.mrb[0].mxu0 %v942
    %v1016 = vpop.f32.mrb[0].mxu0
    %v1017 = vadd.f32 0.0, %v1016
    %v1018 = vpop.f32.mrb[0].mxu0
    %1019 = vmatprep.mubr.f32.mxu0 0.0
    %1020 = vmatmul.mubr.f32.gmra.mrb[0].mxu0 %v944
    %v1021 = vpop.f32.mrb[0].mxu0
    %v1022 = vadd.f32 0.0, %v1021
    %v1023 = vpop.f32.mrb[0].mxu0
    %1024 = vdwg.mxu0
    %v1025 = vmul.f32 %v1017, 0.5
    %v1026 = vmul.f32 %v1022, 0.5
    %v1027 = vmul.f32 %v1025, 1.442695
    %v1028 = vpow.pop %v1027
    %v1029 = vmul.f32 %v1026, 1.442695
    %v1030 = vpow.pop %v1029
    %v1031 = vmul.f32 %v1028, %v35
    %v1032 = vmul.f32 %v1030, %v36
    %v1033 = vsel %vm44, %v1031, 0.0
    %1034 = vadd.xlane.f32.xlu0 %v1033
    %v1035 = vpop.xlane.xlu0 %1034
    %v1036 = vsel %vm44, %v1032, 0.0
    %1037 = vadd.xlane.f32.xlu0 %v1036
    %v1038 = vpop.xlane.xlu0 %1037
    %1039 = vrot.lane.b32.xlu0 %v205, 84
    %v1040 = vpop.permute.xlu0 %1039
    %1041 = vrot.lane.b32.xlu0 %v210, 84
    %v1042 = vpop.permute.xlu0 %1041
    %v1046 = vsel %vm44, %v1031, 0
    %v1049 = vsel %vm44, %v1032, 0
    %1051 = vmatprep.subr.mxu0 0.0
    %1052 = vmatpush1.msra.mxu0 %v1040
    %1053 = vmatprep.subr.mxu0 0.0
    %1054 = vmatpush1.msra.mxu0 %v1042
    %1055 = vmatprep.subr.mxu0 0.0
    %1056 = vmatpush1.msra.mxu0 0.0
    %1057 = vmatprep.subr.mxu0 0.0
    %1058 = vmatpush1.msra.mxu0 0.0
    %1059 = vmatprep.subr.mxu0 0.0
    %1060 = vmatpush1.msra.mxu0 0.0
    %1061 = vmatprep.subr.mxu0 0.0
    %1062 = vmatpush1.msra.mxu0 0.0
    %1063 = vmatprep.subr.mxu0 0.0
    %1064 = vmatpush1.msra.mxu0 0.0
    %1065 = vmatprep.subr.mxu0 0.0
    %1066 = vmatpush1.msra.mxu0 0.0
    %1067 = vmatprep.subr.mxu0 0.0
    %1068 = vmatpush1.msra.mxu0 0.0
    %1069 = vmatprep.subr.mxu0 0.0
    %1070 = vmatpush1.msra.mxu0 0.0
    %1071 = vmatprep.subr.mxu0 0.0
    %1072 = vmatpush1.msra.mxu0 0.0
    %1073 = vmatprep.subr.mxu0 0.0
    %1074 = vmatpush1.msra.mxu0 0.0
    %1075 = vmatprep.subr.mxu0 0.0
    %1076 = vmatpush1.msra.mxu0 0.0
    %1077 = vmatprep.subr.mxu0 0.0
    %1078 = vmatpush1.msra.mxu0 0.0
    %1079 = vmatprep.subr.mxu0 0.0
    %1080 = vmatpush1.msra.mxu0 0.0
    %1081 = vmatprep.subr.mxu0 0.0
    %1082 = vmatpush1.msra.mxu0 0.0
    %1083 = vmatprep.subr.mxu0 0.0
    %1084 = vmatpush1.msra.mxu0 0.0
    %1085 = vmatprep.subr.mxu0 0.0
    %1086 = vmatpush1.msra.mxu0 0.0
    %1087 = vmatprep.subr.mxu0 0.0
    %1088 = vmatpush1.msra.mxu0 0.0
    %1089 = vmatprep.subr.mxu0 0.0
    %1090 = vmatpush1.msra.mxu0 0.0
    %1091 = vmatprep.subr.mxu0 0.0
    %1092 = vmatpush1.msra.mxu0 0.0
    %1093 = vmatprep.subr.mxu0 0.0
    %1094 = vmatpush1.msra.mxu0 0.0
    %1095 = vmatprep.subr.mxu0 0.0
    %1096 = vmatpush1.msra.mxu0 0.0
    %1097 = vmatprep.subr.mxu0 0.0
    %1098 = vmatpush1.msra.mxu0 0.0
    %1099 = vmatprep.subr.mxu0 0.0
    %1100 = vmatpush1.msra.mxu0 0.0
    %1101 = vmatprep.subr.mxu0 0.0
    %1102 = vmatpush1.msra.mxu0 0.0
    %1103 = vmatprep.subr.mxu0 0.0
    %1104 = vmatpush1.msra.mxu0 0.0
    %1105 = vmatprep.subr.mxu0 0.0
    %1106 = vmatpush1.msra.mxu0 0.0
    %1107 = vmatprep.subr.mxu0 0.0
    %1108 = vmatpush1.msra.mxu0 0.0
    %1109 = vmatprep.subr.mxu0 0.0
    %1110 = vmatpush1.msra.mxu0 0.0
    %1111 = vmatprep.subr.mxu0 0.0
    %1112 = vmatpush1.msra.mxu0 0.0
    %1113 = vmatprep.subr.mxu0 0.0
    %1114 = vmatpush1.msra.mxu0 0.0
    %1115 = vmatprep.mubr.f32.mxu0 0.0
    %1116 = vmatmul.mubr.f32.gmra.mrb[0].mxu0 %v1046
    %v1117 = vpop.f32.mrb[0].mxu0
    %v1118 = vadd.f32 0.0, %v1117
    %v1119 = vpop.f32.mrb[0].mxu0
    %1120 = vmatprep.mubr.f32.mxu0 0.0
    %1121 = vmatmul.mubr.f32.gmra.mrb[0].mxu0 %v1049
    %v1122 = vpop.f32.mrb[0].mxu0
    %v1123 = vadd.f32 0.0, %v1122
    %v1124 = vpop.f32.mrb[0].mxu0
    %1125 = vdwg.mxu0
    %v1126 = vrcp.pop %v1035
    %v1127 = vmul.f32 %v1118, %v1126
    %v1128 = vrcp.pop %v1038
    %v1129 = vmul.f32 %v1123, %v1128
    %1130 = vrot.lane.b32.xlu0 %v336, 112
    %v1131 = vpop.permute.xlu0 %1130
    %1132 = vrot.lane.b32.xlu0 %v341, 112
    %v1133 = vpop.permute.xlu0 %1132
    %1134 = vrot.lane.b32.xlu0 %v205, 112
    %v1135 = vpop.permute.xlu0 %1134
    %1136 = vrot.lane.b32.xlu0 %v210, 112
    %v1137 = vpop.permute.xlu0 %1136
    %v1138 = vsel %vm349, %v1131, 0
    %v1140 = vsel %vm349, %v1133, 0
    %v1142 = vsel %vm349, %v1135, 0
    %v1144 = vsel %vm349, %v1137, 0
    %1146 = vmatprep.subr.mxu0 0.0
    %1147 = vmatpush1.xpose.msra.mxu0 %v1142
    %1148 = vmatprep.subr.mxu0 0.0
    %1149 = vmatpush1.xpose.msra.mxu0 %v1144
    %1150 = vmatprep.subr.mxu0 0.0
    %1151 = vmatpush1.xpose.msra.mxu0 0.0
    %1152 = vmatprep.subr.mxu0 0.0
    %1153 = vmatpush1.xpose.msra.mxu0 0.0
    %1154 = vmatprep.subr.mxu0 0.0
    %1155 = vmatpush1.xpose.msra.mxu0 0.0
    %1156 = vmatprep.subr.mxu0 0.0
    %1157 = vmatpush1.xpose.msra.mxu0 0.0
    %1158 = vmatprep.subr.mxu0 0.0
    %1159 = vmatpush1.xpose.msra.mxu0 0.0
    %1160 = vmatprep.subr.mxu0 0.0
    %1161 = vmatpush1.xpose.msra.mxu0 0.0
    %1162 = vmatprep.subr.mxu0 0.0
    %1163 = vmatpush1.xpose.msra.mxu0 0.0
    %1164 = vmatprep.subr.mxu0 0.0
    %1165 = vmatpush1.xpose.msra.mxu0 0.0
    %1166 = vmatprep.subr.mxu0 0.0
    %1167 = vmatpush1.xpose.msra.mxu0 0.0
    %1168 = vmatprep.subr.mxu0 0.0
    %1169 = vmatpush1.xpose.msra.mxu0 0.0
    %1170 = vmatprep.subr.mxu0 0.0
    %1171 = vmatpush1.xpose.msra.mxu0 0.0
    %1172 = vmatprep.subr.mxu0 0.0
    %1173 = vmatpush1.xpose.msra.mxu0 0.0
    %1174 = vmatprep.subr.mxu0 0.0
    %1175 = vmatpush1.xpose.msra.mxu0 0.0
    %1176 = vmatprep.subr.mxu0 0.0
    %1177 = vmatpush1.xpose.msra.mxu0 0.0
    %1178 = vmatprep.subr.mxu0 0.0
    %1179 = vmatpush1.xpose.msra.mxu0 0.0
    %1180 = vmatprep.subr.mxu0 0.0
    %1181 = vmatpush1.xpose.msra.mxu0 0.0
    %1182 = vmatprep.subr.mxu0 0.0
    %1183 = vmatpush1.xpose.msra.mxu0 0.0
    %1184 = vmatprep.subr.mxu0 0.0
    %1185 = vmatpush1.xpose.msra.mxu0 0.0
    %1186 = vmatprep.subr.mxu0 0.0
    %1187 = vmatpush1.xpose.msra.mxu0 0.0
    %1188 = vmatprep.subr.mxu0 0.0
    %1189 = vmatpush1.xpose.msra.mxu0 0.0
    %1190 = vmatprep.subr.mxu0 0.0
    %1191 = vmatpush1.xpose.msra.mxu0 0.0
    %1192 = vmatprep.subr.mxu0 0.0
    %1193 = vmatpush1.xpose.msra.mxu0 0.0
    %1194 = vmatprep.subr.mxu0 0.0
    %1195 = vmatpush1.xpose.msra.mxu0 0.0
    %1196 = vmatprep.subr.mxu0 0.0
    %1197 = vmatpush1.xpose.msra.mxu0 0.0
    %1198 = vmatprep.subr.mxu0 0.0
    %1199 = vmatpush1.xpose.msra.mxu0 0.0
    %1200 = vmatprep.subr.mxu0 0.0
    %1201 = vmatpush1.xpose.msra.mxu0 0.0
    %1202 = vmatprep.subr.mxu0 0.0
    %1203 = vmatpush1.xpose.msra.mxu0 0.0
    %1204 = vmatprep.subr.mxu0 0.0
    %1205 = vmatpush1.xpose.msra.mxu0 0.0
    %1206 = vmatprep.subr.mxu0 0.0
    %1207 = vmatpush1.xpose.msra.mxu0 0.0
    %1208 = vmatprep.subr.mxu0 0.0
    %1209 = vmatpush1.xpose.msra.mxu0 0.0
    %1210 = vmatprep.mubr.f32.mxu0 0.0
    %1211 = vmatmul.mubr.f32.gmra.mrb[0].mxu0 %v1138
    %v1212 = vpop.f32.mrb[0].mxu0
    %v1213 = vadd.f32 0.0, %v1212
    %v1214 = vpop.f32.mrb[0].mxu0
    %1215 = vmatprep.mubr.f32.mxu0 0.0
    %1216 = vmatmul.mubr.f32.gmra.mrb[0].mxu0 %v1140
    %v1217 = vpop.f32.mrb[0].mxu0
    %v1218 = vadd.f32 0.0, %v1217
    %v1219 = vpop.f32.mrb[0].mxu0
    %1220 = vdwg.mxu0
    %v1221 = vmul.f32 %v1213, 0.5
    %v1222 = vmul.f32 %v1218, 0.5
    %v1223 = vmul.f32 %v1221, 1.442695
    %v1224 = vpow.pop %v1223
    %v1225 = vmul.f32 %v1222, 1.442695
    %v1226 = vpow.pop %v1225
    %v1227 = vmul.f32 %v1224, %v35
    %v1228 = vmul.f32 %v1226, %v36
    %v1229 = vsel %vm44, %v1227, 0.0
    %1230 = vadd.xlane.f32.xlu0 %v1229
    %v1231 = vpop.xlane.xlu0 %1230
    %v1232 = vsel %vm44, %v1228, 0.0
    %1233 = vadd.xlane.f32.xlu0 %v1232
    %v1234 = vpop.xlane.xlu0 %1233
    %1235 = vrot.lane.b32.xlu0 %v205, 80
    %v1236 = vpop.permute.xlu0 %1235
    %1237 = vrot.lane.b32.xlu0 %v210, 80
    %v1238 = vpop.permute.xlu0 %1237
    %v1242 = vsel %vm44, %v1227, 0
    %v1245 = vsel %vm44, %v1228, 0
    %1247 = vmatprep.subr.mxu0 0.0
    %1248 = vmatpush1.msra.mxu0 %v1236
    %1249 = vmatprep.subr.mxu0 0.0
    %1250 = vmatpush1.msra.mxu0 %v1238
    %1251 = vmatprep.subr.mxu0 0.0
    %1252 = vmatpush1.msra.mxu0 0.0
    %1253 = vmatprep.subr.mxu0 0.0
    %1254 = vmatpush1.msra.mxu0 0.0
    %1255 = vmatprep.subr.mxu0 0.0
    %1256 = vmatpush1.msra.mxu0 0.0
    %1257 = vmatprep.subr.mxu0 0.0
    %1258 = vmatpush1.msra.mxu0 0.0
    %1259 = vmatprep.subr.mxu0 0.0
    %1260 = vmatpush1.msra.mxu0 0.0
    %1261 = vmatprep.subr.mxu0 0.0
    %1262 = vmatpush1.msra.mxu0 0.0
    %1263 = vmatprep.subr.mxu0 0.0
    %1264 = vmatpush1.msra.mxu0 0.0
    %1265 = vmatprep.subr.mxu0 0.0
    %1266 = vmatpush1.msra.mxu0 0.0
    %1267 = vmatprep.subr.mxu0 0.0
    %1268 = vmatpush1.msra.mxu0 0.0
    %1269 = vmatprep.subr.mxu0 0.0
    %1270 = vmatpush1.msra.mxu0 0.0
    %1271 = vmatprep.subr.mxu0 0.0
    %1272 = vmatpush1.msra.mxu0 0.0
    %1273 = vmatprep.subr.mxu0 0.0
    %1274 = vmatpush1.msra.mxu0 0.0
    %1275 = vmatprep.subr.mxu0 0.0
    %1276 = vmatpush1.msra.mxu0 0.0
    %1277 = vmatprep.subr.mxu0 0.0
    %1278 = vmatpush1.msra.mxu0 0.0
    %1279 = vmatprep.subr.mxu0 0.0
    %1280 = vmatpush1.msra.mxu0 0.0
    %1281 = vmatprep.subr.mxu0 0.0
    %1282 = vmatpush1.msra.mxu0 0.0
    %1283 = vmatprep.subr.mxu0 0.0
    %1284 = vmatpush1.msra.mxu0 0.0
    %1285 = vmatprep.subr.mxu0 0.0
    %1286 = vmatpush1.msra.mxu0 0.0
    %1287 = vmatprep.subr.mxu0 0.0
    %1288 = vmatpush1.msra.mxu0 0.0
    %1289 = vmatprep.subr.mxu0 0.0
    %1290 = vmatpush1.msra.mxu0 0.0
    %1291 = vmatprep.subr.mxu0 0.0
    %1292 = vmatpush1.msra.mxu0 0.0
    %1293 = vmatprep.subr.mxu0 0.0
    %1294 = vmatpush1.msra.mxu0 0.0
    %1295 = vmatprep.subr.mxu0 0.0
    %1296 = vmatpush1.msra.mxu0 0.0
    %1297 = vmatprep.subr.mxu0 0.0
    %1298 = vmatpush1.msra.mxu0 0.0
    %1299 = vmatprep.subr.mxu0 0.0
    %1300 = vmatpush1.msra.mxu0 0.0
    %1301 = vmatprep.subr.mxu0 0.0
    %1302 = vmatpush1.msra.mxu0 0.0
    %1303 = vmatprep.subr.mxu0 0.0
    %1304 = vmatpush1.msra.mxu0 0.0
    %1305 = vmatprep.subr.mxu0 0.0
    %1306 = vmatpush1.msra.mxu0 0.0
    %1307 = vmatprep.subr.mxu0 0.0
    %1308 = vmatpush1.msra.mxu0 0.0
    %1309 = vmatprep.subr.mxu0 0.0
    %1310 = vmatpush1.msra.mxu0 0.0
    %1311 = vmatprep.mubr.f32.mxu0 0.0
    %1312 = vmatmul.mubr.f32.gmra.mrb[0].mxu0 %v1242
    %v1313 = vpop.f32.mrb[0].mxu0
    %v1314 = vadd.f32 0.0, %v1313
    %v1315 = vpop.f32.mrb[0].mxu0
    %1316 = vmatprep.mubr.f32.mxu0 0.0
    %1317 = vmatmul.mubr.f32.gmra.mrb[0].mxu0 %v1245
    %v1318 = vpop.f32.mrb[0].mxu0
    %v1319 = vadd.f32 0.0, %v1318
    %v1320 = vpop.f32.mrb[0].mxu0
    %1321 = vdwg.mxu0
    %v1322 = vrcp.pop %v1231
    %v1323 = vmul.f32 %v1314, %v1322
    %v1324 = vrcp.pop %v1234
    %v1325 = vmul.f32 %v1319, %v1324
    %1326 = vrot.lane.b32.xlu0 %v336, 108
    %v1327 = vpop.permute.xlu0 %1326
    %1328 = vrot.lane.b32.xlu0 %v341, 108
    %v1329 = vpop.permute.xlu0 %1328
    %1330 = vrot.lane.b32.xlu0 %v205, 108
    %v1331 = vpop.permute.xlu0 %1330
    %1332 = vrot.lane.b32.xlu0 %v210, 108
    %v1333 = vpop.permute.xlu0 %1332
    %v1334 = vsel %vm349, %v1327, 0
    %v1336 = vsel %vm349, %v1329, 0
    %v1338 = vsel %vm349, %v1331, 0
    %v1340 = vsel %vm349, %v1333, 0
    %1342 = vmatprep.subr.mxu0 0.0
    %1343 = vmatpush1.xpose.msra.mxu0 %v1338
    %1344 = vmatprep.subr.mxu0 0.0
    %1345 = vmatpush1.xpose.msra.mxu0 %v1340
    %1346 = vmatprep.subr.mxu0 0.0
    %1347 = vmatpush1.xpose.msra.mxu0 0.0
    %1348 = vmatprep.subr.mxu0 0.0
    %1349 = vmatpush1.xpose.msra.mxu0 0.0
    %1350 = vmatprep.subr.mxu0 0.0
    %1351 = vmatpush1.xpose.msra.mxu0 0.0
    %1352 = vmatprep.subr.mxu0 0.0
    %1353 = vmatpush1.xpose.msra.mxu0 0.0
    %1354 = vmatprep.subr.mxu0 0.0
    %1355 = vmatpush1.xpose.msra.mxu0 0.0
    %1356 = vmatprep.subr.mxu0 0.0
    %1357 = vmatpush1.xpose.msra.mxu0 0.0
    %1358 = vmatprep.subr.mxu0 0.0
    %1359 = vmatpush1.xpose.msra.mxu0 0.0
    %1360 = vmatprep.subr.mxu0 0.0
    %1361 = vmatpush1.xpose.msra.mxu0 0.0
    %1362 = vmatprep.subr.mxu0 0.0
    %1363 = vmatpush1.xpose.msra.mxu0 0.0
    %1364 = vmatprep.subr.mxu0 0.0
    %1365 = vmatpush1.xpose.msra.mxu0 0.0
    %1366 = vmatprep.subr.mxu0 0.0
    %1367 = vmatpush1.xpose.msra.mxu0 0.0
    %1368 = vmatprep.subr.mxu0 0.0
    %1369 = vmatpush1.xpose.msra.mxu0 0.0
    %1370 = vmatprep.subr.mxu0 0.0
    %1371 = vmatpush1.xpose.msra.mxu0 0.0
    %1372 = vmatprep.subr.mxu0 0.0
    %1373 = vmatpush1.xpose.msra.mxu0 0.0
    %1374 = vmatprep.subr.mxu0 0.0
    %1375 = vmatpush1.xpose.msra.mxu0 0.0
    %1376 = vmatprep.subr.mxu0 0.0
    %1377 = vmatpush1.xpose.msra.mxu0 0.0
    %1378 = vmatprep.subr.mxu0 0.0
    %1379 = vmatpush1.xpose.msra.mxu0 0.0
    %1380 = vmatprep.subr.mxu0 0.0
    %1381 = vmatpush1.xpose.msra.mxu0 0.0
    %1382 = vmatprep.subr.mxu0 0.0
    %1383 = vmatpush1.xpose.msra.mxu0 0.0
    %1384 = vmatprep.subr.mxu0 0.0
    %1385 = vmatpush1.xpose.msra.mxu0 0.0
    %1386 = vmatprep.subr.mxu0 0.0
    %1387 = vmatpush1.xpose.msra.mxu0 0.0
    %1388 = vmatprep.subr.mxu0 0.0
    %1389 = vmatpush1.xpose.msra.mxu0 0.0
    %1390 = vmatprep.subr.mxu0 0.0
    %1391 = vmatpush1.xpose.msra.mxu0 0.0
    %1392 = vmatprep.subr.mxu0 0.0
    %1393 = vmatpush1.xpose.msra.mxu0 0.0
    %1394 = vmatprep.subr.mxu0 0.0
    %1395 = vmatpush1.xpose.msra.mxu0 0.0
    %1396 = vmatprep.subr.mxu0 0.0
    %1397 = vmatpush1.xpose.msra.mxu0 0.0
    %1398 = vmatprep.subr.mxu0 0.0
    %1399 = vmatpush1.xpose.msra.mxu0 0.0
    %1400 = vmatprep.subr.mxu0 0.0
    %1401 = vmatpush1.xpose.msra.mxu0 0.0
    %1402 = vmatprep.subr.mxu0 0.0
    %1403 = vmatpush1.xpose.msra.mxu0 0.0
    %1404 = vmatprep.subr.mxu0 0.0
    %1405 = vmatpush1.xpose.msra.mxu0 0.0
    %1406 = vmatprep.mubr.f32.mxu0 0.0
    %1407 = vmatmul.mubr.f32.gmra.mrb[0].mxu0 %v1334
    %v1408 = vpop.f32.mrb[0].mxu0
    %v1409 = vadd.f32 0.0, %v1408
    %v1410 = vpop.f32.mrb[0].mxu0
    %1411 = vmatprep.mubr.f32.mxu0 0.0
    %1412 = vmatmul.mubr.f32.gmra.mrb[0].mxu0 %v1336
    %v1413 = vpop.f32.mrb[0].mxu0
    %v1414 = vadd.f32 0.0, %v1413
    %v1415 = vpop.f32.mrb[0].mxu0
    %1416 = vdwg.mxu0
    %v1417 = vmul.f32 %v1409, 0.5
    %v1418 = vmul.f32 %v1414, 0.5
    %v1419 = vmul.f32 %v1417, 1.442695
    %v1420 = vpow.pop %v1419
    %v1421 = vmul.f32 %v1418, 1.442695
    %v1422 = vpow.pop %v1421
    %v1423 = vmul.f32 %v1420, %v35
    %v1424 = vmul.f32 %v1422, %v36
    %v1425 = vsel %vm44, %v1423, 0.0
    %1426 = vadd.xlane.f32.xlu0 %v1425
    %v1427 = vpop.xlane.xlu0 %1426
    %v1428 = vsel %vm44, %v1424, 0.0
    %1429 = vadd.xlane.f32.xlu0 %v1428
    %v1430 = vpop.xlane.xlu0 %1429
    %1431 = vrot.lane.b32.xlu0 %v205, 76
    %v1432 = vpop.permute.xlu0 %1431
    %1433 = vrot.lane.b32.xlu0 %v210, 76
    %v1434 = vpop.permute.xlu0 %1433
    %v1438 = vsel %vm44, %v1423, 0
    %v1441 = vsel %vm44, %v1424, 0
    %1443 = vmatprep.subr.mxu0 0.0
    %1444 = vmatpush1.msra.mxu0 %v1432
    %1445 = vmatprep.subr.mxu0 0.0
    %1446 = vmatpush1.msra.mxu0 %v1434
    %1447 = vmatprep.subr.mxu0 0.0
    %1448 = vmatpush1.msra.mxu0 0.0
    %1449 = vmatprep.subr.mxu0 0.0
    %1450 = vmatpush1.msra.mxu0 0.0
    %1451 = vmatprep.subr.mxu0 0.0
    %1452 = vmatpush1.msra.mxu0 0.0
    %1453 = vmatprep.subr.mxu0 0.0
    %1454 = vmatpush1.msra.mxu0 0.0
    %1455 = vmatprep.subr.mxu0 0.0
    %1456 = vmatpush1.msra.mxu0 0.0
    %1457 = vmatprep.subr.mxu0 0.0
    %1458 = vmatpush1.msra.mxu0 0.0
    %1459 = vmatprep.subr.mxu0 0.0
    %1460 = vmatpush1.msra.mxu0 0.0
    %1461 = vmatprep.subr.mxu0 0.0
    %1462 = vmatpush1.msra.mxu0 0.0
    %1463 = vmatprep.subr.mxu0 0.0
    %1464 = vmatpush1.msra.mxu0 0.0
    %1465 = vmatprep.subr.mxu0 0.0
    %1466 = vmatpush1.msra.mxu0 0.0
    %1467 = vmatprep.subr.mxu0 0.0
    %1468 = vmatpush1.msra.mxu0 0.0
    %1469 = vmatprep.subr.mxu0 0.0
    %1470 = vmatpush1.msra.mxu0 0.0
    %1471 = vmatprep.subr.mxu0 0.0
    %1472 = vmatpush1.msra.mxu0 0.0
    %1473 = vmatprep.subr.mxu0 0.0
    %1474 = vmatpush1.msra.mxu0 0.0
    %1475 = vmatprep.subr.mxu0 0.0
    %1476 = vmatpush1.msra.mxu0 0.0
    %1477 = vmatprep.subr.mxu0 0.0
    %1478 = vmatpush1.msra.mxu0 0.0
    %1479 = vmatprep.subr.mxu0 0.0
    %1480 = vmatpush1.msra.mxu0 0.0
    %1481 = vmatprep.subr.mxu0 0.0
    %1482 = vmatpush1.msra.mxu0 0.0
    %1483 = vmatprep.subr.mxu0 0.0
    %1484 = vmatpush1.msra.mxu0 0.0
    %1485 = vmatprep.subr.mxu0 0.0
    %1486 = vmatpush1.msra.mxu0 0.0
    %1487 = vmatprep.subr.mxu0 0.0
    %1488 = vmatpush1.msra.mxu0 0.0
    %1489 = vmatprep.subr.mxu0 0.0
    %1490 = vmatpush1.msra.mxu0 0.0
    %1491 = vmatprep.subr.mxu0 0.0
    %1492 = vmatpush1.msra.mxu0 0.0
    %1493 = vmatprep.subr.mxu0 0.0
    %1494 = vmatpush1.msra.mxu0 0.0
    %1495 = vmatprep.subr.mxu0 0.0
    %1496 = vmatpush1.msra.mxu0 0.0
    %1497 = vmatprep.subr.mxu0 0.0
    %1498 = vmatpush1.msra.mxu0 0.0
    %1499 = vmatprep.subr.mxu0 0.0
    %1500 = vmatpush1.msra.mxu0 0.0
    %1501 = vmatprep.subr.mxu0 0.0
    %1502 = vmatpush1.msra.mxu0 0.0
    %1503 = vmatprep.subr.mxu0 0.0
    %1504 = vmatpush1.msra.mxu0 0.0
    %1505 = vmatprep.subr.mxu0 0.0
    %1506 = vmatpush1.msra.mxu0 0.0
    %1507 = vmatprep.mubr.f32.mxu0 0.0
    %1508 = vmatmul.mubr.f32.gmra.mrb[0].mxu0 %v1438
    %v1509 = vpop.f32.mrb[0].mxu0
    %v1510 = vadd.f32 0.0, %v1509
    %v1511 = vpop.f32.mrb[0].mxu0
    %1512 = vmatprep.mubr.f32.mxu0 0.0
    %1513 = vmatmul.mubr.f32.gmra.mrb[0].mxu0 %v1441
    %v1514 = vpop.f32.mrb[0].mxu0
    %v1515 = vadd.f32 0.0, %v1514
    %v1516 = vpop.f32.mrb[0].mxu0
    %1517 = vdwg.mxu0
    %v1518 = vrcp.pop %v1427
    %v1519 = vmul.f32 %v1510, %v1518
    %v1520 = vrcp.pop %v1430
    %v1521 = vmul.f32 %v1515, %v1520
    %1522 = vrot.lane.b32.xlu0 %v336, 104
    %v1523 = vpop.permute.xlu0 %1522
    %1524 = vrot.lane.b32.xlu0 %v341, 104
    %v1525 = vpop.permute.xlu0 %1524
    %1526 = vrot.lane.b32.xlu0 %v205, 104
    %v1527 = vpop.permute.xlu0 %1526
    %1528 = vrot.lane.b32.xlu0 %v210, 104
    %v1529 = vpop.permute.xlu0 %1528
    %v1530 = vsel %vm349, %v1523, 0
    %v1532 = vsel %vm349, %v1525, 0
    %v1534 = vsel %vm349, %v1527, 0
    %v1536 = vsel %vm349, %v1529, 0
    %1538 = vmatprep.subr.mxu0 0.0
    %1539 = vmatpush1.xpose.msra.mxu0 %v1534
    %1540 = vmatprep.subr.mxu0 0.0
    %1541 = vmatpush1.xpose.msra.mxu0 %v1536
    %1542 = vmatprep.subr.mxu0 0.0
    %1543 = vmatpush1.xpose.msra.mxu0 0.0
    %1544 = vmatprep.subr.mxu0 0.0
    %1545 = vmatpush1.xpose.msra.mxu0 0.0
    %1546 = vmatprep.subr.mxu0 0.0
    %1547 = vmatpush1.xpose.msra.mxu0 0.0
    %1548 = vmatprep.subr.mxu0 0.0
    %1549 = vmatpush1.xpose.msra.mxu0 0.0
    %1550 = vmatprep.subr.mxu0 0.0
    %1551 = vmatpush1.xpose.msra.mxu0 0.0
    %1552 = vmatprep.subr.mxu0 0.0
    %1553 = vmatpush1.xpose.msra.mxu0 0.0
    %1554 = vmatprep.subr.mxu0 0.0
    %1555 = vmatpush1.xpose.msra.mxu0 0.0
    %1556 = vmatprep.subr.mxu0 0.0
    %1557 = vmatpush1.xpose.msra.mxu0 0.0
    %1558 = vmatprep.subr.mxu0 0.0
    %1559 = vmatpush1.xpose.msra.mxu0 0.0
    %1560 = vmatprep.subr.mxu0 0.0
    %1561 = vmatpush1.xpose.msra.mxu0 0.0
    %1562 = vmatprep.subr.mxu0 0.0
    %1563 = vmatpush1.xpose.msra.mxu0 0.0
    %1564 = vmatprep.subr.mxu0 0.0
    %1565 = vmatpush1.xpose.msra.mxu0 0.0
    %1566 = vmatprep.subr.mxu0 0.0
    %1567 = vmatpush1.xpose.msra.mxu0 0.0
    %1568 = vmatprep.subr.mxu0 0.0
    %1569 = vmatpush1.xpose.msra.mxu0 0.0
    %1570 = vmatprep.subr.mxu0 0.0
    %1571 = vmatpush1.xpose.msra.mxu0 0.0
    %1572 = vmatprep.subr.mxu0 0.0
    %1573 = vmatpush1.xpose.msra.mxu0 0.0
    %1574 = vmatprep.subr.mxu0 0.0
    %1575 = vmatpush1.xpose.msra.mxu0 0.0
    %1576 = vmatprep.subr.mxu0 0.0
    %1577 = vmatpush1.xpose.msra.mxu0 0.0
    %1578 = vmatprep.subr.mxu0 0.0
    %1579 = vmatpush1.xpose.msra.mxu0 0.0
    %1580 = vmatprep.subr.mxu0 0.0
    %1581 = vmatpush1.xpose.msra.mxu0 0.0
    %1582 = vmatprep.subr.mxu0 0.0
    %1583 = vmatpush1.xpose.msra.mxu0 0.0
    %1584 = vmatprep.subr.mxu0 0.0
    %1585 = vmatpush1.xpose.msra.mxu0 0.0
    %1586 = vmatprep.subr.mxu0 0.0
    %1587 = vmatpush1.xpose.msra.mxu0 0.0
    %1588 = vmatprep.subr.mxu0 0.0
    %1589 = vmatpush1.xpose.msra.mxu0 0.0
    %1590 = vmatprep.subr.mxu0 0.0
    %1591 = vmatpush1.xpose.msra.mxu0 0.0
    %1592 = vmatprep.subr.mxu0 0.0
    %1593 = vmatpush1.xpose.msra.mxu0 0.0
    %1594 = vmatprep.subr.mxu0 0.0
    %1595 = vmatpush1.xpose.msra.mxu0 0.0
    %1596 = vmatprep.subr.mxu0 0.0
    %1597 = vmatpush1.xpose.msra.mxu0 0.0
    %1598 = vmatprep.subr.mxu0 0.0
    %1599 = vmatpush1.xpose.msra.mxu0 0.0
    %1600 = vmatprep.subr.mxu0 0.0
    %1601 = vmatpush1.xpose.msra.mxu0 0.0
    %1602 = vmatprep.mubr.f32.mxu0 0.0
    %1603 = vmatmul.mubr.f32.gmra.mrb[0].mxu0 %v1530
    %v1604 = vpop.f32.mrb[0].mxu0
    %v1605 = vadd.f32 0.0, %v1604
    %v1606 = vpop.f32.mrb[0].mxu0
    %1607 = vmatprep.mubr.f32.mxu0 0.0
    %1608 = vmatmul.mubr.f32.gmra.mrb[0].mxu0 %v1532
    %v1609 = vpop.f32.mrb[0].mxu0
    %v1610 = vadd.f32 0.0, %v1609
    %v1611 = vpop.f32.mrb[0].mxu0
    %1612 = vdwg.mxu0
    %v1613 = vmul.f32 %v1605, 0.5
    %v1614 = vmul.f32 %v1610, 0.5
    %v1615 = vmul.f32 %v1613, 1.442695
    %v1616 = vpow.pop %v1615
    %v1617 = vmul.f32 %v1614, 1.442695
    %v1618 = vpow.pop %v1617
    %v1619 = vmul.f32 %v1616, %v35
    %v1620 = vmul.f32 %v1618, %v36
    %v1621 = vsel %vm44, %v1619, 0.0
    %1622 = vadd.xlane.f32.xlu0 %v1621
    %v1623 = vpop.xlane.xlu0 %1622
    %v1624 = vsel %vm44, %v1620, 0.0
    %1625 = vadd.xlane.f32.xlu0 %v1624
    %v1626 = vpop.xlane.xlu0 %1625
    %1627 = vrot.lane.b32.xlu0 %v205, 72
    %v1628 = vpop.permute.xlu0 %1627
    %1629 = vrot.lane.b32.xlu0 %v210, 72
    %v1630 = vpop.permute.xlu0 %1629
    %v1634 = vsel %vm44, %v1619, 0
    %v1637 = vsel %vm44, %v1620, 0
    %1639 = vmatprep.subr.mxu0 0.0
    %1640 = vmatpush1.msra.mxu0 %v1628
    %1641 = vmatprep.subr.mxu0 0.0
    %1642 = vmatpush1.msra.mxu0 %v1630
    %1643 = vmatprep.subr.mxu0 0.0
    %1644 = vmatpush1.msra.mxu0 0.0
    %1645 = vmatprep.subr.mxu0 0.0
    %1646 = vmatpush1.msra.mxu0 0.0
    %1647 = vmatprep.subr.mxu0 0.0
    %1648 = vmatpush1.msra.mxu0 0.0
    %1649 = vmatprep.subr.mxu0 0.0
    %1650 = vmatpush1.msra.mxu0 0.0
    %1651 = vmatprep.subr.mxu0 0.0
    %1652 = vmatpush1.msra.mxu0 0.0
    %1653 = vmatprep.subr.mxu0 0.0
    %1654 = vmatpush1.msra.mxu0 0.0
    %1655 = vmatprep.subr.mxu0 0.0
    %1656 = vmatpush1.msra.mxu0 0.0
    %1657 = vmatprep.subr.mxu0 0.0
    %1658 = vmatpush1.msra.mxu0 0.0
    %1659 = vmatprep.subr.mxu0 0.0
    %1660 = vmatpush1.msra.mxu0 0.0
    %1661 = vmatprep.subr.mxu0 0.0
    %1662 = vmatpush1.msra.mxu0 0.0
    %1663 = vmatprep.subr.mxu0 0.0
    %1664 = vmatpush1.msra.mxu0 0.0
    %1665 = vmatprep.subr.mxu0 0.0
    %1666 = vmatpush1.msra.mxu0 0.0
    %1667 = vmatprep.subr.mxu0 0.0
    %1668 = vmatpush1.msra.mxu0 0.0
    %1669 = vmatprep.subr.mxu0 0.0
    %1670 = vmatpush1.msra.mxu0 0.0
    %1671 = vmatprep.subr.mxu0 0.0
    %1672 = vmatpush1.msra.mxu0 0.0
    %1673 = vmatprep.subr.mxu0 0.0
    %1674 = vmatpush1.msra.mxu0 0.0
    %1675 = vmatprep.subr.mxu0 0.0
    %1676 = vmatpush1.msra.mxu0 0.0
    %1677 = vmatprep.subr.mxu0 0.0
    %1678 = vmatpush1.msra.mxu0 0.0
    %1679 = vmatprep.subr.mxu0 0.0
    %1680 = vmatpush1.msra.mxu0 0.0
    %1681 = vmatprep.subr.mxu0 0.0
    %1682 = vmatpush1.msra.mxu0 0.0
    %1683 = vmatprep.subr.mxu0 0.0
    %1684 = vmatpush1.msra.mxu0 0.0
    %1685 = vmatprep.subr.mxu0 0.0
    %1686 = vmatpush1.msra.mxu0 0.0
    %1687 = vmatprep.subr.mxu0 0.0
    %1688 = vmatpush1.msra.mxu0 0.0
    %1689 = vmatprep.subr.mxu0 0.0
    %1690 = vmatpush1.msra.mxu0 0.0
    %1691 = vmatprep.subr.mxu0 0.0
    %1692 = vmatpush1.msra.mxu0 0.0
    %1693 = vmatprep.subr.mxu0 0.0
    %1694 = vmatpush1.msra.mxu0 0.0
    %1695 = vmatprep.subr.mxu0 0.0
    %1696 = vmatpush1.msra.mxu0 0.0
    %1697 = vmatprep.subr.mxu0 0.0
    %1698 = vmatpush1.msra.mxu0 0.0
    %1699 = vmatprep.subr.mxu0 0.0
    %1700 = vmatpush1.msra.mxu0 0.0
    %1701 = vmatprep.subr.mxu0 0.0
    %1702 = vmatpush1.msra.mxu0 0.0
    %1703 = vmatprep.mubr.f32.mxu0 0.0
    %1704 = vmatmul.mubr.f32.gmra.mrb[0].mxu0 %v1634
    %v1705 = vpop.f32.mrb[0].mxu0
    %v1706 = vadd.f32 0.0, %v1705
    %v1707 = vpop.f32.mrb[0].mxu0
    %1708 = vmatprep.mubr.f32.mxu0 0.0
    %1709 = vmatmul.mubr.f32.gmra.mrb[0].mxu0 %v1637
    %v1710 = vpop.f32.mrb[0].mxu0
    %v1711 = vadd.f32 0.0, %v1710
    %v1712 = vpop.f32.mrb[0].mxu0
    %1713 = vdwg.mxu0
    %v1714 = vrcp.pop %v1623
    %v1715 = vmul.f32 %v1706, %v1714
    %v1716 = vrcp.pop %v1626
    %v1717 = vmul.f32 %v1711, %v1716
    %1718 = vrot.lane.b32.xlu0 %v336, 100
    %v1719 = vpop.permute.xlu0 %1718
    %1720 = vrot.lane.b32.xlu0 %v341, 100
    %v1721 = vpop.permute.xlu0 %1720
    %1722 = vrot.lane.b32.xlu0 %v205, 100
    %v1723 = vpop.permute.xlu0 %1722
    %1724 = vrot.lane.b32.xlu0 %v210, 100
    %v1725 = vpop.permute.xlu0 %1724
    %v1726 = vsel %vm349, %v1719, 0
    %v1728 = vsel %vm349, %v1721, 0
    %v1730 = vsel %vm349, %v1723, 0
    %v1732 = vsel %vm349, %v1725, 0
    %1734 = vmatprep.subr.mxu0 0.0
    %1735 = vmatpush1.xpose.msra.mxu0 %v1730
    %1736 = vmatprep.subr.mxu0 0.0
    %1737 = vmatpush1.xpose.msra.mxu0 %v1732
    %1738 = vmatprep.subr.mxu0 0.0
    %1739 = vmatpush1.xpose.msra.mxu0 0.0
    %1740 = vmatprep.subr.mxu0 0.0
    %1741 = vmatpush1.xpose.msra.mxu0 0.0
    %1742 = vmatprep.subr.mxu0 0.0
    %1743 = vmatpush1.xpose.msra.mxu0 0.0
    %1744 = vmatprep.subr.mxu0 0.0
    %1745 = vmatpush1.xpose.msra.mxu0 0.0
    %1746 = vmatprep.subr.mxu0 0.0
    %1747 = vmatpush1.xpose.msra.mxu0 0.0
    %1748 = vmatprep.subr.mxu0 0.0
    %1749 = vmatpush1.xpose.msra.mxu0 0.0
    %1750 = vmatprep.subr.mxu0 0.0
    %1751 = vmatpush1.xpose.msra.mxu0 0.0
    %1752 = vmatprep.subr.mxu0 0.0
    %1753 = vmatpush1.xpose.msra.mxu0 0.0
    %1754 = vmatprep.subr.mxu0 0.0
    %1755 = vmatpush1.xpose.msra.mxu0 0.0
    %1756 = vmatprep.subr.mxu0 0.0
    %1757 = vmatpush1.xpose.msra.mxu0 0.0
    %1758 = vmatprep.subr.mxu0 0.0
    %1759 = vmatpush1.xpose.msra.mxu0 0.0
    %1760 = vmatprep.subr.mxu0 0.0
    %1761 = vmatpush1.xpose.msra.mxu0 0.0
    %1762 = vmatprep.subr.mxu0 0.0
    %1763 = vmatpush1.xpose.msra.mxu0 0.0
    %1764 = vmatprep.subr.mxu0 0.0
    %1765 = vmatpush1.xpose.msra.mxu0 0.0
    %1766 = vmatprep.subr.mxu0 0.0
    %1767 = vmatpush1.xpose.msra.mxu0 0.0
    %1768 = vmatprep.subr.mxu0 0.0
    %1769 = vmatpush1.xpose.msra.mxu0 0.0
    %1770 = vmatprep.subr.mxu0 0.0
    %1771 = vmatpush1.xpose.msra.mxu0 0.0
    %1772 = vmatprep.subr.mxu0 0.0
    %1773 = vmatpush1.xpose.msra.mxu0 0.0
    %1774 = vmatprep.subr.mxu0 0.0
    %1775 = vmatpush1.xpose.msra.mxu0 0.0
    %1776 = vmatprep.subr.mxu0 0.0
    %1777 = vmatpush1.xpose.msra.mxu0 0.0
    %1778 = vmatprep.subr.mxu0 0.0
    %1779 = vmatpush1.xpose.msra.mxu0 0.0
    %1780 = vmatprep.subr.mxu0 0.0
    %1781 = vmatpush1.xpose.msra.mxu0 0.0
    %1782 = vmatprep.subr.mxu0 0.0
    %1783 = vmatpush1.xpose.msra.mxu0 0.0
    %1784 = vmatprep.subr.mxu0 0.0
    %1785 = vmatpush1.xpose.msra.mxu0 0.0
    %1786 = vmatprep.subr.mxu0 0.0
    %1787 = vmatpush1.xpose.msra.mxu0 0.0
    %1788 = vmatprep.subr.mxu0 0.0
    %1789 = vmatpush1.xpose.msra.mxu0 0.0
    %1790 = vmatprep.subr.mxu0 0.0
    %1791 = vmatpush1.xpose.msra.mxu0 0.0
    %1792 = vmatprep.subr.mxu0 0.0
    %1793 = vmatpush1.xpose.msra.mxu0 0.0
    %1794 = vmatprep.subr.mxu0 0.0
    %1795 = vmatpush1.xpose.msra.mxu0 0.0
    %1796 = vmatprep.subr.mxu0 0.0
    %1797 = vmatpush1.xpose.msra.mxu0 0.0
    %1798 = vmatprep.mubr.f32.mxu0 0.0
    %1799 = vmatmul.mubr.f32.gmra.mrb[0].mxu0 %v1726
    %v1800 = vpop.f32.mrb[0].mxu0
    %v1801 = vadd.f32 0.0, %v1800
    %v1802 = vpop.f32.mrb[0].mxu0
    %1803 = vmatprep.mubr.f32.mxu0 0.0
    %1804 = vmatmul.mubr.f32.gmra.mrb[0].mxu0 %v1728
    %v1805 = vpop.f32.mrb[0].mxu0
    %v1806 = vadd.f32 0.0, %v1805
    %v1807 = vpop.f32.mrb[0].mxu0
    %1808 = vdwg.mxu0
    %v1809 = vmul.f32 %v1801, 0.5
    %v1810 = vmul.f32 %v1806, 0.5
    %v1811 = vmul.f32 %v1809, 1.442695
    %v1812 = vpow.pop %v1811
    %v1813 = vmul.f32 %v1810, 1.442695
    %v1814 = vpow.pop %v1813
    %v1815 = vmul.f32 %v1812, %v35
    %v1816 = vmul.f32 %v1814, %v36
    %v1817 = vsel %vm44, %v1815, 0.0
    %1818 = vadd.xlane.f32.xlu0 %v1817
    %v1819 = vpop.xlane.xlu0 %1818
    %v1820 = vsel %vm44, %v1816, 0.0
    %1821 = vadd.xlane.f32.xlu0 %v1820
    %v1822 = vpop.xlane.xlu0 %1821
    %1823 = vrot.lane.b32.xlu0 %v205, 68
    %v1824 = vpop.permute.xlu0 %1823
    %1825 = vrot.lane.b32.xlu0 %v210, 68
    %v1826 = vpop.permute.xlu0 %1825
    %v1830 = vsel %vm44, %v1815, 0
    %v1833 = vsel %vm44, %v1816, 0
    %1835 = vmatprep.subr.mxu0 0.0
    %1836 = vmatpush1.msra.mxu0 %v1824
    %1837 = vmatprep.subr.mxu0 0.0
    %1838 = vmatpush1.msra.mxu0 %v1826
    %1839 = vmatprep.subr.mxu0 0.0
    %1840 = vmatpush1.msra.mxu0 0.0
    %1841 = vmatprep.subr.mxu0 0.0
    %1842 = vmatpush1.msra.mxu0 0.0
    %1843 = vmatprep.subr.mxu0 0.0
    %1844 = vmatpush1.msra.mxu0 0.0
    %1845 = vmatprep.subr.mxu0 0.0
    %1846 = vmatpush1.msra.mxu0 0.0
    %1847 = vmatprep.subr.mxu0 0.0
    %1848 = vmatpush1.msra.mxu0 0.0
    %1849 = vmatprep.subr.mxu0 0.0
    %1850 = vmatpush1.msra.mxu0 0.0
    %1851 = vmatprep.subr.mxu0 0.0
    %1852 = vmatpush1.msra.mxu0 0.0
    %1853 = vmatprep.subr.mxu0 0.0
    %1854 = vmatpush1.msra.mxu0 0.0
    %1855 = vmatprep.subr.mxu0 0.0
    %1856 = vmatpush1.msra.mxu0 0.0
    %1857 = vmatprep.subr.mxu0 0.0
    %1858 = vmatpush1.msra.mxu0 0.0
    %1859 = vmatprep.subr.mxu0 0.0
    %1860 = vmatpush1.msra.mxu0 0.0
    %1861 = vmatprep.subr.mxu0 0.0
    %1862 = vmatpush1.msra.mxu0 0.0
    %1863 = vmatprep.subr.mxu0 0.0
    %1864 = vmatpush1.msra.mxu0 0.0
    %1865 = vmatprep.subr.mxu0 0.0
    %1866 = vmatpush1.msra.mxu0 0.0
    %1867 = vmatprep.subr.mxu0 0.0
    %1868 = vmatpush1.msra.mxu0 0.0
    %1869 = vmatprep.subr.mxu0 0.0
    %1870 = vmatpush1.msra.mxu0 0.0
    %1871 = vmatprep.subr.mxu0 0.0
    %1872 = vmatpush1.msra.mxu0 0.0
    %1873 = vmatprep.subr.mxu0 0.0
    %1874 = vmatpush1.msra.mxu0 0.0
    %1875 = vmatprep.subr.mxu0 0.0
    %1876 = vmatpush1.msra.mxu0 0.0
    %1877 = vmatprep.subr.mxu0 0.0
    %1878 = vmatpush1.msra.mxu0 0.0
    %1879 = vmatprep.subr.mxu0 0.0
    %1880 = vmatpush1.msra.mxu0 0.0
    %1881 = vmatprep.subr.mxu0 0.0
    %1882 = vmatpush1.msra.mxu0 0.0
    %1883 = vmatprep.subr.mxu0 0.0
    %1884 = vmatpush1.msra.mxu0 0.0
    %1885 = vmatprep.subr.mxu0 0.0
    %1886 = vmatpush1.msra.mxu0 0.0
    %1887 = vmatprep.subr.mxu0 0.0
    %1888 = vmatpush1.msra.mxu0 0.0
    %1889 = vmatprep.subr.mxu0 0.0
    %1890 = vmatpush1.msra.mxu0 0.0
    %1891 = vmatprep.subr.mxu0 0.0
    %1892 = vmatpush1.msra.mxu0 0.0
    %1893 = vmatprep.subr.mxu0 0.0
    %1894 = vmatpush1.msra.mxu0 0.0
    %1895 = vmatprep.subr.mxu0 0.0
    %1896 = vmatpush1.msra.mxu0 0.0
    %1897 = vmatprep.subr.mxu0 0.0
    %1898 = vmatpush1.msra.mxu0 0.0
    %1899 = vmatprep.mubr.f32.mxu0 0.0
    %1900 = vmatmul.mubr.f32.gmra.mrb[0].mxu0 %v1830
    %v1901 = vpop.f32.mrb[0].mxu0
    %v1902 = vadd.f32 0.0, %v1901
    %v1903 = vpop.f32.mrb[0].mxu0
    %1904 = vmatprep.mubr.f32.mxu0 0.0
    %1905 = vmatmul.mubr.f32.gmra.mrb[0].mxu0 %v1833
    %v1906 = vpop.f32.mrb[0].mxu0
    %v1907 = vadd.f32 0.0, %v1906
    %v1908 = vpop.f32.mrb[0].mxu0
    %1909 = vdwg.mxu0
    %v1910 = vrcp.pop %v1819
    %v1911 = vmul.f32 %v1902, %v1910
    %v1912 = vrcp.pop %v1822
    %v1913 = vmul.f32 %v1907, %v1912
    %1916 = vrot.lane.b32.xlu0 %v735, 4
    %v1917 = vpop.permute.xlu0 %1916
    %1918 = vrot.lane.b32.xlu0 %v737, 4
    %v1919 = vpop.permute.xlu0 %1918
    %1924 = vrot.lane.b32.xlu0 %v931, 8
    %v1925 = vpop.permute.xlu0 %1924
    %1926 = vrot.lane.b32.xlu0 %v933, 8
    %v1927 = vpop.permute.xlu0 %1926
    %1932 = vrot.lane.b32.xlu0 %v1127, 12
    %v1933 = vpop.permute.xlu0 %1932
    %1934 = vrot.lane.b32.xlu0 %v1129, 12
    %v1935 = vpop.permute.xlu0 %1934
    %1940 = vrot.lane.b32.xlu0 %v1323, 16
    %v1941 = vpop.permute.xlu0 %1940
    %1942 = vrot.lane.b32.xlu0 %v1325, 16
    %v1943 = vpop.permute.xlu0 %1942
    %1948 = vrot.lane.b32.xlu0 %v1519, 20
    %v1949 = vpop.permute.xlu0 %1948
    %1950 = vrot.lane.b32.xlu0 %v1521, 20
    %v1951 = vpop.permute.xlu0 %1950
    %1956 = vrot.lane.b32.xlu0 %v1715, 24
    %v1957 = vpop.permute.xlu0 %1956
    %1958 = vrot.lane.b32.xlu0 %v1717, 24
    %v1959 = vpop.permute.xlu0 %1958
    %1964 = vrot.lane.b32.xlu0 %v1911, 28
    %v1965 = vpop.permute.xlu0 %1964
    %1966 = vrot.lane.b32.xlu0 %v1913, 28
    %v1967 = vpop.permute.xlu0 %1966
    %v1970 = vsel %vm349, %v539, %v1917
    %v1971 = vsel %vm349, %v541, %v1919
    %vm1972 = vcmask 64512
    %v1973 = vsel %vm1972, %v1970, %v1925
    %v1974 = vsel %vm1972, %v1971, %v1927
    %vm1975 = vcmask 97280
    %v1976 = vsel %vm1975, %v1973, %v1933
    %v1977 = vsel %vm1975, %v1974, %v1935
    %v1978 = vsel %vm44, %v1976, %v1941
    %v1979 = vsel %vm44, %v1977, %v1943
    %vm1980 = vcmask 162816
    %v1981 = vsel %vm1980, %v1978, %v1949
    %v1982 = vsel %vm1980, %v1979, %v1951
    %vm1983 = vcmask 195584
    %v1984 = vsel %vm1983, %v1981, %v1957
    %v1985 = vsel %vm1983, %v1982, %v1959
    %vm1986 = vcmask 228352
    %v1987 = vsel %vm1986, %v1984, %v1965
    %v1988 = vsel %vm1986, %v1985, %v1967
    %v1989 = vlaneseq
    %v1990 = vshrl.u32 %v1989, 7
    %v1991 = vsub.s32 0, %v1990
    %v1992 = vrot.slane %v348, %v1991
    %v1994 = vsel %vm131, %v1987, 0
    %v1997 = vsel %vm131, %v1988, 0
    %1999 = vmatprep.subr.mxu0 0.0
    %2000 = vmatpush1.msra.mxu0 %v344
    %2001 = vmatprep.subr.mxu0 0.0
    %2002 = vmatpush1.msra.mxu0 %v345
    %2003 = vmatprep.subr.mxu0 0.0
    %2004 = vmatpush1.msra.mxu0 %v346
    %2005 = vmatprep.subr.mxu0 0.0
    %2006 = vmatpush1.msra.mxu0 %v347
    %2007 = vmatprep.subr.mxu0 0.0
    %2008 = vmatpush1.msra.mxu0 0.0
    %2009 = vmatprep.subr.mxu0 0.0
    %2010 = vmatpush1.msra.mxu0 0.0
    %2011 = vmatprep.subr.mxu0 0.0
    %2012 = vmatpush1.msra.mxu0 0.0
    %2013 = vmatprep.subr.mxu0 0.0
    %2014 = vmatpush1.msra.mxu0 0.0
    %2015 = vmatprep.subr.mxu0 0.0
    %2016 = vmatpush1.msra.mxu0 0.0
    %2017 = vmatprep.subr.mxu0 0.0
    %2018 = vmatpush1.msra.mxu0 0.0
    %2019 = vmatprep.subr.mxu0 0.0
    %2020 = vmatpush1.msra.mxu0 0.0
    %2021 = vmatprep.subr.mxu0 0.0
    %2022 = vmatpush1.msra.mxu0 0.0
    %2023 = vmatprep.subr.mxu0 0.0
    %2024 = vmatpush1.msra.mxu0 0.0
    %2025 = vmatprep.subr.mxu0 0.0
    %2026 = vmatpush1.msra.mxu0 0.0
    %2027 = vmatprep.subr.mxu0 0.0
    %2028 = vmatpush1.msra.mxu0 0.0
    %2029 = vmatprep.subr.mxu0 0.0
    %2030 = vmatpush1.msra.mxu0 0.0
    %2031 = vmatprep.subr.mxu0 0.0
    %2032 = vmatpush1.msra.mxu0 0.0
    %2033 = vmatprep.subr.mxu0 0.0
    %2034 = vmatpush1.msra.mxu0 0.0
    %2035 = vmatprep.subr.mxu0 0.0
    %2036 = vmatpush1.msra.mxu0 0.0
    %2037 = vmatprep.subr.mxu0 0.0
    %2038 = vmatpush1.msra.mxu0 0.0
    %2039 = vmatprep.subr.mxu0 0.0
    %2040 = vmatpush1.msra.mxu0 0.0
    %2041 = vmatprep.subr.mxu0 0.0
    %2042 = vmatpush1.msra.mxu0 0.0
    %2043 = vmatprep.subr.mxu0 0.0
    %2044 = vmatpush1.msra.mxu0 0.0
    %2045 = vmatprep.subr.mxu0 0.0
    %2046 = vmatpush1.msra.mxu0 0.0
    %2047 = vmatprep.subr.mxu0 0.0
    %2048 = vmatpush1.msra.mxu0 0.0
    %2049 = vmatprep.subr.mxu0 0.0
    %2050 = vmatpush1.msra.mxu0 0.0
    %2051 = vmatprep.subr.mxu0 0.0
    %2052 = vmatpush1.msra.mxu0 0.0
    %2053 = vmatprep.subr.mxu0 0.0
    %2054 = vmatpush1.msra.mxu0 0.0
    %2055 = vmatprep.subr.mxu0 0.0
    %2056 = vmatpush1.msra.mxu0 0.0
    %2057 = vmatprep.subr.mxu0 0.0
    %2058 = vmatpush1.msra.mxu0 0.0
    %2059 = vmatprep.subr.mxu0 0.0
    %2060 = vmatpush1.msra.mxu0 0.0
    %2061 = vmatprep.subr.mxu0 0.0
    %2062 = vmatpush1.msra.mxu0 0.0
    %2063 = vmatprep.mubr.f32.mxu0 0.0
    %2064 = vmatmul.mubr.f32.gmra.mrb[0].mxu0 %v1994
    %v2065 = vpop.f32.mrb[0].mxu0
    %v2066 = vadd.f32 %v1992, %v2065
    %v2067 = vpop.f32.mrb[0].mxu0
    %2068 = vmatprep.mubr.f32.mxu0 0.0
    %2069 = vmatmul.mubr.f32.gmra.mrb[0].mxu0 %v1997
    %v2070 = vpop.f32.mrb[0].mxu0
    %v2071 = vadd.f32 %v1992, %v2070
    %v2072 = vpop.f32.mrb[0].mxu0
    %2073 = vdwg.mxu0
    %2074 = vrot.lane.b32.xlu0 %v205, 64
    %v2075 = vpop.permute.xlu0 %2074
    %2076 = vrot.lane.b32.xlu0 %v210, 64
    %v2077 = vpop.permute.xlu0 %2076
    %2078 = vrot.lane.b32.xlu0 %v336, 96
    %v2079 = vpop.permute.xlu0 %2078
    %2080 = vrot.lane.b32.xlu0 %v341, 96
    %v2081 = vpop.permute.xlu0 %2080
    %v2082 = vsel %vm349, %v2075, 0
    %v2084 = vsel %vm349, %v2077, 0
    %v2086 = vsel %vm349, %v2079, 0
    %v2088 = vsel %vm349, %v2081, 0
    %2090 = vmatprep.subr.mxu0 0.0
    %2091 = vmatpush1.xpose.msra.mxu0 %v2086
    %2092 = vmatprep.subr.mxu0 0.0
    %2093 = vmatpush1.xpose.msra.mxu0 %v2088
    %2094 = vmatprep.subr.mxu0 0.0
    %2095 = vmatpush1.xpose.msra.mxu0 0.0
    %2096 = vmatprep.subr.mxu0 0.0
    %2097 = vmatpush1.xpose.msra.mxu0 0.0
    %2098 = vmatprep.subr.mxu0 0.0
    %2099 = vmatpush1.xpose.msra.mxu0 0.0
    %2100 = vmatprep.subr.mxu0 0.0
    %2101 = vmatpush1.xpose.msra.mxu0 0.0
    %2102 = vmatprep.subr.mxu0 0.0
    %2103 = vmatpush1.xpose.msra.mxu0 0.0
    %2104 = vmatprep.subr.mxu0 0.0
    %2105 = vmatpush1.xpose.msra.mxu0 0.0
    %2106 = vmatprep.subr.mxu0 0.0
    %2107 = vmatpush1.xpose.msra.mxu0 0.0
    %2108 = vmatprep.subr.mxu0 0.0
    %2109 = vmatpush1.xpose.msra.mxu0 0.0
    %2110 = vmatprep.subr.mxu0 0.0
    %2111 = vmatpush1.xpose.msra.mxu0 0.0
    %2112 = vmatprep.subr.mxu0 0.0
    %2113 = vmatpush1.xpose.msra.mxu0 0.0
    %2114 = vmatprep.subr.mxu0 0.0
    %2115 = vmatpush1.xpose.msra.mxu0 0.0
    %2116 = vmatprep.subr.mxu0 0.0
    %2117 = vmatpush1.xpose.msra.mxu0 0.0
    %2118 = vmatprep.subr.mxu0 0.0
    %2119 = vmatpush1.xpose.msra.mxu0 0.0
    %2120 = vmatprep.subr.mxu0 0.0
    %2121 = vmatpush1.xpose.msra.mxu0 0.0
    %2122 = vmatprep.subr.mxu0 0.0
    %2123 = vmatpush1.xpose.msra.mxu0 0.0
    %2124 = vmatprep.subr.mxu0 0.0
    %2125 = vmatpush1.xpose.msra.mxu0 0.0
    %2126 = vmatprep.subr.mxu0 0.0
    %2127 = vmatpush1.xpose.msra.mxu0 0.0
    %2128 = vmatprep.subr.mxu0 0.0
    %2129 = vmatpush1.xpose.msra.mxu0 0.0
    %2130 = vmatprep.subr.mxu0 0.0
    %2131 = vmatpush1.xpose.msra.mxu0 0.0
    %2132 = vmatprep.subr.mxu0 0.0
    %2133 = vmatpush1.xpose.msra.mxu0 0.0
    %2134 = vmatprep.subr.mxu0 0.0
    %2135 = vmatpush1.xpose.msra.mxu0 0.0
    %2136 = vmatprep.subr.mxu0 0.0
    %2137 = vmatpush1.xpose.msra.mxu0 0.0
    %2138 = vmatprep.subr.mxu0 0.0
    %2139 = vmatpush1.xpose.msra.mxu0 0.0
    %2140 = vmatprep.subr.mxu0 0.0
    %2141 = vmatpush1.xpose.msra.mxu0 0.0
    %2142 = vmatprep.subr.mxu0 0.0
    %2143 = vmatpush1.xpose.msra.mxu0 0.0
    %2144 = vmatprep.subr.mxu0 0.0
    %2145 = vmatpush1.xpose.msra.mxu0 0.0
    %2146 = vmatprep.subr.mxu0 0.0
    %2147 = vmatpush1.xpose.msra.mxu0 0.0
    %2148 = vmatprep.subr.mxu0 0.0
    %2149 = vmatpush1.xpose.msra.mxu0 0.0
    %2150 = vmatprep.subr.mxu0 0.0
    %2151 = vmatpush1.xpose.msra.mxu0 0.0
    %2152 = vmatprep.subr.mxu0 0.0
    %2153 = vmatpush1.xpose.msra.mxu0 0.0
    %2154 = vmatprep.mubr.f32.mxu0 0.0
    %2155 = vmatmul.mubr.f32.gmra.mrb[0].mxu0 %v2082
    %v2156 = vpop.f32.mrb[0].mxu0
    %v2157 = vadd.f32 0.0, %v2156
    %v2158 = vpop.f32.mrb[0].mxu0
    %2159 = vmatprep.mubr.f32.mxu0 0.0
    %2160 = vmatmul.mubr.f32.gmra.mrb[0].mxu0 %v2084
    %v2161 = vpop.f32.mrb[0].mxu0
    %v2162 = vadd.f32 0.0, %v2161
    %v2163 = vpop.f32.mrb[0].mxu0
    %2164 = vdwg.mxu0
    %v2165 = vmul.f32 %v2157, 0.5
    %v2166 = vmul.f32 %v2162, 0.5
    %v2167 = vmul.f32 %v2165, 1.442695
    %v2168 = vpow.pop %v2167
    %v2169 = vmul.f32 %v2166, 1.442695
    %v2170 = vpow.pop %v2169
    %v2171 = vmul.f32 %v2168, %v35
    %v2172 = vmul.f32 %v2170, %v36
    %v2173 = vsel %vm44, %v2171, 0.0
    %2174 = vadd.xlane.f32.xlu0 %v2173
    %v2175 = vpop.xlane.xlu0 %2174
    %v2176 = vsel %vm44, %v2172, 0.0
    %2177 = vadd.xlane.f32.xlu0 %v2176
    %v2178 = vpop.xlane.xlu0 %2177
    %2179 = vrot.lane.b32.xlu0 %v336, 64
    %v2180 = vpop.permute.xlu0 %2179
    %2181 = vrot.lane.b32.xlu0 %v341, 64
    %v2182 = vpop.permute.xlu0 %2181
    %v2186 = vsel %vm44, %v2171, 0
    %v2189 = vsel %vm44, %v2172, 0
    %2191 = vmatprep.subr.mxu0 0.0
    %2192 = vmatpush1.msra.mxu0 %v2180
    %2193 = vmatprep.subr.mxu0 0.0
    %2194 = vmatpush1.msra.mxu0 %v2182
    %2195 = vmatprep.subr.mxu0 0.0
    %2196 = vmatpush1.msra.mxu0 0.0
    %2197 = vmatprep.subr.mxu0 0.0
    %2198 = vmatpush1.msra.mxu0 0.0
    %2199 = vmatprep.subr.mxu0 0.0
    %2200 = vmatpush1.msra.mxu0 0.0
    %2201 = vmatprep.subr.mxu0 0.0
    %2202 = vmatpush1.msra.mxu0 0.0
    %2203 = vmatprep.subr.mxu0 0.0
    %2204 = vmatpush1.msra.mxu0 0.0
    %2205 = vmatprep.subr.mxu0 0.0
    %2206 = vmatpush1.msra.mxu0 0.0
    %2207 = vmatprep.subr.mxu0 0.0
    %2208 = vmatpush1.msra.mxu0 0.0
    %2209 = vmatprep.subr.mxu0 0.0
    %2210 = vmatpush1.msra.mxu0 0.0
    %2211 = vmatprep.subr.mxu0 0.0
    %2212 = vmatpush1.msra.mxu0 0.0
    %2213 = vmatprep.subr.mxu0 0.0
    %2214 = vmatpush1.msra.mxu0 0.0
    %2215 = vmatprep.subr.mxu0 0.0
    %2216 = vmatpush1.msra.mxu0 0.0
    %2217 = vmatprep.subr.mxu0 0.0
    %2218 = vmatpush1.msra.mxu0 0.0
    %2219 = vmatprep.subr.mxu0 0.0
    %2220 = vmatpush1.msra.mxu0 0.0
    %2221 = vmatprep.subr.mxu0 0.0
    %2222 = vmatpush1.msra.mxu0 0.0
    %2223 = vmatprep.subr.mxu0 0.0
    %2224 = vmatpush1.msra.mxu0 0.0
    %2225 = vmatprep.subr.mxu0 0.0
    %2226 = vmatpush1.msra.mxu0 0.0
    %2227 = vmatprep.subr.mxu0 0.0
    %2228 = vmatpush1.msra.mxu0 0.0
    %2229 = vmatprep.subr.mxu0 0.0
    %2230 = vmatpush1.msra.mxu0 0.0
    %2231 = vmatprep.subr.mxu0 0.0
    %2232 = vmatpush1.msra.mxu0 0.0
    %2233 = vmatprep.subr.mxu0 0.0
    %2234 = vmatpush1.msra.mxu0 0.0
    %2235 = vmatprep.subr.mxu0 0.0
    %2236 = vmatpush1.msra.mxu0 0.0
    %2237 = vmatprep.subr.mxu0 0.0
    %2238 = vmatpush1.msra.mxu0 0.0
    %2239 = vmatprep.subr.mxu0 0.0
    %2240 = vmatpush1.msra.mxu0 0.0
    %2241 = vmatprep.subr.mxu0 0.0
    %2242 = vmatpush1.msra.mxu0 0.0
    %2243 = vmatprep.subr.mxu0 0.0
    %2244 = vmatpush1.msra.mxu0 0.0
    %2245 = vmatprep.subr.mxu0 0.0
    %2246 = vmatpush1.msra.mxu0 0.0
    %2247 = vmatprep.subr.mxu0 0.0
    %2248 = vmatpush1.msra.mxu0 0.0
    %2249 = vmatprep.subr.mxu0 0.0
    %2250 = vmatpush1.msra.mxu0 0.0
    %2251 = vmatprep.subr.mxu0 0.0
    %2252 = vmatpush1.msra.mxu0 0.0
    %2253 = vmatprep.subr.mxu0 0.0
    %2254 = vmatpush1.msra.mxu0 0.0
    %2255 = vmatprep.mubr.f32.mxu0 0.0
    %2256 = vmatmul.mubr.f32.gmra.mrb[0].mxu0 %v2186
    %v2257 = vpop.f32.mrb[0].mxu0
    %v2258 = vadd.f32 0.0, %v2257
    %v2259 = vpop.f32.mrb[0].mxu0
    %2260 = vmatprep.mubr.f32.mxu0 0.0
    %2261 = vmatmul.mubr.f32.gmra.mrb[0].mxu0 %v2189
    %v2262 = vpop.f32.mrb[0].mxu0
    %v2263 = vadd.f32 0.0, %v2262
    %v2264 = vpop.f32.mrb[0].mxu0
    %2265 = vdwg.mxu0
    %v2266 = vrcp.pop %v2175
    %v2267 = vmul.f32 %v2258, %v2266
    %v2268 = vrcp.pop %v2178
    %v2269 = vmul.f32 %v2263, %v2268
    %2270 = vrot.lane.b32.xlu0 %v205, 60
    %v2271 = vpop.permute.xlu0 %2270
    %2272 = vrot.lane.b32.xlu0 %v210, 60
    %v2273 = vpop.permute.xlu0 %2272
    %2274 = vrot.lane.b32.xlu0 %v336, 92
    %v2275 = vpop.permute.xlu0 %2274
    %2276 = vrot.lane.b32.xlu0 %v341, 92
    %v2277 = vpop.permute.xlu0 %2276
    %v2278 = vsel %vm349, %v2271, 0
    %v2280 = vsel %vm349, %v2273, 0
    %v2282 = vsel %vm349, %v2275, 0
    %v2284 = vsel %vm349, %v2277, 0
    %2286 = vmatprep.subr.mxu0 0.0
    %2287 = vmatpush1.xpose.msra.mxu0 %v2282
    %2288 = vmatprep.subr.mxu0 0.0
    %2289 = vmatpush1.xpose.msra.mxu0 %v2284
    %2290 = vmatprep.subr.mxu0 0.0
    %2291 = vmatpush1.xpose.msra.mxu0 0.0
    %2292 = vmatprep.subr.mxu0 0.0
    %2293 = vmatpush1.xpose.msra.mxu0 0.0
    %2294 = vmatprep.subr.mxu0 0.0
    %2295 = vmatpush1.xpose.msra.mxu0 0.0
    %2296 = vmatprep.subr.mxu0 0.0
    %2297 = vmatpush1.xpose.msra.mxu0 0.0
    %2298 = vmatprep.subr.mxu0 0.0
    %2299 = vmatpush1.xpose.msra.mxu0 0.0
    %2300 = vmatprep.subr.mxu0 0.0
    %2301 = vmatpush1.xpose.msra.mxu0 0.0
    %2302 = vmatprep.subr.mxu0 0.0
    %2303 = vmatpush1.xpose.msra.mxu0 0.0
    %2304 = vmatprep.subr.mxu0 0.0
    %2305 = vmatpush1.xpose.msra.mxu0 0.0
    %2306 = vmatprep.subr.mxu0 0.0
    %2307 = vmatpush1.xpose.msra.mxu0 0.0
    %2308 = vmatprep.subr.mxu0 0.0
    %2309 = vmatpush1.xpose.msra.mxu0 0.0
    %2310 = vmatprep.subr.mxu0 0.0
    %2311 = vmatpush1.xpose.msra.mxu0 0.0
    %2312 = vmatprep.subr.mxu0 0.0
    %2313 = vmatpush1.xpose.msra.mxu0 0.0
    %2314 = vmatprep.subr.mxu0 0.0
    %2315 = vmatpush1.xpose.msra.mxu0 0.0
    %2316 = vmatprep.subr.mxu0 0.0
    %2317 = vmatpush1.xpose.msra.mxu0 0.0
    %2318 = vmatprep.subr.mxu0 0.0
    %2319 = vmatpush1.xpose.msra.mxu0 0.0
    %2320 = vmatprep.subr.mxu0 0.0
    %2321 = vmatpush1.xpose.msra.mxu0 0.0
    %2322 = vmatprep.subr.mxu0 0.0
    %2323 = vmatpush1.xpose.msra.mxu0 0.0
    %2324 = vmatprep.subr.mxu0 0.0
    %2325 = vmatpush1.xpose.msra.mxu0 0.0
    %2326 = vmatprep.subr.mxu0 0.0
    %2327 = vmatpush1.xpose.msra.mxu0 0.0
    %2328 = vmatprep.subr.mxu0 0.0
    %2329 = vmatpush1.xpose.msra.mxu0 0.0
    %2330 = vmatprep.subr.mxu0 0.0
    %2331 = vmatpush1.xpose.msra.mxu0 0.0
    %2332 = vmatprep.subr.mxu0 0.0
    %2333 = vmatpush1.xpose.msra.mxu0 0.0
    %2334 = vmatprep.subr.mxu0 0.0
    %2335 = vmatpush1.xpose.msra.mxu0 0.0
    %2336 = vmatprep.subr.mxu0 0.0
    %2337 = vmatpush1.xpose.msra.mxu0 0.0
    %2338 = vmatprep.subr.mxu0 0.0
    %2339 = vmatpush1.xpose.msra.mxu0 0.0
    %2340 = vmatprep.subr.mxu0 0.0
    %2341 = vmatpush1.xpose.msra.mxu0 0.0
    %2342 = vmatprep.subr.mxu0 0.0
    %2343 = vmatpush1.xpose.msra.mxu0 0.0
    %2344 = vmatprep.subr.mxu0 0.0
    %2345 = vmatpush1.xpose.msra.mxu0 0.0
    %2346 = vmatprep.subr.mxu0 0.0
    %2347 = vmatpush1.xpose.msra.mxu0 0.0
    %2348 = vmatprep.subr.mxu0 0.0
    %2349 = vmatpush1.xpose.msra.mxu0 0.0
    %2350 = vmatprep.mubr.f32.mxu0 0.0
    %2351 = vmatmul.mubr.f32.gmra.mrb[0].mxu0 %v2278
    %v2352 = vpop.f32.mrb[0].mxu0
    %v2353 = vadd.f32 0.0, %v2352
    %v2354 = vpop.f32.mrb[0].mxu0
    %2355 = vmatprep.mubr.f32.mxu0 0.0
    %2356 = vmatmul.mubr.f32.gmra.mrb[0].mxu0 %v2280
    %v2357 = vpop.f32.mrb[0].mxu0
    %v2358 = vadd.f32 0.0, %v2357
    %v2359 = vpop.f32.mrb[0].mxu0
    %2360 = vdwg.mxu0
    %v2361 = vmul.f32 %v2353, 0.5
    %v2362 = vmul.f32 %v2358, 0.5
    %v2363 = vmul.f32 %v2361, 1.442695
    %v2364 = vpow.pop %v2363
    %v2365 = vmul.f32 %v2362, 1.442695
    %v2366 = vpow.pop %v2365
    %v2367 = vmul.f32 %v2364, %v35
    %v2368 = vmul.f32 %v2366, %v36
    %v2369 = vsel %vm44, %v2367, 0.0
    %2370 = vadd.xlane.f32.xlu0 %v2369
    %v2371 = vpop.xlane.xlu0 %2370
    %v2372 = vsel %vm44, %v2368, 0.0
    %2373 = vadd.xlane.f32.xlu0 %v2372
    %v2374 = vpop.xlane.xlu0 %2373
    %2375 = vrot.lane.b32.xlu0 %v336, 60
    %v2376 = vpop.permute.xlu0 %2375
    %2377 = vrot.lane.b32.xlu0 %v341, 60
    %v2378 = vpop.permute.xlu0 %2377
    %v2382 = vsel %vm44, %v2367, 0
    %v2385 = vsel %vm44, %v2368, 0
    %2387 = vmatprep.subr.mxu0 0.0
    %2388 = vmatpush1.msra.mxu0 %v2376
    %2389 = vmatprep.subr.mxu0 0.0
    %2390 = vmatpush1.msra.mxu0 %v2378
    %2391 = vmatprep.subr.mxu0 0.0
    %2392 = vmatpush1.msra.mxu0 0.0
    %2393 = vmatprep.subr.mxu0 0.0
    %2394 = vmatpush1.msra.mxu0 0.0
    %2395 = vmatprep.subr.mxu0 0.0
    %2396 = vmatpush1.msra.mxu0 0.0
    %2397 = vmatprep.subr.mxu0 0.0
    %2398 = vmatpush1.msra.mxu0 0.0
    %2399 = vmatprep.subr.mxu0 0.0
    %2400 = vmatpush1.msra.mxu0 0.0
    %2401 = vmatprep.subr.mxu0 0.0
    %2402 = vmatpush1.msra.mxu0 0.0
    %2403 = vmatprep.subr.mxu0 0.0
    %2404 = vmatpush1.msra.mxu0 0.0
    %2405 = vmatprep.subr.mxu0 0.0
    %2406 = vmatpush1.msra.mxu0 0.0
    %2407 = vmatprep.subr.mxu0 0.0
    %2408 = vmatpush1.msra.mxu0 0.0
    %2409 = vmatprep.subr.mxu0 0.0
    %2410 = vmatpush1.msra.mxu0 0.0
    %2411 = vmatprep.subr.mxu0 0.0
    %2412 = vmatpush1.msra.mxu0 0.0
    %2413 = vmatprep.subr.mxu0 0.0
    %2414 = vmatpush1.msra.mxu0 0.0
    %2415 = vmatprep.subr.mxu0 0.0
    %2416 = vmatpush1.msra.mxu0 0.0
    %2417 = vmatprep.subr.mxu0 0.0
    %2418 = vmatpush1.msra.mxu0 0.0
    %2419 = vmatprep.subr.mxu0 0.0
    %2420 = vmatpush1.msra.mxu0 0.0
    %2421 = vmatprep.subr.mxu0 0.0
    %2422 = vmatpush1.msra.mxu0 0.0
    %2423 = vmatprep.subr.mxu0 0.0
    %2424 = vmatpush1.msra.mxu0 0.0
    %2425 = vmatprep.subr.mxu0 0.0
    %2426 = vmatpush1.msra.mxu0 0.0
    %2427 = vmatprep.subr.mxu0 0.0
    %2428 = vmatpush1.msra.mxu0 0.0
    %2429 = vmatprep.subr.mxu0 0.0
    %2430 = vmatpush1.msra.mxu0 0.0
    %2431 = vmatprep.subr.mxu0 0.0
    %2432 = vmatpush1.msra.mxu0 0.0
    %2433 = vmatprep.subr.mxu0 0.0
    %2434 = vmatpush1.msra.mxu0 0.0
    %2435 = vmatprep.subr.mxu0 0.0
    %2436 = vmatpush1.msra.mxu0 0.0
    %2437 = vmatprep.subr.mxu0 0.0
    %2438 = vmatpush1.msra.mxu0 0.0
    %2439 = vmatprep.subr.mxu0 0.0
    %2440 = vmatpush1.msra.mxu0 0.0
    %2441 = vmatprep.subr.mxu0 0.0
    %2442 = vmatpush1.msra.mxu0 0.0
    %2443 = vmatprep.subr.mxu0 0.0
    %2444 = vmatpush1.msra.mxu0 0.0
    %2445 = vmatprep.subr.mxu0 0.0
    %2446 = vmatpush1.msra.mxu0 0.0
    %2447 = vmatprep.subr.mxu0 0.0
    %2448 = vmatpush1.msra.mxu0 0.0
    %2449 = vmatprep.subr.mxu0 0.0
    %2450 = vmatpush1.msra.mxu0 0.0
    %2451 = vmatprep.mubr.f32.mxu0 0.0
    %2452 = vmatmul.mubr.f32.gmra.mrb[0].mxu0 %v2382
    %v2453 = vpop.f32.mrb[0].mxu0
    %v2454 = vadd.f32 0.0, %v2453
    %v2455 = vpop.f32.mrb[0].mxu0
    %2456 = vmatprep.mubr.f32.mxu0 0.0
    %2457 = vmatmul.mubr.f32.gmra.mrb[0].mxu0 %v2385
    %v2458 = vpop.f32.mrb[0].mxu0
    %v2459 = vadd.f32 0.0, %v2458
    %v2460 = vpop.f32.mrb[0].mxu0
    %2461 = vdwg.mxu0
    %v2462 = vrcp.pop %v2371
    %v2463 = vmul.f32 %v2454, %v2462
    %v2464 = vrcp.pop %v2374
    %v2465 = vmul.f32 %v2459, %v2464
    %2466 = vrot.lane.b32.xlu0 %v205, 56
    %v2467 = vpop.permute.xlu0 %2466
    %2468 = vrot.lane.b32.xlu0 %v210, 56
    %v2469 = vpop.permute.xlu0 %2468
    %2470 = vrot.lane.b32.xlu0 %v336, 88
    %v2471 = vpop.permute.xlu0 %2470
    %2472 = vrot.lane.b32.xlu0 %v341, 88
    %v2473 = vpop.permute.xlu0 %2472
    %v2474 = vsel %vm349, %v2467, 0
    %v2476 = vsel %vm349, %v2469, 0
    %v2478 = vsel %vm349, %v2471, 0
    %v2480 = vsel %vm349, %v2473, 0
    %2482 = vmatprep.subr.mxu0 0.0
    %2483 = vmatpush1.xpose.msra.mxu0 %v2478
    %2484 = vmatprep.subr.mxu0 0.0
    %2485 = vmatpush1.xpose.msra.mxu0 %v2480
    %2486 = vmatprep.subr.mxu0 0.0
    %2487 = vmatpush1.xpose.msra.mxu0 0.0
    %2488 = vmatprep.subr.mxu0 0.0
    %2489 = vmatpush1.xpose.msra.mxu0 0.0
    %2490 = vmatprep.subr.mxu0 0.0
    %2491 = vmatpush1.xpose.msra.mxu0 0.0
    %2492 = vmatprep.subr.mxu0 0.0
    %2493 = vmatpush1.xpose.msra.mxu0 0.0
    %2494 = vmatprep.subr.mxu0 0.0
    %2495 = vmatpush1.xpose.msra.mxu0 0.0
    %2496 = vmatprep.subr.mxu0 0.0
    %2497 = vmatpush1.xpose.msra.mxu0 0.0
    %2498 = vmatprep.subr.mxu0 0.0
    %2499 = vmatpush1.xpose.msra.mxu0 0.0
    %2500 = vmatprep.subr.mxu0 0.0
    %2501 = vmatpush1.xpose.msra.mxu0 0.0
    %2502 = vmatprep.subr.mxu0 0.0
    %2503 = vmatpush1.xpose.msra.mxu0 0.0
    %2504 = vmatprep.subr.mxu0 0.0
    %2505 = vmatpush1.xpose.msra.mxu0 0.0
    %2506 = vmatprep.subr.mxu0 0.0
    %2507 = vmatpush1.xpose.msra.mxu0 0.0
    %2508 = vmatprep.subr.mxu0 0.0
    %2509 = vmatpush1.xpose.msra.mxu0 0.0
    %2510 = vmatprep.subr.mxu0 0.0
    %2511 = vmatpush1.xpose.msra.mxu0 0.0
    %2512 = vmatprep.subr.mxu0 0.0
    %2513 = vmatpush1.xpose.msra.mxu0 0.0
    %2514 = vmatprep.subr.mxu0 0.0
    %2515 = vmatpush1.xpose.msra.mxu0 0.0
    %2516 = vmatprep.subr.mxu0 0.0
    %2517 = vmatpush1.xpose.msra.mxu0 0.0
    %2518 = vmatprep.subr.mxu0 0.0
    %2519 = vmatpush1.xpose.msra.mxu0 0.0
    %2520 = vmatprep.subr.mxu0 0.0
    %2521 = vmatpush1.xpose.msra.mxu0 0.0
    %2522 = vmatprep.subr.mxu0 0.0
    %2523 = vmatpush1.xpose.msra.mxu0 0.0
    %2524 = vmatprep.subr.mxu0 0.0
    %2525 = vmatpush1.xpose.msra.mxu0 0.0
    %2526 = vmatprep.subr.mxu0 0.0
    %2527 = vmatpush1.xpose.msra.mxu0 0.0
    %2528 = vmatprep.subr.mxu0 0.0
    %2529 = vmatpush1.xpose.msra.mxu0 0.0
    %2530 = vmatprep.subr.mxu0 0.0
    %2531 = vmatpush1.xpose.msra.mxu0 0.0
    %2532 = vmatprep.subr.mxu0 0.0
    %2533 = vmatpush1.xpose.msra.mxu0 0.0
    %2534 = vmatprep.subr.mxu0 0.0
    %2535 = vmatpush1.xpose.msra.mxu0 0.0
    %2536 = vmatprep.subr.mxu0 0.0
    %2537 = vmatpush1.xpose.msra.mxu0 0.0
    %2538 = vmatprep.subr.mxu0 0.0
    %2539 = vmatpush1.xpose.msra.mxu0 0.0
    %2540 = vmatprep.subr.mxu0 0.0
    %2541 = vmatpush1.xpose.msra.mxu0 0.0
    %2542 = vmatprep.subr.mxu0 0.0
    %2543 = vmatpush1.xpose.msra.mxu0 0.0
    %2544 = vmatprep.subr.mxu0 0.0
    %2545 = vmatpush1.xpose.msra.mxu0 0.0
    %2546 = vmatprep.mubr.f32.mxu0 0.0
    %2547 = vmatmul.mubr.f32.gmra.mrb[0].mxu0 %v2474
    %v2548 = vpop.f32.mrb[0].mxu0
    %v2549 = vadd.f32 0.0, %v2548
    %v2550 = vpop.f32.mrb[0].mxu0
    %2551 = vmatprep.mubr.f32.mxu0 0.0
    %2552 = vmatmul.mubr.f32.gmra.mrb[0].mxu0 %v2476
    %v2553 = vpop.f32.mrb[0].mxu0
    %v2554 = vadd.f32 0.0, %v2553
    %v2555 = vpop.f32.mrb[0].mxu0
    %2556 = vdwg.mxu0
    %v2557 = vmul.f32 %v2549, 0.5
    %v2558 = vmul.f32 %v2554, 0.5
    %v2559 = vmul.f32 %v2557, 1.442695
    %v2560 = vpow.pop %v2559
    %v2561 = vmul.f32 %v2558, 1.442695
    %v2562 = vpow.pop %v2561
    %v2563 = vmul.f32 %v2560, %v35
    %v2564 = vmul.f32 %v2562, %v36
    %v2565 = vsel %vm44, %v2563, 0.0
    %2566 = vadd.xlane.f32.xlu0 %v2565
    %v2567 = vpop.xlane.xlu0 %2566
    %v2568 = vsel %vm44, %v2564, 0.0
    %2569 = vadd.xlane.f32.xlu0 %v2568
    %v2570 = vpop.xlane.xlu0 %2569
    %2571 = vrot.lane.b32.xlu0 %v336, 56
    %v2572 = vpop.permute.xlu0 %2571
    %2573 = vrot.lane.b32.xlu0 %v341, 56
    %v2574 = vpop.permute.xlu0 %2573
    %v2578 = vsel %vm44, %v2563, 0
    %v2581 = vsel %vm44, %v2564, 0
    %2583 = vmatprep.subr.mxu0 0.0
    %2584 = vmatpush1.msra.mxu0 %v2572
    %2585 = vmatprep.subr.mxu0 0.0
    %2586 = vmatpush1.msra.mxu0 %v2574
    %2587 = vmatprep.subr.mxu0 0.0
    %2588 = vmatpush1.msra.mxu0 0.0
    %2589 = vmatprep.subr.mxu0 0.0
    %2590 = vmatpush1.msra.mxu0 0.0
    %2591 = vmatprep.subr.mxu0 0.0
    %2592 = vmatpush1.msra.mxu0 0.0
    %2593 = vmatprep.subr.mxu0 0.0
    %2594 = vmatpush1.msra.mxu0 0.0
    %2595 = vmatprep.subr.mxu0 0.0
    %2596 = vmatpush1.msra.mxu0 0.0
    %2597 = vmatprep.subr.mxu0 0.0
    %2598 = vmatpush1.msra.mxu0 0.0
    %2599 = vmatprep.subr.mxu0 0.0
    %2600 = vmatpush1.msra.mxu0 0.0
    %2601 = vmatprep.subr.mxu0 0.0
    %2602 = vmatpush1.msra.mxu0 0.0
    %2603 = vmatprep.subr.mxu0 0.0
    %2604 = vmatpush1.msra.mxu0 0.0
    %2605 = vmatprep.subr.mxu0 0.0
    %2606 = vmatpush1.msra.mxu0 0.0
    %2607 = vmatprep.subr.mxu0 0.0
    %2608 = vmatpush1.msra.mxu0 0.0
    %2609 = vmatprep.subr.mxu0 0.0
    %2610 = vmatpush1.msra.mxu0 0.0
    %2611 = vmatprep.subr.mxu0 0.0
    %2612 = vmatpush1.msra.mxu0 0.0
    %2613 = vmatprep.subr.mxu0 0.0
    %2614 = vmatpush1.msra.mxu0 0.0
    %2615 = vmatprep.subr.mxu0 0.0
    %2616 = vmatpush1.msra.mxu0 0.0
    %2617 = vmatprep.subr.mxu0 0.0
    %2618 = vmatpush1.msra.mxu0 0.0
    %2619 = vmatprep.subr.mxu0 0.0
    %2620 = vmatpush1.msra.mxu0 0.0
    %2621 = vmatprep.subr.mxu0 0.0
    %2622 = vmatpush1.msra.mxu0 0.0
    %2623 = vmatprep.subr.mxu0 0.0
    %2624 = vmatpush1.msra.mxu0 0.0
    %2625 = vmatprep.subr.mxu0 0.0
    %2626 = vmatpush1.msra.mxu0 0.0
    %2627 = vmatprep.subr.mxu0 0.0
    %2628 = vmatpush1.msra.mxu0 0.0
    %2629 = vmatprep.subr.mxu0 0.0
    %2630 = vmatpush1.msra.mxu0 0.0
    %2631 = vmatprep.subr.mxu0 0.0
    %2632 = vmatpush1.msra.mxu0 0.0
    %2633 = vmatprep.subr.mxu0 0.0
    %2634 = vmatpush1.msra.mxu0 0.0
    %2635 = vmatprep.subr.mxu0 0.0
    %2636 = vmatpush1.msra.mxu0 0.0
    %2637 = vmatprep.subr.mxu0 0.0
    %2638 = vmatpush1.msra.mxu0 0.0
    %2639 = vmatprep.subr.mxu0 0.0
    %2640 = vmatpush1.msra.mxu0 0.0
    %2641 = vmatprep.subr.mxu0 0.0
    %2642 = vmatpush1.msra.mxu0 0.0
    %2643 = vmatprep.subr.mxu0 0.0
    %2644 = vmatpush1.msra.mxu0 0.0
    %2645 = vmatprep.subr.mxu0 0.0
    %2646 = vmatpush1.msra.mxu0 0.0
    %2647 = vmatprep.mubr.f32.mxu0 0.0
    %2648 = vmatmul.mubr.f32.gmra.mrb[0].mxu0 %v2578
    %v2649 = vpop.f32.mrb[0].mxu0
    %v2650 = vadd.f32 0.0, %v2649
    %v2651 = vpop.f32.mrb[0].mxu0
    %2652 = vmatprep.mubr.f32.mxu0 0.0
    %2653 = vmatmul.mubr.f32.gmra.mrb[0].mxu0 %v2581
    %v2654 = vpop.f32.mrb[0].mxu0
    %v2655 = vadd.f32 0.0, %v2654
    %v2656 = vpop.f32.mrb[0].mxu0
    %2657 = vdwg.mxu0
    %v2658 = vrcp.pop %v2567
    %v2659 = vmul.f32 %v2650, %v2658
    %v2660 = vrcp.pop %v2570
    %v2661 = vmul.f32 %v2655, %v2660
    %2662 = vrot.lane.b32.xlu0 %v205, 52
    %v2663 = vpop.permute.xlu0 %2662
    %2664 = vrot.lane.b32.xlu0 %v210, 52
    %v2665 = vpop.permute.xlu0 %2664
    %2666 = vrot.lane.b32.xlu0 %v336, 84
    %v2667 = vpop.permute.xlu0 %2666
    %2668 = vrot.lane.b32.xlu0 %v341, 84
    %v2669 = vpop.permute.xlu0 %2668
    %v2670 = vsel %vm349, %v2663, 0
    %v2672 = vsel %vm349, %v2665, 0
    %v2674 = vsel %vm349, %v2667, 0
    %v2676 = vsel %vm349, %v2669, 0
    %2678 = vmatprep.subr.mxu0 0.0
    %2679 = vmatpush1.xpose.msra.mxu0 %v2674
    %2680 = vmatprep.subr.mxu0 0.0
    %2681 = vmatpush1.xpose.msra.mxu0 %v2676
    %2682 = vmatprep.subr.mxu0 0.0
    %2683 = vmatpush1.xpose.msra.mxu0 0.0
    %2684 = vmatprep.subr.mxu0 0.0
    %2685 = vmatpush1.xpose.msra.mxu0 0.0
    %2686 = vmatprep.subr.mxu0 0.0
    %2687 = vmatpush1.xpose.msra.mxu0 0.0
    %2688 = vmatprep.subr.mxu0 0.0
    %2689 = vmatpush1.xpose.msra.mxu0 0.0
    %2690 = vmatprep.subr.mxu0 0.0
    %2691 = vmatpush1.xpose.msra.mxu0 0.0
    %2692 = vmatprep.subr.mxu0 0.0
    %2693 = vmatpush1.xpose.msra.mxu0 0.0
    %2694 = vmatprep.subr.mxu0 0.0
    %2695 = vmatpush1.xpose.msra.mxu0 0.0
    %2696 = vmatprep.subr.mxu0 0.0
    %2697 = vmatpush1.xpose.msra.mxu0 0.0
    %2698 = vmatprep.subr.mxu0 0.0
    %2699 = vmatpush1.xpose.msra.mxu0 0.0
    %2700 = vmatprep.subr.mxu0 0.0
    %2701 = vmatpush1.xpose.msra.mxu0 0.0
    %2702 = vmatprep.subr.mxu0 0.0
    %2703 = vmatpush1.xpose.msra.mxu0 0.0
    %2704 = vmatprep.subr.mxu0 0.0
    %2705 = vmatpush1.xpose.msra.mxu0 0.0
    %2706 = vmatprep.subr.mxu0 0.0
    %2707 = vmatpush1.xpose.msra.mxu0 0.0
    %2708 = vmatprep.subr.mxu0 0.0
    %2709 = vmatpush1.xpose.msra.mxu0 0.0
    %2710 = vmatprep.subr.mxu0 0.0
    %2711 = vmatpush1.xpose.msra.mxu0 0.0
    %2712 = vmatprep.subr.mxu0 0.0
    %2713 = vmatpush1.xpose.msra.mxu0 0.0
    %2714 = vmatprep.subr.mxu0 0.0
    %2715 = vmatpush1.xpose.msra.mxu0 0.0
    %2716 = vmatprep.subr.mxu0 0.0
    %2717 = vmatpush1.xpose.msra.mxu0 0.0
    %2718 = vmatprep.subr.mxu0 0.0
    %2719 = vmatpush1.xpose.msra.mxu0 0.0
    %2720 = vmatprep.subr.mxu0 0.0
    %2721 = vmatpush1.xpose.msra.mxu0 0.0
    %2722 = vmatprep.subr.mxu0 0.0
    %2723 = vmatpush1.xpose.msra.mxu0 0.0
    %2724 = vmatprep.subr.mxu0 0.0
    %2725 = vmatpush1.xpose.msra.mxu0 0.0
    %2726 = vmatprep.subr.mxu0 0.0
    %2727 = vmatpush1.xpose.msra.mxu0 0.0
    %2728 = vmatprep.subr.mxu0 0.0
    %2729 = vmatpush1.xpose.msra.mxu0 0.0
    %2730 = vmatprep.subr.mxu0 0.0
    %2731 = vmatpush1.xpose.msra.mxu0 0.0
    %2732 = vmatprep.subr.mxu0 0.0
    %2733 = vmatpush1.xpose.msra.mxu0 0.0
    %2734 = vmatprep.subr.mxu0 0.0
    %2735 = vmatpush1.xpose.msra.mxu0 0.0
    %2736 = vmatprep.subr.mxu0 0.0
    %2737 = vmatpush1.xpose.msra.mxu0 0.0
    %2738 = vmatprep.subr.mxu0 0.0
    %2739 = vmatpush1.xpose.msra.mxu0 0.0
    %2740 = vmatprep.subr.mxu0 0.0
    %2741 = vmatpush1.xpose.msra.mxu0 0.0
    %2742 = vmatprep.mubr.f32.mxu0 0.0
    %2743 = vmatmul.mubr.f32.gmra.mrb[0].mxu0 %v2670
    %v2744 = vpop.f32.mrb[0].mxu0
    %v2745 = vadd.f32 0.0, %v2744
    %v2746 = vpop.f32.mrb[0].mxu0
    %2747 = vmatprep.mubr.f32.mxu0 0.0
    %2748 = vmatmul.mubr.f32.gmra.mrb[0].mxu0 %v2672
    %v2749 = vpop.f32.mrb[0].mxu0
    %v2750 = vadd.f32 0.0, %v2749
    %v2751 = vpop.f32.mrb[0].mxu0
    %2752 = vdwg.mxu0
    %v2753 = vmul.f32 %v2745, 0.5
    %v2754 = vmul.f32 %v2750, 0.5
    %v2755 = vmul.f32 %v2753, 1.442695
    %v2756 = vpow.pop %v2755
    %v2757 = vmul.f32 %v2754, 1.442695
    %v2758 = vpow.pop %v2757
    %v2759 = vmul.f32 %v2756, %v35
    %v2760 = vmul.f32 %v2758, %v36
    %v2761 = vsel %vm44, %v2759, 0.0
    %2762 = vadd.xlane.f32.xlu0 %v2761
    %v2763 = vpop.xlane.xlu0 %2762
    %v2764 = vsel %vm44, %v2760, 0.0
    %2765 = vadd.xlane.f32.xlu0 %v2764
    %v2766 = vpop.xlane.xlu0 %2765
    %2767 = vrot.lane.b32.xlu0 %v336, 52
    %v2768 = vpop.permute.xlu0 %2767
    %2769 = vrot.lane.b32.xlu0 %v341, 52
    %v2770 = vpop.permute.xlu0 %2769
    %v2774 = vsel %vm44, %v2759, 0
    %v2777 = vsel %vm44, %v2760, 0
    %2779 = vmatprep.subr.mxu0 0.0
    %2780 = vmatpush1.msra.mxu0 %v2768
    %2781 = vmatprep.subr.mxu0 0.0
    %2782 = vmatpush1.msra.mxu0 %v2770
    %2783 = vmatprep.subr.mxu0 0.0
    %2784 = vmatpush1.msra.mxu0 0.0
    %2785 = vmatprep.subr.mxu0 0.0
    %2786 = vmatpush1.msra.mxu0 0.0
    %2787 = vmatprep.subr.mxu0 0.0
    %2788 = vmatpush1.msra.mxu0 0.0
    %2789 = vmatprep.subr.mxu0 0.0
    %2790 = vmatpush1.msra.mxu0 0.0
    %2791 = vmatprep.subr.mxu0 0.0
    %2792 = vmatpush1.msra.mxu0 0.0
    %2793 = vmatprep.subr.mxu0 0.0
    %2794 = vmatpush1.msra.mxu0 0.0
    %2795 = vmatprep.subr.mxu0 0.0
    %2796 = vmatpush1.msra.mxu0 0.0
    %2797 = vmatprep.subr.mxu0 0.0
    %2798 = vmatpush1.msra.mxu0 0.0
    %2799 = vmatprep.subr.mxu0 0.0
    %2800 = vmatpush1.msra.mxu0 0.0
    %2801 = vmatprep.subr.mxu0 0.0
    %2802 = vmatpush1.msra.mxu0 0.0
    %2803 = vmatprep.subr.mxu0 0.0
    %2804 = vmatpush1.msra.mxu0 0.0
    %2805 = vmatprep.subr.mxu0 0.0
    %2806 = vmatpush1.msra.mxu0 0.0
    %2807 = vmatprep.subr.mxu0 0.0
    %2808 = vmatpush1.msra.mxu0 0.0
    %2809 = vmatprep.subr.mxu0 0.0
    %2810 = vmatpush1.msra.mxu0 0.0
    %2811 = vmatprep.subr.mxu0 0.0
    %2812 = vmatpush1.msra.mxu0 0.0
    %2813 = vmatprep.subr.mxu0 0.0
    %2814 = vmatpush1.msra.mxu0 0.0
    %2815 = vmatprep.subr.mxu0 0.0
    %2816 = vmatpush1.msra.mxu0 0.0
    %2817 = vmatprep.subr.mxu0 0.0
    %2818 = vmatpush1.msra.mxu0 0.0
    %2819 = vmatprep.subr.mxu0 0.0
    %2820 = vmatpush1.msra.mxu0 0.0
    %2821 = vmatprep.subr.mxu0 0.0
    %2822 = vmatpush1.msra.mxu0 0.0
    %2823 = vmatprep.subr.mxu0 0.0
    %2824 = vmatpush1.msra.mxu0 0.0
    %2825 = vmatprep.subr.mxu0 0.0
    %2826 = vmatpush1.msra.mxu0 0.0
    %2827 = vmatprep.subr.mxu0 0.0
    %2828 = vmatpush1.msra.mxu0 0.0
    %2829 = vmatprep.subr.mxu0 0.0
    %2830 = vmatpush1.msra.mxu0 0.0
    %2831 = vmatprep.subr.mxu0 0.0
    %2832 = vmatpush1.msra.mxu0 0.0
    %2833 = vmatprep.subr.mxu0 0.0
    %2834 = vmatpush1.msra.mxu0 0.0
    %2835 = vmatprep.subr.mxu0 0.0
    %2836 = vmatpush1.msra.mxu0 0.0
    %2837 = vmatprep.subr.mxu0 0.0
    %2838 = vmatpush1.msra.mxu0 0.0
    %2839 = vmatprep.subr.mxu0 0.0
    %2840 = vmatpush1.msra.mxu0 0.0
    %2841 = vmatprep.subr.mxu0 0.0
    %2842 = vmatpush1.msra.mxu0 0.0
    %2843 = vmatprep.mubr.f32.mxu0 0.0
    %2844 = vmatmul.mubr.f32.gmra.mrb[0].mxu0 %v2774
    %v2845 = vpop.f32.mrb[0].mxu0
    %v2846 = vadd.f32 0.0, %v2845
    %v2847 = vpop.f32.mrb[0].mxu0
    %2848 = vmatprep.mubr.f32.mxu0 0.0
    %2849 = vmatmul.mubr.f32.gmra.mrb[0].mxu0 %v2777
    %v2850 = vpop.f32.mrb[0].mxu0
    %v2851 = vadd.f32 0.0, %v2850
    %v2852 = vpop.f32.mrb[0].mxu0
    %2853 = vdwg.mxu0
    %v2854 = vrcp.pop %v2763
    %v2855 = vmul.f32 %v2846, %v2854
    %v2856 = vrcp.pop %v2766
    %v2857 = vmul.f32 %v2851, %v2856
    %2858 = vrot.lane.b32.xlu0 %v205, 48
    %v2859 = vpop.permute.xlu0 %2858
    %2860 = vrot.lane.b32.xlu0 %v210, 48
    %v2861 = vpop.permute.xlu0 %2860
    %2862 = vrot.lane.b32.xlu0 %v336, 80
    %v2863 = vpop.permute.xlu0 %2862
    %2864 = vrot.lane.b32.xlu0 %v341, 80
    %v2865 = vpop.permute.xlu0 %2864
    %v2866 = vsel %vm349, %v2859, 0
    %v2868 = vsel %vm349, %v2861, 0
    %v2870 = vsel %vm349, %v2863, 0
    %v2872 = vsel %vm349, %v2865, 0
    %2874 = vmatprep.subr.mxu0 0.0
    %2875 = vmatpush1.xpose.msra.mxu0 %v2870
    %2876 = vmatprep.subr.mxu0 0.0
    %2877 = vmatpush1.xpose.msra.mxu0 %v2872
    %2878 = vmatprep.subr.mxu0 0.0
    %2879 = vmatpush1.xpose.msra.mxu0 0.0
    %2880 = vmatprep.subr.mxu0 0.0
    %2881 = vmatpush1.xpose.msra.mxu0 0.0
    %2882 = vmatprep.subr.mxu0 0.0
    %2883 = vmatpush1.xpose.msra.mxu0 0.0
    %2884 = vmatprep.subr.mxu0 0.0
    %2885 = vmatpush1.xpose.msra.mxu0 0.0
    %2886 = vmatprep.subr.mxu0 0.0
    %2887 = vmatpush1.xpose.msra.mxu0 0.0
    %2888 = vmatprep.subr.mxu0 0.0
    %2889 = vmatpush1.xpose.msra.mxu0 0.0
    %2890 = vmatprep.subr.mxu0 0.0
    %2891 = vmatpush1.xpose.msra.mxu0 0.0
    %2892 = vmatprep.subr.mxu0 0.0
    %2893 = vmatpush1.xpose.msra.mxu0 0.0
    %2894 = vmatprep.subr.mxu0 0.0
    %2895 = vmatpush1.xpose.msra.mxu0 0.0
    %2896 = vmatprep.subr.mxu0 0.0
    %2897 = vmatpush1.xpose.msra.mxu0 0.0
    %2898 = vmatprep.subr.mxu0 0.0
    %2899 = vmatpush1.xpose.msra.mxu0 0.0
    %2900 = vmatprep.subr.mxu0 0.0
    %2901 = vmatpush1.xpose.msra.mxu0 0.0
    %2902 = vmatprep.subr.mxu0 0.0
    %2903 = vmatpush1.xpose.msra.mxu0 0.0
    %2904 = vmatprep.subr.mxu0 0.0
    %2905 = vmatpush1.xpose.msra.mxu0 0.0
    %2906 = vmatprep.subr.mxu0 0.0
    %2907 = vmatpush1.xpose.msra.mxu0 0.0
    %2908 = vmatprep.subr.mxu0 0.0
    %2909 = vmatpush1.xpose.msra.mxu0 0.0
    %2910 = vmatprep.subr.mxu0 0.0
    %2911 = vmatpush1.xpose.msra.mxu0 0.0
    %2912 = vmatprep.subr.mxu0 0.0
    %2913 = vmatpush1.xpose.msra.mxu0 0.0
    %2914 = vmatprep.subr.mxu0 0.0
    %2915 = vmatpush1.xpose.msra.mxu0 0.0
    %2916 = vmatprep.subr.mxu0 0.0
    %2917 = vmatpush1.xpose.msra.mxu0 0.0
    %2918 = vmatprep.subr.mxu0 0.0
    %2919 = vmatpush1.xpose.msra.mxu0 0.0
    %2920 = vmatprep.subr.mxu0 0.0
    %2921 = vmatpush1.xpose.msra.mxu0 0.0
    %2922 = vmatprep.subr.mxu0 0.0
    %2923 = vmatpush1.xpose.msra.mxu0 0.0
    %2924 = vmatprep.subr.mxu0 0.0
    %2925 = vmatpush1.xpose.msra.mxu0 0.0
    %2926 = vmatprep.subr.mxu0 0.0
    %2927 = vmatpush1.xpose.msra.mxu0 0.0
    %2928 = vmatprep.subr.mxu0 0.0
    %2929 = vmatpush1.xpose.msra.mxu0 0.0
    %2930 = vmatprep.subr.mxu0 0.0
    %2931 = vmatpush1.xpose.msra.mxu0 0.0
    %2932 = vmatprep.subr.mxu0 0.0
    %2933 = vmatpush1.xpose.msra.mxu0 0.0
    %2934 = vmatprep.subr.mxu0 0.0
    %2935 = vmatpush1.xpose.msra.mxu0 0.0
    %2936 = vmatprep.subr.mxu0 0.0
    %2937 = vmatpush1.xpose.msra.mxu0 0.0
    %2938 = vmatprep.mubr.f32.mxu0 0.0
    %2939 = vmatmul.mubr.f32.gmra.mrb[0].mxu0 %v2866
    %v2940 = vpop.f32.mrb[0].mxu0
    %v2941 = vadd.f32 0.0, %v2940
    %v2942 = vpop.f32.mrb[0].mxu0
    %2943 = vmatprep.mubr.f32.mxu0 0.0
    %2944 = vmatmul.mubr.f32.gmra.mrb[0].mxu0 %v2868
    %v2945 = vpop.f32.mrb[0].mxu0
    %v2946 = vadd.f32 0.0, %v2945
    %v2947 = vpop.f32.mrb[0].mxu0
    %2948 = vdwg.mxu0
    %v2949 = vmul.f32 %v2941, 0.5
    %v2950 = vmul.f32 %v2946, 0.5
    %v2951 = vmul.f32 %v2949, 1.442695
    %v2952 = vpow.pop %v2951
    %v2953 = vmul.f32 %v2950, 1.442695
    %v2954 = vpow.pop %v2953
    %v2955 = vmul.f32 %v2952, %v35
    %v2956 = vmul.f32 %v2954, %v36
    %v2957 = vsel %vm44, %v2955, 0.0
    %2958 = vadd.xlane.f32.xlu0 %v2957
    %v2959 = vpop.xlane.xlu0 %2958
    %v2960 = vsel %vm44, %v2956, 0.0
    %2961 = vadd.xlane.f32.xlu0 %v2960
    %v2962 = vpop.xlane.xlu0 %2961
    %2963 = vrot.lane.b32.xlu0 %v336, 48
    %v2964 = vpop.permute.xlu0 %2963
    %2965 = vrot.lane.b32.xlu0 %v341, 48
    %v2966 = vpop.permute.xlu0 %2965
    %v2970 = vsel %vm44, %v2955, 0
    %v2973 = vsel %vm44, %v2956, 0
    %2975 = vmatprep.subr.mxu0 0.0
    %2976 = vmatpush1.msra.mxu0 %v2964
    %2977 = vmatprep.subr.mxu0 0.0
    %2978 = vmatpush1.msra.mxu0 %v2966
    %2979 = vmatprep.subr.mxu0 0.0
    %2980 = vmatpush1.msra.mxu0 0.0
    %2981 = vmatprep.subr.mxu0 0.0
    %2982 = vmatpush1.msra.mxu0 0.0
    %2983 = vmatprep.subr.mxu0 0.0
    %2984 = vmatpush1.msra.mxu0 0.0
    %2985 = vmatprep.subr.mxu0 0.0
    %2986 = vmatpush1.msra.mxu0 0.0
    %2987 = vmatprep.subr.mxu0 0.0
    %2988 = vmatpush1.msra.mxu0 0.0
    %2989 = vmatprep.subr.mxu0 0.0
    %2990 = vmatpush1.msra.mxu0 0.0
    %2991 = vmatprep.subr.mxu0 0.0
    %2992 = vmatpush1.msra.mxu0 0.0
    %2993 = vmatprep.subr.mxu0 0.0
    %2994 = vmatpush1.msra.mxu0 0.0
    %2995 = vmatprep.subr.mxu0 0.0
    %2996 = vmatpush1.msra.mxu0 0.0
    %2997 = vmatprep.subr.mxu0 0.0
    %2998 = vmatpush1.msra.mxu0 0.0
    %2999 = vmatprep.subr.mxu0 0.0
    %3000 = vmatpush1.msra.mxu0 0.0
    %3001 = vmatprep.subr.mxu0 0.0
    %3002 = vmatpush1.msra.mxu0 0.0
    %3003 = vmatprep.subr.mxu0 0.0
    %3004 = vmatpush1.msra.mxu0 0.0
    %3005 = vmatprep.subr.mxu0 0.0
    %3006 = vmatpush1.msra.mxu0 0.0
    %3007 = vmatprep.subr.mxu0 0.0
    %3008 = vmatpush1.msra.mxu0 0.0
    %3009 = vmatprep.subr.mxu0 0.0
    %3010 = vmatpush1.msra.mxu0 0.0
    %3011 = vmatprep.subr.mxu0 0.0
    %3012 = vmatpush1.msra.mxu0 0.0
    %3013 = vmatprep.subr.mxu0 0.0
    %3014 = vmatpush1.msra.mxu0 0.0
    %3015 = vmatprep.subr.mxu0 0.0
    %3016 = vmatpush1.msra.mxu0 0.0
    %3017 = vmatprep.subr.mxu0 0.0
    %3018 = vmatpush1.msra.mxu0 0.0
    %3019 = vmatprep.subr.mxu0 0.0
    %3020 = vmatpush1.msra.mxu0 0.0
    %3021 = vmatprep.subr.mxu0 0.0
    %3022 = vmatpush1.msra.mxu0 0.0
    %3023 = vmatprep.subr.mxu0 0.0
    %3024 = vmatpush1.msra.mxu0 0.0
    %3025 = vmatprep.subr.mxu0 0.0
    %3026 = vmatpush1.msra.mxu0 0.0
    %3027 = vmatprep.subr.mxu0 0.0
    %3028 = vmatpush1.msra.mxu0 0.0
    %3029 = vmatprep.subr.mxu0 0.0
    %3030 = vmatpush1.msra.mxu0 0.0
    %3031 = vmatprep.subr.mxu0 0.0
    %3032 = vmatpush1.msra.mxu0 0.0
    %3033 = vmatprep.subr.mxu0 0.0
    %3034 = vmatpush1.msra.mxu0 0.0
    %3035 = vmatprep.subr.mxu0 0.0
    %3036 = vmatpush1.msra.mxu0 0.0
    %3037 = vmatprep.subr.mxu0 0.0
    %3038 = vmatpush1.msra.mxu0 0.0
    %3039 = vmatprep.mubr.f32.mxu0 0.0
    %3040 = vmatmul.mubr.f32.gmra.mrb[0].mxu0 %v2970
    %v3041 = vpop.f32.mrb[0].mxu0
    %v3042 = vadd.f32 0.0, %v3041
    %v3043 = vpop.f32.mrb[0].mxu0
    %3044 = vmatprep.mubr.f32.mxu0 0.0
    %3045 = vmatmul.mubr.f32.gmra.mrb[0].mxu0 %v2973
    %v3046 = vpop.f32.mrb[0].mxu0
    %v3047 = vadd.f32 0.0, %v3046
    %v3048 = vpop.f32.mrb[0].mxu0
    %3049 = vdwg.mxu0
    %v3050 = vrcp.pop %v2959
    %v3051 = vmul.f32 %v3042, %v3050
    %v3052 = vrcp.pop %v2962
    %v3053 = vmul.f32 %v3047, %v3052
    %3054 = vrot.lane.b32.xlu0 %v205, 44
    %v3055 = vpop.permute.xlu0 %3054
    %3056 = vrot.lane.b32.xlu0 %v210, 44
    %v3057 = vpop.permute.xlu0 %3056
    %3058 = vrot.lane.b32.xlu0 %v336, 76
    %v3059 = vpop.permute.xlu0 %3058
    %3060 = vrot.lane.b32.xlu0 %v341, 76
    %v3061 = vpop.permute.xlu0 %3060
    %v3062 = vsel %vm349, %v3055, 0
    %v3064 = vsel %vm349, %v3057, 0
    %v3066 = vsel %vm349, %v3059, 0
    %v3068 = vsel %vm349, %v3061, 0
    %3070 = vmatprep.subr.mxu0 0.0
    %3071 = vmatpush1.xpose.msra.mxu0 %v3066
    %3072 = vmatprep.subr.mxu0 0.0
    %3073 = vmatpush1.xpose.msra.mxu0 %v3068
    %3074 = vmatprep.subr.mxu0 0.0
    %3075 = vmatpush1.xpose.msra.mxu0 0.0
    %3076 = vmatprep.subr.mxu0 0.0
    %3077 = vmatpush1.xpose.msra.mxu0 0.0
    %3078 = vmatprep.subr.mxu0 0.0
    %3079 = vmatpush1.xpose.msra.mxu0 0.0
    %3080 = vmatprep.subr.mxu0 0.0
    %3081 = vmatpush1.xpose.msra.mxu0 0.0
    %3082 = vmatprep.subr.mxu0 0.0
    %3083 = vmatpush1.xpose.msra.mxu0 0.0
    %3084 = vmatprep.subr.mxu0 0.0
    %3085 = vmatpush1.xpose.msra.mxu0 0.0
    %3086 = vmatprep.subr.mxu0 0.0
    %3087 = vmatpush1.xpose.msra.mxu0 0.0
    %3088 = vmatprep.subr.mxu0 0.0
    %3089 = vmatpush1.xpose.msra.mxu0 0.0
    %3090 = vmatprep.subr.mxu0 0.0
    %3091 = vmatpush1.xpose.msra.mxu0 0.0
    %3092 = vmatprep.subr.mxu0 0.0
    %3093 = vmatpush1.xpose.msra.mxu0 0.0
    %3094 = vmatprep.subr.mxu0 0.0
    %3095 = vmatpush1.xpose.msra.mxu0 0.0
    %3096 = vmatprep.subr.mxu0 0.0
    %3097 = vmatpush1.xpose.msra.mxu0 0.0
    %3098 = vmatprep.subr.mxu0 0.0
    %3099 = vmatpush1.xpose.msra.mxu0 0.0
    %3100 = vmatprep.subr.mxu0 0.0
    %3101 = vmatpush1.xpose.msra.mxu0 0.0
    %3102 = vmatprep.subr.mxu0 0.0
    %3103 = vmatpush1.xpose.msra.mxu0 0.0
    %3104 = vmatprep.subr.mxu0 0.0
    %3105 = vmatpush1.xpose.msra.mxu0 0.0
    %3106 = vmatprep.subr.mxu0 0.0
    %3107 = vmatpush1.xpose.msra.mxu0 0.0
    %3108 = vmatprep.subr.mxu0 0.0
    %3109 = vmatpush1.xpose.msra.mxu0 0.0
    %3110 = vmatprep.subr.mxu0 0.0
    %3111 = vmatpush1.xpose.msra.mxu0 0.0
    %3112 = vmatprep.subr.mxu0 0.0
    %3113 = vmatpush1.xpose.msra.mxu0 0.0
    %3114 = vmatprep.subr.mxu0 0.0
    %3115 = vmatpush1.xpose.msra.mxu0 0.0
    %3116 = vmatprep.subr.mxu0 0.0
    %3117 = vmatpush1.xpose.msra.mxu0 0.0
    %3118 = vmatprep.subr.mxu0 0.0
    %3119 = vmatpush1.xpose.msra.mxu0 0.0
    %3120 = vmatprep.subr.mxu0 0.0
    %3121 = vmatpush1.xpose.msra.mxu0 0.0
    %3122 = vmatprep.subr.mxu0 0.0
    %3123 = vmatpush1.xpose.msra.mxu0 0.0
    %3124 = vmatprep.subr.mxu0 0.0
    %3125 = vmatpush1.xpose.msra.mxu0 0.0
    %3126 = vmatprep.subr.mxu0 0.0
    %3127 = vmatpush1.xpose.msra.mxu0 0.0
    %3128 = vmatprep.subr.mxu0 0.0
    %3129 = vmatpush1.xpose.msra.mxu0 0.0
    %3130 = vmatprep.subr.mxu0 0.0
    %3131 = vmatpush1.xpose.msra.mxu0 0.0
    %3132 = vmatprep.subr.mxu0 0.0
    %3133 = vmatpush1.xpose.msra.mxu0 0.0
    %3134 = vmatprep.mubr.f32.mxu0 0.0
    %3135 = vmatmul.mubr.f32.gmra.mrb[0].mxu0 %v3062
    %v3136 = vpop.f32.mrb[0].mxu0
    %v3137 = vadd.f32 0.0, %v3136
    %v3138 = vpop.f32.mrb[0].mxu0
    %3139 = vmatprep.mubr.f32.mxu0 0.0
    %3140 = vmatmul.mubr.f32.gmra.mrb[0].mxu0 %v3064
    %v3141 = vpop.f32.mrb[0].mxu0
    %v3142 = vadd.f32 0.0, %v3141
    %v3143 = vpop.f32.mrb[0].mxu0
    %3144 = vdwg.mxu0
    %v3145 = vmul.f32 %v3137, 0.5
    %v3146 = vmul.f32 %v3142, 0.5
    %v3147 = vmul.f32 %v3145, 1.442695
    %v3148 = vpow.pop %v3147
    %v3149 = vmul.f32 %v3146, 1.442695
    %v3150 = vpow.pop %v3149
    %v3151 = vmul.f32 %v3148, %v35
    %v3152 = vmul.f32 %v3150, %v36
    %v3153 = vsel %vm44, %v3151, 0.0
    %3154 = vadd.xlane.f32.xlu0 %v3153
    %v3155 = vpop.xlane.xlu0 %3154
    %v3156 = vsel %vm44, %v3152, 0.0
    %3157 = vadd.xlane.f32.xlu0 %v3156
    %v3158 = vpop.xlane.xlu0 %3157
    %3159 = vrot.lane.b32.xlu0 %v336, 44
    %v3160 = vpop.permute.xlu0 %3159
    %3161 = vrot.lane.b32.xlu0 %v341, 44
    %v3162 = vpop.permute.xlu0 %3161
    %v3166 = vsel %vm44, %v3151, 0
    %v3169 = vsel %vm44, %v3152, 0
    %3171 = vmatprep.subr.mxu0 0.0
    %3172 = vmatpush1.msra.mxu0 %v3160
    %3173 = vmatprep.subr.mxu0 0.0
    %3174 = vmatpush1.msra.mxu0 %v3162
    %3175 = vmatprep.subr.mxu0 0.0
    %3176 = vmatpush1.msra.mxu0 0.0
    %3177 = vmatprep.subr.mxu0 0.0
    %3178 = vmatpush1.msra.mxu0 0.0
    %3179 = vmatprep.subr.mxu0 0.0
    %3180 = vmatpush1.msra.mxu0 0.0
    %3181 = vmatprep.subr.mxu0 0.0
    %3182 = vmatpush1.msra.mxu0 0.0
    %3183 = vmatprep.subr.mxu0 0.0
    %3184 = vmatpush1.msra.mxu0 0.0
    %3185 = vmatprep.subr.mxu0 0.0
    %3186 = vmatpush1.msra.mxu0 0.0
    %3187 = vmatprep.subr.mxu0 0.0
    %3188 = vmatpush1.msra.mxu0 0.0
    %3189 = vmatprep.subr.mxu0 0.0
    %3190 = vmatpush1.msra.mxu0 0.0
    %3191 = vmatprep.subr.mxu0 0.0
    %3192 = vmatpush1.msra.mxu0 0.0
    %3193 = vmatprep.subr.mxu0 0.0
    %3194 = vmatpush1.msra.mxu0 0.0
    %3195 = vmatprep.subr.mxu0 0.0
    %3196 = vmatpush1.msra.mxu0 0.0
    %3197 = vmatprep.subr.mxu0 0.0
    %3198 = vmatpush1.msra.mxu0 0.0
    %3199 = vmatprep.subr.mxu0 0.0
    %3200 = vmatpush1.msra.mxu0 0.0
    %3201 = vmatprep.subr.mxu0 0.0
    %3202 = vmatpush1.msra.mxu0 0.0
    %3203 = vmatprep.subr.mxu0 0.0
    %3204 = vmatpush1.msra.mxu0 0.0
    %3205 = vmatprep.subr.mxu0 0.0
    %3206 = vmatpush1.msra.mxu0 0.0
    %3207 = vmatprep.subr.mxu0 0.0
    %3208 = vmatpush1.msra.mxu0 0.0
    %3209 = vmatprep.subr.mxu0 0.0
    %3210 = vmatpush1.msra.mxu0 0.0
    %3211 = vmatprep.subr.mxu0 0.0
    %3212 = vmatpush1.msra.mxu0 0.0
    %3213 = vmatprep.subr.mxu0 0.0
    %3214 = vmatpush1.msra.mxu0 0.0
    %3215 = vmatprep.subr.mxu0 0.0
    %3216 = vmatpush1.msra.mxu0 0.0
    %3217 = vmatprep.subr.mxu0 0.0
    %3218 = vmatpush1.msra.mxu0 0.0
    %3219 = vmatprep.subr.mxu0 0.0
    %3220 = vmatpush1.msra.mxu0 0.0
    %3221 = vmatprep.subr.mxu0 0.0
    %3222 = vmatpush1.msra.mxu0 0.0
    %3223 = vmatprep.subr.mxu0 0.0
    %3224 = vmatpush1.msra.mxu0 0.0
    %3225 = vmatprep.subr.mxu0 0.0
    %3226 = vmatpush1.msra.mxu0 0.0
    %3227 = vmatprep.subr.mxu0 0.0
    %3228 = vmatpush1.msra.mxu0 0.0
    %3229 = vmatprep.subr.mxu0 0.0
    %3230 = vmatpush1.msra.mxu0 0.0
    %3231 = vmatprep.subr.mxu0 0.0
    %3232 = vmatpush1.msra.mxu0 0.0
    %3233 = vmatprep.subr.mxu0 0.0
    %3234 = vmatpush1.msra.mxu0 0.0
    %3235 = vmatprep.mubr.f32.mxu0 0.0
    %3236 = vmatmul.mubr.f32.gmra.mrb[0].mxu0 %v3166
    %v3237 = vpop.f32.mrb[0].mxu0
    %v3238 = vadd.f32 0.0, %v3237
    %v3239 = vpop.f32.mrb[0].mxu0
    %3240 = vmatprep.mubr.f32.mxu0 0.0
    %3241 = vmatmul.mubr.f32.gmra.mrb[0].mxu0 %v3169
    %v3242 = vpop.f32.mrb[0].mxu0
    %v3243 = vadd.f32 0.0, %v3242
    %v3244 = vpop.f32.mrb[0].mxu0
    %3245 = vdwg.mxu0
    %v3246 = vrcp.pop %v3155
    %v3247 = vmul.f32 %v3238, %v3246
    %v3248 = vrcp.pop %v3158
    %v3249 = vmul.f32 %v3243, %v3248
    %3250 = vrot.lane.b32.xlu0 %v205, 40
    %v3251 = vpop.permute.xlu0 %3250
    %3252 = vrot.lane.b32.xlu0 %v210, 40
    %v3253 = vpop.permute.xlu0 %3252
    %3254 = vrot.lane.b32.xlu0 %v336, 72
    %v3255 = vpop.permute.xlu0 %3254
    %3256 = vrot.lane.b32.xlu0 %v341, 72
    %v3257 = vpop.permute.xlu0 %3256
    %v3258 = vsel %vm349, %v3251, 0
    %v3260 = vsel %vm349, %v3253, 0
    %v3262 = vsel %vm349, %v3255, 0
    %v3264 = vsel %vm349, %v3257, 0
    %3266 = vmatprep.subr.mxu0 0.0
    %3267 = vmatpush1.xpose.msra.mxu0 %v3262
    %3268 = vmatprep.subr.mxu0 0.0
    %3269 = vmatpush1.xpose.msra.mxu0 %v3264
    %3270 = vmatprep.subr.mxu0 0.0
    %3271 = vmatpush1.xpose.msra.mxu0 0.0
    %3272 = vmatprep.subr.mxu0 0.0
    %3273 = vmatpush1.xpose.msra.mxu0 0.0
    %3274 = vmatprep.subr.mxu0 0.0
    %3275 = vmatpush1.xpose.msra.mxu0 0.0
    %3276 = vmatprep.subr.mxu0 0.0
    %3277 = vmatpush1.xpose.msra.mxu0 0.0
    %3278 = vmatprep.subr.mxu0 0.0
    %3279 = vmatpush1.xpose.msra.mxu0 0.0
    %3280 = vmatprep.subr.mxu0 0.0
    %3281 = vmatpush1.xpose.msra.mxu0 0.0
    %3282 = vmatprep.subr.mxu0 0.0
    %3283 = vmatpush1.xpose.msra.mxu0 0.0
    %3284 = vmatprep.subr.mxu0 0.0
    %3285 = vmatpush1.xpose.msra.mxu0 0.0
    %3286 = vmatprep.subr.mxu0 0.0
    %3287 = vmatpush1.xpose.msra.mxu0 0.0
    %3288 = vmatprep.subr.mxu0 0.0
    %3289 = vmatpush1.xpose.msra.mxu0 0.0
    %3290 = vmatprep.subr.mxu0 0.0
    %3291 = vmatpush1.xpose.msra.mxu0 0.0
    %3292 = vmatprep.subr.mxu0 0.0
    %3293 = vmatpush1.xpose.msra.mxu0 0.0
    %3294 = vmatprep.subr.mxu0 0.0
    %3295 = vmatpush1.xpose.msra.mxu0 0.0
    %3296 = vmatprep.subr.mxu0 0.0
    %3297 = vmatpush1.xpose.msra.mxu0 0.0
    %3298 = vmatprep.subr.mxu0 0.0
    %3299 = vmatpush1.xpose.msra.mxu0 0.0
    %3300 = vmatprep.subr.mxu0 0.0
    %3301 = vmatpush1.xpose.msra.mxu0 0.0
    %3302 = vmatprep.subr.mxu0 0.0
    %3303 = vmatpush1.xpose.msra.mxu0 0.0
    %3304 = vmatprep.subr.mxu0 0.0
    %3305 = vmatpush1.xpose.msra.mxu0 0.0
    %3306 = vmatprep.subr.mxu0 0.0
    %3307 = vmatpush1.xpose.msra.mxu0 0.0
    %3308 = vmatprep.subr.mxu0 0.0
    %3309 = vmatpush1.xpose.msra.mxu0 0.0
    %3310 = vmatprep.subr.mxu0 0.0
    %3311 = vmatpush1.xpose.msra.mxu0 0.0
    %3312 = vmatprep.subr.mxu0 0.0
    %3313 = vmatpush1.xpose.msra.mxu0 0.0
    %3314 = vmatprep.subr.mxu0 0.0
    %3315 = vmatpush1.xpose.msra.mxu0 0.0
    %3316 = vmatprep.subr.mxu0 0.0
    %3317 = vmatpush1.xpose.msra.mxu0 0.0
    %3318 = vmatprep.subr.mxu0 0.0
    %3319 = vmatpush1.xpose.msra.mxu0 0.0
    %3320 = vmatprep.subr.mxu0 0.0
    %3321 = vmatpush1.xpose.msra.mxu0 0.0
    %3322 = vmatprep.subr.mxu0 0.0
    %3323 = vmatpush1.xpose.msra.mxu0 0.0
    %3324 = vmatprep.subr.mxu0 0.0
    %3325 = vmatpush1.xpose.msra.mxu0 0.0
    %3326 = vmatprep.subr.mxu0 0.0
    %3327 = vmatpush1.xpose.msra.mxu0 0.0
    %3328 = vmatprep.subr.mxu0 0.0
    %3329 = vmatpush1.xpose.msra.mxu0 0.0
    %3330 = vmatprep.mubr.f32.mxu0 0.0
    %3331 = vmatmul.mubr.f32.gmra.mrb[0].mxu0 %v3258
    %v3332 = vpop.f32.mrb[0].mxu0
    %v3333 = vadd.f32 0.0, %v3332
    %v3334 = vpop.f32.mrb[0].mxu0
    %3335 = vmatprep.mubr.f32.mxu0 0.0
    %3336 = vmatmul.mubr.f32.gmra.mrb[0].mxu0 %v3260
    %v3337 = vpop.f32.mrb[0].mxu0
    %v3338 = vadd.f32 0.0, %v3337
    %v3339 = vpop.f32.mrb[0].mxu0
    %3340 = vdwg.mxu0
    %v3341 = vmul.f32 %v3333, 0.5
    %v3342 = vmul.f32 %v3338, 0.5
    %v3343 = vmul.f32 %v3341, 1.442695
    %v3344 = vpow.pop %v3343
    %v3345 = vmul.f32 %v3342, 1.442695
    %v3346 = vpow.pop %v3345
    %v3347 = vmul.f32 %v3344, %v35
    %v3348 = vmul.f32 %v3346, %v36
    %v3349 = vsel %vm44, %v3347, 0.0
    %3350 = vadd.xlane.f32.xlu0 %v3349
    %v3351 = vpop.xlane.xlu0 %3350
    %v3352 = vsel %vm44, %v3348, 0.0
    %3353 = vadd.xlane.f32.xlu0 %v3352
    %v3354 = vpop.xlane.xlu0 %3353
    %3355 = vrot.lane.b32.xlu0 %v336, 40
    %v3356 = vpop.permute.xlu0 %3355
    %3357 = vrot.lane.b32.xlu0 %v341, 40
    %v3358 = vpop.permute.xlu0 %3357
    %v3362 = vsel %vm44, %v3347, 0
    %v3365 = vsel %vm44, %v3348, 0
    %3367 = vmatprep.subr.mxu0 0.0
    %3368 = vmatpush1.msra.mxu0 %v3356
    %3369 = vmatprep.subr.mxu0 0.0
    %3370 = vmatpush1.msra.mxu0 %v3358
    %3371 = vmatprep.subr.mxu0 0.0
    %3372 = vmatpush1.msra.mxu0 0.0
    %3373 = vmatprep.subr.mxu0 0.0
    %3374 = vmatpush1.msra.mxu0 0.0
    %3375 = vmatprep.subr.mxu0 0.0
    %3376 = vmatpush1.msra.mxu0 0.0
    %3377 = vmatprep.subr.mxu0 0.0
    %3378 = vmatpush1.msra.mxu0 0.0
    %3379 = vmatprep.subr.mxu0 0.0
    %3380 = vmatpush1.msra.mxu0 0.0
    %3381 = vmatprep.subr.mxu0 0.0
    %3382 = vmatpush1.msra.mxu0 0.0
    %3383 = vmatprep.subr.mxu0 0.0
    %3384 = vmatpush1.msra.mxu0 0.0
    %3385 = vmatprep.subr.mxu0 0.0
    %3386 = vmatpush1.msra.mxu0 0.0
    %3387 = vmatprep.subr.mxu0 0.0
    %3388 = vmatpush1.msra.mxu0 0.0
    %3389 = vmatprep.subr.mxu0 0.0
    %3390 = vmatpush1.msra.mxu0 0.0
    %3391 = vmatprep.subr.mxu0 0.0
    %3392 = vmatpush1.msra.mxu0 0.0
    %3393 = vmatprep.subr.mxu0 0.0
    %3394 = vmatpush1.msra.mxu0 0.0
    %3395 = vmatprep.subr.mxu0 0.0
    %3396 = vmatpush1.msra.mxu0 0.0
    %3397 = vmatprep.subr.mxu0 0.0
    %3398 = vmatpush1.msra.mxu0 0.0
    %3399 = vmatprep.subr.mxu0 0.0
    %3400 = vmatpush1.msra.mxu0 0.0
    %3401 = vmatprep.subr.mxu0 0.0
    %3402 = vmatpush1.msra.mxu0 0.0
    %3403 = vmatprep.subr.mxu0 0.0
    %3404 = vmatpush1.msra.mxu0 0.0
    %3405 = vmatprep.subr.mxu0 0.0
    %3406 = vmatpush1.msra.mxu0 0.0
    %3407 = vmatprep.subr.mxu0 0.0
    %3408 = vmatpush1.msra.mxu0 0.0
    %3409 = vmatprep.subr.mxu0 0.0
    %3410 = vmatpush1.msra.mxu0 0.0
    %3411 = vmatprep.subr.mxu0 0.0
    %3412 = vmatpush1.msra.mxu0 0.0
    %3413 = vmatprep.subr.mxu0 0.0
    %3414 = vmatpush1.msra.mxu0 0.0
    %3415 = vmatprep.subr.mxu0 0.0
    %3416 = vmatpush1.msra.mxu0 0.0
    %3417 = vmatprep.subr.mxu0 0.0
    %3418 = vmatpush1.msra.mxu0 0.0
    %3419 = vmatprep.subr.mxu0 0.0
    %3420 = vmatpush1.msra.mxu0 0.0
    %3421 = vmatprep.subr.mxu0 0.0
    %3422 = vmatpush1.msra.mxu0 0.0
    %3423 = vmatprep.subr.mxu0 0.0
    %3424 = vmatpush1.msra.mxu0 0.0
    %3425 = vmatprep.subr.mxu0 0.0
    %3426 = vmatpush1.msra.mxu0 0.0
    %3427 = vmatprep.subr.mxu0 0.0
    %3428 = vmatpush1.msra.mxu0 0.0
    %3429 = vmatprep.subr.mxu0 0.0
    %3430 = vmatpush1.msra.mxu0 0.0
    %3431 = vmatprep.mubr.f32.mxu0 0.0
    %3432 = vmatmul.mubr.f32.gmra.mrb[0].mxu0 %v3362
    %v3433 = vpop.f32.mrb[0].mxu0
    %v3434 = vadd.f32 0.0, %v3433
    %v3435 = vpop.f32.mrb[0].mxu0
    %3436 = vmatprep.mubr.f32.mxu0 0.0
    %3437 = vmatmul.mubr.f32.gmra.mrb[0].mxu0 %v3365
    %v3438 = vpop.f32.mrb[0].mxu0
    %v3439 = vadd.f32 0.0, %v3438
    %v3440 = vpop.f32.mrb[0].mxu0
    %3441 = vdwg.mxu0
    %v3442 = vrcp.pop %v3351
    %v3443 = vmul.f32 %v3434, %v3442
    %v3444 = vrcp.pop %v3354
    %v3445 = vmul.f32 %v3439, %v3444
    %3446 = vrot.lane.b32.xlu0 %v205, 36
    %v3447 = vpop.permute.xlu0 %3446
    %3448 = vrot.lane.b32.xlu0 %v210, 36
    %v3449 = vpop.permute.xlu0 %3448
    %3450 = vrot.lane.b32.xlu0 %v336, 68
    %v3451 = vpop.permute.xlu0 %3450
    %3452 = vrot.lane.b32.xlu0 %v341, 68
    %v3453 = vpop.permute.xlu0 %3452
    %v3454 = vsel %vm349, %v3447, 0
    %v3456 = vsel %vm349, %v3449, 0
    %v3458 = vsel %vm349, %v3451, 0
    %v3460 = vsel %vm349, %v3453, 0
    %3462 = vmatprep.subr.mxu0 0.0
    %3463 = vmatpush1.xpose.msra.mxu0 %v3458
    %3464 = vmatprep.subr.mxu0 0.0
    %3465 = vmatpush1.xpose.msra.mxu0 %v3460
    %3466 = vmatprep.subr.mxu0 0.0
    %3467 = vmatpush1.xpose.msra.mxu0 0.0
    %3468 = vmatprep.subr.mxu0 0.0
    %3469 = vmatpush1.xpose.msra.mxu0 0.0
    %3470 = vmatprep.subr.mxu0 0.0
    %3471 = vmatpush1.xpose.msra.mxu0 0.0
    %3472 = vmatprep.subr.mxu0 0.0
    %3473 = vmatpush1.xpose.msra.mxu0 0.0
    %3474 = vmatprep.subr.mxu0 0.0
    %3475 = vmatpush1.xpose.msra.mxu0 0.0
    %3476 = vmatprep.subr.mxu0 0.0
    %3477 = vmatpush1.xpose.msra.mxu0 0.0
    %3478 = vmatprep.subr.mxu0 0.0
    %3479 = vmatpush1.xpose.msra.mxu0 0.0
    %3480 = vmatprep.subr.mxu0 0.0
    %3481 = vmatpush1.xpose.msra.mxu0 0.0
    %3482 = vmatprep.subr.mxu0 0.0
    %3483 = vmatpush1.xpose.msra.mxu0 0.0
    %3484 = vmatprep.subr.mxu0 0.0
    %3485 = vmatpush1.xpose.msra.mxu0 0.0
    %3486 = vmatprep.subr.mxu0 0.0
    %3487 = vmatpush1.xpose.msra.mxu0 0.0
    %3488 = vmatprep.subr.mxu0 0.0
    %3489 = vmatpush1.xpose.msra.mxu0 0.0
    %3490 = vmatprep.subr.mxu0 0.0
    %3491 = vmatpush1.xpose.msra.mxu0 0.0
    %3492 = vmatprep.subr.mxu0 0.0
    %3493 = vmatpush1.xpose.msra.mxu0 0.0
    %3494 = vmatprep.subr.mxu0 0.0
    %3495 = vmatpush1.xpose.msra.mxu0 0.0
    %3496 = vmatprep.subr.mxu0 0.0
    %3497 = vmatpush1.xpose.msra.mxu0 0.0
    %3498 = vmatprep.subr.mxu0 0.0
    %3499 = vmatpush1.xpose.msra.mxu0 0.0
    %3500 = vmatprep.subr.mxu0 0.0
    %3501 = vmatpush1.xpose.msra.mxu0 0.0
    %3502 = vmatprep.subr.mxu0 0.0
    %3503 = vmatpush1.xpose.msra.mxu0 0.0
    %3504 = vmatprep.subr.mxu0 0.0
    %3505 = vmatpush1.xpose.msra.mxu0 0.0
    %3506 = vmatprep.subr.mxu0 0.0
    %3507 = vmatpush1.xpose.msra.mxu0 0.0
    %3508 = vmatprep.subr.mxu0 0.0
    %3509 = vmatpush1.xpose.msra.mxu0 0.0
    %3510 = vmatprep.subr.mxu0 0.0
    %3511 = vmatpush1.xpose.msra.mxu0 0.0
    %3512 = vmatprep.subr.mxu0 0.0
    %3513 = vmatpush1.xpose.msra.mxu0 0.0
    %3514 = vmatprep.subr.mxu0 0.0
    %3515 = vmatpush1.xpose.msra.mxu0 0.0
    %3516 = vmatprep.subr.mxu0 0.0
    %3517 = vmatpush1.xpose.msra.mxu0 0.0
    %3518 = vmatprep.subr.mxu0 0.0
    %3519 = vmatpush1.xpose.msra.mxu0 0.0
    %3520 = vmatprep.subr.mxu0 0.0
    %3521 = vmatpush1.xpose.msra.mxu0 0.0
    %3522 = vmatprep.subr.mxu0 0.0
    %3523 = vmatpush1.xpose.msra.mxu0 0.0
    %3524 = vmatprep.subr.mxu0 0.0
    %3525 = vmatpush1.xpose.msra.mxu0 0.0
    %3526 = vmatprep.mubr.f32.mxu0 0.0
    %3527 = vmatmul.mubr.f32.gmra.mrb[0].mxu0 %v3454
    %v3528 = vpop.f32.mrb[0].mxu0
    %v3529 = vadd.f32 0.0, %v3528
    %v3530 = vpop.f32.mrb[0].mxu0
    %3531 = vmatprep.mubr.f32.mxu0 0.0
    %3532 = vmatmul.mubr.f32.gmra.mrb[0].mxu0 %v3456
    %v3533 = vpop.f32.mrb[0].mxu0
    %v3534 = vadd.f32 0.0, %v3533
    %v3535 = vpop.f32.mrb[0].mxu0
    %3536 = vdwg.mxu0
    %v3537 = vmul.f32 %v3529, 0.5
    %v3538 = vmul.f32 %v3534, 0.5
    %v3539 = vmul.f32 %v3537, 1.442695
    %v3540 = vpow.pop %v3539
    %v3541 = vmul.f32 %v3538, 1.442695
    %v3542 = vpow.pop %v3541
    %v3543 = vmul.f32 %v3540, %v35
    %v3544 = vmul.f32 %v3542, %v36
    %v3545 = vsel %vm44, %v3543, 0.0
    %3546 = vadd.xlane.f32.xlu0 %v3545
    %v3547 = vpop.xlane.xlu0 %3546
    %v3548 = vsel %vm44, %v3544, 0.0
    %3549 = vadd.xlane.f32.xlu0 %v3548
    %v3550 = vpop.xlane.xlu0 %3549
    %3551 = vrot.lane.b32.xlu0 %v336, 36
    %v3552 = vpop.permute.xlu0 %3551
    %3553 = vrot.lane.b32.xlu0 %v341, 36
    %v3554 = vpop.permute.xlu0 %3553
    %v3558 = vsel %vm44, %v3543, 0
    %v3561 = vsel %vm44, %v3544, 0
    %3563 = vmatprep.subr.mxu0 0.0
    %3564 = vmatpush1.msra.mxu0 %v3552
    %3565 = vmatprep.subr.mxu0 0.0
    %3566 = vmatpush1.msra.mxu0 %v3554
    %3567 = vmatprep.subr.mxu0 0.0
    %3568 = vmatpush1.msra.mxu0 0.0
    %3569 = vmatprep.subr.mxu0 0.0
    %3570 = vmatpush1.msra.mxu0 0.0
    %3571 = vmatprep.subr.mxu0 0.0
    %3572 = vmatpush1.msra.mxu0 0.0
    %3573 = vmatprep.subr.mxu0 0.0
    %3574 = vmatpush1.msra.mxu0 0.0
    %3575 = vmatprep.subr.mxu0 0.0
    %3576 = vmatpush1.msra.mxu0 0.0
    %3577 = vmatprep.subr.mxu0 0.0
    %3578 = vmatpush1.msra.mxu0 0.0
    %3579 = vmatprep.subr.mxu0 0.0
    %3580 = vmatpush1.msra.mxu0 0.0
    %3581 = vmatprep.subr.mxu0 0.0
    %3582 = vmatpush1.msra.mxu0 0.0
    %3583 = vmatprep.subr.mxu0 0.0
    %3584 = vmatpush1.msra.mxu0 0.0
    %3585 = vmatprep.subr.mxu0 0.0
    %3586 = vmatpush1.msra.mxu0 0.0
    %3587 = vmatprep.subr.mxu0 0.0
    %3588 = vmatpush1.msra.mxu0 0.0
    %3589 = vmatprep.subr.mxu0 0.0
    %3590 = vmatpush1.msra.mxu0 0.0
    %3591 = vmatprep.subr.mxu0 0.0
    %3592 = vmatpush1.msra.mxu0 0.0
    %3593 = vmatprep.subr.mxu0 0.0
    %3594 = vmatpush1.msra.mxu0 0.0
    %3595 = vmatprep.subr.mxu0 0.0
    %3596 = vmatpush1.msra.mxu0 0.0
    %3597 = vmatprep.subr.mxu0 0.0
    %3598 = vmatpush1.msra.mxu0 0.0
    %3599 = vmatprep.subr.mxu0 0.0
    %3600 = vmatpush1.msra.mxu0 0.0
    %3601 = vmatprep.subr.mxu0 0.0
    %3602 = vmatpush1.msra.mxu0 0.0
    %3603 = vmatprep.subr.mxu0 0.0
    %3604 = vmatpush1.msra.mxu0 0.0
    %3605 = vmatprep.subr.mxu0 0.0
    %3606 = vmatpush1.msra.mxu0 0.0
    %3607 = vmatprep.subr.mxu0 0.0
    %3608 = vmatpush1.msra.mxu0 0.0
    %3609 = vmatprep.subr.mxu0 0.0
    %3610 = vmatpush1.msra.mxu0 0.0
    %3611 = vmatprep.subr.mxu0 0.0
    %3612 = vmatpush1.msra.mxu0 0.0
    %3613 = vmatprep.subr.mxu0 0.0
    %3614 = vmatpush1.msra.mxu0 0.0
    %3615 = vmatprep.subr.mxu0 0.0
    %3616 = vmatpush1.msra.mxu0 0.0
    %3617 = vmatprep.subr.mxu0 0.0
    %3618 = vmatpush1.msra.mxu0 0.0
    %3619 = vmatprep.subr.mxu0 0.0
    %3620 = vmatpush1.msra.mxu0 0.0
    %3621 = vmatprep.subr.mxu0 0.0
    %3622 = vmatpush1.msra.mxu0 0.0
    %3623 = vmatprep.subr.mxu0 0.0
    %3624 = vmatpush1.msra.mxu0 0.0
    %3625 = vmatprep.subr.mxu0 0.0
    %3626 = vmatpush1.msra.mxu0 0.0
    %3627 = vmatprep.mubr.f32.mxu0 0.0
    %3628 = vmatmul.mubr.f32.gmra.mrb[0].mxu0 %v3558
    %v3629 = vpop.f32.mrb[0].mxu0
    %v3630 = vadd.f32 0.0, %v3629
    %v3631 = vpop.f32.mrb[0].mxu0
    %3632 = vmatprep.mubr.f32.mxu0 0.0
    %3633 = vmatmul.mubr.f32.gmra.mrb[0].mxu0 %v3561
    %v3634 = vpop.f32.mrb[0].mxu0
    %v3635 = vadd.f32 0.0, %v3634
    %v3636 = vpop.f32.mrb[0].mxu0
    %3637 = vdwg.mxu0
    %v3638 = vrcp.pop %v3547
    %v3639 = vmul.f32 %v3630, %v3638
    %v3640 = vrcp.pop %v3550
    %v3641 = vmul.f32 %v3635, %v3640
    %3644 = vrot.lane.b32.xlu0 %v2463, 4
    %v3645 = vpop.permute.xlu0 %3644
    %3646 = vrot.lane.b32.xlu0 %v2465, 4
    %v3647 = vpop.permute.xlu0 %3646
    %3652 = vrot.lane.b32.xlu0 %v2659, 8
    %v3653 = vpop.permute.xlu0 %3652
    %3654 = vrot.lane.b32.xlu0 %v2661, 8
    %v3655 = vpop.permute.xlu0 %3654
    %3660 = vrot.lane.b32.xlu0 %v2855, 12
    %v3661 = vpop.permute.xlu0 %3660
    %3662 = vrot.lane.b32.xlu0 %v2857, 12
    %v3663 = vpop.permute.xlu0 %3662
    %3668 = vrot.lane.b32.xlu0 %v3051, 16
    %v3669 = vpop.permute.xlu0 %3668
    %3670 = vrot.lane.b32.xlu0 %v3053, 16
    %v3671 = vpop.permute.xlu0 %3670
    %3676 = vrot.lane.b32.xlu0 %v3247, 20
    %v3677 = vpop.permute.xlu0 %3676
    %3678 = vrot.lane.b32.xlu0 %v3249, 20
    %v3679 = vpop.permute.xlu0 %3678
    %3684 = vrot.lane.b32.xlu0 %v3443, 24
    %v3685 = vpop.permute.xlu0 %3684
    %3686 = vrot.lane.b32.xlu0 %v3445, 24
    %v3687 = vpop.permute.xlu0 %3686
    %3692 = vrot.lane.b32.xlu0 %v3639, 28
    %v3693 = vpop.permute.xlu0 %3692
    %3694 = vrot.lane.b32.xlu0 %v3641, 28
    %v3695 = vpop.permute.xlu0 %3694
    %v3698 = vsel %vm349, %v2267, %v3645
    %v3699 = vsel %vm349, %v2269, %v3647
    %v3700 = vsel %vm1972, %v3698, %v3653
    %v3701 = vsel %vm1972, %v3699, %v3655
    %v3702 = vsel %vm1975, %v3700, %v3661
    %v3703 = vsel %vm1975, %v3701, %v3663
    %v3704 = vsel %vm44, %v3702, %v3669
    %v3705 = vsel %vm44, %v3703, %v3671
    %v3706 = vsel %vm1980, %v3704, %v3677
    %v3707 = vsel %vm1980, %v3705, %v3679
    %v3708 = vsel %vm1983, %v3706, %v3685
    %v3709 = vsel %vm1983, %v3707, %v3687
    %v3710 = vsel %vm1986, %v3708, %v3693
    %v3711 = vsel %vm1986, %v3709, %v3695
    %3716 = vrot.lane.b32.xlu0 %v344, 96
    %v3717 = vpop.permute.xlu0 %3716
    %3718 = vrot.lane.b32.xlu0 %v345, 96
    %v3719 = vpop.permute.xlu0 %3718
    %3720 = vrot.lane.b32.xlu0 %v346, 96
    %v3721 = vpop.permute.xlu0 %3720
    %3722 = vrot.lane.b32.xlu0 %v347, 96
    %v3723 = vpop.permute.xlu0 %3722
    %3729 = vrot.lane.b32.xlu0 %v1992, 96
    %v3730 = vpop.permute.xlu0 %3729
    %v3733 = vsel %vm131, %v3710, 0
    %v3736 = vsel %vm131, %v3711, 0
    %3738 = vmatprep.subr.mxu0 0.0
    %3739 = vmatpush1.msra.mxu0 %v3717
    %3740 = vmatprep.subr.mxu0 0.0
    %3741 = vmatpush1.msra.mxu0 %v3719
    %3742 = vmatprep.subr.mxu0 0.0
    %3743 = vmatpush1.msra.mxu0 %v3721
    %3744 = vmatprep.subr.mxu0 0.0
    %3745 = vmatpush1.msra.mxu0 %v3723
    %3746 = vmatprep.subr.mxu0 0.0
    %3747 = vmatpush1.msra.mxu0 0.0
    %3748 = vmatprep.subr.mxu0 0.0
    %3749 = vmatpush1.msra.mxu0 0.0
    %3750 = vmatprep.subr.mxu0 0.0
    %3751 = vmatpush1.msra.mxu0 0.0
    %3752 = vmatprep.subr.mxu0 0.0
    %3753 = vmatpush1.msra.mxu0 0.0
    %3754 = vmatprep.subr.mxu0 0.0
    %3755 = vmatpush1.msra.mxu0 0.0
    %3756 = vmatprep.subr.mxu0 0.0
    %3757 = vmatpush1.msra.mxu0 0.0
    %3758 = vmatprep.subr.mxu0 0.0
    %3759 = vmatpush1.msra.mxu0 0.0
    %3760 = vmatprep.subr.mxu0 0.0
    %3761 = vmatpush1.msra.mxu0 0.0
    %3762 = vmatprep.subr.mxu0 0.0
    %3763 = vmatpush1.msra.mxu0 0.0
    %3764 = vmatprep.subr.mxu0 0.0
    %3765 = vmatpush1.msra.mxu0 0.0
    %3766 = vmatprep.subr.mxu0 0.0
    %3767 = vmatpush1.msra.mxu0 0.0
    %3768 = vmatprep.subr.mxu0 0.0
    %3769 = vmatpush1.msra.mxu0 0.0
    %3770 = vmatprep.subr.mxu0 0.0
    %3771 = vmatpush1.msra.mxu0 0.0
    %3772 = vmatprep.subr.mxu0 0.0
    %3773 = vmatpush1.msra.mxu0 0.0
    %3774 = vmatprep.subr.mxu0 0.0
    %3775 = vmatpush1.msra.mxu0 0.0
    %3776 = vmatprep.subr.mxu0 0.0
    %3777 = vmatpush1.msra.mxu0 0.0
    %3778 = vmatprep.subr.mxu0 0.0
    %3779 = vmatpush1.msra.mxu0 0.0
    %3780 = vmatprep.subr.mxu0 0.0
    %3781 = vmatpush1.msra.mxu0 0.0
    %3782 = vmatprep.subr.mxu0 0.0
    %3783 = vmatpush1.msra.mxu0 0.0
    %3784 = vmatprep.subr.mxu0 0.0
    %3785 = vmatpush1.msra.mxu0 0.0
    %3786 = vmatprep.subr.mxu0 0.0
    %3787 = vmatpush1.msra.mxu0 0.0
    %3788 = vmatprep.subr.mxu0 0.0
    %3789 = vmatpush1.msra.mxu0 0.0
    %3790 = vmatprep.subr.mxu0 0.0
    %3791 = vmatpush1.msra.mxu0 0.0
    %3792 = vmatprep.subr.mxu0 0.0
    %3793 = vmatpush1.msra.mxu0 0.0
    %3794 = vmatprep.subr.mxu0 0.0
    %3795 = vmatpush1.msra.mxu0 0.0
    %3796 = vmatprep.subr.mxu0 0.0
    %3797 = vmatpush1.msra.mxu0 0.0
    %3798 = vmatprep.subr.mxu0 0.0
    %3799 = vmatpush1.msra.mxu0 0.0
    %3800 = vmatprep.subr.mxu0 0.0
    %3801 = vmatpush1.msra.mxu0 0.0
    %3802 = vmatprep.mubr.f32.mxu0 0.0
    %3803 = vmatmul.mubr.f32.gmra.mrb[0].mxu0 %v3733
    %v3804 = vpop.f32.mrb[0].mxu0
    %v3805 = vadd.f32 %v3730, %v3804
    %v3806 = vpop.f32.mrb[0].mxu0
    %3807 = vmatprep.mubr.f32.mxu0 0.0
    %3808 = vmatmul.mubr.f32.gmra.mrb[0].mxu0 %v3736
    %v3809 = vpop.f32.mrb[0].mxu0
    %v3810 = vadd.f32 %v3730, %v3809
    %v3811 = vpop.f32.mrb[0].mxu0
    %3812 = vdwg.mxu0
    %v3813 = vld [vmem:[%s2] sm:$0xff]
    %v3814 = vld [vmem:[%s2 + $0x8] sm:$0xff]
    %v3815 = vld [vmem:[%s2 + $0x10] sm:$0xff]
    %v3816 = vld [vmem:[%s2 + $0x18] sm:$0xff]
    %v3817 = vld [vmem:[%s2 + $0x20] sm:$0xff]
    %v3818 = vld [vmem:[%s2 + $0x28] sm:$0xff]
    %v3819 = vld [vmem:[%s2 + $0x30] sm:$0xff]
    %v3820 = vld [vmem:[%s2 + $0x38] sm:$0xff]
    %v3821 = vld [vmem:[%s2 + $0x40] sm:$0xff]
    %v3822 = vld [vmem:[%s2 + $0x48] sm:$0xff]
    %v3823 = vld [vmem:[%s2 + $0x50] sm:$0xff]
    %v3824 = vld [vmem:[%s2 + $0x58] sm:$0xff]
    %v3825 = vld [vmem:[%s2 + $0x60] sm:$0xff]
    %v3826 = vld [vmem:[%s2 + $0x68] sm:$0xff]
    %v3827 = vld [vmem:[%s2 + $0x70] sm:$0xff]
    %v3828 = vld [vmem:[%s2 + $0x78] sm:$0xff]
    %v3830 = vsel %vm131, %v3805, 0
    %v3833 = vsel %vm131, %v3810, 0
    %3835 = vmatprep.subr.mxu0 %v3822
    %3836 = vmatpush1.msra.mxu0 %v3821
    %3837 = vmatprep.subr.mxu0 %v3824
    %3838 = vmatpush1.msra.mxu0 %v3823
    %3839 = vmatprep.subr.mxu0 %v3826
    %3840 = vmatpush1.msra.mxu0 %v3825
    %3841 = vmatprep.subr.mxu0 %v3828
    %3842 = vmatpush1.msra.mxu0 %v3827
    %3843 = vmatprep.subr.mxu0 0.0
    %3844 = vmatpush1.msra.mxu0 0.0
    %3845 = vmatprep.subr.mxu0 0.0
    %3846 = vmatpush1.msra.mxu0 0.0
    %3847 = vmatprep.subr.mxu0 0.0
    %3848 = vmatpush1.msra.mxu0 0.0
    %3849 = vmatprep.subr.mxu0 0.0
    %3850 = vmatpush1.msra.mxu0 0.0
    %3851 = vmatprep.subr.mxu0 0.0
    %3852 = vmatpush1.msra.mxu0 0.0
    %3853 = vmatprep.subr.mxu0 0.0
    %3854 = vmatpush1.msra.mxu0 0.0
    %3855 = vmatprep.subr.mxu0 0.0
    %3856 = vmatpush1.msra.mxu0 0.0
    %3857 = vmatprep.subr.mxu0 0.0
    %3858 = vmatpush1.msra.mxu0 0.0
    %3859 = vmatprep.subr.mxu0 0.0
    %3860 = vmatpush1.msra.mxu0 0.0
    %3861 = vmatprep.subr.mxu0 0.0
    %3862 = vmatpush1.msra.mxu0 0.0
    %3863 = vmatprep.subr.mxu0 0.0
    %3864 = vmatpush1.msra.mxu0 0.0
    %3865 = vmatprep.subr.mxu0 0.0
    %3866 = vmatpush1.msra.mxu0 0.0
    %3867 = vmatprep.subr.mxu0 0.0
    %3868 = vmatpush1.msra.mxu0 0.0
    %3869 = vmatprep.subr.mxu0 0.0
    %3870 = vmatpush1.msra.mxu0 0.0
    %3871 = vmatprep.subr.mxu0 0.0
    %3872 = vmatpush1.msra.mxu0 0.0
    %3873 = vmatprep.subr.mxu0 0.0
    %3874 = vmatpush1.msra.mxu0 0.0
    %3875 = vmatprep.subr.mxu0 0.0
    %3876 = vmatpush1.msra.mxu0 0.0
    %3877 = vmatprep.subr.mxu0 0.0
    %3878 = vmatpush1.msra.mxu0 0.0
    %3879 = vmatprep.subr.mxu0 0.0
    %3880 = vmatpush1.msra.mxu0 0.0
    %3881 = vmatprep.subr.mxu0 0.0
    %3882 = vmatpush1.msra.mxu0 0.0
    %3883 = vmatprep.subr.mxu0 0.0
    %3884 = vmatpush1.msra.mxu0 0.0
    %3885 = vmatprep.subr.mxu0 0.0
    %3886 = vmatpush1.msra.mxu0 0.0
    %3887 = vmatprep.subr.mxu0 0.0
    %3888 = vmatpush1.msra.mxu0 0.0
    %3889 = vmatprep.subr.mxu0 0.0
    %3890 = vmatpush1.msra.mxu0 0.0
    %3891 = vmatprep.subr.mxu0 0.0
    %3892 = vmatpush1.msra.mxu0 0.0
    %3893 = vmatprep.subr.mxu0 0.0
    %3894 = vmatpush1.msra.mxu0 0.0
    %3895 = vmatprep.subr.mxu0 0.0
    %3896 = vmatpush1.msra.mxu0 0.0
    %3897 = vmatprep.subr.mxu0 0.0
    %3898 = vmatpush1.msra.mxu0 0.0
    %3899 = vmatprep.mubr.f32.mxu0 0.0
    %3900 = vmatmul.mubr.f32.gmra.mrb[0].mxu0 %v3830
    %v3901 = vpop.f32.mrb[0].mxu0
    %v3902 = vadd.f32 0.0, %v3901
    %v3903 = vpop.f32.mrb[0].mxu0
    %v3904 = vadd.f32 0.0, %v3903
    %3905 = vmatprep.mubr.f32.mxu0 0.0
    %3906 = vmatmul.mubr.f32.gmra.mrb[0].mxu0 %v3833
    %v3907 = vpop.f32.mrb[0].mxu0
    %v3908 = vadd.f32 0.0, %v3907
    %v3909 = vpop.f32.mrb[0].mxu0
    %v3910 = vadd.f32 0.0, %v3909
    %3911 = vdwg.mxu0
    %v3913 = vsel %vm131, %v2066, 0
    %v3916 = vsel %vm131, %v2071, 0
    %3918 = vmatprep.subr.mxu0 %v3814
    %3919 = vmatpush1.msra.mxu0 %v3813
    %3920 = vmatprep.subr.mxu0 %v3816
    %3921 = vmatpush1.msra.mxu0 %v3815
    %3922 = vmatprep.subr.mxu0 %v3818
    %3923 = vmatpush1.msra.mxu0 %v3817
    %3924 = vmatprep.subr.mxu0 %v3820
    %3925 = vmatpush1.msra.mxu0 %v3819
    %3926 = vmatprep.subr.mxu0 0.0
    %3927 = vmatpush1.msra.mxu0 0.0
    %3928 = vmatprep.subr.mxu0 0.0
    %3929 = vmatpush1.msra.mxu0 0.0
    %3930 = vmatprep.subr.mxu0 0.0
    %3931 = vmatpush1.msra.mxu0 0.0
    %3932 = vmatprep.subr.mxu0 0.0
    %3933 = vmatpush1.msra.mxu0 0.0
    %3934 = vmatprep.subr.mxu0 0.0
    %3935 = vmatpush1.msra.mxu0 0.0
    %3936 = vmatprep.subr.mxu0 0.0
    %3937 = vmatpush1.msra.mxu0 0.0
    %3938 = vmatprep.subr.mxu0 0.0
    %3939 = vmatpush1.msra.mxu0 0.0
    %3940 = vmatprep.subr.mxu0 0.0
    %3941 = vmatpush1.msra.mxu0 0.0
    %3942 = vmatprep.subr.mxu0 0.0
    %3943 = vmatpush1.msra.mxu0 0.0
    %3944 = vmatprep.subr.mxu0 0.0
    %3945 = vmatpush1.msra.mxu0 0.0
    %3946 = vmatprep.subr.mxu0 0.0
    %3947 = vmatpush1.msra.mxu0 0.0
    %3948 = vmatprep.subr.mxu0 0.0
    %3949 = vmatpush1.msra.mxu0 0.0
    %3950 = vmatprep.subr.mxu0 0.0
    %3951 = vmatpush1.msra.mxu0 0.0
    %3952 = vmatprep.subr.mxu0 0.0
    %3953 = vmatpush1.msra.mxu0 0.0
    %3954 = vmatprep.subr.mxu0 0.0
    %3955 = vmatpush1.msra.mxu0 0.0
    %3956 = vmatprep.subr.mxu0 0.0
    %3957 = vmatpush1.msra.mxu0 0.0
    %3958 = vmatprep.subr.mxu0 0.0
    %3959 = vmatpush1.msra.mxu0 0.0
    %3960 = vmatprep.subr.mxu0 0.0
    %3961 = vmatpush1.msra.mxu0 0.0
    %3962 = vmatprep.subr.mxu0 0.0
    %3963 = vmatpush1.msra.mxu0 0.0
    %3964 = vmatprep.subr.mxu0 0.0
    %3965 = vmatpush1.msra.mxu0 0.0
    %3966 = vmatprep.subr.mxu0 0.0
    %3967 = vmatpush1.msra.mxu0 0.0
    %3968 = vmatprep.subr.mxu0 0.0
    %3969 = vmatpush1.msra.mxu0 0.0
    %3970 = vmatprep.subr.mxu0 0.0
    %3971 = vmatpush1.msra.mxu0 0.0
    %3972 = vmatprep.subr.mxu0 0.0
    %3973 = vmatpush1.msra.mxu0 0.0
    %3974 = vmatprep.subr.mxu0 0.0
    %3975 = vmatpush1.msra.mxu0 0.0
    %3976 = vmatprep.subr.mxu0 0.0
    %3977 = vmatpush1.msra.mxu0 0.0
    %3978 = vmatprep.subr.mxu0 0.0
    %3979 = vmatpush1.msra.mxu0 0.0
    %3980 = vmatprep.subr.mxu0 0.0
    %3981 = vmatpush1.msra.mxu0 0.0
    %3982 = vmatprep.mubr.f32.mxu0 0.0
    %3983 = vmatmul.mubr.f32.gmra.mrb[0].mxu0 %v3913
    %v3984 = vpop.f32.mrb[0].mxu0
    %v3985 = vadd.f32 %v3902, %v3984
    %v3986 = vpop.f32.mrb[0].mxu0
    %v3987 = vadd.f32 %v3904, %v3986
    %3988 = vmatprep.mubr.f32.mxu0 0.0
    %3989 = vmatmul.mubr.f32.gmra.mrb[0].mxu0 %v3916
    %v3990 = vpop.f32.mrb[0].mxu0
    %v3991 = vadd.f32 %v3908, %v3990
    %v3992 = vpop.f32.mrb[0].mxu0
    %v3993 = vadd.f32 %v3910, %v3992
    %3994 = vdwg.mxu0
    %s3995 = scalar_lea.vmem %s2, 128
    %v3996 = vld [vmem:[%s3995] ss:$8 sm:$0x3]
    %v3998 = vlaneseq
    %v3999 = vshrl.u32 %v3998, 7
    %v4000 = vsub.s32 0, %v3999
    %v4001 = vrot.slane %v3996, %v4000
    %v4002 = vlaneseq
    %v4003 = vshrl.u32 %v4002, 7
    %v4004 = vsub.s32 1, %v4003
    %v4005 = vrot.slane %v3996, %v4004
    %v4008 = vadd.f32 %v3985, %v4001
    %v4009 = vadd.f32 %v3987, %v4005
    %v4010 = vadd.f32 %v3991, %v4001
    %v4011 = vadd.f32 %v3993, %v4005
    %v4012 = vld [vmem:[%s3] sm:$0xff]
    %v4013 = vld [vmem:[%s3 + $0x8] sm:$0xff]
    %v4014 = vld [vmem:[%s3 + $0x10] sm:$0xff]
    %v4015 = vld [vmem:[%s3 + $0x18] sm:$0xff]
    %v4016 = vld [vmem:[%s3 + $0x20] sm:$0xff]
    %v4017 = vld [vmem:[%s3 + $0x28] sm:$0xff]
    %v4018 = vld [vmem:[%s3 + $0x30] sm:$0xff]
    %v4019 = vld [vmem:[%s3 + $0x38] sm:$0xff]
    %v4020 = vld [vmem:[%s3 + $0xb2] sm:$0x1]
    %4023 = vrot.lane.b32.xlu0 %v4008, 64
    %v4024 = vpop.permute.xlu0 %4023
    %4025 = vrot.lane.b32.xlu0 %v4010, 64
    %v4026 = vpop.permute.xlu0 %4025
    %v4027 = vsel %vm1972, %v4008, 0
    %v4029 = vsel %vm1972, %v4010, 0
    %v4031 = vsel %vm1972, %v4024, 0
    %v4033 = vsel %vm1972, %v4026, 0
    %4035 = vmatprep.subr.mxu0 0.0
    %4036 = vmatpush1.xpose.msra.mxu0 %v4031
    %4037 = vmatprep.subr.mxu0 0.0
    %4038 = vmatpush1.xpose.msra.mxu0 %v4033
    %4039 = vmatprep.subr.mxu0 0.0
    %4040 = vmatpush1.xpose.msra.mxu0 0.0
    %4041 = vmatprep.subr.mxu0 0.0
    %4042 = vmatpush1.xpose.msra.mxu0 0.0
    %4043 = vmatprep.subr.mxu0 0.0
    %4044 = vmatpush1.xpose.msra.mxu0 0.0
    %4045 = vmatprep.subr.mxu0 0.0
    %4046 = vmatpush1.xpose.msra.mxu0 0.0
    %4047 = vmatprep.subr.mxu0 0.0
    %4048 = vmatpush1.xpose.msra.mxu0 0.0
    %4049 = vmatprep.subr.mxu0 0.0
    %4050 = vmatpush1.xpose.msra.mxu0 0.0
    %4051 = vmatprep.subr.mxu0 0.0
    %4052 = vmatpush1.xpose.msra.mxu0 0.0
    %4053 = vmatprep.subr.mxu0 0.0
    %4054 = vmatpush1.xpose.msra.mxu0 0.0
    %4055 = vmatprep.subr.mxu0 0.0
    %4056 = vmatpush1.xpose.msra.mxu0 0.0
    %4057 = vmatprep.subr.mxu0 0.0
    %4058 = vmatpush1.xpose.msra.mxu0 0.0
    %4059 = vmatprep.subr.mxu0 0.0
    %4060 = vmatpush1.xpose.msra.mxu0 0.0
    %4061 = vmatprep.subr.mxu0 0.0
    %4062 = vmatpush1.xpose.msra.mxu0 0.0
    %4063 = vmatprep.subr.mxu0 0.0
    %4064 = vmatpush1.xpose.msra.mxu0 0.0
    %4065 = vmatprep.subr.mxu0 0.0
    %4066 = vmatpush1.xpose.msra.mxu0 0.0
    %4067 = vmatprep.subr.mxu0 0.0
    %4068 = vmatpush1.xpose.msra.mxu0 0.0
    %4069 = vmatprep.subr.mxu0 0.0
    %4070 = vmatpush1.xpose.msra.mxu0 0.0
    %4071 = vmatprep.subr.mxu0 0.0
    %4072 = vmatpush1.xpose.msra.mxu0 0.0
    %4073 = vmatprep.subr.mxu0 0.0
    %4074 = vmatpush1.xpose.msra.mxu0 0.0
    %4075 = vmatprep.subr.mxu0 0.0
    %4076 = vmatpush1.xpose.msra.mxu0 0.0
    %4077 = vmatprep.subr.mxu0 0.0
    %4078 = vmatpush1.xpose.msra.mxu0 0.0
    %4079 = vmatprep.subr.mxu0 0.0
    %4080 = vmatpush1.xpose.msra.mxu0 0.0
    %4081 = vmatprep.subr.mxu0 0.0
    %4082 = vmatpush1.xpose.msra.mxu0 0.0
    %4083 = vmatprep.subr.mxu0 0.0
    %4084 = vmatpush1.xpose.msra.mxu0 0.0
    %4085 = vmatprep.subr.mxu0 0.0
    %4086 = vmatpush1.xpose.msra.mxu0 0.0
    %4087 = vmatprep.subr.mxu0 0.0
    %4088 = vmatpush1.xpose.msra.mxu0 0.0
    %4089 = vmatprep.subr.mxu0 0.0
    %4090 = vmatpush1.xpose.msra.mxu0 0.0
    %4091 = vmatprep.subr.mxu0 0.0
    %4092 = vmatpush1.xpose.msra.mxu0 0.0
    %4093 = vmatprep.subr.mxu0 0.0
    %4094 = vmatpush1.xpose.msra.mxu0 0.0
    %4095 = vmatprep.subr.mxu0 0.0
    %4096 = vmatpush1.xpose.msra.mxu0 0.0
    %4097 = vmatprep.subr.mxu0 0.0
    %4098 = vmatpush1.xpose.msra.mxu0 0.0
    %4099 = vmatprep.mubr.f32.mxu0 0.0
    %4100 = vmatmul.mubr.f32.gmra.mrb[0].mxu0 %v4027
    %v4101 = vpop.f32.mrb[0].mxu0
    %v4102 = vadd.f32 0.0, %v4101
    %v4103 = vpop.f32.mrb[0].mxu0
    %4104 = vmatprep.mubr.f32.mxu0 0.0
    %4105 = vmatmul.mubr.f32.gmra.mrb[0].mxu0 %v4029
    %v4106 = vpop.f32.mrb[0].mxu0
    %v4107 = vadd.f32 0.0, %v4106
    %v4108 = vpop.f32.mrb[0].mxu0
    %4109 = vdwg.mxu0
    %v4110 = vmul.f32 %v4102, 0.35355338
    %v4111 = vmul.f32 %v4107, 0.35355338
    %v4112 = vmul.f32 %v4110, 1.442695
    %v4113 = vpow.pop %v4112
    %v4114 = vmul.f32 %v4111, 1.442695
    %v4115 = vpow.pop %v4114
    %v4116 = vmul.f32 %v4113, %v35
    %v4117 = vmul.f32 %v4115, %v36
    %v4118 = vsel %vm44, %v4116, 0.0
    %4119 = vadd.xlane.f32.xlu0 %v4118
    %v4120 = vpop.xlane.xlu0 %4119
    %v4121 = vsel %vm44, %v4117, 0.0
    %4122 = vadd.xlane.f32.xlu0 %v4121
    %v4123 = vpop.xlane.xlu0 %4122
    %v4125 = vsel %vm44, %v4116, 0
    %v4128 = vsel %vm44, %v4117, 0
    %4130 = vmatprep.subr.mxu0 0.0
    %4131 = vmatpush1.msra.mxu0 %v4009
    %4132 = vmatprep.subr.mxu0 0.0
    %4133 = vmatpush1.msra.mxu0 %v4011
    %4134 = vmatprep.subr.mxu0 0.0
    %4135 = vmatpush1.msra.mxu0 0.0
    %4136 = vmatprep.subr.mxu0 0.0
    %4137 = vmatpush1.msra.mxu0 0.0
    %4138 = vmatprep.subr.mxu0 0.0
    %4139 = vmatpush1.msra.mxu0 0.0
    %4140 = vmatprep.subr.mxu0 0.0
    %4141 = vmatpush1.msra.mxu0 0.0
    %4142 = vmatprep.subr.mxu0 0.0
    %4143 = vmatpush1.msra.mxu0 0.0
    %4144 = vmatprep.subr.mxu0 0.0
    %4145 = vmatpush1.msra.mxu0 0.0
    %4146 = vmatprep.subr.mxu0 0.0
    %4147 = vmatpush1.msra.mxu0 0.0
    %4148 = vmatprep.subr.mxu0 0.0
    %4149 = vmatpush1.msra.mxu0 0.0
    %4150 = vmatprep.subr.mxu0 0.0
    %4151 = vmatpush1.msra.mxu0 0.0
    %4152 = vmatprep.subr.mxu0 0.0
    %4153 = vmatpush1.msra.mxu0 0.0
    %4154 = vmatprep.subr.mxu0 0.0
    %4155 = vmatpush1.msra.mxu0 0.0
    %4156 = vmatprep.subr.mxu0 0.0
    %4157 = vmatpush1.msra.mxu0 0.0
    %4158 = vmatprep.subr.mxu0 0.0
    %4159 = vmatpush1.msra.mxu0 0.0
    %4160 = vmatprep.subr.mxu0 0.0
    %4161 = vmatpush1.msra.mxu0 0.0
    %4162 = vmatprep.subr.mxu0 0.0
    %4163 = vmatpush1.msra.mxu0 0.0
    %4164 = vmatprep.subr.mxu0 0.0
    %4165 = vmatpush1.msra.mxu0 0.0
    %4166 = vmatprep.subr.mxu0 0.0
    %4167 = vmatpush1.msra.mxu0 0.0
    %4168 = vmatprep.subr.mxu0 0.0
    %4169 = vmatpush1.msra.mxu0 0.0
    %4170 = vmatprep.subr.mxu0 0.0
    %4171 = vmatpush1.msra.mxu0 0.0
    %4172 = vmatprep.subr.mxu0 0.0
    %4173 = vmatpush1.msra.mxu0 0.0
    %4174 = vmatprep.subr.mxu0 0.0
    %4175 = vmatpush1.msra.mxu0 0.0
    %4176 = vmatprep.subr.mxu0 0.0
    %4177 = vmatpush1.msra.mxu0 0.0
    %4178 = vmatprep.subr.mxu0 0.0
    %4179 = vmatpush1.msra.mxu0 0.0
    %4180 = vmatprep.subr.mxu0 0.0
    %4181 = vmatpush1.msra.mxu0 0.0
    %4182 = vmatprep.subr.mxu0 0.0
    %4183 = vmatpush1.msra.mxu0 0.0
    %4184 = vmatprep.subr.mxu0 0.0
    %4185 = vmatpush1.msra.mxu0 0.0
    %4186 = vmatprep.subr.mxu0 0.0
    %4187 = vmatpush1.msra.mxu0 0.0
    %4188 = vmatprep.subr.mxu0 0.0
    %4189 = vmatpush1.msra.mxu0 0.0
    %4190 = vmatprep.subr.mxu0 0.0
    %4191 = vmatpush1.msra.mxu0 0.0
    %4192 = vmatprep.subr.mxu0 0.0
    %4193 = vmatpush1.msra.mxu0 0.0
    %4194 = vmatprep.mubr.f32.mxu0 0.0
    %4195 = vmatmul.mubr.f32.gmra.mrb[0].mxu0 %v4125
    %v4196 = vpop.f32.mrb[0].mxu0
    %v4197 = vadd.f32 0.0, %v4196
    %v4198 = vpop.f32.mrb[0].mxu0
    %4199 = vmatprep.mubr.f32.mxu0 0.0
    %4200 = vmatmul.mubr.f32.gmra.mrb[0].mxu0 %v4128
    %v4201 = vpop.f32.mrb[0].mxu0
    %v4202 = vadd.f32 0.0, %v4201
    %v4203 = vpop.f32.mrb[0].mxu0
    %4204 = vdwg.mxu0
    %v4205 = vrcp.pop %v4120
    %v4206 = vmul.f32 %v4197, %v4205
    %v4207 = vrcp.pop %v4123
    %v4208 = vmul.f32 %v4202, %v4207
    %4209 = vrot.lane.b32.xlu0 %v4008, 120
    %v4210 = vpop.permute.xlu0 %4209
    %4211 = vrot.lane.b32.xlu0 %v4010, 120
    %v4212 = vpop.permute.xlu0 %4211
    %4213 = vrot.lane.b32.xlu0 %v4008, 56
    %v4214 = vpop.permute.xlu0 %4213
    %4215 = vrot.lane.b32.xlu0 %v4010, 56
    %v4216 = vpop.permute.xlu0 %4215
    %v4217 = vsel %vm1972, %v4210, 0
    %v4219 = vsel %vm1972, %v4212, 0
    %v4221 = vsel %vm1972, %v4214, 0
    %v4223 = vsel %vm1972, %v4216, 0
    %4225 = vmatprep.subr.mxu0 0.0
    %4226 = vmatpush1.xpose.msra.mxu0 %v4221
    %4227 = vmatprep.subr.mxu0 0.0
    %4228 = vmatpush1.xpose.msra.mxu0 %v4223
    %4229 = vmatprep.subr.mxu0 0.0
    %4230 = vmatpush1.xpose.msra.mxu0 0.0
    %4231 = vmatprep.subr.mxu0 0.0
    %4232 = vmatpush1.xpose.msra.mxu0 0.0
    %4233 = vmatprep.subr.mxu0 0.0
    %4234 = vmatpush1.xpose.msra.mxu0 0.0
    %4235 = vmatprep.subr.mxu0 0.0
    %4236 = vmatpush1.xpose.msra.mxu0 0.0
    %4237 = vmatprep.subr.mxu0 0.0
    %4238 = vmatpush1.xpose.msra.mxu0 0.0
    %4239 = vmatprep.subr.mxu0 0.0
    %4240 = vmatpush1.xpose.msra.mxu0 0.0
    %4241 = vmatprep.subr.mxu0 0.0
    %4242 = vmatpush1.xpose.msra.mxu0 0.0
    %4243 = vmatprep.subr.mxu0 0.0
    %4244 = vmatpush1.xpose.msra.mxu0 0.0
    %4245 = vmatprep.subr.mxu0 0.0
    %4246 = vmatpush1.xpose.msra.mxu0 0.0
    %4247 = vmatprep.subr.mxu0 0.0
    %4248 = vmatpush1.xpose.msra.mxu0 0.0
    %4249 = vmatprep.subr.mxu0 0.0
    %4250 = vmatpush1.xpose.msra.mxu0 0.0
    %4251 = vmatprep.subr.mxu0 0.0
    %4252 = vmatpush1.xpose.msra.mxu0 0.0
    %4253 = vmatprep.subr.mxu0 0.0
    %4254 = vmatpush1.xpose.msra.mxu0 0.0
    %4255 = vmatprep.subr.mxu0 0.0
    %4256 = vmatpush1.xpose.msra.mxu0 0.0
    %4257 = vmatprep.subr.mxu0 0.0
    %4258 = vmatpush1.xpose.msra.mxu0 0.0
    %4259 = vmatprep.subr.mxu0 0.0
    %4260 = vmatpush1.xpose.msra.mxu0 0.0
    %4261 = vmatprep.subr.mxu0 0.0
    %4262 = vmatpush1.xpose.msra.mxu0 0.0
    %4263 = vmatprep.subr.mxu0 0.0
    %4264 = vmatpush1.xpose.msra.mxu0 0.0
    %4265 = vmatprep.subr.mxu0 0.0
    %4266 = vmatpush1.xpose.msra.mxu0 0.0
    %4267 = vmatprep.subr.mxu0 0.0
    %4268 = vmatpush1.xpose.msra.mxu0 0.0
    %4269 = vmatprep.subr.mxu0 0.0
    %4270 = vmatpush1.xpose.msra.mxu0 0.0
    %4271 = vmatprep.subr.mxu0 0.0
    %4272 = vmatpush1.xpose.msra.mxu0 0.0
    %4273 = vmatprep.subr.mxu0 0.0
    %4274 = vmatpush1.xpose.msra.mxu0 0.0
    %4275 = vmatprep.subr.mxu0 0.0
    %4276 = vmatpush1.xpose.msra.mxu0 0.0
    %4277 = vmatprep.subr.mxu0 0.0
    %4278 = vmatpush1.xpose.msra.mxu0 0.0
    %4279 = vmatprep.subr.mxu0 0.0
    %4280 = vmatpush1.xpose.msra.mxu0 0.0
    %4281 = vmatprep.subr.mxu0 0.0
    %4282 = vmatpush1.xpose.msra.mxu0 0.0
    %4283 = vmatprep.subr.mxu0 0.0
    %4284 = vmatpush1.xpose.msra.mxu0 0.0
    %4285 = vmatprep.subr.mxu0 0.0
    %4286 = vmatpush1.xpose.msra.mxu0 0.0
    %4287 = vmatprep.subr.mxu0 0.0
    %4288 = vmatpush1.xpose.msra.mxu0 0.0
    %4289 = vmatprep.mubr.f32.mxu0 0.0
    %4290 = vmatmul.mubr.f32.gmra.mrb[0].mxu0 %v4217
    %v4291 = vpop.f32.mrb[0].mxu0
    %v4292 = vadd.f32 0.0, %v4291
    %v4293 = vpop.f32.mrb[0].mxu0
    %4294 = vmatprep.mubr.f32.mxu0 0.0
    %4295 = vmatmul.mubr.f32.gmra.mrb[0].mxu0 %v4219
    %v4296 = vpop.f32.mrb[0].mxu0
    %v4297 = vadd.f32 0.0, %v4296
    %v4298 = vpop.f32.mrb[0].mxu0
    %4299 = vdwg.mxu0
    %v4300 = vmul.f32 %v4292, 0.35355338
    %v4301 = vmul.f32 %v4297, 0.35355338
    %v4302 = vmul.f32 %v4300, 1.442695
    %v4303 = vpow.pop %v4302
    %v4304 = vmul.f32 %v4301, 1.442695
    %v4305 = vpow.pop %v4304
    %v4306 = vmul.f32 %v4303, %v35
    %v4307 = vmul.f32 %v4305, %v36
    %v4308 = vsel %vm44, %v4306, 0.0
    %4309 = vadd.xlane.f32.xlu0 %v4308
    %v4310 = vpop.xlane.xlu0 %4309
    %v4311 = vsel %vm44, %v4307, 0.0
    %4312 = vadd.xlane.f32.xlu0 %v4311
    %v4313 = vpop.xlane.xlu0 %4312
    %4316 = vrot.lane.b32.xlu0 %v4009, 120
    %v4317 = vpop.permute.xlu0 %4316
    %4318 = vrot.lane.b32.xlu0 %v4011, 120
    %v4319 = vpop.permute.xlu0 %4318
    %v4323 = vsel %vm44, %v4306, 0
    %v4326 = vsel %vm44, %v4307, 0
    %4328 = vmatprep.subr.mxu0 0.0
    %4329 = vmatpush1.msra.mxu0 %v4317
    %4330 = vmatprep.subr.mxu0 0.0
    %4331 = vmatpush1.msra.mxu0 %v4319
    %4332 = vmatprep.subr.mxu0 0.0
    %4333 = vmatpush1.msra.mxu0 0.0
    %4334 = vmatprep.subr.mxu0 0.0
    %4335 = vmatpush1.msra.mxu0 0.0
    %4336 = vmatprep.subr.mxu0 0.0
    %4337 = vmatpush1.msra.mxu0 0.0
    %4338 = vmatprep.subr.mxu0 0.0
    %4339 = vmatpush1.msra.mxu0 0.0
    %4340 = vmatprep.subr.mxu0 0.0
    %4341 = vmatpush1.msra.mxu0 0.0
    %4342 = vmatprep.subr.mxu0 0.0
    %4343 = vmatpush1.msra.mxu0 0.0
    %4344 = vmatprep.subr.mxu0 0.0
    %4345 = vmatpush1.msra.mxu0 0.0
    %4346 = vmatprep.subr.mxu0 0.0
    %4347 = vmatpush1.msra.mxu0 0.0
    %4348 = vmatprep.subr.mxu0 0.0
    %4349 = vmatpush1.msra.mxu0 0.0
    %4350 = vmatprep.subr.mxu0 0.0
    %4351 = vmatpush1.msra.mxu0 0.0
    %4352 = vmatprep.subr.mxu0 0.0
    %4353 = vmatpush1.msra.mxu0 0.0
    %4354 = vmatprep.subr.mxu0 0.0
    %4355 = vmatpush1.msra.mxu0 0.0
    %4356 = vmatprep.subr.mxu0 0.0
    %4357 = vmatpush1.msra.mxu0 0.0
    %4358 = vmatprep.subr.mxu0 0.0
    %4359 = vmatpush1.msra.mxu0 0.0
    %4360 = vmatprep.subr.mxu0 0.0
    %4361 = vmatpush1.msra.mxu0 0.0
    %4362 = vmatprep.subr.mxu0 0.0
    %4363 = vmatpush1.msra.mxu0 0.0
    %4364 = vmatprep.subr.mxu0 0.0
    %4365 = vmatpush1.msra.mxu0 0.0
    %4366 = vmatprep.subr.mxu0 0.0
    %4367 = vmatpush1.msra.mxu0 0.0
    %4368 = vmatprep.subr.mxu0 0.0
    %4369 = vmatpush1.msra.mxu0 0.0
    %4370 = vmatprep.subr.mxu0 0.0
    %4371 = vmatpush1.msra.mxu0 0.0
    %4372 = vmatprep.subr.mxu0 0.0
    %4373 = vmatpush1.msra.mxu0 0.0
    %4374 = vmatprep.subr.mxu0 0.0
    %4375 = vmatpush1.msra.mxu0 0.0
    %4376 = vmatprep.subr.mxu0 0.0
    %4377 = vmatpush1.msra.mxu0 0.0
    %4378 = vmatprep.subr.mxu0 0.0
    %4379 = vmatpush1.msra.mxu0 0.0
    %4380 = vmatprep.subr.mxu0 0.0
    %4381 = vmatpush1.msra.mxu0 0.0
    %4382 = vmatprep.subr.mxu0 0.0
    %4383 = vmatpush1.msra.mxu0 0.0
    %4384 = vmatprep.subr.mxu0 0.0
    %4385 = vmatpush1.msra.mxu0 0.0
    %4386 = vmatprep.subr.mxu0 0.0
    %4387 = vmatpush1.msra.mxu0 0.0
    %4388 = vmatprep.subr.mxu0 0.0
    %4389 = vmatpush1.msra.mxu0 0.0
    %4390 = vmatprep.subr.mxu0 0.0
    %4391 = vmatpush1.msra.mxu0 0.0
    %4392 = vmatprep.mubr.f32.mxu0 0.0
    %4393 = vmatmul.mubr.f32.gmra.mrb[0].mxu0 %v4323
    %v4394 = vpop.f32.mrb[0].mxu0
    %v4395 = vadd.f32 0.0, %v4394
    %v4396 = vpop.f32.mrb[0].mxu0
    %4397 = vmatprep.mubr.f32.mxu0 0.0
    %4398 = vmatmul.mubr.f32.gmra.mrb[0].mxu0 %v4326
    %v4399 = vpop.f32.mrb[0].mxu0
    %v4400 = vadd.f32 0.0, %v4399
    %v4401 = vpop.f32.mrb[0].mxu0
    %4402 = vdwg.mxu0
    %v4403 = vrcp.pop %v4310
    %v4404 = vmul.f32 %v4395, %v4403
    %v4405 = vrcp.pop %v4313
    %v4406 = vmul.f32 %v4400, %v4405
    %4407 = vrot.lane.b32.xlu0 %v4008, 112
    %v4408 = vpop.permute.xlu0 %4407
    %4409 = vrot.lane.b32.xlu0 %v4010, 112
    %v4410 = vpop.permute.xlu0 %4409
    %4411 = vrot.lane.b32.xlu0 %v4008, 48
    %v4412 = vpop.permute.xlu0 %4411
    %4413 = vrot.lane.b32.xlu0 %v4010, 48
    %v4414 = vpop.permute.xlu0 %4413
    %v4415 = vsel %vm1972, %v4408, 0
    %v4417 = vsel %vm1972, %v4410, 0
    %v4419 = vsel %vm1972, %v4412, 0
    %v4421 = vsel %vm1972, %v4414, 0
    %4423 = vmatprep.subr.mxu0 0.0
    %4424 = vmatpush1.xpose.msra.mxu0 %v4419
    %4425 = vmatprep.subr.mxu0 0.0
    %4426 = vmatpush1.xpose.msra.mxu0 %v4421
    %4427 = vmatprep.subr.mxu0 0.0
    %4428 = vmatpush1.xpose.msra.mxu0 0.0
    %4429 = vmatprep.subr.mxu0 0.0
    %4430 = vmatpush1.xpose.msra.mxu0 0.0
    %4431 = vmatprep.subr.mxu0 0.0
    %4432 = vmatpush1.xpose.msra.mxu0 0.0
    %4433 = vmatprep.subr.mxu0 0.0
    %4434 = vmatpush1.xpose.msra.mxu0 0.0
    %4435 = vmatprep.subr.mxu0 0.0
    %4436 = vmatpush1.xpose.msra.mxu0 0.0
    %4437 = vmatprep.subr.mxu0 0.0
    %4438 = vmatpush1.xpose.msra.mxu0 0.0
    %4439 = vmatprep.subr.mxu0 0.0
    %4440 = vmatpush1.xpose.msra.mxu0 0.0
    %4441 = vmatprep.subr.mxu0 0.0
    %4442 = vmatpush1.xpose.msra.mxu0 0.0
    %4443 = vmatprep.subr.mxu0 0.0
    %4444 = vmatpush1.xpose.msra.mxu0 0.0
    %4445 = vmatprep.subr.mxu0 0.0
    %4446 = vmatpush1.xpose.msra.mxu0 0.0
    %4447 = vmatprep.subr.mxu0 0.0
    %4448 = vmatpush1.xpose.msra.mxu0 0.0
    %4449 = vmatprep.subr.mxu0 0.0
    %4450 = vmatpush1.xpose.msra.mxu0 0.0
    %4451 = vmatprep.subr.mxu0 0.0
    %4452 = vmatpush1.xpose.msra.mxu0 0.0
    %4453 = vmatprep.subr.mxu0 0.0
    %4454 = vmatpush1.xpose.msra.mxu0 0.0
    %4455 = vmatprep.subr.mxu0 0.0
    %4456 = vmatpush1.xpose.msra.mxu0 0.0
    %4457 = vmatprep.subr.mxu0 0.0
    %4458 = vmatpush1.xpose.msra.mxu0 0.0
    %4459 = vmatprep.subr.mxu0 0.0
    %4460 = vmatpush1.xpose.msra.mxu0 0.0
    %4461 = vmatprep.subr.mxu0 0.0
    %4462 = vmatpush1.xpose.msra.mxu0 0.0
    %4463 = vmatprep.subr.mxu0 0.0
    %4464 = vmatpush1.xpose.msra.mxu0 0.0
    %4465 = vmatprep.subr.mxu0 0.0
    %4466 = vmatpush1.xpose.msra.mxu0 0.0
    %4467 = vmatprep.subr.mxu0 0.0
    %4468 = vmatpush1.xpose.msra.mxu0 0.0
    %4469 = vmatprep.subr.mxu0 0.0
    %4470 = vmatpush1.xpose.msra.mxu0 0.0
    %4471 = vmatprep.subr.mxu0 0.0
    %4472 = vmatpush1.xpose.msra.mxu0 0.0
    %4473 = vmatprep.subr.mxu0 0.0
    %4474 = vmatpush1.xpose.msra.mxu0 0.0
    %4475 = vmatprep.subr.mxu0 0.0
    %4476 = vmatpush1.xpose.msra.mxu0 0.0
    %4477 = vmatprep.subr.mxu0 0.0
    %4478 = vmatpush1.xpose.msra.mxu0 0.0
    %4479 = vmatprep.subr.mxu0 0.0
    %4480 = vmatpush1.xpose.msra.mxu0 0.0
    %4481 = vmatprep.subr.mxu0 0.0
    %4482 = vmatpush1.xpose.msra.mxu0 0.0
    %4483 = vmatprep.subr.mxu0 0.0
    %4484 = vmatpush1.xpose.msra.mxu0 0.0
    %4485 = vmatprep.subr.mxu0 0.0
    %4486 = vmatpush1.xpose.msra.mxu0 0.0
    %4487 = vmatprep.mubr.f32.mxu0 0.0
    %4488 = vmatmul.mubr.f32.gmra.mrb[0].mxu0 %v4415
    %v4489 = vpop.f32.mrb[0].mxu0
    %v4490 = vadd.f32 0.0, %v4489
    %v4491 = vpop.f32.mrb[0].mxu0
    %4492 = vmatprep.mubr.f32.mxu0 0.0
    %4493 = vmatmul.mubr.f32.gmra.mrb[0].mxu0 %v4417
    %v4494 = vpop.f32.mrb[0].mxu0
    %v4495 = vadd.f32 0.0, %v4494
    %v4496 = vpop.f32.mrb[0].mxu0
    %4497 = vdwg.mxu0
    %v4498 = vmul.f32 %v4490, 0.35355338
    %v4499 = vmul.f32 %v4495, 0.35355338
    %v4500 = vmul.f32 %v4498, 1.442695
    %v4501 = vpow.pop %v4500
    %v4502 = vmul.f32 %v4499, 1.442695
    %v4503 = vpow.pop %v4502
    %v4504 = vmul.f32 %v4501, %v35
    %v4505 = vmul.f32 %v4503, %v36
    %v4506 = vsel %vm44, %v4504, 0.0
    %4507 = vadd.xlane.f32.xlu0 %v4506
    %v4508 = vpop.xlane.xlu0 %4507
    %v4509 = vsel %vm44, %v4505, 0.0
    %4510 = vadd.xlane.f32.xlu0 %v4509
    %v4511 = vpop.xlane.xlu0 %4510
    %4512 = vrot.lane.b32.xlu0 %v4009, 112
    %v4513 = vpop.permute.xlu0 %4512
    %4514 = vrot.lane.b32.xlu0 %v4011, 112
    %v4515 = vpop.permute.xlu0 %4514
    %v4519 = vsel %vm44, %v4504, 0
    %v4522 = vsel %vm44, %v4505, 0
    %4524 = vmatprep.subr.mxu0 0.0
    %4525 = vmatpush1.msra.mxu0 %v4513
    %4526 = vmatprep.subr.mxu0 0.0
    %4527 = vmatpush1.msra.mxu0 %v4515
    %4528 = vmatprep.subr.mxu0 0.0
    %4529 = vmatpush1.msra.mxu0 0.0
    %4530 = vmatprep.subr.mxu0 0.0
    %4531 = vmatpush1.msra.mxu0 0.0
    %4532 = vmatprep.subr.mxu0 0.0
    %4533 = vmatpush1.msra.mxu0 0.0
    %4534 = vmatprep.subr.mxu0 0.0
    %4535 = vmatpush1.msra.mxu0 0.0
    %4536 = vmatprep.subr.mxu0 0.0
    %4537 = vmatpush1.msra.mxu0 0.0
    %4538 = vmatprep.subr.mxu0 0.0
    %4539 = vmatpush1.msra.mxu0 0.0
    %4540 = vmatprep.subr.mxu0 0.0
    %4541 = vmatpush1.msra.mxu0 0.0
    %4542 = vmatprep.subr.mxu0 0.0
    %4543 = vmatpush1.msra.mxu0 0.0
    %4544 = vmatprep.subr.mxu0 0.0
    %4545 = vmatpush1.msra.mxu0 0.0
    %4546 = vmatprep.subr.mxu0 0.0
    %4547 = vmatpush1.msra.mxu0 0.0
    %4548 = vmatprep.subr.mxu0 0.0
    %4549 = vmatpush1.msra.mxu0 0.0
    %4550 = vmatprep.subr.mxu0 0.0
    %4551 = vmatpush1.msra.mxu0 0.0
    %4552 = vmatprep.subr.mxu0 0.0
    %4553 = vmatpush1.msra.mxu0 0.0
    %4554 = vmatprep.subr.mxu0 0.0
    %4555 = vmatpush1.msra.mxu0 0.0
    %4556 = vmatprep.subr.mxu0 0.0
    %4557 = vmatpush1.msra.mxu0 0.0
    %4558 = vmatprep.subr.mxu0 0.0
    %4559 = vmatpush1.msra.mxu0 0.0
    %4560 = vmatprep.subr.mxu0 0.0
    %4561 = vmatpush1.msra.mxu0 0.0
    %4562 = vmatprep.subr.mxu0 0.0
    %4563 = vmatpush1.msra.mxu0 0.0
    %4564 = vmatprep.subr.mxu0 0.0
    %4565 = vmatpush1.msra.mxu0 0.0
    %4566 = vmatprep.subr.mxu0 0.0
    %4567 = vmatpush1.msra.mxu0 0.0
    %4568 = vmatprep.subr.mxu0 0.0
    %4569 = vmatpush1.msra.mxu0 0.0
    %4570 = vmatprep.subr.mxu0 0.0
    %4571 = vmatpush1.msra.mxu0 0.0
    %4572 = vmatprep.subr.mxu0 0.0
    %4573 = vmatpush1.msra.mxu0 0.0
    %4574 = vmatprep.subr.mxu0 0.0
    %4575 = vmatpush1.msra.mxu0 0.0
    %4576 = vmatprep.subr.mxu0 0.0
    %4577 = vmatpush1.msra.mxu0 0.0
    %4578 = vmatprep.subr.mxu0 0.0
    %4579 = vmatpush1.msra.mxu0 0.0
    %4580 = vmatprep.subr.mxu0 0.0
    %4581 = vmatpush1.msra.mxu0 0.0
    %4582 = vmatprep.subr.mxu0 0.0
    %4583 = vmatpush1.msra.mxu0 0.0
    %4584 = vmatprep.subr.mxu0 0.0
    %4585 = vmatpush1.msra.mxu0 0.0
    %4586 = vmatprep.subr.mxu0 0.0
    %4587 = vmatpush1.msra.mxu0 0.0
    %4588 = vmatprep.mubr.f32.mxu0 0.0
    %4589 = vmatmul.mubr.f32.gmra.mrb[0].mxu0 %v4519
    %v4590 = vpop.f32.mrb[0].mxu0
    %v4591 = vadd.f32 0.0, %v4590
    %v4592 = vpop.f32.mrb[0].mxu0
    %4593 = vmatprep.mubr.f32.mxu0 0.0
    %4594 = vmatmul.mubr.f32.gmra.mrb[0].mxu0 %v4522
    %v4595 = vpop.f32.mrb[0].mxu0
    %v4596 = vadd.f32 0.0, %v4595
    %v4597 = vpop.f32.mrb[0].mxu0
    %4598 = vdwg.mxu0
    %v4599 = vrcp.pop %v4508
    %v4600 = vmul.f32 %v4591, %v4599
    %v4601 = vrcp.pop %v4511
    %v4602 = vmul.f32 %v4596, %v4601
    %4603 = vrot.lane.b32.xlu0 %v4008, 104
    %v4604 = vpop.permute.xlu0 %4603
    %4605 = vrot.lane.b32.xlu0 %v4010, 104
    %v4606 = vpop.permute.xlu0 %4605
    %4607 = vrot.lane.b32.xlu0 %v4008, 40
    %v4608 = vpop.permute.xlu0 %4607
    %4609 = vrot.lane.b32.xlu0 %v4010, 40
    %v4610 = vpop.permute.xlu0 %4609
    %v4611 = vsel %vm1972, %v4604, 0
    %v4613 = vsel %vm1972, %v4606, 0
    %v4615 = vsel %vm1972, %v4608, 0
    %v4617 = vsel %vm1972, %v4610, 0
    %4619 = vmatprep.subr.mxu0 0.0
    %4620 = vmatpush1.xpose.msra.mxu0 %v4615
    %4621 = vmatprep.subr.mxu0 0.0
    %4622 = vmatpush1.xpose.msra.mxu0 %v4617
    %4623 = vmatprep.subr.mxu0 0.0
    %4624 = vmatpush1.xpose.msra.mxu0 0.0
    %4625 = vmatprep.subr.mxu0 0.0
    %4626 = vmatpush1.xpose.msra.mxu0 0.0
    %4627 = vmatprep.subr.mxu0 0.0
    %4628 = vmatpush1.xpose.msra.mxu0 0.0
    %4629 = vmatprep.subr.mxu0 0.0
    %4630 = vmatpush1.xpose.msra.mxu0 0.0
    %4631 = vmatprep.subr.mxu0 0.0
    %4632 = vmatpush1.xpose.msra.mxu0 0.0
    %4633 = vmatprep.subr.mxu0 0.0
    %4634 = vmatpush1.xpose.msra.mxu0 0.0
    %4635 = vmatprep.subr.mxu0 0.0
    %4636 = vmatpush1.xpose.msra.mxu0 0.0
    %4637 = vmatprep.subr.mxu0 0.0
    %4638 = vmatpush1.xpose.msra.mxu0 0.0
    %4639 = vmatprep.subr.mxu0 0.0
    %4640 = vmatpush1.xpose.msra.mxu0 0.0
    %4641 = vmatprep.subr.mxu0 0.0
    %4642 = vmatpush1.xpose.msra.mxu0 0.0
    %4643 = vmatprep.subr.mxu0 0.0
    %4644 = vmatpush1.xpose.msra.mxu0 0.0
    %4645 = vmatprep.subr.mxu0 0.0
    %4646 = vmatpush1.xpose.msra.mxu0 0.0
    %4647 = vmatprep.subr.mxu0 0.0
    %4648 = vmatpush1.xpose.msra.mxu0 0.0
    %4649 = vmatprep.subr.mxu0 0.0
    %4650 = vmatpush1.xpose.msra.mxu0 0.0
    %4651 = vmatprep.subr.mxu0 0.0
    %4652 = vmatpush1.xpose.msra.mxu0 0.0
    %4653 = vmatprep.subr.mxu0 0.0
    %4654 = vmatpush1.xpose.msra.mxu0 0.0
    %4655 = vmatprep.subr.mxu0 0.0
    %4656 = vmatpush1.xpose.msra.mxu0 0.0
    %4657 = vmatprep.subr.mxu0 0.0
    %4658 = vmatpush1.xpose.msra.mxu0 0.0
    %4659 = vmatprep.subr.mxu0 0.0
    %4660 = vmatpush1.xpose.msra.mxu0 0.0
    %4661 = vmatprep.subr.mxu0 0.0
    %4662 = vmatpush1.xpose.msra.mxu0 0.0
    %4663 = vmatprep.subr.mxu0 0.0
    %4664 = vmatpush1.xpose.msra.mxu0 0.0
    %4665 = vmatprep.subr.mxu0 0.0
    %4666 = vmatpush1.xpose.msra.mxu0 0.0
    %4667 = vmatprep.subr.mxu0 0.0
    %4668 = vmatpush1.xpose.msra.mxu0 0.0
    %4669 = vmatprep.subr.mxu0 0.0
    %4670 = vmatpush1.xpose.msra.mxu0 0.0
    %4671 = vmatprep.subr.mxu0 0.0
    %4672 = vmatpush1.xpose.msra.mxu0 0.0
    %4673 = vmatprep.subr.mxu0 0.0
    %4674 = vmatpush1.xpose.msra.mxu0 0.0
    %4675 = vmatprep.subr.mxu0 0.0
    %4676 = vmatpush1.xpose.msra.mxu0 0.0
    %4677 = vmatprep.subr.mxu0 0.0
    %4678 = vmatpush1.xpose.msra.mxu0 0.0
    %4679 = vmatprep.subr.mxu0 0.0
    %4680 = vmatpush1.xpose.msra.mxu0 0.0
    %4681 = vmatprep.subr.mxu0 0.0
    %4682 = vmatpush1.xpose.msra.mxu0 0.0
    %4683 = vmatprep.mubr.f32.mxu0 0.0
    %4684 = vmatmul.mubr.f32.gmra.mrb[0].mxu0 %v4611
    %v4685 = vpop.f32.mrb[0].mxu0
    %v4686 = vadd.f32 0.0, %v4685
    %v4687 = vpop.f32.mrb[0].mxu0
    %4688 = vmatprep.mubr.f32.mxu0 0.0
    %4689 = vmatmul.mubr.f32.gmra.mrb[0].mxu0 %v4613
    %v4690 = vpop.f32.mrb[0].mxu0
    %v4691 = vadd.f32 0.0, %v4690
    %v4692 = vpop.f32.mrb[0].mxu0
    %4693 = vdwg.mxu0
    %v4694 = vmul.f32 %v4686, 0.35355338
    %v4695 = vmul.f32 %v4691, 0.35355338
    %v4696 = vmul.f32 %v4694, 1.442695
    %v4697 = vpow.pop %v4696
    %v4698 = vmul.f32 %v4695, 1.442695
    %v4699 = vpow.pop %v4698
    %v4700 = vmul.f32 %v4697, %v35
    %v4701 = vmul.f32 %v4699, %v36
    %v4702 = vsel %vm44, %v4700, 0.0
    %4703 = vadd.xlane.f32.xlu0 %v4702
    %v4704 = vpop.xlane.xlu0 %4703
    %v4705 = vsel %vm44, %v4701, 0.0
    %4706 = vadd.xlane.f32.xlu0 %v4705
    %v4707 = vpop.xlane.xlu0 %4706
    %4708 = vrot.lane.b32.xlu0 %v4009, 104
    %v4709 = vpop.permute.xlu0 %4708
    %4710 = vrot.lane.b32.xlu0 %v4011, 104
    %v4711 = vpop.permute.xlu0 %4710
    %v4715 = vsel %vm44, %v4700, 0
    %v4718 = vsel %vm44, %v4701, 0
    %4720 = vmatprep.subr.mxu0 0.0
    %4721 = vmatpush1.msra.mxu0 %v4709
    %4722 = vmatprep.subr.mxu0 0.0
    %4723 = vmatpush1.msra.mxu0 %v4711
    %4724 = vmatprep.subr.mxu0 0.0
    %4725 = vmatpush1.msra.mxu0 0.0
    %4726 = vmatprep.subr.mxu0 0.0
    %4727 = vmatpush1.msra.mxu0 0.0
    %4728 = vmatprep.subr.mxu0 0.0
    %4729 = vmatpush1.msra.mxu0 0.0
    %4730 = vmatprep.subr.mxu0 0.0
    %4731 = vmatpush1.msra.mxu0 0.0
    %4732 = vmatprep.subr.mxu0 0.0
    %4733 = vmatpush1.msra.mxu0 0.0
    %4734 = vmatprep.subr.mxu0 0.0
    %4735 = vmatpush1.msra.mxu0 0.0
    %4736 = vmatprep.subr.mxu0 0.0
    %4737 = vmatpush1.msra.mxu0 0.0
    %4738 = vmatprep.subr.mxu0 0.0
    %4739 = vmatpush1.msra.mxu0 0.0
    %4740 = vmatprep.subr.mxu0 0.0
    %4741 = vmatpush1.msra.mxu0 0.0
    %4742 = vmatprep.subr.mxu0 0.0
    %4743 = vmatpush1.msra.mxu0 0.0
    %4744 = vmatprep.subr.mxu0 0.0
    %4745 = vmatpush1.msra.mxu0 0.0
    %4746 = vmatprep.subr.mxu0 0.0
    %4747 = vmatpush1.msra.mxu0 0.0
    %4748 = vmatprep.subr.mxu0 0.0
    %4749 = vmatpush1.msra.mxu0 0.0
    %4750 = vmatprep.subr.mxu0 0.0
    %4751 = vmatpush1.msra.mxu0 0.0
    %4752 = vmatprep.subr.mxu0 0.0
    %4753 = vmatpush1.msra.mxu0 0.0
    %4754 = vmatprep.subr.mxu0 0.0
    %4755 = vmatpush1.msra.mxu0 0.0
    %4756 = vmatprep.subr.mxu0 0.0
    %4757 = vmatpush1.msra.mxu0 0.0
    %4758 = vmatprep.subr.mxu0 0.0
    %4759 = vmatpush1.msra.mxu0 0.0
    %4760 = vmatprep.subr.mxu0 0.0
    %4761 = vmatpush1.msra.mxu0 0.0
    %4762 = vmatprep.subr.mxu0 0.0
    %4763 = vmatpush1.msra.mxu0 0.0
    %4764 = vmatprep.subr.mxu0 0.0
    %4765 = vmatpush1.msra.mxu0 0.0
    %4766 = vmatprep.subr.mxu0 0.0
    %4767 = vmatpush1.msra.mxu0 0.0
    %4768 = vmatprep.subr.mxu0 0.0
    %4769 = vmatpush1.msra.mxu0 0.0
    %4770 = vmatprep.subr.mxu0 0.0
    %4771 = vmatpush1.msra.mxu0 0.0
    %4772 = vmatprep.subr.mxu0 0.0
    %4773 = vmatpush1.msra.mxu0 0.0
    %4774 = vmatprep.subr.mxu0 0.0
    %4775 = vmatpush1.msra.mxu0 0.0
    %4776 = vmatprep.subr.mxu0 0.0
    %4777 = vmatpush1.msra.mxu0 0.0
    %4778 = vmatprep.subr.mxu0 0.0
    %4779 = vmatpush1.msra.mxu0 0.0
    %4780 = vmatprep.subr.mxu0 0.0
    %4781 = vmatpush1.msra.mxu0 0.0
    %4782 = vmatprep.subr.mxu0 0.0
    %4783 = vmatpush1.msra.mxu0 0.0
    %4784 = vmatprep.mubr.f32.mxu0 0.0
    %4785 = vmatmul.mubr.f32.gmra.mrb[0].mxu0 %v4715
    %v4786 = vpop.f32.mrb[0].mxu0
    %v4787 = vadd.f32 0.0, %v4786
    %v4788 = vpop.f32.mrb[0].mxu0
    %4789 = vmatprep.mubr.f32.mxu0 0.0
    %4790 = vmatmul.mubr.f32.gmra.mrb[0].mxu0 %v4718
    %v4791 = vpop.f32.mrb[0].mxu0
    %v4792 = vadd.f32 0.0, %v4791
    %v4793 = vpop.f32.mrb[0].mxu0
    %4794 = vdwg.mxu0
    %v4795 = vrcp.pop %v4704
    %v4796 = vmul.f32 %v4787, %v4795
    %v4797 = vrcp.pop %v4707
    %v4798 = vmul.f32 %v4792, %v4797
    %4799 = vrot.lane.b32.xlu0 %v4008, 96
    %v4800 = vpop.permute.xlu0 %4799
    %4801 = vrot.lane.b32.xlu0 %v4010, 96
    %v4802 = vpop.permute.xlu0 %4801
    %4803 = vrot.lane.b32.xlu0 %v4008, 32
    %v4804 = vpop.permute.xlu0 %4803
    %4805 = vrot.lane.b32.xlu0 %v4010, 32
    %v4806 = vpop.permute.xlu0 %4805
    %v4807 = vsel %vm1972, %v4800, 0
    %v4809 = vsel %vm1972, %v4802, 0
    %v4811 = vsel %vm1972, %v4804, 0
    %v4813 = vsel %vm1972, %v4806, 0
    %4815 = vmatprep.subr.mxu0 0.0
    %4816 = vmatpush1.xpose.msra.mxu0 %v4811
    %4817 = vmatprep.subr.mxu0 0.0
    %4818 = vmatpush1.xpose.msra.mxu0 %v4813
    %4819 = vmatprep.subr.mxu0 0.0
    %4820 = vmatpush1.xpose.msra.mxu0 0.0
    %4821 = vmatprep.subr.mxu0 0.0
    %4822 = vmatpush1.xpose.msra.mxu0 0.0
    %4823 = vmatprep.subr.mxu0 0.0
    %4824 = vmatpush1.xpose.msra.mxu0 0.0
    %4825 = vmatprep.subr.mxu0 0.0
    %4826 = vmatpush1.xpose.msra.mxu0 0.0
    %4827 = vmatprep.subr.mxu0 0.0
    %4828 = vmatpush1.xpose.msra.mxu0 0.0
    %4829 = vmatprep.subr.mxu0 0.0
    %4830 = vmatpush1.xpose.msra.mxu0 0.0
    %4831 = vmatprep.subr.mxu0 0.0
    %4832 = vmatpush1.xpose.msra.mxu0 0.0
    %4833 = vmatprep.subr.mxu0 0.0
    %4834 = vmatpush1.xpose.msra.mxu0 0.0
    %4835 = vmatprep.subr.mxu0 0.0
    %4836 = vmatpush1.xpose.msra.mxu0 0.0
    %4837 = vmatprep.subr.mxu0 0.0
    %4838 = vmatpush1.xpose.msra.mxu0 0.0
    %4839 = vmatprep.subr.mxu0 0.0
    %4840 = vmatpush1.xpose.msra.mxu0 0.0
    %4841 = vmatprep.subr.mxu0 0.0
    %4842 = vmatpush1.xpose.msra.mxu0 0.0
    %4843 = vmatprep.subr.mxu0 0.0
    %4844 = vmatpush1.xpose.msra.mxu0 0.0
    %4845 = vmatprep.subr.mxu0 0.0
    %4846 = vmatpush1.xpose.msra.mxu0 0.0
    %4847 = vmatprep.subr.mxu0 0.0
    %4848 = vmatpush1.xpose.msra.mxu0 0.0
    %4849 = vmatprep.subr.mxu0 0.0
    %4850 = vmatpush1.xpose.msra.mxu0 0.0
    %4851 = vmatprep.subr.mxu0 0.0
    %4852 = vmatpush1.xpose.msra.mxu0 0.0
    %4853 = vmatprep.subr.mxu0 0.0
    %4854 = vmatpush1.xpose.msra.mxu0 0.0
    %4855 = vmatprep.subr.mxu0 0.0
    %4856 = vmatpush1.xpose.msra.mxu0 0.0
    %4857 = vmatprep.subr.mxu0 0.0
    %4858 = vmatpush1.xpose.msra.mxu0 0.0
    %4859 = vmatprep.subr.mxu0 0.0
    %4860 = vmatpush1.xpose.msra.mxu0 0.0
    %4861 = vmatprep.subr.mxu0 0.0
    %4862 = vmatpush1.xpose.msra.mxu0 0.0
    %4863 = vmatprep.subr.mxu0 0.0
    %4864 = vmatpush1.xpose.msra.mxu0 0.0
    %4865 = vmatprep.subr.mxu0 0.0
    %4866 = vmatpush1.xpose.msra.mxu0 0.0
    %4867 = vmatprep.subr.mxu0 0.0
    %4868 = vmatpush1.xpose.msra.mxu0 0.0
    %4869 = vmatprep.subr.mxu0 0.0
    %4870 = vmatpush1.xpose.msra.mxu0 0.0
    %4871 = vmatprep.subr.mxu0 0.0
    %4872 = vmatpush1.xpose.msra.mxu0 0.0
    %4873 = vmatprep.subr.mxu0 0.0
    %4874 = vmatpush1.xpose.msra.mxu0 0.0
    %4875 = vmatprep.subr.mxu0 0.0
    %4876 = vmatpush1.xpose.msra.mxu0 0.0
    %4877 = vmatprep.subr.mxu0 0.0
    %4878 = vmatpush1.xpose.msra.mxu0 0.0
    %4879 = vmatprep.mubr.f32.mxu0 0.0
    %4880 = vmatmul.mubr.f32.gmra.mrb[0].mxu0 %v4807
    %v4881 = vpop.f32.mrb[0].mxu0
    %v4882 = vadd.f32 0.0, %v4881
    %v4883 = vpop.f32.mrb[0].mxu0
    %4884 = vmatprep.mubr.f32.mxu0 0.0
    %4885 = vmatmul.mubr.f32.gmra.mrb[0].mxu0 %v4809
    %v4886 = vpop.f32.mrb[0].mxu0
    %v4887 = vadd.f32 0.0, %v4886
    %v4888 = vpop.f32.mrb[0].mxu0
    %4889 = vdwg.mxu0
    %v4890 = vmul.f32 %v4882, 0.35355338
    %v4891 = vmul.f32 %v4887, 0.35355338
    %v4892 = vmul.f32 %v4890, 1.442695
    %v4893 = vpow.pop %v4892
    %v4894 = vmul.f32 %v4891, 1.442695
    %v4895 = vpow.pop %v4894
    %v4896 = vmul.f32 %v4893, %v35
    %v4897 = vmul.f32 %v4895, %v36
    %v4898 = vsel %vm44, %v4896, 0.0
    %4899 = vadd.xlane.f32.xlu0 %v4898
    %v4900 = vpop.xlane.xlu0 %4899
    %v4901 = vsel %vm44, %v4897, 0.0
    %4902 = vadd.xlane.f32.xlu0 %v4901
    %v4903 = vpop.xlane.xlu0 %4902
    %4904 = vrot.lane.b32.xlu0 %v4009, 96
    %v4905 = vpop.permute.xlu0 %4904
    %4906 = vrot.lane.b32.xlu0 %v4011, 96
    %v4907 = vpop.permute.xlu0 %4906
    %v4911 = vsel %vm44, %v4896, 0
    %v4914 = vsel %vm44, %v4897, 0
    %4916 = vmatprep.subr.mxu0 0.0
    %4917 = vmatpush1.msra.mxu0 %v4905
    %4918 = vmatprep.subr.mxu0 0.0
    %4919 = vmatpush1.msra.mxu0 %v4907
    %4920 = vmatprep.subr.mxu0 0.0
    %4921 = vmatpush1.msra.mxu0 0.0
    %4922 = vmatprep.subr.mxu0 0.0
    %4923 = vmatpush1.msra.mxu0 0.0
    %4924 = vmatprep.subr.mxu0 0.0
    %4925 = vmatpush1.msra.mxu0 0.0
    %4926 = vmatprep.subr.mxu0 0.0
    %4927 = vmatpush1.msra.mxu0 0.0
    %4928 = vmatprep.subr.mxu0 0.0
    %4929 = vmatpush1.msra.mxu0 0.0
    %4930 = vmatprep.subr.mxu0 0.0
    %4931 = vmatpush1.msra.mxu0 0.0
    %4932 = vmatprep.subr.mxu0 0.0
    %4933 = vmatpush1.msra.mxu0 0.0
    %4934 = vmatprep.subr.mxu0 0.0
    %4935 = vmatpush1.msra.mxu0 0.0
    %4936 = vmatprep.subr.mxu0 0.0
    %4937 = vmatpush1.msra.mxu0 0.0
    %4938 = vmatprep.subr.mxu0 0.0
    %4939 = vmatpush1.msra.mxu0 0.0
    %4940 = vmatprep.subr.mxu0 0.0
    %4941 = vmatpush1.msra.mxu0 0.0
    %4942 = vmatprep.subr.mxu0 0.0
    %4943 = vmatpush1.msra.mxu0 0.0
    %4944 = vmatprep.subr.mxu0 0.0
    %4945 = vmatpush1.msra.mxu0 0.0
    %4946 = vmatprep.subr.mxu0 0.0
    %4947 = vmatpush1.msra.mxu0 0.0
    %4948 = vmatprep.subr.mxu0 0.0
    %4949 = vmatpush1.msra.mxu0 0.0
    %4950 = vmatprep.subr.mxu0 0.0
    %4951 = vmatpush1.msra.mxu0 0.0
    %4952 = vmatprep.subr.mxu0 0.0
    %4953 = vmatpush1.msra.mxu0 0.0
    %4954 = vmatprep.subr.mxu0 0.0
    %4955 = vmatpush1.msra.mxu0 0.0
    %4956 = vmatprep.subr.mxu0 0.0
    %4957 = vmatpush1.msra.mxu0 0.0
    %4958 = vmatprep.subr.mxu0 0.0
    %4959 = vmatpush1.msra.mxu0 0.0
    %4960 = vmatprep.subr.mxu0 0.0
    %4961 = vmatpush1.msra.mxu0 0.0
    %4962 = vmatprep.subr.mxu0 0.0
    %4963 = vmatpush1.msra.mxu0 0.0
    %4964 = vmatprep.subr.mxu0 0.0
    %4965 = vmatpush1.msra.mxu0 0.0
    %4966 = vmatprep.subr.mxu0 0.0
    %4967 = vmatpush1.msra.mxu0 0.0
    %4968 = vmatprep.subr.mxu0 0.0
    %4969 = vmatpush1.msra.mxu0 0.0
    %4970 = vmatprep.subr.mxu0 0.0
    %4971 = vmatpush1.msra.mxu0 0.0
    %4972 = vmatprep.subr.mxu0 0.0
    %4973 = vmatpush1.msra.mxu0 0.0
    %4974 = vmatprep.subr.mxu0 0.0
    %4975 = vmatpush1.msra.mxu0 0.0
    %4976 = vmatprep.subr.mxu0 0.0
    %4977 = vmatpush1.msra.mxu0 0.0
    %4978 = vmatprep.subr.mxu0 0.0
    %4979 = vmatpush1.msra.mxu0 0.0
    %4980 = vmatprep.mubr.f32.mxu0 0.0
    %4981 = vmatmul.mubr.f32.gmra.mrb[0].mxu0 %v4911
    %v4982 = vpop.f32.mrb[0].mxu0
    %v4983 = vadd.f32 0.0, %v4982
    %v4984 = vpop.f32.mrb[0].mxu0
    %4985 = vmatprep.mubr.f32.mxu0 0.0
    %4986 = vmatmul.mubr.f32.gmra.mrb[0].mxu0 %v4914
    %v4987 = vpop.f32.mrb[0].mxu0
    %v4988 = vadd.f32 0.0, %v4987
    %v4989 = vpop.f32.mrb[0].mxu0
    %4990 = vdwg.mxu0
    %v4991 = vrcp.pop %v4900
    %v4992 = vmul.f32 %v4983, %v4991
    %v4993 = vrcp.pop %v4903
    %v4994 = vmul.f32 %v4988, %v4993
    %4995 = vrot.lane.b32.xlu0 %v4008, 88
    %v4996 = vpop.permute.xlu0 %4995
    %4997 = vrot.lane.b32.xlu0 %v4010, 88
    %v4998 = vpop.permute.xlu0 %4997
    %4999 = vrot.lane.b32.xlu0 %v4008, 24
    %v5000 = vpop.permute.xlu0 %4999
    %5001 = vrot.lane.b32.xlu0 %v4010, 24
    %v5002 = vpop.permute.xlu0 %5001
    %v5003 = vsel %vm1972, %v4996, 0
    %v5005 = vsel %vm1972, %v4998, 0
    %v5007 = vsel %vm1972, %v5000, 0
    %v5009 = vsel %vm1972, %v5002, 0
    %5011 = vmatprep.subr.mxu0 0.0
    %5012 = vmatpush1.xpose.msra.mxu0 %v5007
    %5013 = vmatprep.subr.mxu0 0.0
    %5014 = vmatpush1.xpose.msra.mxu0 %v5009
    %5015 = vmatprep.subr.mxu0 0.0
    %5016 = vmatpush1.xpose.msra.mxu0 0.0
    %5017 = vmatprep.subr.mxu0 0.0
    %5018 = vmatpush1.xpose.msra.mxu0 0.0
    %5019 = vmatprep.subr.mxu0 0.0
    %5020 = vmatpush1.xpose.msra.mxu0 0.0
    %5021 = vmatprep.subr.mxu0 0.0
    %5022 = vmatpush1.xpose.msra.mxu0 0.0
    %5023 = vmatprep.subr.mxu0 0.0
    %5024 = vmatpush1.xpose.msra.mxu0 0.0
    %5025 = vmatprep.subr.mxu0 0.0
    %5026 = vmatpush1.xpose.msra.mxu0 0.0
    %5027 = vmatprep.subr.mxu0 0.0
    %5028 = vmatpush1.xpose.msra.mxu0 0.0
    %5029 = vmatprep.subr.mxu0 0.0
    %5030 = vmatpush1.xpose.msra.mxu0 0.0
    %5031 = vmatprep.subr.mxu0 0.0
    %5032 = vmatpush1.xpose.msra.mxu0 0.0
    %5033 = vmatprep.subr.mxu0 0.0
    %5034 = vmatpush1.xpose.msra.mxu0 0.0
    %5035 = vmatprep.subr.mxu0 0.0
    %5036 = vmatpush1.xpose.msra.mxu0 0.0
    %5037 = vmatprep.subr.mxu0 0.0
    %5038 = vmatpush1.xpose.msra.mxu0 0.0
    %5039 = vmatprep.subr.mxu0 0.0
    %5040 = vmatpush1.xpose.msra.mxu0 0.0
    %5041 = vmatprep.subr.mxu0 0.0
    %5042 = vmatpush1.xpose.msra.mxu0 0.0
    %5043 = vmatprep.subr.mxu0 0.0
    %5044 = vmatpush1.xpose.msra.mxu0 0.0
    %5045 = vmatprep.subr.mxu0 0.0
    %5046 = vmatpush1.xpose.msra.mxu0 0.0
    %5047 = vmatprep.subr.mxu0 0.0
    %5048 = vmatpush1.xpose.msra.mxu0 0.0
    %5049 = vmatprep.subr.mxu0 0.0
    %5050 = vmatpush1.xpose.msra.mxu0 0.0
    %5051 = vmatprep.subr.mxu0 0.0
    %5052 = vmatpush1.xpose.msra.mxu0 0.0
    %5053 = vmatprep.subr.mxu0 0.0
    %5054 = vmatpush1.xpose.msra.mxu0 0.0
    %5055 = vmatprep.subr.mxu0 0.0
    %5056 = vmatpush1.xpose.msra.mxu0 0.0
    %5057 = vmatprep.subr.mxu0 0.0
    %5058 = vmatpush1.xpose.msra.mxu0 0.0
    %5059 = vmatprep.subr.mxu0 0.0
    %5060 = vmatpush1.xpose.msra.mxu0 0.0
    %5061 = vmatprep.subr.mxu0 0.0
    %5062 = vmatpush1.xpose.msra.mxu0 0.0
    %5063 = vmatprep.subr.mxu0 0.0
    %5064 = vmatpush1.xpose.msra.mxu0 0.0
    %5065 = vmatprep.subr.mxu0 0.0
    %5066 = vmatpush1.xpose.msra.mxu0 0.0
    %5067 = vmatprep.subr.mxu0 0.0
    %5068 = vmatpush1.xpose.msra.mxu0 0.0
    %5069 = vmatprep.subr.mxu0 0.0
    %5070 = vmatpush1.xpose.msra.mxu0 0.0
    %5071 = vmatprep.subr.mxu0 0.0
    %5072 = vmatpush1.xpose.msra.mxu0 0.0
    %5073 = vmatprep.subr.mxu0 0.0
    %5074 = vmatpush1.xpose.msra.mxu0 0.0
    %5075 = vmatprep.mubr.f32.mxu0 0.0
    %5076 = vmatmul.mubr.f32.gmra.mrb[0].mxu0 %v5003
    %v5077 = vpop.f32.mrb[0].mxu0
    %v5078 = vadd.f32 0.0, %v5077
    %v5079 = vpop.f32.mrb[0].mxu0
    %5080 = vmatprep.mubr.f32.mxu0 0.0
    %5081 = vmatmul.mubr.f32.gmra.mrb[0].mxu0 %v5005
    %v5082 = vpop.f32.mrb[0].mxu0
    %v5083 = vadd.f32 0.0, %v5082
    %v5084 = vpop.f32.mrb[0].mxu0
    %5085 = vdwg.mxu0
    %v5086 = vmul.f32 %v5078, 0.35355338
    %v5087 = vmul.f32 %v5083, 0.35355338
    %v5088 = vmul.f32 %v5086, 1.442695
    %v5089 = vpow.pop %v5088
    %v5090 = vmul.f32 %v5087, 1.442695
    %v5091 = vpow.pop %v5090
    %v5092 = vmul.f32 %v5089, %v35
    %v5093 = vmul.f32 %v5091, %v36
    %v5094 = vsel %vm44, %v5092, 0.0
    %5095 = vadd.xlane.f32.xlu0 %v5094
    %v5096 = vpop.xlane.xlu0 %5095
    %v5097 = vsel %vm44, %v5093, 0.0
    %5098 = vadd.xlane.f32.xlu0 %v5097
    %v5099 = vpop.xlane.xlu0 %5098
    %5100 = vrot.lane.b32.xlu0 %v4009, 88
    %v5101 = vpop.permute.xlu0 %5100
    %5102 = vrot.lane.b32.xlu0 %v4011, 88
    %v5103 = vpop.permute.xlu0 %5102
    %v5107 = vsel %vm44, %v5092, 0
    %v5110 = vsel %vm44, %v5093, 0
    %5112 = vmatprep.subr.mxu0 0.0
    %5113 = vmatpush1.msra.mxu0 %v5101
    %5114 = vmatprep.subr.mxu0 0.0
    %5115 = vmatpush1.msra.mxu0 %v5103
    %5116 = vmatprep.subr.mxu0 0.0
    %5117 = vmatpush1.msra.mxu0 0.0
    %5118 = vmatprep.subr.mxu0 0.0
    %5119 = vmatpush1.msra.mxu0 0.0
    %5120 = vmatprep.subr.mxu0 0.0
    %5121 = vmatpush1.msra.mxu0 0.0
    %5122 = vmatprep.subr.mxu0 0.0
    %5123 = vmatpush1.msra.mxu0 0.0
    %5124 = vmatprep.subr.mxu0 0.0
    %5125 = vmatpush1.msra.mxu0 0.0
    %5126 = vmatprep.subr.mxu0 0.0
    %5127 = vmatpush1.msra.mxu0 0.0
    %5128 = vmatprep.subr.mxu0 0.0
    %5129 = vmatpush1.msra.mxu0 0.0
    %5130 = vmatprep.subr.mxu0 0.0
    %5131 = vmatpush1.msra.mxu0 0.0
    %5132 = vmatprep.subr.mxu0 0.0
    %5133 = vmatpush1.msra.mxu0 0.0
    %5134 = vmatprep.subr.mxu0 0.0
    %5135 = vmatpush1.msra.mxu0 0.0
    %5136 = vmatprep.subr.mxu0 0.0
    %5137 = vmatpush1.msra.mxu0 0.0
    %5138 = vmatprep.subr.mxu0 0.0
    %5139 = vmatpush1.msra.mxu0 0.0
    %5140 = vmatprep.subr.mxu0 0.0
    %5141 = vmatpush1.msra.mxu0 0.0
    %5142 = vmatprep.subr.mxu0 0.0
    %5143 = vmatpush1.msra.mxu0 0.0
    %5144 = vmatprep.subr.mxu0 0.0
    %5145 = vmatpush1.msra.mxu0 0.0
    %5146 = vmatprep.subr.mxu0 0.0
    %5147 = vmatpush1.msra.mxu0 0.0
    %5148 = vmatprep.subr.mxu0 0.0
    %5149 = vmatpush1.msra.mxu0 0.0
    %5150 = vmatprep.subr.mxu0 0.0
    %5151 = vmatpush1.msra.mxu0 0.0
    %5152 = vmatprep.subr.mxu0 0.0
    %5153 = vmatpush1.msra.mxu0 0.0
    %5154 = vmatprep.subr.mxu0 0.0
    %5155 = vmatpush1.msra.mxu0 0.0
    %5156 = vmatprep.subr.mxu0 0.0
    %5157 = vmatpush1.msra.mxu0 0.0
    %5158 = vmatprep.subr.mxu0 0.0
    %5159 = vmatpush1.msra.mxu0 0.0
    %5160 = vmatprep.subr.mxu0 0.0
    %5161 = vmatpush1.msra.mxu0 0.0
    %5162 = vmatprep.subr.mxu0 0.0
    %5163 = vmatpush1.msra.mxu0 0.0
    %5164 = vmatprep.subr.mxu0 0.0
    %5165 = vmatpush1.msra.mxu0 0.0
    %5166 = vmatprep.subr.mxu0 0.0
    %5167 = vmatpush1.msra.mxu0 0.0
    %5168 = vmatprep.subr.mxu0 0.0
    %5169 = vmatpush1.msra.mxu0 0.0
    %5170 = vmatprep.subr.mxu0 0.0
    %5171 = vmatpush1.msra.mxu0 0.0
    %5172 = vmatprep.subr.mxu0 0.0
    %5173 = vmatpush1.msra.mxu0 0.0
    %5174 = vmatprep.subr.mxu0 0.0
    %5175 = vmatpush1.msra.mxu0 0.0
    %5176 = vmatprep.mubr.f32.mxu0 0.0
    %5177 = vmatmul.mubr.f32.gmra.mrb[0].mxu0 %v5107
    %v5178 = vpop.f32.mrb[0].mxu0
    %v5179 = vadd.f32 0.0, %v5178
    %v5180 = vpop.f32.mrb[0].mxu0
    %5181 = vmatprep.mubr.f32.mxu0 0.0
    %5182 = vmatmul.mubr.f32.gmra.mrb[0].mxu0 %v5110
    %v5183 = vpop.f32.mrb[0].mxu0
    %v5184 = vadd.f32 0.0, %v5183
    %v5185 = vpop.f32.mrb[0].mxu0
    %5186 = vdwg.mxu0
    %v5187 = vrcp.pop %v5096
    %v5188 = vmul.f32 %v5179, %v5187
    %v5189 = vrcp.pop %v5099
    %v5190 = vmul.f32 %v5184, %v5189
    %5191 = vrot.lane.b32.xlu0 %v4008, 80
    %v5192 = vpop.permute.xlu0 %5191
    %5193 = vrot.lane.b32.xlu0 %v4010, 80
    %v5194 = vpop.permute.xlu0 %5193
    %5195 = vrot.lane.b32.xlu0 %v4008, 16
    %v5196 = vpop.permute.xlu0 %5195
    %5197 = vrot.lane.b32.xlu0 %v4010, 16
    %v5198 = vpop.permute.xlu0 %5197
    %v5199 = vsel %vm1972, %v5192, 0
    %v5201 = vsel %vm1972, %v5194, 0
    %v5203 = vsel %vm1972, %v5196, 0
    %v5205 = vsel %vm1972, %v5198, 0
    %5207 = vmatprep.subr.mxu0 0.0
    %5208 = vmatpush1.xpose.msra.mxu0 %v5203
    %5209 = vmatprep.subr.mxu0 0.0
    %5210 = vmatpush1.xpose.msra.mxu0 %v5205
    %5211 = vmatprep.subr.mxu0 0.0
    %5212 = vmatpush1.xpose.msra.mxu0 0.0
    %5213 = vmatprep.subr.mxu0 0.0
    %5214 = vmatpush1.xpose.msra.mxu0 0.0
    %5215 = vmatprep.subr.mxu0 0.0
    %5216 = vmatpush1.xpose.msra.mxu0 0.0
    %5217 = vmatprep.subr.mxu0 0.0
    %5218 = vmatpush1.xpose.msra.mxu0 0.0
    %5219 = vmatprep.subr.mxu0 0.0
    %5220 = vmatpush1.xpose.msra.mxu0 0.0
    %5221 = vmatprep.subr.mxu0 0.0
    %5222 = vmatpush1.xpose.msra.mxu0 0.0
    %5223 = vmatprep.subr.mxu0 0.0
    %5224 = vmatpush1.xpose.msra.mxu0 0.0
    %5225 = vmatprep.subr.mxu0 0.0
    %5226 = vmatpush1.xpose.msra.mxu0 0.0
    %5227 = vmatprep.subr.mxu0 0.0
    %5228 = vmatpush1.xpose.msra.mxu0 0.0
    %5229 = vmatprep.subr.mxu0 0.0
    %5230 = vmatpush1.xpose.msra.mxu0 0.0
    %5231 = vmatprep.subr.mxu0 0.0
    %5232 = vmatpush1.xpose.msra.mxu0 0.0
    %5233 = vmatprep.subr.mxu0 0.0
    %5234 = vmatpush1.xpose.msra.mxu0 0.0
    %5235 = vmatprep.subr.mxu0 0.0
    %5236 = vmatpush1.xpose.msra.mxu0 0.0
    %5237 = vmatprep.subr.mxu0 0.0
    %5238 = vmatpush1.xpose.msra.mxu0 0.0
    %5239 = vmatprep.subr.mxu0 0.0
    %5240 = vmatpush1.xpose.msra.mxu0 0.0
    %5241 = vmatprep.subr.mxu0 0.0
    %5242 = vmatpush1.xpose.msra.mxu0 0.0
    %5243 = vmatprep.subr.mxu0 0.0
    %5244 = vmatpush1.xpose.msra.mxu0 0.0
    %5245 = vmatprep.subr.mxu0 0.0
    %5246 = vmatpush1.xpose.msra.mxu0 0.0
    %5247 = vmatprep.subr.mxu0 0.0
    %5248 = vmatpush1.xpose.msra.mxu0 0.0
    %5249 = vmatprep.subr.mxu0 0.0
    %5250 = vmatpush1.xpose.msra.mxu0 0.0
    %5251 = vmatprep.subr.mxu0 0.0
    %5252 = vmatpush1.xpose.msra.mxu0 0.0
    %5253 = vmatprep.subr.mxu0 0.0
    %5254 = vmatpush1.xpose.msra.mxu0 0.0
    %5255 = vmatprep.subr.mxu0 0.0
    %5256 = vmatpush1.xpose.msra.mxu0 0.0
    %5257 = vmatprep.subr.mxu0 0.0
    %5258 = vmatpush1.xpose.msra.mxu0 0.0
    %5259 = vmatprep.subr.mxu0 0.0
    %5260 = vmatpush1.xpose.msra.mxu0 0.0
    %5261 = vmatprep.subr.mxu0 0.0
    %5262 = vmatpush1.xpose.msra.mxu0 0.0
    %5263 = vmatprep.subr.mxu0 0.0
    %5264 = vmatpush1.xpose.msra.mxu0 0.0
    %5265 = vmatprep.subr.mxu0 0.0
    %5266 = vmatpush1.xpose.msra.mxu0 0.0
    %5267 = vmatprep.subr.mxu0 0.0
    %5268 = vmatpush1.xpose.msra.mxu0 0.0
    %5269 = vmatprep.subr.mxu0 0.0
    %5270 = vmatpush1.xpose.msra.mxu0 0.0
    %5271 = vmatprep.mubr.f32.mxu0 0.0
    %5272 = vmatmul.mubr.f32.gmra.mrb[0].mxu0 %v5199
    %v5273 = vpop.f32.mrb[0].mxu0
    %v5274 = vadd.f32 0.0, %v5273
    %v5275 = vpop.f32.mrb[0].mxu0
    %5276 = vmatprep.mubr.f32.mxu0 0.0
    %5277 = vmatmul.mubr.f32.gmra.mrb[0].mxu0 %v5201
    %v5278 = vpop.f32.mrb[0].mxu0
    %v5279 = vadd.f32 0.0, %v5278
    %v5280 = vpop.f32.mrb[0].mxu0
    %5281 = vdwg.mxu0
    %v5282 = vmul.f32 %v5274, 0.35355338
    %v5283 = vmul.f32 %v5279, 0.35355338
    %v5284 = vmul.f32 %v5282, 1.442695
    %v5285 = vpow.pop %v5284
    %v5286 = vmul.f32 %v5283, 1.442695
    %v5287 = vpow.pop %v5286
    %v5288 = vmul.f32 %v5285, %v35
    %v5289 = vmul.f32 %v5287, %v36
    %v5290 = vsel %vm44, %v5288, 0.0
    %5291 = vadd.xlane.f32.xlu0 %v5290
    %v5292 = vpop.xlane.xlu0 %5291
    %v5293 = vsel %vm44, %v5289, 0.0
    %5294 = vadd.xlane.f32.xlu0 %v5293
    %v5295 = vpop.xlane.xlu0 %5294
    %5296 = vrot.lane.b32.xlu0 %v4009, 80
    %v5297 = vpop.permute.xlu0 %5296
    %5298 = vrot.lane.b32.xlu0 %v4011, 80
    %v5299 = vpop.permute.xlu0 %5298
    %v5303 = vsel %vm44, %v5288, 0
    %v5306 = vsel %vm44, %v5289, 0
    %5308 = vmatprep.subr.mxu0 0.0
    %5309 = vmatpush1.msra.mxu0 %v5297
    %5310 = vmatprep.subr.mxu0 0.0
    %5311 = vmatpush1.msra.mxu0 %v5299
    %5312 = vmatprep.subr.mxu0 0.0
    %5313 = vmatpush1.msra.mxu0 0.0
    %5314 = vmatprep.subr.mxu0 0.0
    %5315 = vmatpush1.msra.mxu0 0.0
    %5316 = vmatprep.subr.mxu0 0.0
    %5317 = vmatpush1.msra.mxu0 0.0
    %5318 = vmatprep.subr.mxu0 0.0
    %5319 = vmatpush1.msra.mxu0 0.0
    %5320 = vmatprep.subr.mxu0 0.0
    %5321 = vmatpush1.msra.mxu0 0.0
    %5322 = vmatprep.subr.mxu0 0.0
    %5323 = vmatpush1.msra.mxu0 0.0
    %5324 = vmatprep.subr.mxu0 0.0
    %5325 = vmatpush1.msra.mxu0 0.0
    %5326 = vmatprep.subr.mxu0 0.0
    %5327 = vmatpush1.msra.mxu0 0.0
    %5328 = vmatprep.subr.mxu0 0.0
    %5329 = vmatpush1.msra.mxu0 0.0
    %5330 = vmatprep.subr.mxu0 0.0
    %5331 = vmatpush1.msra.mxu0 0.0
    %5332 = vmatprep.subr.mxu0 0.0
    %5333 = vmatpush1.msra.mxu0 0.0
    %5334 = vmatprep.subr.mxu0 0.0
    %5335 = vmatpush1.msra.mxu0 0.0
    %5336 = vmatprep.subr.mxu0 0.0
    %5337 = vmatpush1.msra.mxu0 0.0
    %5338 = vmatprep.subr.mxu0 0.0
    %5339 = vmatpush1.msra.mxu0 0.0
    %5340 = vmatprep.subr.mxu0 0.0
    %5341 = vmatpush1.msra.mxu0 0.0
    %5342 = vmatprep.subr.mxu0 0.0
    %5343 = vmatpush1.msra.mxu0 0.0
    %5344 = vmatprep.subr.mxu0 0.0
    %5345 = vmatpush1.msra.mxu0 0.0
    %5346 = vmatprep.subr.mxu0 0.0
    %5347 = vmatpush1.msra.mxu0 0.0
    %5348 = vmatprep.subr.mxu0 0.0
    %5349 = vmatpush1.msra.mxu0 0.0
    %5350 = vmatprep.subr.mxu0 0.0
    %5351 = vmatpush1.msra.mxu0 0.0
    %5352 = vmatprep.subr.mxu0 0.0
    %5353 = vmatpush1.msra.mxu0 0.0
    %5354 = vmatprep.subr.mxu0 0.0
    %5355 = vmatpush1.msra.mxu0 0.0
    %5356 = vmatprep.subr.mxu0 0.0
    %5357 = vmatpush1.msra.mxu0 0.0
    %5358 = vmatprep.subr.mxu0 0.0
    %5359 = vmatpush1.msra.mxu0 0.0
    %5360 = vmatprep.subr.mxu0 0.0
    %5361 = vmatpush1.msra.mxu0 0.0
    %5362 = vmatprep.subr.mxu0 0.0
    %5363 = vmatpush1.msra.mxu0 0.0
    %5364 = vmatprep.subr.mxu0 0.0
    %5365 = vmatpush1.msra.mxu0 0.0
    %5366 = vmatprep.subr.mxu0 0.0
    %5367 = vmatpush1.msra.mxu0 0.0
    %5368 = vmatprep.subr.mxu0 0.0
    %5369 = vmatpush1.msra.mxu0 0.0
    %5370 = vmatprep.subr.mxu0 0.0
    %5371 = vmatpush1.msra.mxu0 0.0
    %5372 = vmatprep.mubr.f32.mxu0 0.0
    %5373 = vmatmul.mubr.f32.gmra.mrb[0].mxu0 %v5303
    %v5374 = vpop.f32.mrb[0].mxu0
    %v5375 = vadd.f32 0.0, %v5374
    %v5376 = vpop.f32.mrb[0].mxu0
    %5377 = vmatprep.mubr.f32.mxu0 0.0
    %5378 = vmatmul.mubr.f32.gmra.mrb[0].mxu0 %v5306
    %v5379 = vpop.f32.mrb[0].mxu0
    %v5380 = vadd.f32 0.0, %v5379
    %v5381 = vpop.f32.mrb[0].mxu0
    %5382 = vdwg.mxu0
    %v5383 = vrcp.pop %v5292
    %v5384 = vmul.f32 %v5375, %v5383
    %v5385 = vrcp.pop %v5295
    %v5386 = vmul.f32 %v5380, %v5385
    %5387 = vrot.lane.b32.xlu0 %v4008, 72
    %v5388 = vpop.permute.xlu0 %5387
    %5389 = vrot.lane.b32.xlu0 %v4010, 72
    %v5390 = vpop.permute.xlu0 %5389
    %5391 = vrot.lane.b32.xlu0 %v4008, 8
    %v5392 = vpop.permute.xlu0 %5391
    %5393 = vrot.lane.b32.xlu0 %v4010, 8
    %v5394 = vpop.permute.xlu0 %5393
    %v5395 = vsel %vm1972, %v5388, 0
    %v5397 = vsel %vm1972, %v5390, 0
    %v5399 = vsel %vm1972, %v5392, 0
    %v5401 = vsel %vm1972, %v5394, 0
    %5403 = vmatprep.subr.mxu0 0.0
    %5404 = vmatpush1.xpose.msra.mxu0 %v5399
    %5405 = vmatprep.subr.mxu0 0.0
    %5406 = vmatpush1.xpose.msra.mxu0 %v5401
    %5407 = vmatprep.subr.mxu0 0.0
    %5408 = vmatpush1.xpose.msra.mxu0 0.0
    %5409 = vmatprep.subr.mxu0 0.0
    %5410 = vmatpush1.xpose.msra.mxu0 0.0
    %5411 = vmatprep.subr.mxu0 0.0
    %5412 = vmatpush1.xpose.msra.mxu0 0.0
    %5413 = vmatprep.subr.mxu0 0.0
    %5414 = vmatpush1.xpose.msra.mxu0 0.0
    %5415 = vmatprep.subr.mxu0 0.0
    %5416 = vmatpush1.xpose.msra.mxu0 0.0
    %5417 = vmatprep.subr.mxu0 0.0
    %5418 = vmatpush1.xpose.msra.mxu0 0.0
    %5419 = vmatprep.subr.mxu0 0.0
    %5420 = vmatpush1.xpose.msra.mxu0 0.0
    %5421 = vmatprep.subr.mxu0 0.0
    %5422 = vmatpush1.xpose.msra.mxu0 0.0
    %5423 = vmatprep.subr.mxu0 0.0
    %5424 = vmatpush1.xpose.msra.mxu0 0.0
    %5425 = vmatprep.subr.mxu0 0.0
    %5426 = vmatpush1.xpose.msra.mxu0 0.0
    %5427 = vmatprep.subr.mxu0 0.0
    %5428 = vmatpush1.xpose.msra.mxu0 0.0
    %5429 = vmatprep.subr.mxu0 0.0
    %5430 = vmatpush1.xpose.msra.mxu0 0.0
    %5431 = vmatprep.subr.mxu0 0.0
    %5432 = vmatpush1.xpose.msra.mxu0 0.0
    %5433 = vmatprep.subr.mxu0 0.0
    %5434 = vmatpush1.xpose.msra.mxu0 0.0
    %5435 = vmatprep.subr.mxu0 0.0
    %5436 = vmatpush1.xpose.msra.mxu0 0.0
    %5437 = vmatprep.subr.mxu0 0.0
    %5438 = vmatpush1.xpose.msra.mxu0 0.0
    %5439 = vmatprep.subr.mxu0 0.0
    %5440 = vmatpush1.xpose.msra.mxu0 0.0
    %5441 = vmatprep.subr.mxu0 0.0
    %5442 = vmatpush1.xpose.msra.mxu0 0.0
    %5443 = vmatprep.subr.mxu0 0.0
    %5444 = vmatpush1.xpose.msra.mxu0 0.0
    %5445 = vmatprep.subr.mxu0 0.0
    %5446 = vmatpush1.xpose.msra.mxu0 0.0
    %5447 = vmatprep.subr.mxu0 0.0
    %5448 = vmatpush1.xpose.msra.mxu0 0.0
    %5449 = vmatprep.subr.mxu0 0.0
    %5450 = vmatpush1.xpose.msra.mxu0 0.0
    %5451 = vmatprep.subr.mxu0 0.0
    %5452 = vmatpush1.xpose.msra.mxu0 0.0
    %5453 = vmatprep.subr.mxu0 0.0
    %5454 = vmatpush1.xpose.msra.mxu0 0.0
    %5455 = vmatprep.subr.mxu0 0.0
    %5456 = vmatpush1.xpose.msra.mxu0 0.0
    %5457 = vmatprep.subr.mxu0 0.0
    %5458 = vmatpush1.xpose.msra.mxu0 0.0
    %5459 = vmatprep.subr.mxu0 0.0
    %5460 = vmatpush1.xpose.msra.mxu0 0.0
    %5461 = vmatprep.subr.mxu0 0.0
    %5462 = vmatpush1.xpose.msra.mxu0 0.0
    %5463 = vmatprep.subr.mxu0 0.0
    %5464 = vmatpush1.xpose.msra.mxu0 0.0
    %5465 = vmatprep.subr.mxu0 0.0
    %5466 = vmatpush1.xpose.msra.mxu0 0.0
    %5467 = vmatprep.mubr.f32.mxu0 0.0
    %5468 = vmatmul.mubr.f32.gmra.mrb[0].mxu0 %v5395
    %v5469 = vpop.f32.mrb[0].mxu0
    %v5470 = vadd.f32 0.0, %v5469
    %v5471 = vpop.f32.mrb[0].mxu0
    %5472 = vmatprep.mubr.f32.mxu0 0.0
    %5473 = vmatmul.mubr.f32.gmra.mrb[0].mxu0 %v5397
    %v5474 = vpop.f32.mrb[0].mxu0
    %v5475 = vadd.f32 0.0, %v5474
    %v5476 = vpop.f32.mrb[0].mxu0
    %5477 = vdwg.mxu0
    %v5478 = vmul.f32 %v5470, 0.35355338
    %v5479 = vmul.f32 %v5475, 0.35355338
    %v5480 = vmul.f32 %v5478, 1.442695
    %v5481 = vpow.pop %v5480
    %v5482 = vmul.f32 %v5479, 1.442695
    %v5483 = vpow.pop %v5482
    %v5484 = vmul.f32 %v5481, %v35
    %v5485 = vmul.f32 %v5483, %v36
    %v5486 = vsel %vm44, %v5484, 0.0
    %5487 = vadd.xlane.f32.xlu0 %v5486
    %v5488 = vpop.xlane.xlu0 %5487
    %v5489 = vsel %vm44, %v5485, 0.0
    %5490 = vadd.xlane.f32.xlu0 %v5489
    %v5491 = vpop.xlane.xlu0 %5490
    %5492 = vrot.lane.b32.xlu0 %v4009, 72
    %v5493 = vpop.permute.xlu0 %5492
    %5494 = vrot.lane.b32.xlu0 %v4011, 72
    %v5495 = vpop.permute.xlu0 %5494
    %v5499 = vsel %vm44, %v5484, 0
    %v5502 = vsel %vm44, %v5485, 0
    %5504 = vmatprep.subr.mxu0 0.0
    %5505 = vmatpush1.msra.mxu0 %v5493
    %5506 = vmatprep.subr.mxu0 0.0
    %5507 = vmatpush1.msra.mxu0 %v5495
    %5508 = vmatprep.subr.mxu0 0.0
    %5509 = vmatpush1.msra.mxu0 0.0
    %5510 = vmatprep.subr.mxu0 0.0
    %5511 = vmatpush1.msra.mxu0 0.0
    %5512 = vmatprep.subr.mxu0 0.0
    %5513 = vmatpush1.msra.mxu0 0.0
    %5514 = vmatprep.subr.mxu0 0.0
    %5515 = vmatpush1.msra.mxu0 0.0
    %5516 = vmatprep.subr.mxu0 0.0
    %5517 = vmatpush1.msra.mxu0 0.0
    %5518 = vmatprep.subr.mxu0 0.0
    %5519 = vmatpush1.msra.mxu0 0.0
    %5520 = vmatprep.subr.mxu0 0.0
    %5521 = vmatpush1.msra.mxu0 0.0
    %5522 = vmatprep.subr.mxu0 0.0
    %5523 = vmatpush1.msra.mxu0 0.0
    %5524 = vmatprep.subr.mxu0 0.0
    %5525 = vmatpush1.msra.mxu0 0.0
    %5526 = vmatprep.subr.mxu0 0.0
    %5527 = vmatpush1.msra.mxu0 0.0
    %5528 = vmatprep.subr.mxu0 0.0
    %5529 = vmatpush1.msra.mxu0 0.0
    %5530 = vmatprep.subr.mxu0 0.0
    %5531 = vmatpush1.msra.mxu0 0.0
    %5532 = vmatprep.subr.mxu0 0.0
    %5533 = vmatpush1.msra.mxu0 0.0
    %5534 = vmatprep.subr.mxu0 0.0
    %5535 = vmatpush1.msra.mxu0 0.0
    %5536 = vmatprep.subr.mxu0 0.0
    %5537 = vmatpush1.msra.mxu0 0.0
    %5538 = vmatprep.subr.mxu0 0.0
    %5539 = vmatpush1.msra.mxu0 0.0
    %5540 = vmatprep.subr.mxu0 0.0
    %5541 = vmatpush1.msra.mxu0 0.0
    %5542 = vmatprep.subr.mxu0 0.0
    %5543 = vmatpush1.msra.mxu0 0.0
    %5544 = vmatprep.subr.mxu0 0.0
    %5545 = vmatpush1.msra.mxu0 0.0
    %5546 = vmatprep.subr.mxu0 0.0
    %5547 = vmatpush1.msra.mxu0 0.0
    %5548 = vmatprep.subr.mxu0 0.0
    %5549 = vmatpush1.msra.mxu0 0.0
    %5550 = vmatprep.subr.mxu0 0.0
    %5551 = vmatpush1.msra.mxu0 0.0
    %5552 = vmatprep.subr.mxu0 0.0
    %5553 = vmatpush1.msra.mxu0 0.0
    %5554 = vmatprep.subr.mxu0 0.0
    %5555 = vmatpush1.msra.mxu0 0.0
    %5556 = vmatprep.subr.mxu0 0.0
    %5557 = vmatpush1.msra.mxu0 0.0
    %5558 = vmatprep.subr.mxu0 0.0
    %5559 = vmatpush1.msra.mxu0 0.0
    %5560 = vmatprep.subr.mxu0 0.0
    %5561 = vmatpush1.msra.mxu0 0.0
    %5562 = vmatprep.subr.mxu0 0.0
    %5563 = vmatpush1.msra.mxu0 0.0
    %5564 = vmatprep.subr.mxu0 0.0
    %5565 = vmatpush1.msra.mxu0 0.0
    %5566 = vmatprep.subr.mxu0 0.0
    %5567 = vmatpush1.msra.mxu0 0.0
    %5568 = vmatprep.mubr.f32.mxu0 0.0
    %5569 = vmatmul.mubr.f32.gmra.mrb[0].mxu0 %v5499
    %v5570 = vpop.f32.mrb[0].mxu0
    %v5571 = vadd.f32 0.0, %v5570
    %v5572 = vpop.f32.mrb[0].mxu0
    %5573 = vmatprep.mubr.f32.mxu0 0.0
    %5574 = vmatmul.mubr.f32.gmra.mrb[0].mxu0 %v5502
    %v5575 = vpop.f32.mrb[0].mxu0
    %v5576 = vadd.f32 0.0, %v5575
    %v5577 = vpop.f32.mrb[0].mxu0
    %5578 = vdwg.mxu0
    %v5579 = vrcp.pop %v5488
    %v5580 = vmul.f32 %v5571, %v5579
    %v5581 = vrcp.pop %v5491
    %v5582 = vmul.f32 %v5576, %v5581
    %5585 = vrot.lane.b32.xlu0 %v4404, 8
    %v5586 = vpop.permute.xlu0 %5585
    %5587 = vrot.lane.b32.xlu0 %v4406, 8
    %v5588 = vpop.permute.xlu0 %5587
    %5593 = vrot.lane.b32.xlu0 %v4600, 16
    %v5594 = vpop.permute.xlu0 %5593
    %5595 = vrot.lane.b32.xlu0 %v4602, 16
    %v5596 = vpop.permute.xlu0 %5595
    %5601 = vrot.lane.b32.xlu0 %v4796, 24
    %v5602 = vpop.permute.xlu0 %5601
    %5603 = vrot.lane.b32.xlu0 %v4798, 24
    %v5604 = vpop.permute.xlu0 %5603
    %5609 = vrot.lane.b32.xlu0 %v4992, 32
    %v5610 = vpop.permute.xlu0 %5609
    %5611 = vrot.lane.b32.xlu0 %v4994, 32
    %v5612 = vpop.permute.xlu0 %5611
    %5617 = vrot.lane.b32.xlu0 %v5188, 40
    %v5618 = vpop.permute.xlu0 %5617
    %5619 = vrot.lane.b32.xlu0 %v5190, 40
    %v5620 = vpop.permute.xlu0 %5619
    %5625 = vrot.lane.b32.xlu0 %v5384, 48
    %v5626 = vpop.permute.xlu0 %5625
    %5627 = vrot.lane.b32.xlu0 %v5386, 48
    %v5628 = vpop.permute.xlu0 %5627
    %5633 = vrot.lane.b32.xlu0 %v5580, 56
    %v5634 = vpop.permute.xlu0 %5633
    %5635 = vrot.lane.b32.xlu0 %v5582, 56
    %v5636 = vpop.permute.xlu0 %5635
    %v5639 = vsel %vm1972, %v4206, %v5586
    %v5640 = vsel %vm1972, %v4208, %v5588
    %v5641 = vsel %vm44, %v5639, %v5594
    %v5642 = vsel %vm44, %v5640, %v5596
    %v5643 = vsel %vm1983, %v5641, %v5602
    %v5644 = vsel %vm1983, %v5642, %v5604
    %v5645 = vsel %vm131, %v5643, %v5610
    %v5646 = vsel %vm131, %v5644, %v5612
    %vm5647 = vcmask 326656
    %v5648 = vsel %vm5647, %v5645, %v5618
    %v5649 = vsel %vm5647, %v5646, %v5620
    %vm5650 = vcmask 392192
    %v5651 = vsel %vm5650, %v5648, %v5626
    %v5652 = vsel %vm5650, %v5649, %v5628
    %vm5653 = vcmask 457728
    %v5654 = vsel %vm5653, %v5651, %v5634
    %v5655 = vsel %vm5653, %v5652, %v5636
    %v5656 = vlaneseq
    %v5657 = vshrl.u32 %v5656, 7
    %v5658 = vsub.s32 0, %v5657
    %v5659 = vrot.slane %v4020, %v5658
    %vm5660 = vcmask 523264
    %v5662 = vsel %vm5660, %v5654, 0
    %v5665 = vsel %vm5660, %v5655, 0
    %5667 = vmatprep.subr.mxu0 0.0
    %5668 = vmatpush1.msra.mxu0 %v4012
    %5669 = vmatprep.subr.mxu0 0.0
    %5670 = vmatpush1.msra.mxu0 %v4013
    %5671 = vmatprep.subr.mxu0 0.0
    %5672 = vmatpush1.msra.mxu0 %v4014
    %5673 = vmatprep.subr.mxu0 0.0
    %5674 = vmatpush1.msra.mxu0 %v4015
    %5675 = vmatprep.subr.mxu0 0.0
    %5676 = vmatpush1.msra.mxu0 %v4016
    %5677 = vmatprep.subr.mxu0 0.0
    %5678 = vmatpush1.msra.mxu0 %v4017
    %5679 = vmatprep.subr.mxu0 0.0
    %5680 = vmatpush1.msra.mxu0 %v4018
    %5681 = vmatprep.subr.mxu0 0.0
    %5682 = vmatpush1.msra.mxu0 %v4019
    %5683 = vmatprep.subr.mxu0 0.0
    %5684 = vmatpush1.msra.mxu0 0.0
    %5685 = vmatprep.subr.mxu0 0.0
    %5686 = vmatpush1.msra.mxu0 0.0
    %5687 = vmatprep.subr.mxu0 0.0
    %5688 = vmatpush1.msra.mxu0 0.0
    %5689 = vmatprep.subr.mxu0 0.0
    %5690 = vmatpush1.msra.mxu0 0.0
    %5691 = vmatprep.subr.mxu0 0.0
    %5692 = vmatpush1.msra.mxu0 0.0
    %5693 = vmatprep.subr.mxu0 0.0
    %5694 = vmatpush1.msra.mxu0 0.0
    %5695 = vmatprep.subr.mxu0 0.0
    %5696 = vmatpush1.msra.mxu0 0.0
    %5697 = vmatprep.subr.mxu0 0.0
    %5698 = vmatpush1.msra.mxu0 0.0
    %5699 = vmatprep.subr.mxu0 0.0
    %5700 = vmatpush1.msra.mxu0 0.0
    %5701 = vmatprep.subr.mxu0 0.0
    %5702 = vmatpush1.msra.mxu0 0.0
    %5703 = vmatprep.subr.mxu0 0.0
    %5704 = vmatpush1.msra.mxu0 0.0
    %5705 = vmatprep.subr.mxu0 0.0
    %5706 = vmatpush1.msra.mxu0 0.0
    %5707 = vmatprep.subr.mxu0 0.0
    %5708 = vmatpush1.msra.mxu0 0.0
    %5709 = vmatprep.subr.mxu0 0.0
    %5710 = vmatpush1.msra.mxu0 0.0
    %5711 = vmatprep.subr.mxu0 0.0
    %5712 = vmatpush1.msra.mxu0 0.0
    %5713 = vmatprep.subr.mxu0 0.0
    %5714 = vmatpush1.msra.mxu0 0.0
    %5715 = vmatprep.subr.mxu0 0.0
    %5716 = vmatpush1.msra.mxu0 0.0
    %5717 = vmatprep.subr.mxu0 0.0
    %5718 = vmatpush1.msra.mxu0 0.0
    %5719 = vmatprep.subr.mxu0 0.0
    %5720 = vmatpush1.msra.mxu0 0.0
    %5721 = vmatprep.subr.mxu0 0.0
    %5722 = vmatpush1.msra.mxu0 0.0
    %5723 = vmatprep.subr.mxu0 0.0
    %5724 = vmatpush1.msra.mxu0 0.0
    %5725 = vmatprep.subr.mxu0 0.0
    %5726 = vmatpush1.msra.mxu0 0.0
    %5727 = vmatprep.subr.mxu0 0.0
    %5728 = vmatpush1.msra.mxu0 0.0
    %5729 = vmatprep.subr.mxu0 0.0
    %5730 = vmatpush1.msra.mxu0 0.0
    %5731 = vmatprep.mubr.f32.mxu0 0.0
    %5732 = vmatmul.mubr.f32.gmra.mrb[0].mxu0 %v5662
    %v5733 = vpop.f32.mrb[0].mxu0
    %v5734 = vadd.f32 %v5659, %v5733
    %v5735 = vpop.f32.mrb[0].mxu0
    %5736 = vmatprep.mubr.f32.mxu0 0.0
    %5737 = vmatmul.mubr.f32.gmra.mrb[0].mxu0 %v5665
    %v5738 = vpop.f32.mrb[0].mxu0
    %v5739 = vadd.f32 %v5659, %v5738
    %v5740 = vpop.f32.mrb[0].mxu0
    %5741 = vdwg.mxu0
    %v5742 = vld [vmem:[%s3 + $0x40] sm:$0xff]
    %v5743 = vld [vmem:[%s3 + $0x48] sm:$0xff]
    %v5744 = vld [vmem:[%s3 + $0x50] sm:$0xff]
    %v5745 = vld [vmem:[%s3 + $0x58] sm:$0xff]
    %v5746 = vld [vmem:[%s3 + $0x60] sm:$0xff]
    %v5747 = vld [vmem:[%s3 + $0x68] sm:$0xff]
    %v5748 = vld [vmem:[%s3 + $0x70] sm:$0xff]
    %v5749 = vld [vmem:[%s3 + $0x78] sm:$0xff]
    %v5750 = vld [vmem:[%s3 + $0xb3] sm:$0x1]
    %v5751 = vlaneseq
    %v5752 = vshrl.u32 %v5751, 7
    %v5753 = vsub.s32 0, %v5752
    %v5754 = vrot.slane %v5750, %v5753
    %v5756 = vsel %vm5660, %v5734, 0
    %v5759 = vsel %vm5660, %v5739, 0
    %5761 = vmatprep.subr.mxu0 0.0
    %5762 = vmatpush1.msra.mxu0 %v5742
    %5763 = vmatprep.subr.mxu0 0.0
    %5764 = vmatpush1.msra.mxu0 %v5743
    %5765 = vmatprep.subr.mxu0 0.0
    %5766 = vmatpush1.msra.mxu0 %v5744
    %5767 = vmatprep.subr.mxu0 0.0
    %5768 = vmatpush1.msra.mxu0 %v5745
    %5769 = vmatprep.subr.mxu0 0.0
    %5770 = vmatpush1.msra.mxu0 %v5746
    %5771 = vmatprep.subr.mxu0 0.0
    %5772 = vmatpush1.msra.mxu0 %v5747
    %5773 = vmatprep.subr.mxu0 0.0
    %5774 = vmatpush1.msra.mxu0 %v5748
    %5775 = vmatprep.subr.mxu0 0.0
    %5776 = vmatpush1.msra.mxu0 %v5749
    %5777 = vmatprep.subr.mxu0 0.0
    %5778 = vmatpush1.msra.mxu0 0.0
    %5779 = vmatprep.subr.mxu0 0.0
    %5780 = vmatpush1.msra.mxu0 0.0
    %5781 = vmatprep.subr.mxu0 0.0
    %5782 = vmatpush1.msra.mxu0 0.0
    %5783 = vmatprep.subr.mxu0 0.0
    %5784 = vmatpush1.msra.mxu0 0.0
    %5785 = vmatprep.subr.mxu0 0.0
    %5786 = vmatpush1.msra.mxu0 0.0
    %5787 = vmatprep.subr.mxu0 0.0
    %5788 = vmatpush1.msra.mxu0 0.0
    %5789 = vmatprep.subr.mxu0 0.0
    %5790 = vmatpush1.msra.mxu0 0.0
    %5791 = vmatprep.subr.mxu0 0.0
    %5792 = vmatpush1.msra.mxu0 0.0
    %5793 = vmatprep.subr.mxu0 0.0
    %5794 = vmatpush1.msra.mxu0 0.0
    %5795 = vmatprep.subr.mxu0 0.0
    %5796 = vmatpush1.msra.mxu0 0.0
    %5797 = vmatprep.subr.mxu0 0.0
    %5798 = vmatpush1.msra.mxu0 0.0
    %5799 = vmatprep.subr.mxu0 0.0
    %5800 = vmatpush1.msra.mxu0 0.0
    %5801 = vmatprep.subr.mxu0 0.0
    %5802 = vmatpush1.msra.mxu0 0.0
    %5803 = vmatprep.subr.mxu0 0.0
    %5804 = vmatpush1.msra.mxu0 0.0
    %5805 = vmatprep.subr.mxu0 0.0
    %5806 = vmatpush1.msra.mxu0 0.0
    %5807 = vmatprep.subr.mxu0 0.0
    %5808 = vmatpush1.msra.mxu0 0.0
    %5809 = vmatprep.subr.mxu0 0.0
    %5810 = vmatpush1.msra.mxu0 0.0
    %5811 = vmatprep.subr.mxu0 0.0
    %5812 = vmatpush1.msra.mxu0 0.0
    %5813 = vmatprep.subr.mxu0 0.0
    %5814 = vmatpush1.msra.mxu0 0.0
    %5815 = vmatprep.subr.mxu0 0.0
    %5816 = vmatpush1.msra.mxu0 0.0
    %5817 = vmatprep.subr.mxu0 0.0
    %5818 = vmatpush1.msra.mxu0 0.0
    %5819 = vmatprep.subr.mxu0 0.0
    %5820 = vmatpush1.msra.mxu0 0.0
    %5821 = vmatprep.subr.mxu0 0.0
    %5822 = vmatpush1.msra.mxu0 0.0
    %5823 = vmatprep.subr.mxu0 0.0
    %5824 = vmatpush1.msra.mxu0 0.0
    %5825 = vmatprep.mubr.f32.mxu0 0.0
    %5826 = vmatmul.mubr.f32.gmra.mrb[0].mxu0 %v5756
    %v5827 = vpop.f32.mrb[0].mxu0
    %v5828 = vadd.f32 %v5754, %v5827
    %v5829 = vpop.f32.mrb[0].mxu0
    %5830 = vmatprep.mubr.f32.mxu0 0.0
    %5831 = vmatmul.mubr.f32.gmra.mrb[0].mxu0 %v5759
    %v5832 = vpop.f32.mrb[0].mxu0
    %v5833 = vadd.f32 %v5754, %v5832
    %v5834 = vpop.f32.mrb[0].mxu0
    %5835 = vdwg.mxu0
    %v5836 = vsel %vm5650, %v5828, 0.0
    %5837 = vadd.xlane.f32.xlu0 %v5836
    %v5838 = vpop.xlane.xlu0 %5837
    %v5839 = vsel %vm5650, %v5833, 0.0
    %5840 = vadd.xlane.f32.xlu0 %v5839
    %v5841 = vpop.xlane.xlu0 %5840
    %v5842 = vrcp.pop 48.0
    %v5843 = vmul.f32 %v5838, %v5842
    %v5844 = vmul.f32 %v5841, %v5842
    %v5845 = vsub.f32 %v5828, %v5843
    %v5846 = vsub.f32 %v5833, %v5844
    %v5847 = vmul.f32 %v5845, %v5845
    %v5848 = vmul.f32 %v5846, %v5846
    %v5849 = vsel %vm5650, %v5847, 0.0
    %5850 = vadd.xlane.f32.xlu0 %v5849
    %v5851 = vpop.xlane.xlu0 %5850
    %v5852 = vsel %vm5650, %v5848, 0.0
    %5853 = vadd.xlane.f32.xlu0 %v5852
    %v5854 = vpop.xlane.xlu0 %5853
    %v5855 = vmul.f32 %v5851, %v5842
    %v5856 = vmul.f32 %v5854, %v5842
    %v5857 = vadd.f32 %v5855, 1e-05
    %v5858 = vadd.f32 %v5856, 1e-05
    %v5859 = vrsqrt.pop %v5857
    %v5860 = vrsqrt.pop %v5858
    %v5861 = vmul.f32 %v5845, %v5859
    %v5862 = vmul.f32 %v5846, %v5860
    %v5863 = vld [vmem:[%s3 + $0xb4] sm:$0x1]
    %v5864 = vlaneseq
    %v5865 = vshrl.u32 %v5864, 7
    %v5866 = vsub.s32 0, %v5865
    %v5867 = vrot.slane %v5863, %v5866
    %v5868 = vmul.f32 %v5861, %v5867
    %v5869 = vmul.f32 %v5862, %v5867
    %v5870 = vld [vmem:[%s3 + $0xb5] sm:$0x1]
    %v5871 = vlaneseq
    %v5872 = vshrl.u32 %v5871, 7
    %v5873 = vsub.s32 0, %v5872
    %v5874 = vrot.slane %v5870, %v5873
    %v5875 = vadd.f32 %v5868, %v5874
    %v5876 = vadd.f32 %v5869, %v5874
    %5877 = vst.msk [vmem:[#allocation2] sm:$0xff] %vm5650, %v5875
    %5878 = vst.msk [vmem:[#allocation2 + $0x8] sm:$0xff] %vm5650, %v5876
    // Predicated region
    $region18: #{tpu_custom_call.1} parent=1 // pred_check
      _
    $region19: #{tpu_custom_call.1} parent=1 // pred_check_branch
      %5880 = sbr.rel (0) target = $region21
    $region20: #{tpu_custom_call.1} parent=1 // pred_region
      %s5882 = ssub.s32 256, 256
      %5883 = vsyncadd [#allocation3], %s5882
      %s5884 = sshll.u32 [#allocation2], 4
      %s5885 = int_to_ptr.vmem [resolvable:$true] %s5884
      %5890 = dma.vmem_to_hbm [thread:$0]  %s5885, 256, %s4, [#allocation3], 128, 128, 8
    $region21: #{tpu_custom_call.1} parent=1 // pred_fallthru
      _
    // Predicated region
    $region22: #{tpu_custom_call.1} parent=1 // pred_check
      _
    $region23: #{tpu_custom_call.1} parent=1 // pred_check_branch
      %5892 = sbr.rel (0) target = $region25
    $region24: #{tpu_custom_call.1} parent=1 // pred_region
      %5893 = dma.done [#allocation3], 256
    $region25: #{tpu_custom_call.1} parent=1 // pred_fallthru
      _
    %5894 = vsyncpa [#allocation3], 1

</llo_original>
